<compile_context>
chip_gen: v7x
topology: tpu7x:2x2x1
jax: 0.10.0
libtpu: 0.0.40
codegen_flags: <defaults>
</compile_context>

<pallas_src>
import jax
import jax.numpy as jnp
from jax import lax
from jax.experimental import pallas as pl
from jax.experimental.pallas import tpu as pltpu

HID = 256       # LSTM hidden size per direction
FEAT = 512      # resnet3d feature width (== LSTM input size, == 2*HID concat)
FC2 = 32        # fc2 logical output width
FC2_PAD = 128   # fc2 padded to a full lane width (zero pads -> identical numerics)
OUT_PAD = 128   # fc3 output (2) padded to 128 lanes for a lane-dense store


def _make_kernel(B, T):
    G = 4 * HID

    def net_kernel(x_ref, wih_ref, bih_ref,
                   whh_f_hbm, whh_b_hbm, w2f_hbm, w2b_hbm, b2_ref, w3_hbm, b3_ref,
                   o_ref,
                   gx, ro_f, ro_b,
                   whh_f_v, whh_b_v, w2f_v, w2b_v, w3_v, dsem):
        """Full post-backbone forward for B clips of length T (eval mode)."""
        # Kick off DMAs for the late-use weights so their HBM fetch overlaps the
        # big input-to-gate projection below (only x/wih are needed for it).
        cp_whf = pltpu.make_async_copy(whh_f_hbm, whh_f_v, dsem.at[0]); cp_whf.start()
        cp_whb = pltpu.make_async_copy(whh_b_hbm, whh_b_v, dsem.at[1]); cp_whb.start()
        cp_w2f = pltpu.make_async_copy(w2f_hbm, w2f_v, dsem.at[2]); cp_w2f.start()
        cp_w2b = pltpu.make_async_copy(w2b_hbm, w2b_v, dsem.at[3]); cp_w2b.start()
        cp_w3 = pltpu.make_async_copy(w3_hbm, w3_v, dsem.at[4]); cp_w3.start()

        # F.relu on the resnet3d features; bf16 only at the MXU boundary.
        xin = jnp.maximum(x_ref[...], 0.0).astype(jnp.bfloat16)

        # Fused input-to-gate projection for BOTH directions, ALL clips, ALL steps:
        # one (T*B,512)@(512,2048) bf16 matmul, f32 accumulation, (b_ih + b_hh)
        # per direction folded in.
        gx[...] = jnp.dot(xin, wih_ref[...],
                          preferred_element_type=jnp.float32) + bih_ref[...]

        # Recurrent weights must be resident before the first time step.
        cp_whf.wait(); cp_whb.wait()
        whh_f = whh_f_v[...]
        whh_b = whh_b_v[...]

        # Merged forward/backward recurrence: the two directions are independent,
        # so advancing both in the same iteration overlaps their MXU matmuls, and
        # stacking their gates into one (2B, 4*HID) tile halves EUP/VPU work.
        def step(i, carry):
            hf, hb, c = carry               # hf,hb: (B,HID) f32; c: (2B,HID) f32 [fwd;bwd]
            tf = i
            tb = T - 1 - i
            gf = gx[pl.ds(tf * B, B), pl.ds(0, G)] + jnp.dot(
                hf.astype(jnp.bfloat16), whh_f, preferred_element_type=jnp.float32)
            gb = gx[pl.ds(tb * B, B), pl.ds(G, G)] + jnp.dot(
                hb.astype(jnp.bfloat16), whh_b, preferred_element_type=jnp.float32)
            g = jnp.concatenate([gf, gb], axis=0)      # (2B, 4*HID) shared vregs
            # PyTorch gate order: i, f, g, o. Gate math stays f32 (VPU/EUP).
            i_g = jax.nn.sigmoid(g[:, 0 * HID:1 * HID])
            f_g = jax.nn.sigmoid(g[:, 1 * HID:2 * HID])
            g_g = jnp.tanh(g[:, 2 * HID:3 * HID])
            o_g = jax.nn.sigmoid(g[:, 3 * HID:4 * HID])
            c_new = f_g * c + i_g * g_g
            h_new = o_g * jnp.tanh(c_new)
            h_bf = h_new.astype(jnp.bfloat16)          # fc2 consumes bf16 anyway
            ro_f[pl.ds(tf * B, B), :] = h_bf[:B]
            ro_b[pl.ds(tb * B, B), :] = h_bf[B:]
            return (h_new[:B], h_new[B:], c_new)

        zero1 = jnp.zeros((B, HID), jnp.float32)       # default zero initial state
        zero2 = jnp.zeros((2 * B, HID), jnp.float32)
        lax.fori_loop(0, T, step, (zero1, zero1, zero2),
                      unroll=True if T <= 16 else 4)

        # rnn_output -> (T*B, 512); dropout in eval mode is identity.
        # fc2 as a split-sum over the direction halves (sum precedes the ReLU, so
        # this is mathematically identical to concat(ro_f, ro_b) @ w2).
        cp_w2f.wait(); cp_w2b.wait(); cp_w3.wait()
        h2 = jnp.maximum(
            jnp.dot(ro_f[...], w2f_v[...], preferred_element_type=jnp.float32)
            + jnp.dot(ro_b[...], w2b_v[...], preferred_element_type=jnp.float32)
            + b2_ref[...],
            0.0)
        o_ref[...] = jnp.dot(h2.astype(jnp.bfloat16), w3_v[...],
                             preferred_element_type=jnp.float32) + b3_ref[...]

    return net_kernel


def _full_spec(shape):
    n = len(shape)
    return pl.BlockSpec(shape, lambda i: (0,) * n)


def net_forward(feats, params):
    """feats: (B, T, FEAT) resnet3d features. Returns (B*T, 2) logits.

    Per-clip math is identical to the module's eval path (dropout == identity);
    batching just amortizes the weights across B clips in one pallas_call.
    """
    B, T, _ = feats.shape
    # Time-major layout so the per-step recurrence slices (B, ...) contiguous rows.
    x_tm = jnp.transpose(feats, (1, 0, 2)).reshape(T * B, FEAT)

    ins = [
        x_tm,
        params["wih"], params["b_ih"],
        params["whh_f"], params["whh_b"],
        params["w2f"], params["w2b"], params["b2"],
        params["w3"], params["b3"],
    ]
    any_spec = pl.BlockSpec(memory_space=pl.ANY)
    in_specs = [
        _full_spec(x_tm.shape),
        _full_spec(params["wih"].shape),
        _full_spec(params["b_ih"].shape),
        any_spec,                        # whh_f  (DMA'd in-kernel, overlapped)
        any_spec,                        # whh_b
        any_spec,                        # w2f
        any_spec,                        # w2b
        _full_spec(params["b2"].shape),
        any_spec,                        # w3
        _full_spec(params["b3"].shape),
    ]

    out = pl.pallas_call(
        _make_kernel(B, T),
        out_shape=jax.ShapeDtypeStruct((T * B, OUT_PAD), jnp.float32),
        grid=(1,),
        in_specs=in_specs,
        out_specs=_full_spec((T * B, OUT_PAD)),
        scratch_shapes=[
            pltpu.VMEM((T * B, 8 * HID), jnp.float32),     # fused fwd|bwd input-gate proj
            pltpu.VMEM((T * B, HID), jnp.bfloat16),        # forward-direction LSTM outputs
            pltpu.VMEM((T * B, HID), jnp.bfloat16),        # backward-direction LSTM outputs
            pltpu.VMEM((HID, 4 * HID), jnp.bfloat16),      # whh_f resident copy
            pltpu.VMEM((HID, 4 * HID), jnp.bfloat16),      # whh_b resident copy
            pltpu.VMEM((HID, FC2_PAD), jnp.bfloat16),      # w2f resident copy
            pltpu.VMEM((HID, FC2_PAD), jnp.bfloat16),      # w2b resident copy
            pltpu.VMEM((FC2_PAD, OUT_PAD), jnp.bfloat16),  # w3 resident copy
            pltpu.SemaphoreType.DMA((5,)),
        ],
        compiler_params=pltpu.CompilerParams(
            dimension_semantics=("arbitrary",),
            vmem_limit_bytes=32 << 20),
    )(*ins)

    # fc3 was padded 2 -> OUT_PAD lanes inside the kernel; undo the time-major
    # layout, slice the 2 real logits, and apply the module's .reshape(-1, 2).
    out = out.reshape(T, B, OUT_PAD)[:, :, :2]
    return jnp.transpose(out, (1, 0, 2)).reshape(B * T, 2)


def init_params(key):
    ks = jax.random.split(key, 12)

    def u(k, shape, fan_in):
        bound = 1.0 / float(fan_in) ** 0.5
        return jax.random.uniform(k, shape, jnp.float32, -bound, bound)

    # LSTM weights stored transposed: (in, 4*HID) so the kernel does x @ W.
    wih_f = u(ks[0], (FEAT, 4 * HID), HID)
    whh_f = u(ks[1], (HID, 4 * HID), HID)
    b_f = u(ks[2], (1, 4 * HID), HID) + u(ks[3], (1, 4 * HID), HID)   # b_ih + b_hh
    wih_b = u(ks[4], (FEAT, 4 * HID), HID)
    whh_b = u(ks[5], (HID, 4 * HID), HID)
    b_b = u(ks[6], (1, 4 * HID), HID) + u(ks[7], (1, 4 * HID), HID)

    w2 = u(ks[8], (FEAT, FC2), FEAT)
    b2 = u(ks[9], (1, FC2), FEAT)
    w3 = u(ks[10], (FC2, 2), FC2)
    b3 = u(ks[11], (1, 2), FC2)

    bf16 = jnp.bfloat16
    # fc2 padded 32->128 with zero columns; fc3 padded with zero rows/cols so the
    # padded lanes contribute exactly zero (ReLU(0)=0) and the host slices [:, :2].
    w2_pad = jnp.pad(w2, ((0, 0), (0, FC2_PAD - FC2)))

    return {
        # Weights in bf16 (halved HBM traffic, MXU-native); biases stay f32.
        "wih":   jnp.concatenate([wih_f, wih_b], axis=1).astype(bf16),  # (FEAT, 8*HID)
        "b_ih":  jnp.concatenate([b_f, b_b], axis=1),                   # (1, 8*HID) f32
        "whh_f": whh_f.astype(bf16),
        "whh_b": whh_b.astype(bf16),
        "w2f":   w2_pad[:HID].astype(bf16),       # rows multiplying forward hidden
        "w2b":   w2_pad[HID:].astype(bf16),       # rows multiplying backward hidden
        "b2":    jnp.pad(b2, ((0, 0), (0, FC2_PAD - FC2))),
        "w3":    jnp.pad(w3, ((0, FC2_PAD - FC2), (0, OUT_PAD - 2))).astype(bf16),
        "b3":    jnp.pad(b3, ((0, 0), (0, OUT_PAD - 2))),
    }


if __name__ == "__main__":
    key = jax.random.PRNGKey(0)
    k_in, k_par = jax.random.split(key)

    B = 2   # clips batched per pallas_call (per-clip math == the eval-mode module)
    T = 8   # sequence length produced by the 3D backbone (small test size)
    feats = jax.random.normal(k_in, (B, T, FEAT), jnp.float32)  # resnet3d output features
    params = init_params(k_par)

    out = net_forward(feats, params)
    out = jax.block_until_ready(out)
    assert out.shape == (B * T, 2), out.shape
    assert out.dtype == jnp.float32
    print("KERNEL_OK")
</pallas_src>

<mosaic_0001>
module attributes {stable_mosaic.version = 11 : i64} {
  func.func @net_kernel(%arg0: i32, %arg1: memref<16x512xf32, #tpu.memory_space<vmem>>, %arg2: memref<512x2048xbf16, #tpu.memory_space<vmem>>, %arg3: memref<1x2048xf32, #tpu.memory_space<vmem>>, %arg4: memref<256x1024xbf16, #tpu.memory_space<any>>, %arg5: memref<256x1024xbf16, #tpu.memory_space<any>>, %arg6: memref<256x128xbf16, #tpu.memory_space<any>>, %arg7: memref<256x128xbf16, #tpu.memory_space<any>>, %arg8: memref<1x128xf32, #tpu.memory_space<vmem>>, %arg9: memref<128x128xbf16, #tpu.memory_space<any>>, %arg10: memref<1x128xf32, #tpu.memory_space<vmem>>, %arg11: memref<16x128xf32, #tpu.memory_space<vmem>>, %arg12: memref<16x2048xf32, #tpu.memory_space<vmem>>, %arg13: memref<16x256xbf16, #tpu.memory_space<vmem>>, %arg14: memref<16x256xbf16, #tpu.memory_space<vmem>>, %arg15: memref<256x1024xbf16, #tpu.memory_space<vmem>>, %arg16: memref<256x1024xbf16, #tpu.memory_space<vmem>>, %arg17: memref<256x128xbf16, #tpu.memory_space<vmem>>, %arg18: memref<256x128xbf16, #tpu.memory_space<vmem>>, %arg19: memref<128x128xbf16, #tpu.memory_space<vmem>>, %arg20: memref<5x!tpu.dma_semaphore, #tpu.memory_space<semaphore_mem>>) attributes {dimension_semantics = [#tpu.dimension_semantics<arbitrary>], iteration_bounds = array<i64: 1>, scalar_prefetch = 0 : i64, scratch_operands = 9 : i64, tpu.core_type = #tpu.core_type<tc>, window_params = [{pipeline_mode = #tpu.pipeline_mode<synchronous>, transform_indices = @transform_0, window_bounds = array<i64: 16, 512>}, {pipeline_mode = #tpu.pipeline_mode<synchronous>, transform_indices = @transform_1, window_bounds = array<i64: 512, 2048>}, {pipeline_mode = #tpu.pipeline_mode<synchronous>, transform_indices = @transform_2, window_bounds = array<i64: 1, 2048>}, {}, {}, {}, {}, {pipeline_mode = #tpu.pipeline_mode<synchronous>, transform_indices = @transform_7, window_bounds = array<i64: 1, 128>}, {}, {pipeline_mode = #tpu.pipeline_mode<synchronous>, transform_indices = @transform_9, window_bounds = array<i64: 1, 128>}, {pipeline_mode = #tpu.pipeline_mode<synchronous>, transform_indices = @transform_10, window_bounds = array<i64: 16, 128>}]} {
    %c0_i32 = arith.constant 0 : i32
    %0 = tpu.memref_slice %arg20[%c0_i32] : memref<5x!tpu.dma_semaphore, #tpu.memory_space<semaphore_mem>> -> memref<1x!tpu.dma_semaphore, #tpu.memory_space<semaphore_mem>>
    %1 = tpu.memref_squeeze %0 : memref<1x!tpu.dma_semaphore, #tpu.memory_space<semaphore_mem>> -> memref<!tpu.dma_semaphore, #tpu.memory_space<semaphore_mem>>
    tpu.enqueue_dma source(%arg4 : memref<256x1024xbf16, #tpu.memory_space<any>>) target(%arg15 : memref<256x1024xbf16, #tpu.memory_space<vmem>>) target_semaphore(%1 : memref<!tpu.dma_semaphore, #tpu.memory_space<semaphore_mem>>)
    %c1_i32 = arith.constant 1 : i32
    %2 = tpu.memref_slice %arg20[%c1_i32] : memref<5x!tpu.dma_semaphore, #tpu.memory_space<semaphore_mem>> -> memref<1x!tpu.dma_semaphore, #tpu.memory_space<semaphore_mem>>
    %3 = tpu.memref_squeeze %2 : memref<1x!tpu.dma_semaphore, #tpu.memory_space<semaphore_mem>> -> memref<!tpu.dma_semaphore, #tpu.memory_space<semaphore_mem>>
    tpu.enqueue_dma source(%arg5 : memref<256x1024xbf16, #tpu.memory_space<any>>) target(%arg16 : memref<256x1024xbf16, #tpu.memory_space<vmem>>) target_semaphore(%3 : memref<!tpu.dma_semaphore, #tpu.memory_space<semaphore_mem>>)
    %c2_i32 = arith.constant 2 : i32
    %4 = tpu.memref_slice %arg20[%c2_i32] : memref<5x!tpu.dma_semaphore, #tpu.memory_space<semaphore_mem>> -> memref<1x!tpu.dma_semaphore, #tpu.memory_space<semaphore_mem>>
    %5 = tpu.memref_squeeze %4 : memref<1x!tpu.dma_semaphore, #tpu.memory_space<semaphore_mem>> -> memref<!tpu.dma_semaphore, #tpu.memory_space<semaphore_mem>>
    tpu.enqueue_dma source(%arg6 : memref<256x128xbf16, #tpu.memory_space<any>>) target(%arg17 : memref<256x128xbf16, #tpu.memory_space<vmem>>) target_semaphore(%5 : memref<!tpu.dma_semaphore, #tpu.memory_space<semaphore_mem>>)
    %c3_i32 = arith.constant 3 : i32
    %6 = tpu.memref_slice %arg20[%c3_i32] : memref<5x!tpu.dma_semaphore, #tpu.memory_space<semaphore_mem>> -> memref<1x!tpu.dma_semaphore, #tpu.memory_space<semaphore_mem>>
    %7 = tpu.memref_squeeze %6 : memref<1x!tpu.dma_semaphore, #tpu.memory_space<semaphore_mem>> -> memref<!tpu.dma_semaphore, #tpu.memory_space<semaphore_mem>>
    tpu.enqueue_dma source(%arg7 : memref<256x128xbf16, #tpu.memory_space<any>>) target(%arg18 : memref<256x128xbf16, #tpu.memory_space<vmem>>) target_semaphore(%7 : memref<!tpu.dma_semaphore, #tpu.memory_space<semaphore_mem>>)
    %c4_i32 = arith.constant 4 : i32
    %8 = tpu.memref_slice %arg20[%c4_i32] : memref<5x!tpu.dma_semaphore, #tpu.memory_space<semaphore_mem>> -> memref<1x!tpu.dma_semaphore, #tpu.memory_space<semaphore_mem>>
    %9 = tpu.memref_squeeze %8 : memref<1x!tpu.dma_semaphore, #tpu.memory_space<semaphore_mem>> -> memref<!tpu.dma_semaphore, #tpu.memory_space<semaphore_mem>>
    tpu.enqueue_dma source(%arg9 : memref<128x128xbf16, #tpu.memory_space<any>>) target(%arg19 : memref<128x128xbf16, #tpu.memory_space<vmem>>) target_semaphore(%9 : memref<!tpu.dma_semaphore, #tpu.memory_space<semaphore_mem>>)
    %c0 = arith.constant 0 : index
    %c0_0 = arith.constant 0 : index
    %10 = vector.load %arg1[%c0, %c0_0] : memref<16x512xf32, #tpu.memory_space<vmem>>, vector<16x512xf32>
    %cst = arith.constant 0.000000e+00 : f32
    %11 = vector.broadcast %cst : f32 to vector<16x512xf32>
    %12 = arith.maximumf %10, %11 : vector<16x512xf32>
    %13 = arith.truncf %12 : vector<16x512xf32> to vector<16x512xbf16>
    %c0_1 = arith.constant 0 : index
    %c0_2 = arith.constant 0 : index
    %14 = vector.load %arg2[%c0_1, %c0_2] : memref<512x2048xbf16, #tpu.memory_space<vmem>>, vector<512x2048xbf16>
    %cst_3 = arith.constant dense<0.000000e+00> : vector<16x2048xf32>
    %15 = tpu.matmul %13, %14, %cst_3 {dimension_numbers = #tpu.dot_dimension_numbers<[1], [0], [0], [1], [0, 0, 1, 1], [], []>} : vector<16x512xbf16>, vector<512x2048xbf16>, vector<16x2048xf32> -> vector<16x2048xf32>
    %c0_4 = arith.constant 0 : index
    %c0_5 = arith.constant 0 : index
    %16 = vector.load %arg3[%c0_4, %c0_5] : memref<1x2048xf32, #tpu.memory_space<vmem>>, vector<1x2048xf32>
    %17 = vector.broadcast %16 : vector<1x2048xf32> to vector<16x2048xf32>
    %18 = arith.addf %15, %17 : vector<16x2048xf32>
    %c0_6 = arith.constant 0 : index
    %c0_7 = arith.constant 0 : index
    %19 = vector.load %arg12[%c0_6, %c0_7] : memref<16x2048xf32, #tpu.memory_space<vmem>>, vector<16x2048xf32>
    tpu.vector_store %arg12[%c0_6, %c0_7], %18 {strides = array<i32>} : memref<16x2048xf32, #tpu.memory_space<vmem>>, vector<16x2048xf32>,
    %c0_i32_8 = arith.constant 0 : i32
    %20 = tpu.memref_slice %arg20[%c0_i32_8] : memref<5x!tpu.dma_semaphore, #tpu.memory_space<semaphore_mem>> -> memref<1x!tpu.dma_semaphore, #tpu.memory_space<semaphore_mem>>
    %21 = tpu.memref_squeeze %20 : memref<1x!tpu.dma_semaphore, #tpu.memory_space<semaphore_mem>> -> memref<!tpu.dma_semaphore, #tpu.memory_space<semaphore_mem>>
    tpu.wait_dma2 semaphore(%21 : memref<!tpu.dma_semaphore, #tpu.memory_space<semaphore_mem>>) src(%arg4 : memref<256x1024xbf16, #tpu.memory_space<any>>) dst(%arg15 : memref<256x1024xbf16, #tpu.memory_space<vmem>>)
    %c1_i32_9 = arith.constant 1 : i32
    %22 = tpu.memref_slice %arg20[%c1_i32_9] : memref<5x!tpu.dma_semaphore, #tpu.memory_space<semaphore_mem>> -> memref<1x!tpu.dma_semaphore, #tpu.memory_space<semaphore_mem>>
    %23 = tpu.memref_squeeze %22 : memref<1x!tpu.dma_semaphore, #tpu.memory_space<semaphore_mem>> -> memref<!tpu.dma_semaphore, #tpu.memory_space<semaphore_mem>>
    tpu.wait_dma2 semaphore(%23 : memref<!tpu.dma_semaphore, #tpu.memory_space<semaphore_mem>>) src(%arg5 : memref<256x1024xbf16, #tpu.memory_space<any>>) dst(%arg16 : memref<256x1024xbf16, #tpu.memory_space<vmem>>)
    %c0_10 = arith.constant 0 : index
    %c0_11 = arith.constant 0 : index
    %24 = vector.load %arg15[%c0_10, %c0_11] : memref<256x1024xbf16, #tpu.memory_space<vmem>>, vector<256x1024xbf16>
    %c0_12 = arith.constant 0 : index
    %c0_13 = arith.constant 0 : index
    %25 = vector.load %arg16[%c0_12, %c0_13] : memref<256x1024xbf16, #tpu.memory_space<vmem>>, vector<256x1024xbf16>
    %cst_14 = arith.constant 0.000000e+00 : f32
    %26 = vector.broadcast %cst_14 : f32 to vector<2x256xf32>
    %cst_15 = arith.constant 0.000000e+00 : f32
    %27 = vector.broadcast %cst_15 : f32 to vector<4x256xf32>
    %c0_i32_16 = arith.constant 0 : i32
    %c7_i32 = arith.constant 7 : i32
    %28 = arith.subi %c7_i32, %c0_i32_16 : i32
    %c2_i32_17 = arith.constant 2 : i32
    %29 = arith.muli %c0_i32_16, %c2_i32_17 : i32
    %30 = arith.index_cast %29 : i32 to index
    %c0_18 = arith.constant 0 : index
    %31 = vector.load %arg12[%30, %c0_18] : memref<16x2048xf32, #tpu.memory_space<vmem>>, vector<2x1024xf32>
    %32 = arith.truncf %26 : vector<2x256xf32> to vector<2x256xbf16>
    %cst_19 = arith.constant dense<0.000000e+00> : vector<2x1024xf32>
    %33 = tpu.matmul %32, %24, %cst_19 {dimension_numbers = #tpu.dot_dimension_numbers<[1], [0], [0], [1], [0, 0, 1, 1], [], []>} : vector<2x256xbf16>, vector<256x1024xbf16>, vector<2x1024xf32> -> vector<2x1024xf32>
    %34 = arith.addf %31, %33 : vector<2x1024xf32>
    %c2_i32_20 = arith.constant 2 : i32
    %35 = arith.muli %28, %c2_i32_20 : i32
    %36 = arith.index_cast %35 : i32 to index
    %c1024 = arith.constant 1024 : index
    %37 = vector.load %arg12[%36, %c1024] : memref<16x2048xf32, #tpu.memory_space<vmem>>, vector<2x1024xf32>
    %38 = arith.truncf %26 : vector<2x256xf32> to vector<2x256xbf16>
    %cst_21 = arith.constant dense<0.000000e+00> : vector<2x1024xf32>
    %39 = tpu.matmul %38, %25, %cst_21 {dimension_numbers = #tpu.dot_dimension_numbers<[1], [0], [0], [1], [0, 0, 1, 1], [], []>} : vector<2x256xbf16>, vector<256x1024xbf16>, vector<2x1024xf32> -> vector<2x1024xf32>
    %40 = arith.addf %37, %39 : vector<2x1024xf32>
    %41 = tpu.concatenate %34, %40 in 0 : vector<2x1024xf32>, vector<2x1024xf32> -> vector<4x1024xf32>
    %42 = vector.extract_strided_slice %41 {offsets = [0, 0], sizes = [4, 256], strides = [1, 1]} : vector<4x1024xf32> to vector<4x256xf32>
    %43 = arith.negf %42 : vector<4x256xf32>
    %44 = math.exp %43 : vector<4x256xf32>
    %cst_22 = arith.constant 1.000000e+00 : f32
    %45 = vector.broadcast %cst_22 : f32 to vector<4x256xf32>
    %46 = arith.addf %45, %44 : vector<4x256xf32>
    %47 = arith.divf %45, %46 : vector<4x256xf32>
    %48 = vector.extract_strided_slice %41 {offsets = [0, 256], sizes = [4, 256], strides = [1, 1]} : vector<4x1024xf32> to vector<4x256xf32>
    %49 = arith.negf %48 : vector<4x256xf32>
    %50 = math.exp %49 : vector<4x256xf32>
    %cst_23 = arith.constant 1.000000e+00 : f32
    %51 = vector.broadcast %cst_23 : f32 to vector<4x256xf32>
    %52 = arith.addf %51, %50 : vector<4x256xf32>
    %53 = arith.divf %51, %52 : vector<4x256xf32>
    %54 = vector.extract_strided_slice %41 {offsets = [0, 512], sizes = [4, 256], strides = [1, 1]} : vector<4x1024xf32> to vector<4x256xf32>
    %55 = math.tanh %54 : vector<4x256xf32>
    %56 = vector.extract_strided_slice %41 {offsets = [0, 768], sizes = [4, 256], strides = [1, 1]} : vector<4x1024xf32> to vector<4x256xf32>
    %57 = arith.negf %56 : vector<4x256xf32>
    %58 = math.exp %57 : vector<4x256xf32>
    %cst_24 = arith.constant 1.000000e+00 : f32
    %59 = vector.broadcast %cst_24 : f32 to vector<4x256xf32>
    %60 = arith.addf %59, %58 : vector<4x256xf32>
    %61 = arith.divf %59, %60 : vector<4x256xf32>
    %62 = arith.mulf %53, %27 : vector<4x256xf32>
    %63 = arith.mulf %47, %55 : vector<4x256xf32>
    %64 = arith.addf %62, %63 : vector<4x256xf32>
    %65 = math.tanh %64 : vector<4x256xf32>
    %66 = arith.mulf %61, %65 : vector<4x256xf32>
    %67 = arith.truncf %66 : vector<4x256xf32> to vector<4x256xbf16>
    %68 = vector.extract_strided_slice %67 {offsets = [0, 0], sizes = [2, 256], strides = [1, 1]} : vector<4x256xbf16> to vector<2x256xbf16>
    %c2_i32_25 = arith.constant 2 : i32
    %69 = arith.muli %c0_i32_16, %c2_i32_25 : i32
    %70 = arith.index_cast %69 : i32 to index
    %c0_26 = arith.constant 0 : index
    %71 = vector.load %arg13[%70, %c0_26] : memref<16x256xbf16, #tpu.memory_space<vmem>>, vector<2x256xbf16>
    tpu.vector_store %arg13[%70, %c0_26], %68 {strides = array<i32>} : memref<16x256xbf16, #tpu.memory_space<vmem>>, vector<2x256xbf16>,
    %72 = vector.extract_strided_slice %67 {offsets = [2, 0], sizes = [2, 256], strides = [1, 1]} : vector<4x256xbf16> to vector<2x256xbf16>
    %c2_i32_27 = arith.constant 2 : i32
    %73 = arith.muli %28, %c2_i32_27 : i32
    %74 = arith.index_cast %73 : i32 to index
    %c0_28 = arith.constant 0 : index
    %75 = vector.load %arg14[%74, %c0_28] : memref<16x256xbf16, #tpu.memory_space<vmem>>, vector<2x256xbf16>
    tpu.vector_store %arg14[%74, %c0_28], %72 {strides = array<i32>} : memref<16x256xbf16, #tpu.memory_space<vmem>>, vector<2x256xbf16>,
    %76 = vector.extract_strided_slice %66 {offsets = [0, 0], sizes = [2, 256], strides = [1, 1]} : vector<4x256xf32> to vector<2x256xf32>
    %77 = vector.extract_strided_slice %66 {offsets = [2, 0], sizes = [2, 256], strides = [1, 1]} : vector<4x256xf32> to vector<2x256xf32>
    %c1_i32_29 = arith.constant 1 : i32
    %c7_i32_30 = arith.constant 7 : i32
    %78 = arith.subi %c7_i32_30, %c1_i32_29 : i32
    %c2_i32_31 = arith.constant 2 : i32
    %79 = arith.muli %c1_i32_29, %c2_i32_31 : i32
    %80 = arith.index_cast %79 : i32 to index
    %c0_32 = arith.constant 0 : index
    %81 = vector.load %arg12[%80, %c0_32] : memref<16x2048xf32, #tpu.memory_space<vmem>>, vector<2x1024xf32>
    %82 = arith.truncf %76 : vector<2x256xf32> to vector<2x256xbf16>
    %cst_33 = arith.constant dense<0.000000e+00> : vector<2x1024xf32>
    %83 = tpu.matmul %82, %24, %cst_33 {dimension_numbers = #tpu.dot_dimension_numbers<[1], [0], [0], [1], [0, 0, 1, 1], [], []>} : vector<2x256xbf16>, vector<256x1024xbf16>, vector<2x1024xf32> -> vector<2x1024xf32>
    %84 = arith.addf %81, %83 : vector<2x1024xf32>
    %c2_i32_34 = arith.constant 2 : i32
    %85 = arith.muli %78, %c2_i32_34 : i32
    %86 = arith.index_cast %85 : i32 to index
    %c1024_35 = arith.constant 1024 : index
    %87 = vector.load %arg12[%86, %c1024_35] : memref<16x2048xf32, #tpu.memory_space<vmem>>, vector<2x1024xf32>
    %88 = arith.truncf %77 : vector<2x256xf32> to vector<2x256xbf16>
    %cst_36 = arith.constant dense<0.000000e+00> : vector<2x1024xf32>
    %89 = tpu.matmul %88, %25, %cst_36 {dimension_numbers = #tpu.dot_dimension_numbers<[1], [0], [0], [1], [0, 0, 1, 1], [], []>} : vector<2x256xbf16>, vector<256x1024xbf16>, vector<2x1024xf32> -> vector<2x1024xf32>
    %90 = arith.addf %87, %89 : vector<2x1024xf32>
    %91 = tpu.concatenate %84, %90 in 0 : vector<2x1024xf32>, vector<2x1024xf32> -> vector<4x1024xf32>
    %92 = vector.extract_strided_slice %91 {offsets = [0, 0], sizes = [4, 256], strides = [1, 1]} : vector<4x1024xf32> to vector<4x256xf32>
    %93 = arith.negf %92 : vector<4x256xf32>
    %94 = math.exp %93 : vector<4x256xf32>
    %cst_37 = arith.constant 1.000000e+00 : f32
    %95 = vector.broadcast %cst_37 : f32 to vector<4x256xf32>
    %96 = arith.addf %95, %94 : vector<4x256xf32>
    %97 = arith.divf %95, %96 : vector<4x256xf32>
    %98 = vector.extract_strided_slice %91 {offsets = [0, 256], sizes = [4, 256], strides = [1, 1]} : vector<4x1024xf32> to vector<4x256xf32>
    %99 = arith.negf %98 : vector<4x256xf32>
    %100 = math.exp %99 : vector<4x256xf32>
    %cst_38 = arith.constant 1.000000e+00 : f32
    %101 = vector.broadcast %cst_38 : f32 to vector<4x256xf32>
    %102 = arith.addf %101, %100 : vector<4x256xf32>
    %103 = arith.divf %101, %102 : vector<4x256xf32>
    %104 = vector.extract_strided_slice %91 {offsets = [0, 512], sizes = [4, 256], strides = [1, 1]} : vector<4x1024xf32> to vector<4x256xf32>
    %105 = math.tanh %104 : vector<4x256xf32>
    %106 = vector.extract_strided_slice %91 {offsets = [0, 768], sizes = [4, 256], strides = [1, 1]} : vector<4x1024xf32> to vector<4x256xf32>
    %107 = arith.negf %106 : vector<4x256xf32>
    %108 = math.exp %107 : vector<4x256xf32>
    %cst_39 = arith.constant 1.000000e+00 : f32
    %109 = vector.broadcast %cst_39 : f32 to vector<4x256xf32>
    %110 = arith.addf %109, %108 : vector<4x256xf32>
    %111 = arith.divf %109, %110 : vector<4x256xf32>
    %112 = arith.mulf %103, %64 : vector<4x256xf32>
    %113 = arith.mulf %97, %105 : vector<4x256xf32>
    %114 = arith.addf %112, %113 : vector<4x256xf32>
    %115 = math.tanh %114 : vector<4x256xf32>
    %116 = arith.mulf %111, %115 : vector<4x256xf32>
    %117 = arith.truncf %116 : vector<4x256xf32> to vector<4x256xbf16>
    %118 = vector.extract_strided_slice %117 {offsets = [0, 0], sizes = [2, 256], strides = [1, 1]} : vector<4x256xbf16> to vector<2x256xbf16>
    %c2_i32_40 = arith.constant 2 : i32
    %119 = arith.muli %c1_i32_29, %c2_i32_40 : i32
    %120 = arith.index_cast %119 : i32 to index
    %c0_41 = arith.constant 0 : index
    %121 = vector.load %arg13[%120, %c0_41] : memref<16x256xbf16, #tpu.memory_space<vmem>>, vector<2x256xbf16>
    tpu.vector_store %arg13[%120, %c0_41], %118 {strides = array<i32>} : memref<16x256xbf16, #tpu.memory_space<vmem>>, vector<2x256xbf16>,
    %122 = vector.extract_strided_slice %117 {offsets = [2, 0], sizes = [2, 256], strides = [1, 1]} : vector<4x256xbf16> to vector<2x256xbf16>
    %c2_i32_42 = arith.constant 2 : i32
    %123 = arith.muli %78, %c2_i32_42 : i32
    %124 = arith.index_cast %123 : i32 to index
    %c0_43 = arith.constant 0 : index
    %125 = vector.load %arg14[%124, %c0_43] : memref<16x256xbf16, #tpu.memory_space<vmem>>, vector<2x256xbf16>
    tpu.vector_store %arg14[%124, %c0_43], %122 {strides = array<i32>} : memref<16x256xbf16, #tpu.memory_space<vmem>>, vector<2x256xbf16>,
    %126 = vector.extract_strided_slice %116 {offsets = [0, 0], sizes = [2, 256], strides = [1, 1]} : vector<4x256xf32> to vector<2x256xf32>
    %127 = vector.extract_strided_slice %116 {offsets = [2, 0], sizes = [2, 256], strides = [1, 1]} : vector<4x256xf32> to vector<2x256xf32>
    %c2_i32_44 = arith.constant 2 : i32
    %c7_i32_45 = arith.constant 7 : i32
    %128 = arith.subi %c7_i32_45, %c2_i32_44 : i32
    %c2_i32_46 = arith.constant 2 : i32
    %129 = arith.muli %c2_i32_44, %c2_i32_46 : i32
    %130 = arith.index_cast %129 : i32 to index
    %c0_47 = arith.constant 0 : index
    %131 = vector.load %arg12[%130, %c0_47] : memref<16x2048xf32, #tpu.memory_space<vmem>>, vector<2x1024xf32>
    %132 = arith.truncf %126 : vector<2x256xf32> to vector<2x256xbf16>
    %cst_48 = arith.constant dense<0.000000e+00> : vector<2x1024xf32>
    %133 = tpu.matmul %132, %24, %cst_48 {dimension_numbers = #tpu.dot_dimension_numbers<[1], [0], [0], [1], [0, 0, 1, 1], [], []>} : vector<2x256xbf16>, vector<256x1024xbf16>, vector<2x1024xf32> -> vector<2x1024xf32>
    %134 = arith.addf %131, %133 : vector<2x1024xf32>
    %c2_i32_49 = arith.constant 2 : i32
    %135 = arith.muli %128, %c2_i32_49 : i32
    %136 = arith.index_cast %135 : i32 to index
    %c1024_50 = arith.constant 1024 : index
    %137 = vector.load %arg12[%136, %c1024_50] : memref<16x2048xf32, #tpu.memory_space<vmem>>, vector<2x1024xf32>
    %138 = arith.truncf %127 : vector<2x256xf32> to vector<2x256xbf16>
    %cst_51 = arith.constant dense<0.000000e+00> : vector<2x1024xf32>
    %139 = tpu.matmul %138, %25, %cst_51 {dimension_numbers = #tpu.dot_dimension_numbers<[1], [0], [0], [1], [0, 0, 1, 1], [], []>} : vector<2x256xbf16>, vector<256x1024xbf16>, vector<2x1024xf32> -> vector<2x1024xf32>
    %140 = arith.addf %137, %139 : vector<2x1024xf32>
    %141 = tpu.concatenate %134, %140 in 0 : vector<2x1024xf32>, vector<2x1024xf32> -> vector<4x1024xf32>
    %142 = vector.extract_strided_slice %141 {offsets = [0, 0], sizes = [4, 256], strides = [1, 1]} : vector<4x1024xf32> to vector<4x256xf32>
    %143 = arith.negf %142 : vector<4x256xf32>
    %144 = math.exp %143 : vector<4x256xf32>
    %cst_52 = arith.constant 1.000000e+00 : f32
    %145 = vector.broadcast %cst_52 : f32 to vector<4x256xf32>
    %146 = arith.addf %145, %144 : vector<4x256xf32>
    %147 = arith.divf %145, %146 : vector<4x256xf32>
    %148 = vector.extract_strided_slice %141 {offsets = [0, 256], sizes = [4, 256], strides = [1, 1]} : vector<4x1024xf32> to vector<4x256xf32>
    %149 = arith.negf %148 : vector<4x256xf32>
    %150 = math.exp %149 : vector<4x256xf32>
    %cst_53 = arith.constant 1.000000e+00 : f32
    %151 = vector.broadcast %cst_53 : f32 to vector<4x256xf32>
    %152 = arith.addf %151, %150 : vector<4x256xf32>
    %153 = arith.divf %151, %152 : vector<4x256xf32>
    %154 = vector.extract_strided_slice %141 {offsets = [0, 512], sizes = [4, 256], strides = [1, 1]} : vector<4x1024xf32> to vector<4x256xf32>
    %155 = math.tanh %154 : vector<4x256xf32>
    %156 = vector.extract_strided_slice %141 {offsets = [0, 768], sizes = [4, 256], strides = [1, 1]} : vector<4x1024xf32> to vector<4x256xf32>
    %157 = arith.negf %156 : vector<4x256xf32>
    %158 = math.exp %157 : vector<4x256xf32>
    %cst_54 = arith.constant 1.000000e+00 : f32
    %159 = vector.broadcast %cst_54 : f32 to vector<4x256xf32>
    %160 = arith.addf %159, %158 : vector<4x256xf32>
    %161 = arith.divf %159, %160 : vector<4x256xf32>
    %162 = arith.mulf %153, %114 : vector<4x256xf32>
    %163 = arith.mulf %147, %155 : vector<4x256xf32>
    %164 = arith.addf %162, %163 : vector<4x256xf32>
    %165 = math.tanh %164 : vector<4x256xf32>
    %166 = arith.mulf %161, %165 : vector<4x256xf32>
    %167 = arith.truncf %166 : vector<4x256xf32> to vector<4x256xbf16>
    %168 = vector.extract_strided_slice %167 {offsets = [0, 0], sizes = [2, 256], strides = [1, 1]} : vector<4x256xbf16> to vector<2x256xbf16>
    %c2_i32_55 = arith.constant 2 : i32
    %169 = arith.muli %c2_i32_44, %c2_i32_55 : i32
    %170 = arith.index_cast %169 : i32 to index
    %c0_56 = arith.constant 0 : index
    %171 = vector.load %arg13[%170, %c0_56] : memref<16x256xbf16, #tpu.memory_space<vmem>>, vector<2x256xbf16>
    tpu.vector_store %arg13[%170, %c0_56], %168 {strides = array<i32>} : memref<16x256xbf16, #tpu.memory_space<vmem>>, vector<2x256xbf16>,
    %172 = vector.extract_strided_slice %167 {offsets = [2, 0], sizes = [2, 256], strides = [1, 1]} : vector<4x256xbf16> to vector<2x256xbf16>
    %c2_i32_57 = arith.constant 2 : i32
    %173 = arith.muli %128, %c2_i32_57 : i32
    %174 = arith.index_cast %173 : i32 to index
    %c0_58 = arith.constant 0 : index
    %175 = vector.load %arg14[%174, %c0_58] : memref<16x256xbf16, #tpu.memory_space<vmem>>, vector<2x256xbf16>
    tpu.vector_store %arg14[%174, %c0_58], %172 {strides = array<i32>} : memref<16x256xbf16, #tpu.memory_space<vmem>>, vector<2x256xbf16>,
    %176 = vector.extract_strided_slice %166 {offsets = [0, 0], sizes = [2, 256], strides = [1, 1]} : vector<4x256xf32> to vector<2x256xf32>
    %177 = vector.extract_strided_slice %166 {offsets = [2, 0], sizes = [2, 256], strides = [1, 1]} : vector<4x256xf32> to vector<2x256xf32>
    %c3_i32_59 = arith.constant 3 : i32
    %c7_i32_60 = arith.constant 7 : i32
    %178 = arith.subi %c7_i32_60, %c3_i32_59 : i32
    %c2_i32_61 = arith.constant 2 : i32
    %179 = arith.muli %c3_i32_59, %c2_i32_61 : i32
    %180 = arith.index_cast %179 : i32 to index
    %c0_62 = arith.constant 0 : index
    %181 = vector.load %arg12[%180, %c0_62] : memref<16x2048xf32, #tpu.memory_space<vmem>>, vector<2x1024xf32>
    %182 = arith.truncf %176 : vector<2x256xf32> to vector<2x256xbf16>
    %cst_63 = arith.constant dense<0.000000e+00> : vector<2x1024xf32>
    %183 = tpu.matmul %182, %24, %cst_63 {dimension_numbers = #tpu.dot_dimension_numbers<[1], [0], [0], [1], [0, 0, 1, 1], [], []>} : vector<2x256xbf16>, vector<256x1024xbf16>, vector<2x1024xf32> -> vector<2x1024xf32>
    %184 = arith.addf %181, %183 : vector<2x1024xf32>
    %c2_i32_64 = arith.constant 2 : i32
    %185 = arith.muli %178, %c2_i32_64 : i32
    %186 = arith.index_cast %185 : i32 to index
    %c1024_65 = arith.constant 1024 : index
    %187 = vector.load %arg12[%186, %c1024_65] : memref<16x2048xf32, #tpu.memory_space<vmem>>, vector<2x1024xf32>
    %188 = arith.truncf %177 : vector<2x256xf32> to vector<2x256xbf16>
    %cst_66 = arith.constant dense<0.000000e+00> : vector<2x1024xf32>
    %189 = tpu.matmul %188, %25, %cst_66 {dimension_numbers = #tpu.dot_dimension_numbers<[1], [0], [0], [1], [0, 0, 1, 1], [], []>} : vector<2x256xbf16>, vector<256x1024xbf16>, vector<2x1024xf32> -> vector<2x1024xf32>
    %190 = arith.addf %187, %189 : vector<2x1024xf32>
    %191 = tpu.concatenate %184, %190 in 0 : vector<2x1024xf32>, vector<2x1024xf32> -> vector<4x1024xf32>
    %192 = vector.extract_strided_slice %191 {offsets = [0, 0], sizes = [4, 256], strides = [1, 1]} : vector<4x1024xf32> to vector<4x256xf32>
    %193 = arith.negf %192 : vector<4x256xf32>
    %194 = math.exp %193 : vector<4x256xf32>
    %cst_67 = arith.constant 1.000000e+00 : f32
    %195 = vector.broadcast %cst_67 : f32 to vector<4x256xf32>
    %196 = arith.addf %195, %194 : vector<4x256xf32>
    %197 = arith.divf %195, %196 : vector<4x256xf32>
    %198 = vector.extract_strided_slice %191 {offsets = [0, 256], sizes = [4, 256], strides = [1, 1]} : vector<4x1024xf32> to vector<4x256xf32>
    %199 = arith.negf %198 : vector<4x256xf32>
    %200 = math.exp %199 : vector<4x256xf32>
    %cst_68 = arith.constant 1.000000e+00 : f32
    %201 = vector.broadcast %cst_68 : f32 to vector<4x256xf32>
    %202 = arith.addf %201, %200 : vector<4x256xf32>
    %203 = arith.divf %201, %202 : vector<4x256xf32>
    %204 = vector.extract_strided_slice %191 {offsets = [0, 512], sizes = [4, 256], strides = [1, 1]} : vector<4x1024xf32> to vector<4x256xf32>
    %205 = math.tanh %204 : vector<4x256xf32>
    %206 = vector.extract_strided_slice %191 {offsets = [0, 768], sizes = [4, 256], strides = [1, 1]} : vector<4x1024xf32> to vector<4x256xf32>
    %207 = arith.negf %206 : vector<4x256xf32>
    %208 = math.exp %207 : vector<4x256xf32>
    %cst_69 = arith.constant 1.000000e+00 : f32
    %209 = vector.broadcast %cst_69 : f32 to vector<4x256xf32>
    %210 = arith.addf %209, %208 : vector<4x256xf32>
    %211 = arith.divf %209, %210 : vector<4x256xf32>
    %212 = arith.mulf %203, %164 : vector<4x256xf32>
    %213 = arith.mulf %197, %205 : vector<4x256xf32>
    %214 = arith.addf %212, %213 : vector<4x256xf32>
    %215 = math.tanh %214 : vector<4x256xf32>
    %216 = arith.mulf %211, %215 : vector<4x256xf32>
    %217 = arith.truncf %216 : vector<4x256xf32> to vector<4x256xbf16>
    %218 = vector.extract_strided_slice %217 {offsets = [0, 0], sizes = [2, 256], strides = [1, 1]} : vector<4x256xbf16> to vector<2x256xbf16>
    %c2_i32_70 = arith.constant 2 : i32
    %219 = arith.muli %c3_i32_59, %c2_i32_70 : i32
    %220 = arith.index_cast %219 : i32 to index
    %c0_71 = arith.constant 0 : index
    %221 = vector.load %arg13[%220, %c0_71] : memref<16x256xbf16, #tpu.memory_space<vmem>>, vector<2x256xbf16>
    tpu.vector_store %arg13[%220, %c0_71], %218 {strides = array<i32>} : memref<16x256xbf16, #tpu.memory_space<vmem>>, vector<2x256xbf16>,
    %222 = vector.extract_strided_slice %217 {offsets = [2, 0], sizes = [2, 256], strides = [1, 1]} : vector<4x256xbf16> to vector<2x256xbf16>
    %c2_i32_72 = arith.constant 2 : i32
    %223 = arith.muli %178, %c2_i32_72 : i32
    %224 = arith.index_cast %223 : i32 to index
    %c0_73 = arith.constant 0 : index
    %225 = vector.load %arg14[%224, %c0_73] : memref<16x256xbf16, #tpu.memory_space<vmem>>, vector<2x256xbf16>
    tpu.vector_store %arg14[%224, %c0_73], %222 {strides = array<i32>} : memref<16x256xbf16, #tpu.memory_space<vmem>>, vector<2x256xbf16>,
    %226 = vector.extract_strided_slice %216 {offsets = [0, 0], sizes = [2, 256], strides = [1, 1]} : vector<4x256xf32> to vector<2x256xf32>
    %227 = vector.extract_strided_slice %216 {offsets = [2, 0], sizes = [2, 256], strides = [1, 1]} : vector<4x256xf32> to vector<2x256xf32>
    %c4_i32_74 = arith.constant 4 : i32
    %c7_i32_75 = arith.constant 7 : i32
    %228 = arith.subi %c7_i32_75, %c4_i32_74 : i32
    %c2_i32_76 = arith.constant 2 : i32
    %229 = arith.muli %c4_i32_74, %c2_i32_76 : i32
    %230 = arith.index_cast %229 : i32 to index
    %c0_77 = arith.constant 0 : index
    %231 = vector.load %arg12[%230, %c0_77] : memref<16x2048xf32, #tpu.memory_space<vmem>>, vector<2x1024xf32>
    %232 = arith.truncf %226 : vector<2x256xf32> to vector<2x256xbf16>
    %cst_78 = arith.constant dense<0.000000e+00> : vector<2x1024xf32>
    %233 = tpu.matmul %232, %24, %cst_78 {dimension_numbers = #tpu.dot_dimension_numbers<[1], [0], [0], [1], [0, 0, 1, 1], [], []>} : vector<2x256xbf16>, vector<256x1024xbf16>, vector<2x1024xf32> -> vector<2x1024xf32>
    %234 = arith.addf %231, %233 : vector<2x1024xf32>
    %c2_i32_79 = arith.constant 2 : i32
    %235 = arith.muli %228, %c2_i32_79 : i32
    %236 = arith.index_cast %235 : i32 to index
    %c1024_80 = arith.constant 1024 : index
    %237 = vector.load %arg12[%236, %c1024_80] : memref<16x2048xf32, #tpu.memory_space<vmem>>, vector<2x1024xf32>
    %238 = arith.truncf %227 : vector<2x256xf32> to vector<2x256xbf16>
    %cst_81 = arith.constant dense<0.000000e+00> : vector<2x1024xf32>
    %239 = tpu.matmul %238, %25, %cst_81 {dimension_numbers = #tpu.dot_dimension_numbers<[1], [0], [0], [1], [0, 0, 1, 1], [], []>} : vector<2x256xbf16>, vector<256x1024xbf16>, vector<2x1024xf32> -> vector<2x1024xf32>
    %240 = arith.addf %237, %239 : vector<2x1024xf32>
    %241 = tpu.concatenate %234, %240 in 0 : vector<2x1024xf32>, vector<2x1024xf32> -> vector<4x1024xf32>
    %242 = vector.extract_strided_slice %241 {offsets = [0, 0], sizes = [4, 256], strides = [1, 1]} : vector<4x1024xf32> to vector<4x256xf32>
    %243 = arith.negf %242 : vector<4x256xf32>
    %244 = math.exp %243 : vector<4x256xf32>
    %cst_82 = arith.constant 1.000000e+00 : f32
    %245 = vector.broadcast %cst_82 : f32 to vector<4x256xf32>
    %246 = arith.addf %245, %244 : vector<4x256xf32>
    %247 = arith.divf %245, %246 : vector<4x256xf32>
    %248 = vector.extract_strided_slice %241 {offsets = [0, 256], sizes = [4, 256], strides = [1, 1]} : vector<4x1024xf32> to vector<4x256xf32>
    %249 = arith.negf %248 : vector<4x256xf32>
    %250 = math.exp %249 : vector<4x256xf32>
    %cst_83 = arith.constant 1.000000e+00 : f32
    %251 = vector.broadcast %cst_83 : f32 to vector<4x256xf32>
    %252 = arith.addf %251, %250 : vector<4x256xf32>
    %253 = arith.divf %251, %252 : vector<4x256xf32>
    %254 = vector.extract_strided_slice %241 {offsets = [0, 512], sizes = [4, 256], strides = [1, 1]} : vector<4x1024xf32> to vector<4x256xf32>
    %255 = math.tanh %254 : vector<4x256xf32>
    %256 = vector.extract_strided_slice %241 {offsets = [0, 768], sizes = [4, 256], strides = [1, 1]} : vector<4x1024xf32> to vector<4x256xf32>
    %257 = arith.negf %256 : vector<4x256xf32>
    %258 = math.exp %257 : vector<4x256xf32>
    %cst_84 = arith.constant 1.000000e+00 : f32
    %259 = vector.broadcast %cst_84 : f32 to vector<4x256xf32>
    %260 = arith.addf %259, %258 : vector<4x256xf32>
    %261 = arith.divf %259, %260 : vector<4x256xf32>
    %262 = arith.mulf %253, %214 : vector<4x256xf32>
    %263 = arith.mulf %247, %255 : vector<4x256xf32>
    %264 = arith.addf %262, %263 : vector<4x256xf32>
    %265 = math.tanh %264 : vector<4x256xf32>
    %266 = arith.mulf %261, %265 : vector<4x256xf32>
    %267 = arith.truncf %266 : vector<4x256xf32> to vector<4x256xbf16>
    %268 = vector.extract_strided_slice %267 {offsets = [0, 0], sizes = [2, 256], strides = [1, 1]} : vector<4x256xbf16> to vector<2x256xbf16>
    %c2_i32_85 = arith.constant 2 : i32
    %269 = arith.muli %c4_i32_74, %c2_i32_85 : i32
    %270 = arith.index_cast %269 : i32 to index
    %c0_86 = arith.constant 0 : index
    %271 = vector.load %arg13[%270, %c0_86] : memref<16x256xbf16, #tpu.memory_space<vmem>>, vector<2x256xbf16>
    tpu.vector_store %arg13[%270, %c0_86], %268 {strides = array<i32>} : memref<16x256xbf16, #tpu.memory_space<vmem>>, vector<2x256xbf16>,
    %272 = vector.extract_strided_slice %267 {offsets = [2, 0], sizes = [2, 256], strides = [1, 1]} : vector<4x256xbf16> to vector<2x256xbf16>
    %c2_i32_87 = arith.constant 2 : i32
    %273 = arith.muli %228, %c2_i32_87 : i32
    %274 = arith.index_cast %273 : i32 to index
    %c0_88 = arith.constant 0 : index
    %275 = vector.load %arg14[%274, %c0_88] : memref<16x256xbf16, #tpu.memory_space<vmem>>, vector<2x256xbf16>
    tpu.vector_store %arg14[%274, %c0_88], %272 {strides = array<i32>} : memref<16x256xbf16, #tpu.memory_space<vmem>>, vector<2x256xbf16>,
    %276 = vector.extract_strided_slice %266 {offsets = [0, 0], sizes = [2, 256], strides = [1, 1]} : vector<4x256xf32> to vector<2x256xf32>
    %277 = vector.extract_strided_slice %266 {offsets = [2, 0], sizes = [2, 256], strides = [1, 1]} : vector<4x256xf32> to vector<2x256xf32>
    %c5_i32 = arith.constant 5 : i32
    %c7_i32_89 = arith.constant 7 : i32
    %278 = arith.subi %c7_i32_89, %c5_i32 : i32
    %c2_i32_90 = arith.constant 2 : i32
    %279 = arith.muli %c5_i32, %c2_i32_90 : i32
    %280 = arith.index_cast %279 : i32 to index
    %c0_91 = arith.constant 0 : index
    %281 = vector.load %arg12[%280, %c0_91] : memref<16x2048xf32, #tpu.memory_space<vmem>>, vector<2x1024xf32>
    %282 = arith.truncf %276 : vector<2x256xf32> to vector<2x256xbf16>
    %cst_92 = arith.constant dense<0.000000e+00> : vector<2x1024xf32>
    %283 = tpu.matmul %282, %24, %cst_92 {dimension_numbers = #tpu.dot_dimension_numbers<[1], [0], [0], [1], [0, 0, 1, 1], [], []>} : vector<2x256xbf16>, vector<256x1024xbf16>, vector<2x1024xf32> -> vector<2x1024xf32>
    %284 = arith.addf %281, %283 : vector<2x1024xf32>
    %c2_i32_93 = arith.constant 2 : i32
    %285 = arith.muli %278, %c2_i32_93 : i32
    %286 = arith.index_cast %285 : i32 to index
    %c1024_94 = arith.constant 1024 : index
    %287 = vector.load %arg12[%286, %c1024_94] : memref<16x2048xf32, #tpu.memory_space<vmem>>, vector<2x1024xf32>
    %288 = arith.truncf %277 : vector<2x256xf32> to vector<2x256xbf16>
    %cst_95 = arith.constant dense<0.000000e+00> : vector<2x1024xf32>
    %289 = tpu.matmul %288, %25, %cst_95 {dimension_numbers = #tpu.dot_dimension_numbers<[1], [0], [0], [1], [0, 0, 1, 1], [], []>} : vector<2x256xbf16>, vector<256x1024xbf16>, vector<2x1024xf32> -> vector<2x1024xf32>
    %290 = arith.addf %287, %289 : vector<2x1024xf32>
    %291 = tpu.concatenate %284, %290 in 0 : vector<2x1024xf32>, vector<2x1024xf32> -> vector<4x1024xf32>
    %292 = vector.extract_strided_slice %291 {offsets = [0, 0], sizes = [4, 256], strides = [1, 1]} : vector<4x1024xf32> to vector<4x256xf32>
    %293 = arith.negf %292 : vector<4x256xf32>
    %294 = math.exp %293 : vector<4x256xf32>
    %cst_96 = arith.constant 1.000000e+00 : f32
    %295 = vector.broadcast %cst_96 : f32 to vector<4x256xf32>
    %296 = arith.addf %295, %294 : vector<4x256xf32>
    %297 = arith.divf %295, %296 : vector<4x256xf32>
    %298 = vector.extract_strided_slice %291 {offsets = [0, 256], sizes = [4, 256], strides = [1, 1]} : vector<4x1024xf32> to vector<4x256xf32>
    %299 = arith.negf %298 : vector<4x256xf32>
    %300 = math.exp %299 : vector<4x256xf32>
    %cst_97 = arith.constant 1.000000e+00 : f32
    %301 = vector.broadcast %cst_97 : f32 to vector<4x256xf32>
    %302 = arith.addf %301, %300 : vector<4x256xf32>
    %303 = arith.divf %301, %302 : vector<4x256xf32>
    %304 = vector.extract_strided_slice %291 {offsets = [0, 512], sizes = [4, 256], strides = [1, 1]} : vector<4x1024xf32> to vector<4x256xf32>
    %305 = math.tanh %304 : vector<4x256xf32>
    %306 = vector.extract_strided_slice %291 {offsets = [0, 768], sizes = [4, 256], strides = [1, 1]} : vector<4x1024xf32> to vector<4x256xf32>
    %307 = arith.negf %306 : vector<4x256xf32>
    %308 = math.exp %307 : vector<4x256xf32>
    %cst_98 = arith.constant 1.000000e+00 : f32
    %309 = vector.broadcast %cst_98 : f32 to vector<4x256xf32>
    %310 = arith.addf %309, %308 : vector<4x256xf32>
    %311 = arith.divf %309, %310 : vector<4x256xf32>
    %312 = arith.mulf %303, %264 : vector<4x256xf32>
    %313 = arith.mulf %297, %305 : vector<4x256xf32>
    %314 = arith.addf %312, %313 : vector<4x256xf32>
    %315 = math.tanh %314 : vector<4x256xf32>
    %316 = arith.mulf %311, %315 : vector<4x256xf32>
    %317 = arith.truncf %316 : vector<4x256xf32> to vector<4x256xbf16>
    %318 = vector.extract_strided_slice %317 {offsets = [0, 0], sizes = [2, 256], strides = [1, 1]} : vector<4x256xbf16> to vector<2x256xbf16>
    %c2_i32_99 = arith.constant 2 : i32
    %319 = arith.muli %c5_i32, %c2_i32_99 : i32
    %320 = arith.index_cast %319 : i32 to index
    %c0_100 = arith.constant 0 : index
    %321 = vector.load %arg13[%320, %c0_100] : memref<16x256xbf16, #tpu.memory_space<vmem>>, vector<2x256xbf16>
    tpu.vector_store %arg13[%320, %c0_100], %318 {strides = array<i32>} : memref<16x256xbf16, #tpu.memory_space<vmem>>, vector<2x256xbf16>,
    %322 = vector.extract_strided_slice %317 {offsets = [2, 0], sizes = [2, 256], strides = [1, 1]} : vector<4x256xbf16> to vector<2x256xbf16>
    %c2_i32_101 = arith.constant 2 : i32
    %323 = arith.muli %278, %c2_i32_101 : i32
    %324 = arith.index_cast %323 : i32 to index
    %c0_102 = arith.constant 0 : index
    %325 = vector.load %arg14[%324, %c0_102] : memref<16x256xbf16, #tpu.memory_space<vmem>>, vector<2x256xbf16>
    tpu.vector_store %arg14[%324, %c0_102], %322 {strides = array<i32>} : memref<16x256xbf16, #tpu.memory_space<vmem>>, vector<2x256xbf16>,
    %326 = vector.extract_strided_slice %316 {offsets = [0, 0], sizes = [2, 256], strides = [1, 1]} : vector<4x256xf32> to vector<2x256xf32>
    %327 = vector.extract_strided_slice %316 {offsets = [2, 0], sizes = [2, 256], strides = [1, 1]} : vector<4x256xf32> to vector<2x256xf32>
    %c6_i32 = arith.constant 6 : i32
    %c7_i32_103 = arith.constant 7 : i32
    %328 = arith.subi %c7_i32_103, %c6_i32 : i32
    %c2_i32_104 = arith.constant 2 : i32
    %329 = arith.muli %c6_i32, %c2_i32_104 : i32
    %330 = arith.index_cast %329 : i32 to index
    %c0_105 = arith.constant 0 : index
    %331 = vector.load %arg12[%330, %c0_105] : memref<16x2048xf32, #tpu.memory_space<vmem>>, vector<2x1024xf32>
    %332 = arith.truncf %326 : vector<2x256xf32> to vector<2x256xbf16>
    %cst_106 = arith.constant dense<0.000000e+00> : vector<2x1024xf32>
    %333 = tpu.matmul %332, %24, %cst_106 {dimension_numbers = #tpu.dot_dimension_numbers<[1], [0], [0], [1], [0, 0, 1, 1], [], []>} : vector<2x256xbf16>, vector<256x1024xbf16>, vector<2x1024xf32> -> vector<2x1024xf32>
    %334 = arith.addf %331, %333 : vector<2x1024xf32>
    %c2_i32_107 = arith.constant 2 : i32
    %335 = arith.muli %328, %c2_i32_107 : i32
    %336 = arith.index_cast %335 : i32 to index
    %c1024_108 = arith.constant 1024 : index
    %337 = vector.load %arg12[%336, %c1024_108] : memref<16x2048xf32, #tpu.memory_space<vmem>>, vector<2x1024xf32>
    %338 = arith.truncf %327 : vector<2x256xf32> to vector<2x256xbf16>
    %cst_109 = arith.constant dense<0.000000e+00> : vector<2x1024xf32>
    %339 = tpu.matmul %338, %25, %cst_109 {dimension_numbers = #tpu.dot_dimension_numbers<[1], [0], [0], [1], [0, 0, 1, 1], [], []>} : vector<2x256xbf16>, vector<256x1024xbf16>, vector<2x1024xf32> -> vector<2x1024xf32>
    %340 = arith.addf %337, %339 : vector<2x1024xf32>
    %341 = tpu.concatenate %334, %340 in 0 : vector<2x1024xf32>, vector<2x1024xf32> -> vector<4x1024xf32>
    %342 = vector.extract_strided_slice %341 {offsets = [0, 0], sizes = [4, 256], strides = [1, 1]} : vector<4x1024xf32> to vector<4x256xf32>
    %343 = arith.negf %342 : vector<4x256xf32>
    %344 = math.exp %343 : vector<4x256xf32>
    %cst_110 = arith.constant 1.000000e+00 : f32
    %345 = vector.broadcast %cst_110 : f32 to vector<4x256xf32>
    %346 = arith.addf %345, %344 : vector<4x256xf32>
    %347 = arith.divf %345, %346 : vector<4x256xf32>
    %348 = vector.extract_strided_slice %341 {offsets = [0, 256], sizes = [4, 256], strides = [1, 1]} : vector<4x1024xf32> to vector<4x256xf32>
    %349 = arith.negf %348 : vector<4x256xf32>
    %350 = math.exp %349 : vector<4x256xf32>
    %cst_111 = arith.constant 1.000000e+00 : f32
    %351 = vector.broadcast %cst_111 : f32 to vector<4x256xf32>
    %352 = arith.addf %351, %350 : vector<4x256xf32>
    %353 = arith.divf %351, %352 : vector<4x256xf32>
    %354 = vector.extract_strided_slice %341 {offsets = [0, 512], sizes = [4, 256], strides = [1, 1]} : vector<4x1024xf32> to vector<4x256xf32>
    %355 = math.tanh %354 : vector<4x256xf32>
    %356 = vector.extract_strided_slice %341 {offsets = [0, 768], sizes = [4, 256], strides = [1, 1]} : vector<4x1024xf32> to vector<4x256xf32>
    %357 = arith.negf %356 : vector<4x256xf32>
    %358 = math.exp %357 : vector<4x256xf32>
    %cst_112 = arith.constant 1.000000e+00 : f32
    %359 = vector.broadcast %cst_112 : f32 to vector<4x256xf32>
    %360 = arith.addf %359, %358 : vector<4x256xf32>
    %361 = arith.divf %359, %360 : vector<4x256xf32>
    %362 = arith.mulf %353, %314 : vector<4x256xf32>
    %363 = arith.mulf %347, %355 : vector<4x256xf32>
    %364 = arith.addf %362, %363 : vector<4x256xf32>
    %365 = math.tanh %364 : vector<4x256xf32>
    %366 = arith.mulf %361, %365 : vector<4x256xf32>
    %367 = arith.truncf %366 : vector<4x256xf32> to vector<4x256xbf16>
    %368 = vector.extract_strided_slice %367 {offsets = [0, 0], sizes = [2, 256], strides = [1, 1]} : vector<4x256xbf16> to vector<2x256xbf16>
    %c2_i32_113 = arith.constant 2 : i32
    %369 = arith.muli %c6_i32, %c2_i32_113 : i32
    %370 = arith.index_cast %369 : i32 to index
    %c0_114 = arith.constant 0 : index
    %371 = vector.load %arg13[%370, %c0_114] : memref<16x256xbf16, #tpu.memory_space<vmem>>, vector<2x256xbf16>
    tpu.vector_store %arg13[%370, %c0_114], %368 {strides = array<i32>} : memref<16x256xbf16, #tpu.memory_space<vmem>>, vector<2x256xbf16>,
    %372 = vector.extract_strided_slice %367 {offsets = [2, 0], sizes = [2, 256], strides = [1, 1]} : vector<4x256xbf16> to vector<2x256xbf16>
    %c2_i32_115 = arith.constant 2 : i32
    %373 = arith.muli %328, %c2_i32_115 : i32
    %374 = arith.index_cast %373 : i32 to index
    %c0_116 = arith.constant 0 : index
    %375 = vector.load %arg14[%374, %c0_116] : memref<16x256xbf16, #tpu.memory_space<vmem>>, vector<2x256xbf16>
    tpu.vector_store %arg14[%374, %c0_116], %372 {strides = array<i32>} : memref<16x256xbf16, #tpu.memory_space<vmem>>, vector<2x256xbf16>,
    %376 = vector.extract_strided_slice %366 {offsets = [0, 0], sizes = [2, 256], strides = [1, 1]} : vector<4x256xf32> to vector<2x256xf32>
    %377 = vector.extract_strided_slice %366 {offsets = [2, 0], sizes = [2, 256], strides = [1, 1]} : vector<4x256xf32> to vector<2x256xf32>
    %c7_i32_117 = arith.constant 7 : i32
    %c7_i32_118 = arith.constant 7 : i32
    %378 = arith.subi %c7_i32_118, %c7_i32_117 : i32
    %c2_i32_119 = arith.constant 2 : i32
    %379 = arith.muli %c7_i32_117, %c2_i32_119 : i32
    %380 = arith.index_cast %379 : i32 to index
    %c0_120 = arith.constant 0 : index
    %381 = vector.load %arg12[%380, %c0_120] : memref<16x2048xf32, #tpu.memory_space<vmem>>, vector<2x1024xf32>
    %382 = arith.truncf %376 : vector<2x256xf32> to vector<2x256xbf16>
    %cst_121 = arith.constant dense<0.000000e+00> : vector<2x1024xf32>
    %383 = tpu.matmul %382, %24, %cst_121 {dimension_numbers = #tpu.dot_dimension_numbers<[1], [0], [0], [1], [0, 0, 1, 1], [], []>} : vector<2x256xbf16>, vector<256x1024xbf16>, vector<2x1024xf32> -> vector<2x1024xf32>
    %384 = arith.addf %381, %383 : vector<2x1024xf32>
    %c2_i32_122 = arith.constant 2 : i32
    %385 = arith.muli %378, %c2_i32_122 : i32
    %386 = arith.index_cast %385 : i32 to index
    %c1024_123 = arith.constant 1024 : index
    %387 = vector.load %arg12[%386, %c1024_123] : memref<16x2048xf32, #tpu.memory_space<vmem>>, vector<2x1024xf32>
    %388 = arith.truncf %377 : vector<2x256xf32> to vector<2x256xbf16>
    %cst_124 = arith.constant dense<0.000000e+00> : vector<2x1024xf32>
    %389 = tpu.matmul %388, %25, %cst_124 {dimension_numbers = #tpu.dot_dimension_numbers<[1], [0], [0], [1], [0, 0, 1, 1], [], []>} : vector<2x256xbf16>, vector<256x1024xbf16>, vector<2x1024xf32> -> vector<2x1024xf32>
    %390 = arith.addf %387, %389 : vector<2x1024xf32>
    %391 = tpu.concatenate %384, %390 in 0 : vector<2x1024xf32>, vector<2x1024xf32> -> vector<4x1024xf32>
    %392 = vector.extract_strided_slice %391 {offsets = [0, 0], sizes = [4, 256], strides = [1, 1]} : vector<4x1024xf32> to vector<4x256xf32>
    %393 = arith.negf %392 : vector<4x256xf32>
    %394 = math.exp %393 : vector<4x256xf32>
    %cst_125 = arith.constant 1.000000e+00 : f32
    %395 = vector.broadcast %cst_125 : f32 to vector<4x256xf32>
    %396 = arith.addf %395, %394 : vector<4x256xf32>
    %397 = arith.divf %395, %396 : vector<4x256xf32>
    %398 = vector.extract_strided_slice %391 {offsets = [0, 256], sizes = [4, 256], strides = [1, 1]} : vector<4x1024xf32> to vector<4x256xf32>
    %399 = arith.negf %398 : vector<4x256xf32>
    %400 = math.exp %399 : vector<4x256xf32>
    %cst_126 = arith.constant 1.000000e+00 : f32
    %401 = vector.broadcast %cst_126 : f32 to vector<4x256xf32>
    %402 = arith.addf %401, %400 : vector<4x256xf32>
    %403 = arith.divf %401, %402 : vector<4x256xf32>
    %404 = vector.extract_strided_slice %391 {offsets = [0, 512], sizes = [4, 256], strides = [1, 1]} : vector<4x1024xf32> to vector<4x256xf32>
    %405 = math.tanh %404 : vector<4x256xf32>
    %406 = vector.extract_strided_slice %391 {offsets = [0, 768], sizes = [4, 256], strides = [1, 1]} : vector<4x1024xf32> to vector<4x256xf32>
    %407 = arith.negf %406 : vector<4x256xf32>
    %408 = math.exp %407 : vector<4x256xf32>
    %cst_127 = arith.constant 1.000000e+00 : f32
    %409 = vector.broadcast %cst_127 : f32 to vector<4x256xf32>
    %410 = arith.addf %409, %408 : vector<4x256xf32>
    %411 = arith.divf %409, %410 : vector<4x256xf32>
    %412 = arith.mulf %403, %364 : vector<4x256xf32>
    %413 = arith.mulf %397, %405 : vector<4x256xf32>
    %414 = arith.addf %412, %413 : vector<4x256xf32>
    %415 = math.tanh %414 : vector<4x256xf32>
    %416 = arith.mulf %411, %415 : vector<4x256xf32>
    %417 = arith.truncf %416 : vector<4x256xf32> to vector<4x256xbf16>
    %418 = vector.extract_strided_slice %417 {offsets = [0, 0], sizes = [2, 256], strides = [1, 1]} : vector<4x256xbf16> to vector<2x256xbf16>
    %c2_i32_128 = arith.constant 2 : i32
    %419 = arith.muli %c7_i32_117, %c2_i32_128 : i32
    %420 = arith.index_cast %419 : i32 to index
    %c0_129 = arith.constant 0 : index
    %421 = vector.load %arg13[%420, %c0_129] : memref<16x256xbf16, #tpu.memory_space<vmem>>, vector<2x256xbf16>
    tpu.vector_store %arg13[%420, %c0_129], %418 {strides = array<i32>} : memref<16x256xbf16, #tpu.memory_space<vmem>>, vector<2x256xbf16>,
    %422 = vector.extract_strided_slice %417 {offsets = [2, 0], sizes = [2, 256], strides = [1, 1]} : vector<4x256xbf16> to vector<2x256xbf16>
    %c2_i32_130 = arith.constant 2 : i32
    %423 = arith.muli %378, %c2_i32_130 : i32
    %424 = arith.index_cast %423 : i32 to index
    %c0_131 = arith.constant 0 : index
    %425 = vector.load %arg14[%424, %c0_131] : memref<16x256xbf16, #tpu.memory_space<vmem>>, vector<2x256xbf16>
    tpu.vector_store %arg14[%424, %c0_131], %422 {strides = array<i32>} : memref<16x256xbf16, #tpu.memory_space<vmem>>, vector<2x256xbf16>,
    %426 = vector.extract_strided_slice %416 {offsets = [0, 0], sizes = [2, 256], strides = [1, 1]} : vector<4x256xf32> to vector<2x256xf32>
    %427 = vector.extract_strided_slice %416 {offsets = [2, 0], sizes = [2, 256], strides = [1, 1]} : vector<4x256xf32> to vector<2x256xf32>
    %c8_i32 = arith.constant 8 : i32
    %c2_i32_132 = arith.constant 2 : i32
    %428 = tpu.memref_slice %arg20[%c2_i32_132] : memref<5x!tpu.dma_semaphore, #tpu.memory_space<semaphore_mem>> -> memref<1x!tpu.dma_semaphore, #tpu.memory_space<semaphore_mem>>
    %429 = tpu.memref_squeeze %428 : memref<1x!tpu.dma_semaphore, #tpu.memory_space<semaphore_mem>> -> memref<!tpu.dma_semaphore, #tpu.memory_space<semaphore_mem>>
    tpu.wait_dma2 semaphore(%429 : memref<!tpu.dma_semaphore, #tpu.memory_space<semaphore_mem>>) src(%arg6 : memref<256x128xbf16, #tpu.memory_space<any>>) dst(%arg17 : memref<256x128xbf16, #tpu.memory_space<vmem>>)
    %c3_i32_133 = arith.constant 3 : i32
    %430 = tpu.memref_slice %arg20[%c3_i32_133] : memref<5x!tpu.dma_semaphore, #tpu.memory_space<semaphore_mem>> -> memref<1x!tpu.dma_semaphore, #tpu.memory_space<semaphore_mem>>
    %431 = tpu.memref_squeeze %430 : memref<1x!tpu.dma_semaphore, #tpu.memory_space<semaphore_mem>> -> memref<!tpu.dma_semaphore, #tpu.memory_space<semaphore_mem>>
    tpu.wait_dma2 semaphore(%431 : memref<!tpu.dma_semaphore, #tpu.memory_space<semaphore_mem>>) src(%arg7 : memref<256x128xbf16, #tpu.memory_space<any>>) dst(%arg18 : memref<256x128xbf16, #tpu.memory_space<vmem>>)
    %c4_i32_134 = arith.constant 4 : i32
    %432 = tpu.memref_slice %arg20[%c4_i32_134] : memref<5x!tpu.dma_semaphore, #tpu.memory_space<semaphore_mem>> -> memref<1x!tpu.dma_semaphore, #tpu.memory_space<semaphore_mem>>
    %433 = tpu.memref_squeeze %432 : memref<1x!tpu.dma_semaphore, #tpu.memory_space<semaphore_mem>> -> memref<!tpu.dma_semaphore, #tpu.memory_space<semaphore_mem>>
    tpu.wait_dma2 semaphore(%433 : memref<!tpu.dma_semaphore, #tpu.memory_space<semaphore_mem>>) src(%arg9 : memref<128x128xbf16, #tpu.memory_space<any>>) dst(%arg19 : memref<128x128xbf16, #tpu.memory_space<vmem>>)
    %c0_135 = arith.constant 0 : index
    %c0_136 = arith.constant 0 : index
    %434 = vector.load %arg13[%c0_135, %c0_136] : memref<16x256xbf16, #tpu.memory_space<vmem>>, vector<16x256xbf16>
    %c0_137 = arith.constant 0 : index
    %c0_138 = arith.constant 0 : index
    %435 = vector.load %arg17[%c0_137, %c0_138] : memref<256x128xbf16, #tpu.memory_space<vmem>>, vector<256x128xbf16>
    %cst_139 = arith.constant dense<0.000000e+00> : vector<16x128xf32>
    %436 = tpu.matmul %434, %435, %cst_139 {dimension_numbers = #tpu.dot_dimension_numbers<[1], [0], [0], [1], [0, 0, 1, 1], [], []>} : vector<16x256xbf16>, vector<256x128xbf16>, vector<16x128xf32> -> vector<16x128xf32>
    %c0_140 = arith.constant 0 : index
    %c0_141 = arith.constant 0 : index
    %437 = vector.load %arg14[%c0_140, %c0_141] : memref<16x256xbf16, #tpu.memory_space<vmem>>, vector<16x256xbf16>
    %c0_142 = arith.constant 0 : index
    %c0_143 = arith.constant 0 : index
    %438 = vector.load %arg18[%c0_142, %c0_143] : memref<256x128xbf16, #tpu.memory_space<vmem>>, vector<256x128xbf16>
    %cst_144 = arith.constant dense<0.000000e+00> : vector<16x128xf32>
    %439 = tpu.matmul %437, %438, %cst_144 {dimension_numbers = #tpu.dot_dimension_numbers<[1], [0], [0], [1], [0, 0, 1, 1], [], []>} : vector<16x256xbf16>, vector<256x128xbf16>, vector<16x128xf32> -> vector<16x128xf32>
    %440 = arith.addf %436, %439 : vector<16x128xf32>
    %c0_145 = arith.constant 0 : index
    %c0_146 = arith.constant 0 : index
    %441 = vector.load %arg8[%c0_145, %c0_146] : memref<1x128xf32, #tpu.memory_space<vmem>>, vector<1x128xf32>
    %442 = vector.broadcast %441 : vector<1x128xf32> to vector<16x128xf32>
    %443 = arith.addf %440, %442 : vector<16x128xf32>
    %cst_147 = arith.constant 0.000000e+00 : f32
    %444 = vector.broadcast %cst_147 : f32 to vector<16x128xf32>
    %445 = arith.maximumf %443, %444 : vector<16x128xf32>
    %446 = arith.truncf %445 : vector<16x128xf32> to vector<16x128xbf16>
    %c0_148 = arith.constant 0 : index
    %c0_149 = arith.constant 0 : index
    %447 = vector.load %arg19[%c0_148, %c0_149] : memref<128x128xbf16, #tpu.memory_space<vmem>>, vector<128x128xbf16>
    %cst_150 = arith.constant dense<0.000000e+00> : vector<16x128xf32>
    %448 = tpu.matmul %446, %447, %cst_150 {dimension_numbers = #tpu.dot_dimension_numbers<[1], [0], [0], [1], [0, 0, 1, 1], [], []>} : vector<16x128xbf16>, vector<128x128xbf16>, vector<16x128xf32> -> vector<16x128xf32>
    %c0_151 = arith.constant 0 : index
    %c0_152 = arith.constant 0 : index
    %449 = vector.load %arg10[%c0_151, %c0_152] : memref<1x128xf32, #tpu.memory_space<vmem>>, vector<1x128xf32>
    %450 = vector.broadcast %449 : vector<1x128xf32> to vector<16x128xf32>
    %451 = arith.addf %448, %450 : vector<16x128xf32>
    %c0_153 = arith.constant 0 : index
    %c0_154 = arith.constant 0 : index
    %452 = vector.load %arg11[%c0_153, %c0_154] : memref<16x128xf32, #tpu.memory_space<vmem>>, vector<16x128xf32>
    tpu.vector_store %arg11[%c0_153, %c0_154], %451 {strides = array<i32>} : memref<16x128xf32, #tpu.memory_space<vmem>>, vector<16x128xf32>,
    return
  }
  func.func @transform_0(%arg0: i32) -> (i32, i32) {
    %c0_i32 = arith.constant 0 : i32
    %c0_i32_0 = arith.constant 0 : i32
    %c0_i32_1 = arith.constant 0 : i32
    return %c0_i32, %c0_i32_0 : i32, i32
  }
  func.func @transform_1(%arg0: i32) -> (i32, i32) {
    %c0_i32 = arith.constant 0 : i32
    %c0_i32_0 = arith.constant 0 : i32
    %c0_i32_1 = arith.constant 0 : i32
    return %c0_i32, %c0_i32_0 : i32, i32
  }
  func.func @transform_2(%arg0: i32) -> (i32, i32) {
    %c0_i32 = arith.constant 0 : i32
    %c0_i32_0 = arith.constant 0 : i32
    %c0_i32_1 = arith.constant 0 : i32
    return %c0_i32, %c0_i32_0 : i32, i32
  }
  func.func @transform_7(%arg0: i32) -> (i32, i32) {
    %c0_i32 = arith.constant 0 : i32
    %c0_i32_0 = arith.constant 0 : i32
    %c0_i32_1 = arith.constant 0 : i32
    return %c0_i32, %c0_i32_0 : i32, i32
  }
  func.func @transform_9(%arg0: i32) -> (i32, i32) {
    %c0_i32 = arith.constant 0 : i32
    %c0_i32_0 = arith.constant 0 : i32
    %c0_i32_1 = arith.constant 0 : i32
    return %c0_i32, %c0_i32_0 : i32, i32
  }
  func.func @transform_10(%arg0: i32) -> (i32, i32) {
    %c0_i32 = arith.constant 0 : i32
    %c0_i32_0 = arith.constant 0 : i32
    %c0_i32_1 = arith.constant 0 : i32
    return %c0_i32, %c0_i32_0 : i32, i32
  }
}

</mosaic_0001>

<llo_original>
// kernel: tpu_custom_call.1
$region0: #{tpu_custom_call.1}
  #allocation0 [shape = 'u32[]', space=smem, size = 0x4, offset = 0x4, fixed_abs, tag = 'smem constant byte address 0x4 - core index']
  #allocation1 [shape = 'u32[144,128]{1,0:T(1,128)}', space=vmem, size = 0x12000, scoped, tag = 'internal scratch']
  #allocation2 [shape = 'f32[16,2048]{1,0:T(8,128)}', space=vmem, size = 0x20000, scoped, tag = 'scratch operand']
  #allocation3 [shape = 'bf16[16,256]{1,0:T(16,128)(2,1)}', space=vmem, size = 0x2000, scoped, tag = 'scratch operand']
  #allocation4 [shape = 'bf16[16,256]{1,0:T(16,128)(2,1)}', space=vmem, size = 0x2000, scoped, tag = 'scratch operand']
  #allocation5 [shape = 'bf16[256,1024]{1,0:T(16,128)(2,1)}', space=vmem, size = 0x80000, scoped, tag = 'scratch operand']
  #allocation6 [shape = 'bf16[256,1024]{1,0:T(16,128)(2,1)}', space=vmem, size = 0x80000, scoped, tag = 'scratch operand']
  #allocation7 [shape = 'bf16[256,128]{1,0:T(16,128)(2,1)}', space=vmem, size = 0x10000, scoped, tag = 'scratch operand']
  #allocation8 [shape = 'bf16[256,128]{1,0:T(16,128)(2,1)}', space=vmem, size = 0x10000, scoped, tag = 'scratch operand']
  #allocation9 [shape = 'bf16[128,128]{1,0:T(16,128)(2,1)}', space=vmem, size = 0x8000, scoped, tag = 'scratch operand']
  #allocation10 [shape = 's32[5]{0}', space=sflag, size = 0x14, scoped, tag = 'scratch operand']
  #allocation21 [shape = 's32[]', space=sflag, size = 0x4, offset = 0, fixed_abs, tag = 'sflag constant byte address 0x0 - dummy sync flag']
  #allocation23 [shape = 's32[]', space=sflag, size = 0x4, offset = 0, fixed_abs, tag = 'sflag constant byte address 0x0 - dummy sync flag']
  #allocation25 [shape = 's32[]', space=sflag, size = 0x4, offset = 0, fixed_abs, tag = 'sflag constant byte address 0x0 - dummy sync flag']
  #allocation26 [shape = 's32[]', space=sflag, size = 0x4, offset = 0, fixed_abs, tag = 'sflag constant byte address 0x0 - dummy sync flag']
  #allocation27 [shape = 'u32[]', space=smem, size = 0x4, offset = 0x44, fixed_abs, tag = 'smem constant byte address 0x44 - assertion arg 0']
  #allocation28 [shape = 'u32[]', space=smem, size = 0x4, offset = 0x48, fixed_abs, tag = 'smem constant byte address 0x48 - assertion arg 1']
  #allocation29 [shape = 's32[]', space=sflag, size = 0x4, offset = 0, fixed_abs, tag = 'sflag constant byte address 0x0 - dummy sync flag']
  #allocation30 [shape = 's32[]', space=sflag, size = 0x4, offset = 0, fixed_abs, tag = 'sflag constant byte address 0x0 - dummy sync flag']
  #allocation31 [shape = 's32[]', space=sflag, size = 0x4, offset = 0, fixed_abs, tag = 'sflag constant byte address 0x0 - dummy sync flag']
  #allocation32 [shape = 's32[]', space=sflag, size = 0x4, offset = 0, fixed_abs, tag = 'sflag constant byte address 0x0 - dummy sync flag']
  %s0 = inlined_call_operand.hbm [shape: f32[16,512], index: 0, kind: input, shape index: {}]
  %s1 = inlined_call_operand.hbm [shape: bf16[512,2048], index: 1, kind: input, shape index: {}]
  %s2 = inlined_call_operand.hbm [shape: f32[1,2048], index: 2, kind: input, shape index: {}]
  %s3 = inlined_call_operand.hbm [shape: bf16[256,1024], index: 3, kind: input, shape index: {}]
  %s4 = inlined_call_operand.hbm [shape: bf16[256,1024], index: 4, kind: input, shape index: {}]
  %s5 = inlined_call_operand.hbm [shape: bf16[256,128], index: 5, kind: input, shape index: {}]
  %s6 = inlined_call_operand.hbm [shape: bf16[256,128], index: 6, kind: input, shape index: {}]
  %s7 = inlined_call_operand.hbm [shape: f32[1,128], index: 7, kind: input, shape index: {}]
  %s8 = inlined_call_operand.hbm [shape: bf16[128,128], index: 8, kind: input, shape index: {}]
  %s9 = inlined_call_operand.hbm [shape: f32[1,128], index: 9, kind: input, shape index: {}]
  %s10 = inlined_call_operand.hbm [shape: f32[16,128], index: 10, kind: output, shape index: {}]
  %s11 = sld [smem:[#allocation0]]
  $region62: #{tpu_custom_call.1} parent=0
    _
  %s13 = ssub.s32 1, %s11
  %s14 = scalar_select 0, %s13, %s11
  $region1: #{tpu_custom_call.1} parent=0
    #allocation11 [shape = 'u8[32768]{0}', space=vmem, size = 0x8000, scoped, tag = 'input window, operand 0, single buffered']
    #allocation12 [shape = 's32[1]{0}', space=sflag, size = 0x4, scoped, tag = 'scoped memory for tpu_custom_call.1']
    #allocation13 [shape = 's32[1]{0}', space=sflag, size = 0x4, scoped, tag = 'scoped memory for tpu_custom_call.1']
    #allocation14 [shape = 'u8[2097152]{0}', space=vmem, size = 0x200000, scoped, tag = 'input window, operand 1, single buffered']
    #allocation15 [shape = 's32[1]{0}', space=sflag, size = 0x4, scoped, tag = 'scoped memory for tpu_custom_call.1']
    #allocation16 [shape = 'u8[8192]{0}', space=vmem, size = 0x2000, scoped, tag = 'input window, operand 2, single buffered']
    #allocation17 [shape = 'u8[512]{0}', space=vmem, size = 0x400, scoped, tag = 'input window, operand 7, single buffered']
    #allocation18 [shape = 's32[1]{0}', space=sflag, size = 0x4, scoped, tag = 'scoped memory for tpu_custom_call.1']
    #allocation19 [shape = 'u8[512]{0}', space=vmem, size = 0x400, scoped, tag = 'input window, operand 9, single buffered']
    #allocation20 [shape = 'u8[8192]{0}', space=vmem, size = 0x2000, scoped, tag = 'output window, operand 0, single buffered']
    #allocation22 [shape = 'u32[9]{0}', space=smem, size = 0x24, scoped, tag = 'DMA stride descriptor']
    #allocation24 [shape = 'u32[9]{0}', space=smem, size = 0x24, scoped, tag = 'DMA stride descriptor']
    %15 = vsyncpa [#allocation12], 0
    %16 = vsyncpa [#allocation15], 0
    %17 = vsyncpa [#allocation18], 0
    %18 = vsyncpa [#allocation13], 0
    // Predicated region
    $region2: #{tpu_custom_call.1} parent=1 // pred_check
      _
    $region3: #{tpu_custom_call.1} parent=1 // pred_check_branch
      %20 = sbr.rel (0) target = $region5
    $region4: #{tpu_custom_call.1} parent=1 // pred_region
      %s22 = ssub.s32 1024, 1024
      %23 = vsyncadd [#allocation12], %s22
      %s24 = sshll.u32 [#allocation11], 4
      %s25 = int_to_ptr.vmem [resolvable:$true] %s24
      %30 = dma.hbm_to_vmem [thread:$0]  %s0, 1024, %s25, [#allocation12], 512, 512, 32
    $region5: #{tpu_custom_call.1} parent=1 // pred_fallthru
      _
    // Predicated region
    $region6: #{tpu_custom_call.1} parent=1 // pred_check
      _
    $region7: #{tpu_custom_call.1} parent=1 // pred_check_branch
      %32 = sbr.rel (0) target = $region9
    $region8: #{tpu_custom_call.1} parent=1 // pred_region
      %s34 = ssub.s32 65536, 65536
      %35 = vsyncadd [#allocation15], %s34
      %s36 = sshll.u32 [#allocation14], 4
      %s37 = int_to_ptr.vmem [resolvable:$true] %s36
      %42 = dma.hbm_to_vmem [thread:$0]  %s1, 65536, %s37, [#allocation15], 1024, 1024, 64
    $region9: #{tpu_custom_call.1} parent=1 // pred_fallthru
      _
    // Predicated region
    $region10: #{tpu_custom_call.1} parent=1 // pred_check
      _
    $region11: #{tpu_custom_call.1} parent=1 // pred_check_branch
      %44 = sbr.rel (0) target = $region13
    $region12: #{tpu_custom_call.1} parent=1 // pred_region
      %s46 = ssub.s32 256, 256
      %47 = vsyncadd [#allocation15], %s46
      %s49 = sshll.u32 [#allocation16], 4
      %s50 = int_to_ptr.vmem [resolvable:$true] %s49
      %52 = dma.hbm_to_vmem [thread:$0]  %s2, 256, %s50, [#allocation15]
    $region13: #{tpu_custom_call.1} parent=1 // pred_fallthru
      _
    // Predicated region
    $region14: #{tpu_custom_call.1} parent=1 // pred_check
      _
    $region15: #{tpu_custom_call.1} parent=1 // pred_check_branch
      %54 = sbr.rel (0) target = $region17
    $region16: #{tpu_custom_call.1} parent=1 // pred_region
      %s56 = ssub.s32 16, 16
      %57 = vsyncadd [#allocation18], %s56
      %s59 = sshll.u32 [#allocation17], 4
      %s60 = int_to_ptr.vmem [resolvable:$true] %s59
      %62 = dma.hbm_to_vmem [thread:$0]  %s7, 16, %s60, [#allocation18]
    $region17: #{tpu_custom_call.1} parent=1 // pred_fallthru
      _
    // Predicated region
    $region18: #{tpu_custom_call.1} parent=1 // pred_check
      _
    $region19: #{tpu_custom_call.1} parent=1 // pred_check_branch
      %64 = sbr.rel (0) target = $region21
    $region20: #{tpu_custom_call.1} parent=1 // pred_region
      %s66 = ssub.s32 16, 16
      %67 = vsyncadd [#allocation18], %s66
      %s69 = sshll.u32 [#allocation19], 4
      %s70 = int_to_ptr.vmem [resolvable:$true] %s69
      %72 = dma.hbm_to_vmem [thread:$0]  %s9, 16, %s70, [#allocation18]
    $region21: #{tpu_custom_call.1} parent=1 // pred_fallthru
      _
    // Predicated region
    $region22: #{tpu_custom_call.1} parent=1 // pred_check
      _
    $region23: #{tpu_custom_call.1} parent=1 // pred_check_branch
      %74 = sbr.rel (0) target = $region25
    $region24: #{tpu_custom_call.1} parent=1 // pred_region
      %75 = dma.done [#allocation12], 1024
    $region25: #{tpu_custom_call.1} parent=1 // pred_fallthru
      _
    // Predicated region
    $region26: #{tpu_custom_call.1} parent=1 // pred_check
      _
    $region27: #{tpu_custom_call.1} parent=1 // pred_check_branch
      %77 = sbr.rel (0) target = $region29
    $region28: #{tpu_custom_call.1} parent=1 // pred_region
      %78 = dma.done [#allocation15], 65536
    $region29: #{tpu_custom_call.1} parent=1 // pred_fallthru
      _
    // Predicated region
    $region30: #{tpu_custom_call.1} parent=1 // pred_check
      _
    $region31: #{tpu_custom_call.1} parent=1 // pred_check_branch
      %80 = sbr.rel (0) target = $region33
    $region32: #{tpu_custom_call.1} parent=1 // pred_region
      %81 = dma.done [#allocation15], 256
    $region33: #{tpu_custom_call.1} parent=1 // pred_fallthru
      _
    // Predicated region
    $region34: #{tpu_custom_call.1} parent=1 // pred_check
      _
    $region35: #{tpu_custom_call.1} parent=1 // pred_check_branch
      %83 = sbr.rel (0) target = $region37
    $region36: #{tpu_custom_call.1} parent=1 // pred_region
      %84 = dma.done [#allocation18], 16
    $region37: #{tpu_custom_call.1} parent=1 // pred_fallthru
      _
    // Predicated region
    $region38: #{tpu_custom_call.1} parent=1 // pred_check
      _
    $region39: #{tpu_custom_call.1} parent=1 // pred_check_branch
      %86 = sbr.rel (0) target = $region41
    $region40: #{tpu_custom_call.1} parent=1 // pred_region
      %87 = dma.done [#allocation18], 16
    $region41: #{tpu_custom_call.1} parent=1 // pred_fallthru
      _
    %s90 = sshll.u32 1, 14
    %s91 = sxor.u32 4294967295, %s90
    %s93 = sld [smem:[#allocation0]]
    %s94 = sadd.s32 2, %s93
    %s96 = sshll.u32 7, 26
    %s97 = sxor.u32 4294967295, %s96
    %s98 = sand.u32 0, %s97
    %s99 = sshll.u32 %s94, 26
    %s100 = sor.u32 %s98, %s99
    %s101 = sshll.u32 [#allocation5], 4
    %s102 = int_to_ptr.vmem [resolvable:$true] %s101
    %105 = sst [smem:[#allocation22]] 1024
    %s106 = scalar_lea.smem [#allocation22], 1
    %107 = sst [smem:[%s106]] 1024
    %s108 = scalar_lea.smem [#allocation22], 2
    %109 = sst [smem:[%s108]] 8
    %s110 = scalar_lea.smem [#allocation22], 3
    %111 = sst [smem:[%s110]] 64
    %s112 = scalar_lea.smem [#allocation22], 4
    %113 = sst [smem:[%s112]] 128
    %s114 = scalar_lea.smem [#allocation22], 5
    %115 = sst [smem:[%s114]] 2
    %s116 = scalar_lea.smem [#allocation22], 6
    %117 = sst [smem:[%s116]] 512
    %s118 = scalar_lea.smem [#allocation22], 7
    %119 = sst [smem:[%s118]] 64
    %s120 = scalar_lea.smem [#allocation22], 8
    %121 = sst [smem:[%s120]] 4
    %123 = dma.general %s3, 16384, %s102, [#allocation10], [#allocation21], [#allocation22], %s100, 0
    %s124 = scalar_lea.sflag [#allocation10], 1
    %s126 = sshll.u32 1, 14
    %s127 = sxor.u32 4294967295, %s126
    %s129 = sadd.s32 2, %s93
    %s131 = sshll.u32 7, 26
    %s132 = sxor.u32 4294967295, %s131
    %s133 = sand.u32 0, %s132
    %s134 = sshll.u32 %s129, 26
    %s135 = sor.u32 %s133, %s134
    %s136 = sshll.u32 [#allocation6], 4
    %s137 = int_to_ptr.vmem [resolvable:$true] %s136
    %140 = sst [smem:[#allocation24]] 1024
    %s141 = scalar_lea.smem [#allocation24], 1
    %142 = sst [smem:[%s141]] 1024
    %s143 = scalar_lea.smem [#allocation24], 2
    %144 = sst [smem:[%s143]] 8
    %s145 = scalar_lea.smem [#allocation24], 3
    %146 = sst [smem:[%s145]] 64
    %s147 = scalar_lea.smem [#allocation24], 4
    %148 = sst [smem:[%s147]] 128
    %s149 = scalar_lea.smem [#allocation24], 5
    %150 = sst [smem:[%s149]] 2
    %s151 = scalar_lea.smem [#allocation24], 6
    %152 = sst [smem:[%s151]] 512
    %s153 = scalar_lea.smem [#allocation24], 7
    %154 = sst [smem:[%s153]] 64
    %s155 = scalar_lea.smem [#allocation24], 8
    %156 = sst [smem:[%s155]] 4
    %158 = dma.general %s4, 16384, %s137, %s124, [#allocation23], [#allocation24], %s135, 0
    %s159 = scalar_lea.sflag [#allocation10], 2
    // Predicated region
    $region42: #{tpu_custom_call.1} parent=1 // pred_check
      _
    $region43: #{tpu_custom_call.1} parent=1 // pred_check_branch
      %161 = sbr.rel target = $region45
    $region44: #{tpu_custom_call.1} parent=1 // pred_region
      %162 = sst [smem:[#allocation27]] [#allocation26]
      %163 = sst [smem:[#allocation28]] [#allocation25]
    $region45: #{tpu_custom_call.1} parent=1 // pred_fallthru
      _
    %165 = shalt.err (0)
    %s167 = sshll.u32 [#allocation7], 4
    %s168 = int_to_ptr.vmem [resolvable:$true] %s167
    %170 = dma.hbm_to_vmem [thread:$0]  %s5, 2048, %s168, %s159
    %s171 = scalar_lea.sflag [#allocation10], 3
    // Predicated region
    $region46: #{tpu_custom_call.1} parent=1 // pred_check
      _
    $region47: #{tpu_custom_call.1} parent=1 // pred_check_branch
      %173 = sbr.rel target = $region49
    $region48: #{tpu_custom_call.1} parent=1 // pred_region
      %174 = sst [smem:[#allocation27]] [#allocation30]
      %175 = sst [smem:[#allocation28]] [#allocation29]
    $region49: #{tpu_custom_call.1} parent=1 // pred_fallthru
      _
    %177 = shalt.err (0)
    %s179 = sshll.u32 [#allocation8], 4
    %s180 = int_to_ptr.vmem [resolvable:$true] %s179
    %182 = dma.hbm_to_vmem [thread:$0]  %s6, 2048, %s180, %s171
    %s183 = scalar_lea.sflag [#allocation10], 4
    // Predicated region
    $region50: #{tpu_custom_call.1} parent=1 // pred_check
      _
    $region51: #{tpu_custom_call.1} parent=1 // pred_check_branch
      %185 = sbr.rel target = $region53
    $region52: #{tpu_custom_call.1} parent=1 // pred_region
      %186 = sst [smem:[#allocation27]] [#allocation32]
      %187 = sst [smem:[#allocation28]] [#allocation31]
    $region53: #{tpu_custom_call.1} parent=1 // pred_fallthru
      _
    %189 = shalt.err (0)
    %s191 = sshll.u32 [#allocation9], 4
    %s192 = int_to_ptr.vmem [resolvable:$true] %s191
    %194 = dma.hbm_to_vmem [thread:$0]  %s8, 1024, %s192, %s183
    %v195 = vld [vmem:[#allocation11] sm:$0xff]
    %v196 = vld [vmem:[#allocation11 + $0x8] sm:$0xff]
    %v197 = vld [vmem:[#allocation11 + $0x10] sm:$0xff]
    %v198 = vld [vmem:[#allocation11 + $0x18] sm:$0xff]
    %v199 = vld [vmem:[#allocation11 + $0x20] sm:$0xff]
    %v200 = vld [vmem:[#allocation11 + $0x28] sm:$0xff]
    %v201 = vld [vmem:[#allocation11 + $0x30] sm:$0xff]
    %v202 = vld [vmem:[#allocation11 + $0x38] sm:$0xff]
    %v203 = vmax.f32 %v195, 0.0
    %v204 = vmax.f32 %v196, 0.0
    %v205 = vmax.f32 %v197, 0.0
    %v206 = vmax.f32 %v198, 0.0
    %v207 = vmax.f32 %v199, 0.0
    %v208 = vmax.f32 %v200, 0.0
    %v209 = vmax.f32 %v201, 0.0
    %v210 = vmax.f32 %v202, 0.0
    %v211 = vpack.c.bf16 %v207, %v203
    %v212 = vpack.c.bf16 %v208, %v204
    %v213 = vpack.c.bf16 %v209, %v205
    %v214 = vpack.c.bf16 %v210, %v206
    %v215 = vld [vmem:[#allocation14] sm:$0xff]
    %v216 = vld [vmem:[#allocation14 + $0x8] sm:$0xff]
    %v217 = vld [vmem:[#allocation14 + $0x10] sm:$0xff]
    %v218 = vld [vmem:[#allocation14 + $0x18] sm:$0xff]
    %v219 = vld [vmem:[#allocation14 + $0x20] sm:$0xff]
    %v220 = vld [vmem:[#allocation14 + $0x28] sm:$0xff]
    %v221 = vld [vmem:[#allocation14 + $0x30] sm:$0xff]
    %v222 = vld [vmem:[#allocation14 + $0x38] sm:$0xff]
    %v223 = vld [vmem:[#allocation14 + $0x40] sm:$0xff]
    %v224 = vld [vmem:[#allocation14 + $0x48] sm:$0xff]
    %v225 = vld [vmem:[#allocation14 + $0x50] sm:$0xff]
    %v226 = vld [vmem:[#allocation14 + $0x58] sm:$0xff]
    %v227 = vld [vmem:[#allocation14 + $0x60] sm:$0xff]
    %v228 = vld [vmem:[#allocation14 + $0x68] sm:$0xff]
    %v229 = vld [vmem:[#allocation14 + $0x70] sm:$0xff]
    %v230 = vld [vmem:[#allocation14 + $0x78] sm:$0xff]
    %v231 = vld [vmem:[#allocation14 + $0x80] sm:$0xff]
    %v232 = vld [vmem:[#allocation14 + $0x88] sm:$0xff]
    %v233 = vld [vmem:[#allocation14 + $0x90] sm:$0xff]
    %v234 = vld [vmem:[#allocation14 + $0x98] sm:$0xff]
    %v235 = vld [vmem:[#allocation14 + $0xa0] sm:$0xff]
    %v236 = vld [vmem:[#allocation14 + $0xa8] sm:$0xff]
    %v237 = vld [vmem:[#allocation14 + $0xb0] sm:$0xff]
    %v238 = vld [vmem:[#allocation14 + $0xb8] sm:$0xff]
    %v239 = vld [vmem:[#allocation14 + $0xc0] sm:$0xff]
    %v240 = vld [vmem:[#allocation14 + $0xc8] sm:$0xff]
    %v241 = vld [vmem:[#allocation14 + $0xd0] sm:$0xff]
    %v242 = vld [vmem:[#allocation14 + $0xd8] sm:$0xff]
    %v243 = vld [vmem:[#allocation14 + $0xe0] sm:$0xff]
    %v244 = vld [vmem:[#allocation14 + $0xe8] sm:$0xff]
    %v245 = vld [vmem:[#allocation14 + $0xf0] sm:$0xff]
    %v246 = vld [vmem:[#allocation14 + $0xf8] sm:$0xff]
    %v247 = vld [vmem:[#allocation14 + $0x100] sm:$0xff]
    %v248 = vld [vmem:[#allocation14 + $0x108] sm:$0xff]
    %v249 = vld [vmem:[#allocation14 + $0x110] sm:$0xff]
    %v250 = vld [vmem:[#allocation14 + $0x118] sm:$0xff]
    %v251 = vld [vmem:[#allocation14 + $0x120] sm:$0xff]
    %v252 = vld [vmem:[#allocation14 + $0x128] sm:$0xff]
    %v253 = vld [vmem:[#allocation14 + $0x130] sm:$0xff]
    %v254 = vld [vmem:[#allocation14 + $0x138] sm:$0xff]
    %v255 = vld [vmem:[#allocation14 + $0x140] sm:$0xff]
    %v256 = vld [vmem:[#allocation14 + $0x148] sm:$0xff]
    %v257 = vld [vmem:[#allocation14 + $0x150] sm:$0xff]
    %v258 = vld [vmem:[#allocation14 + $0x158] sm:$0xff]
    %v259 = vld [vmem:[#allocation14 + $0x160] sm:$0xff]
    %v260 = vld [vmem:[#allocation14 + $0x168] sm:$0xff]
    %v261 = vld [vmem:[#allocation14 + $0x170] sm:$0xff]
    %v262 = vld [vmem:[#allocation14 + $0x178] sm:$0xff]
    %v263 = vld [vmem:[#allocation14 + $0x180] sm:$0xff]
    %v264 = vld [vmem:[#allocation14 + $0x188] sm:$0xff]
    %v265 = vld [vmem:[#allocation14 + $0x190] sm:$0xff]
    %v266 = vld [vmem:[#allocation14 + $0x198] sm:$0xff]
    %v267 = vld [vmem:[#allocation14 + $0x1a0] sm:$0xff]
    %v268 = vld [vmem:[#allocation14 + $0x1a8] sm:$0xff]
    %v269 = vld [vmem:[#allocation14 + $0x1b0] sm:$0xff]
    %v270 = vld [vmem:[#allocation14 + $0x1b8] sm:$0xff]
    %v271 = vld [vmem:[#allocation14 + $0x1c0] sm:$0xff]
    %v272 = vld [vmem:[#allocation14 + $0x1c8] sm:$0xff]
    %v273 = vld [vmem:[#allocation14 + $0x1d0] sm:$0xff]
    %v274 = vld [vmem:[#allocation14 + $0x1d8] sm:$0xff]
    %v275 = vld [vmem:[#allocation14 + $0x1e0] sm:$0xff]
    %v276 = vld [vmem:[#allocation14 + $0x1e8] sm:$0xff]
    %v277 = vld [vmem:[#allocation14 + $0x1f0] sm:$0xff]
    %v278 = vld [vmem:[#allocation14 + $0x1f8] sm:$0xff]
    %v279 = vld [vmem:[#allocation14 + $0x200] sm:$0xff]
    %v280 = vld [vmem:[#allocation14 + $0x208] sm:$0xff]
    %v281 = vld [vmem:[#allocation14 + $0x210] sm:$0xff]
    %v282 = vld [vmem:[#allocation14 + $0x218] sm:$0xff]
    %v283 = vld [vmem:[#allocation14 + $0x220] sm:$0xff]
    %v284 = vld [vmem:[#allocation14 + $0x228] sm:$0xff]
    %v285 = vld [vmem:[#allocation14 + $0x230] sm:$0xff]
    %v286 = vld [vmem:[#allocation14 + $0x238] sm:$0xff]
    %v287 = vld [vmem:[#allocation14 + $0x240] sm:$0xff]
    %v288 = vld [vmem:[#allocation14 + $0x248] sm:$0xff]
    %v289 = vld [vmem:[#allocation14 + $0x250] sm:$0xff]
    %v290 = vld [vmem:[#allocation14 + $0x258] sm:$0xff]
    %v291 = vld [vmem:[#allocation14 + $0x260] sm:$0xff]
    %v292 = vld [vmem:[#allocation14 + $0x268] sm:$0xff]
    %v293 = vld [vmem:[#allocation14 + $0x270] sm:$0xff]
    %v294 = vld [vmem:[#allocation14 + $0x278] sm:$0xff]
    %v295 = vld [vmem:[#allocation14 + $0x280] sm:$0xff]
    %v296 = vld [vmem:[#allocation14 + $0x288] sm:$0xff]
    %v297 = vld [vmem:[#allocation14 + $0x290] sm:$0xff]
    %v298 = vld [vmem:[#allocation14 + $0x298] sm:$0xff]
    %v299 = vld [vmem:[#allocation14 + $0x2a0] sm:$0xff]
    %v300 = vld [vmem:[#allocation14 + $0x2a8] sm:$0xff]
    %v301 = vld [vmem:[#allocation14 + $0x2b0] sm:$0xff]
    %v302 = vld [vmem:[#allocation14 + $0x2b8] sm:$0xff]
    %v303 = vld [vmem:[#allocation14 + $0x2c0] sm:$0xff]
    %v304 = vld [vmem:[#allocation14 + $0x2c8] sm:$0xff]
    %v305 = vld [vmem:[#allocation14 + $0x2d0] sm:$0xff]
    %v306 = vld [vmem:[#allocation14 + $0x2d8] sm:$0xff]
    %v307 = vld [vmem:[#allocation14 + $0x2e0] sm:$0xff]
    %v308 = vld [vmem:[#allocation14 + $0x2e8] sm:$0xff]
    %v309 = vld [vmem:[#allocation14 + $0x2f0] sm:$0xff]
    %v310 = vld [vmem:[#allocation14 + $0x2f8] sm:$0xff]
    %v311 = vld [vmem:[#allocation14 + $0x300] sm:$0xff]
    %v312 = vld [vmem:[#allocation14 + $0x308] sm:$0xff]
    %v313 = vld [vmem:[#allocation14 + $0x310] sm:$0xff]
    %v314 = vld [vmem:[#allocation14 + $0x318] sm:$0xff]
    %v315 = vld [vmem:[#allocation14 + $0x320] sm:$0xff]
    %v316 = vld [vmem:[#allocation14 + $0x328] sm:$0xff]
    %v317 = vld [vmem:[#allocation14 + $0x330] sm:$0xff]
    %v318 = vld [vmem:[#allocation14 + $0x338] sm:$0xff]
    %v319 = vld [vmem:[#allocation14 + $0x340] sm:$0xff]
    %v320 = vld [vmem:[#allocation14 + $0x348] sm:$0xff]
    %v321 = vld [vmem:[#allocation14 + $0x350] sm:$0xff]
    %v322 = vld [vmem:[#allocation14 + $0x358] sm:$0xff]
    %v323 = vld [vmem:[#allocation14 + $0x360] sm:$0xff]
    %v324 = vld [vmem:[#allocation14 + $0x368] sm:$0xff]
    %v325 = vld [vmem:[#allocation14 + $0x370] sm:$0xff]
    %v326 = vld [vmem:[#allocation14 + $0x378] sm:$0xff]
    %v327 = vld [vmem:[#allocation14 + $0x380] sm:$0xff]
    %v328 = vld [vmem:[#allocation14 + $0x388] sm:$0xff]
    %v329 = vld [vmem:[#allocation14 + $0x390] sm:$0xff]
    %v330 = vld [vmem:[#allocation14 + $0x398] sm:$0xff]
    %v331 = vld [vmem:[#allocation14 + $0x3a0] sm:$0xff]
    %v332 = vld [vmem:[#allocation14 + $0x3a8] sm:$0xff]
    %v333 = vld [vmem:[#allocation14 + $0x3b0] sm:$0xff]
    %v334 = vld [vmem:[#allocation14 + $0x3b8] sm:$0xff]
    %v335 = vld [vmem:[#allocation14 + $0x3c0] sm:$0xff]
    %v336 = vld [vmem:[#allocation14 + $0x3c8] sm:$0xff]
    %v337 = vld [vmem:[#allocation14 + $0x3d0] sm:$0xff]
    %v338 = vld [vmem:[#allocation14 + $0x3d8] sm:$0xff]
    %v339 = vld [vmem:[#allocation14 + $0x3e0] sm:$0xff]
    %v340 = vld [vmem:[#allocation14 + $0x3e8] sm:$0xff]
    %v341 = vld [vmem:[#allocation14 + $0x3f0] sm:$0xff]
    %v342 = vld [vmem:[#allocation14 + $0x3f8] sm:$0xff]
    %v343 = vld [vmem:[#allocation14 + $0x400] sm:$0xff]
    %v344 = vld [vmem:[#allocation14 + $0x408] sm:$0xff]
    %v345 = vld [vmem:[#allocation14 + $0x410] sm:$0xff]
    %v346 = vld [vmem:[#allocation14 + $0x418] sm:$0xff]
    %v347 = vld [vmem:[#allocation14 + $0x420] sm:$0xff]
    %v348 = vld [vmem:[#allocation14 + $0x428] sm:$0xff]
    %v349 = vld [vmem:[#allocation14 + $0x430] sm:$0xff]
    %v350 = vld [vmem:[#allocation14 + $0x438] sm:$0xff]
    %v351 = vld [vmem:[#allocation14 + $0x440] sm:$0xff]
    %v352 = vld [vmem:[#allocation14 + $0x448] sm:$0xff]
    %v353 = vld [vmem:[#allocation14 + $0x450] sm:$0xff]
    %v354 = vld [vmem:[#allocation14 + $0x458] sm:$0xff]
    %v355 = vld [vmem:[#allocation14 + $0x460] sm:$0xff]
    %v356 = vld [vmem:[#allocation14 + $0x468] sm:$0xff]
    %v357 = vld [vmem:[#allocation14 + $0x470] sm:$0xff]
    %v358 = vld [vmem:[#allocation14 + $0x478] sm:$0xff]
    %v359 = vld [vmem:[#allocation14 + $0x480] sm:$0xff]
    %v360 = vld [vmem:[#allocation14 + $0x488] sm:$0xff]
    %v361 = vld [vmem:[#allocation14 + $0x490] sm:$0xff]
    %v362 = vld [vmem:[#allocation14 + $0x498] sm:$0xff]
    %v363 = vld [vmem:[#allocation14 + $0x4a0] sm:$0xff]
    %v364 = vld [vmem:[#allocation14 + $0x4a8] sm:$0xff]
    %v365 = vld [vmem:[#allocation14 + $0x4b0] sm:$0xff]
    %v366 = vld [vmem:[#allocation14 + $0x4b8] sm:$0xff]
    %v367 = vld [vmem:[#allocation14 + $0x4c0] sm:$0xff]
    %v368 = vld [vmem:[#allocation14 + $0x4c8] sm:$0xff]
    %v369 = vld [vmem:[#allocation14 + $0x4d0] sm:$0xff]
    %v370 = vld [vmem:[#allocation14 + $0x4d8] sm:$0xff]
    %v371 = vld [vmem:[#allocation14 + $0x4e0] sm:$0xff]
    %v372 = vld [vmem:[#allocation14 + $0x4e8] sm:$0xff]
    %v373 = vld [vmem:[#allocation14 + $0x4f0] sm:$0xff]
    %v374 = vld [vmem:[#allocation14 + $0x4f8] sm:$0xff]
    %v375 = vld [vmem:[#allocation14 + $0x500] sm:$0xff]
    %v376 = vld [vmem:[#allocation14 + $0x508] sm:$0xff]
    %v377 = vld [vmem:[#allocation14 + $0x510] sm:$0xff]
    %v378 = vld [vmem:[#allocation14 + $0x518] sm:$0xff]
    %v379 = vld [vmem:[#allocation14 + $0x520] sm:$0xff]
    %v380 = vld [vmem:[#allocation14 + $0x528] sm:$0xff]
    %v381 = vld [vmem:[#allocation14 + $0x530] sm:$0xff]
    %v382 = vld [vmem:[#allocation14 + $0x538] sm:$0xff]
    %v383 = vld [vmem:[#allocation14 + $0x540] sm:$0xff]
    %v384 = vld [vmem:[#allocation14 + $0x548] sm:$0xff]
    %v385 = vld [vmem:[#allocation14 + $0x550] sm:$0xff]
    %v386 = vld [vmem:[#allocation14 + $0x558] sm:$0xff]
    %v387 = vld [vmem:[#allocation14 + $0x560] sm:$0xff]
    %v388 = vld [vmem:[#allocation14 + $0x568] sm:$0xff]
    %v389 = vld [vmem:[#allocation14 + $0x570] sm:$0xff]
    %v390 = vld [vmem:[#allocation14 + $0x578] sm:$0xff]
    %v391 = vld [vmem:[#allocation14 + $0x580] sm:$0xff]
    %v392 = vld [vmem:[#allocation14 + $0x588] sm:$0xff]
    %v393 = vld [vmem:[#allocation14 + $0x590] sm:$0xff]
    %v394 = vld [vmem:[#allocation14 + $0x598] sm:$0xff]
    %v395 = vld [vmem:[#allocation14 + $0x5a0] sm:$0xff]
    %v396 = vld [vmem:[#allocation14 + $0x5a8] sm:$0xff]
    %v397 = vld [vmem:[#allocation14 + $0x5b0] sm:$0xff]
    %v398 = vld [vmem:[#allocation14 + $0x5b8] sm:$0xff]
    %v399 = vld [vmem:[#allocation14 + $0x5c0] sm:$0xff]
    %v400 = vld [vmem:[#allocation14 + $0x5c8] sm:$0xff]
    %v401 = vld [vmem:[#allocation14 + $0x5d0] sm:$0xff]
    %v402 = vld [vmem:[#allocation14 + $0x5d8] sm:$0xff]
    %v403 = vld [vmem:[#allocation14 + $0x5e0] sm:$0xff]
    %v404 = vld [vmem:[#allocation14 + $0x5e8] sm:$0xff]
    %v405 = vld [vmem:[#allocation14 + $0x5f0] sm:$0xff]
    %v406 = vld [vmem:[#allocation14 + $0x5f8] sm:$0xff]
    %v407 = vld [vmem:[#allocation14 + $0x600] sm:$0xff]
    %v408 = vld [vmem:[#allocation14 + $0x608] sm:$0xff]
    %v409 = vld [vmem:[#allocation14 + $0x610] sm:$0xff]
    %v410 = vld [vmem:[#allocation14 + $0x618] sm:$0xff]
    %v411 = vld [vmem:[#allocation14 + $0x620] sm:$0xff]
    %v412 = vld [vmem:[#allocation14 + $0x628] sm:$0xff]
    %v413 = vld [vmem:[#allocation14 + $0x630] sm:$0xff]
    %v414 = vld [vmem:[#allocation14 + $0x638] sm:$0xff]
    %v415 = vld [vmem:[#allocation14 + $0x640] sm:$0xff]
    %v416 = vld [vmem:[#allocation14 + $0x648] sm:$0xff]
    %v417 = vld [vmem:[#allocation14 + $0x650] sm:$0xff]
    %v418 = vld [vmem:[#allocation14 + $0x658] sm:$0xff]
    %v419 = vld [vmem:[#allocation14 + $0x660] sm:$0xff]
    %v420 = vld [vmem:[#allocation14 + $0x668] sm:$0xff]
    %v421 = vld [vmem:[#allocation14 + $0x670] sm:$0xff]
    %v422 = vld [vmem:[#allocation14 + $0x678] sm:$0xff]
    %v423 = vld [vmem:[#allocation14 + $0x680] sm:$0xff]
    %v424 = vld [vmem:[#allocation14 + $0x688] sm:$0xff]
    %v425 = vld [vmem:[#allocation14 + $0x690] sm:$0xff]
    %v426 = vld [vmem:[#allocation14 + $0x698] sm:$0xff]
    %v427 = vld [vmem:[#allocation14 + $0x6a0] sm:$0xff]
    %v428 = vld [vmem:[#allocation14 + $0x6a8] sm:$0xff]
    %v429 = vld [vmem:[#allocation14 + $0x6b0] sm:$0xff]
    %v430 = vld [vmem:[#allocation14 + $0x6b8] sm:$0xff]
    %v431 = vld [vmem:[#allocation14 + $0x6c0] sm:$0xff]
    %v432 = vld [vmem:[#allocation14 + $0x6c8] sm:$0xff]
    %v433 = vld [vmem:[#allocation14 + $0x6d0] sm:$0xff]
    %v434 = vld [vmem:[#allocation14 + $0x6d8] sm:$0xff]
    %v435 = vld [vmem:[#allocation14 + $0x6e0] sm:$0xff]
    %v436 = vld [vmem:[#allocation14 + $0x6e8] sm:$0xff]
    %v437 = vld [vmem:[#allocation14 + $0x6f0] sm:$0xff]
    %v438 = vld [vmem:[#allocation14 + $0x6f8] sm:$0xff]
    %v439 = vld [vmem:[#allocation14 + $0x700] sm:$0xff]
    %v440 = vld [vmem:[#allocation14 + $0x708] sm:$0xff]
    %v441 = vld [vmem:[#allocation14 + $0x710] sm:$0xff]
    %v442 = vld [vmem:[#allocation14 + $0x718] sm:$0xff]
    %v443 = vld [vmem:[#allocation14 + $0x720] sm:$0xff]
    %v444 = vld [vmem:[#allocation14 + $0x728] sm:$0xff]
    %v445 = vld [vmem:[#allocation14 + $0x730] sm:$0xff]
    %v446 = vld [vmem:[#allocation14 + $0x738] sm:$0xff]
    %v447 = vld [vmem:[#allocation14 + $0x740] sm:$0xff]
    %v448 = vld [vmem:[#allocation14 + $0x748] sm:$0xff]
    %v449 = vld [vmem:[#allocation14 + $0x750] sm:$0xff]
    %v450 = vld [vmem:[#allocation14 + $0x758] sm:$0xff]
    %v451 = vld [vmem:[#allocation14 + $0x760] sm:$0xff]
    %v452 = vld [vmem:[#allocation14 + $0x768] sm:$0xff]
    %v453 = vld [vmem:[#allocation14 + $0x770] sm:$0xff]
    %v454 = vld [vmem:[#allocation14 + $0x778] sm:$0xff]
    %v455 = vld [vmem:[#allocation14 + $0x780] sm:$0xff]
    %v456 = vld [vmem:[#allocation14 + $0x788] sm:$0xff]
    %v457 = vld [vmem:[#allocation14 + $0x790] sm:$0xff]
    %v458 = vld [vmem:[#allocation14 + $0x798] sm:$0xff]
    %v459 = vld [vmem:[#allocation14 + $0x7a0] sm:$0xff]
    %v460 = vld [vmem:[#allocation14 + $0x7a8] sm:$0xff]
    %v461 = vld [vmem:[#allocation14 + $0x7b0] sm:$0xff]
    %v462 = vld [vmem:[#allocation14 + $0x7b8] sm:$0xff]
    %v463 = vld [vmem:[#allocation14 + $0x7c0] sm:$0xff]
    %v464 = vld [vmem:[#allocation14 + $0x7c8] sm:$0xff]
    %v465 = vld [vmem:[#allocation14 + $0x7d0] sm:$0xff]
    %v466 = vld [vmem:[#allocation14 + $0x7d8] sm:$0xff]
    %v467 = vld [vmem:[#allocation14 + $0x7e0] sm:$0xff]
    %v468 = vld [vmem:[#allocation14 + $0x7e8] sm:$0xff]
    %v469 = vld [vmem:[#allocation14 + $0x7f0] sm:$0xff]
    %v470 = vld [vmem:[#allocation14 + $0x7f8] sm:$0xff]
    %v471 = vld [vmem:[#allocation14 + $0x800] sm:$0xff]
    %v472 = vld [vmem:[#allocation14 + $0x808] sm:$0xff]
    %v473 = vld [vmem:[#allocation14 + $0x810] sm:$0xff]
    %v474 = vld [vmem:[#allocation14 + $0x818] sm:$0xff]
    %v475 = vld [vmem:[#allocation14 + $0x820] sm:$0xff]
    %v476 = vld [vmem:[#allocation14 + $0x828] sm:$0xff]
    %v477 = vld [vmem:[#allocation14 + $0x830] sm:$0xff]
    %v478 = vld [vmem:[#allocation14 + $0x838] sm:$0xff]
    %v479 = vld [vmem:[#allocation14 + $0x840] sm:$0xff]
    %v480 = vld [vmem:[#allocation14 + $0x848] sm:$0xff]
    %v481 = vld [vmem:[#allocation14 + $0x850] sm:$0xff]
    %v482 = vld [vmem:[#allocation14 + $0x858] sm:$0xff]
    %v483 = vld [vmem:[#allocation14 + $0x860] sm:$0xff]
    %v484 = vld [vmem:[#allocation14 + $0x868] sm:$0xff]
    %v485 = vld [vmem:[#allocation14 + $0x870] sm:$0xff]
    %v486 = vld [vmem:[#allocation14 + $0x878] sm:$0xff]
    %v487 = vld [vmem:[#allocation14 + $0x880] sm:$0xff]
    %v488 = vld [vmem:[#allocation14 + $0x888] sm:$0xff]
    %v489 = vld [vmem:[#allocation14 + $0x890] sm:$0xff]
    %v490 = vld [vmem:[#allocation14 + $0x898] sm:$0xff]
    %v491 = vld [vmem:[#allocation14 + $0x8a0] sm:$0xff]
    %v492 = vld [vmem:[#allocation14 + $0x8a8] sm:$0xff]
    %v493 = vld [vmem:[#allocation14 + $0x8b0] sm:$0xff]
    %v494 = vld [vmem:[#allocation14 + $0x8b8] sm:$0xff]
    %v495 = vld [vmem:[#allocation14 + $0x8c0] sm:$0xff]
    %v496 = vld [vmem:[#allocation14 + $0x8c8] sm:$0xff]
    %v497 = vld [vmem:[#allocation14 + $0x8d0] sm:$0xff]
    %v498 = vld [vmem:[#allocation14 + $0x8d8] sm:$0xff]
    %v499 = vld [vmem:[#allocation14 + $0x8e0] sm:$0xff]
    %v500 = vld [vmem:[#allocation14 + $0x8e8] sm:$0xff]
    %v501 = vld [vmem:[#allocation14 + $0x8f0] sm:$0xff]
    %v502 = vld [vmem:[#allocation14 + $0x8f8] sm:$0xff]
    %v503 = vld [vmem:[#allocation14 + $0x900] sm:$0xff]
    %v504 = vld [vmem:[#allocation14 + $0x908] sm:$0xff]
    %v505 = vld [vmem:[#allocation14 + $0x910] sm:$0xff]
    %v506 = vld [vmem:[#allocation14 + $0x918] sm:$0xff]
    %v507 = vld [vmem:[#allocation14 + $0x920] sm:$0xff]
    %v508 = vld [vmem:[#allocation14 + $0x928] sm:$0xff]
    %v509 = vld [vmem:[#allocation14 + $0x930] sm:$0xff]
    %v510 = vld [vmem:[#allocation14 + $0x938] sm:$0xff]
    %v511 = vld [vmem:[#allocation14 + $0x940] sm:$0xff]
    %v512 = vld [vmem:[#allocation14 + $0x948] sm:$0xff]
    %v513 = vld [vmem:[#allocation14 + $0x950] sm:$0xff]
    %v514 = vld [vmem:[#allocation14 + $0x958] sm:$0xff]
    %v515 = vld [vmem:[#allocation14 + $0x960] sm:$0xff]
    %v516 = vld [vmem:[#allocation14 + $0x968] sm:$0xff]
    %v517 = vld [vmem:[#allocation14 + $0x970] sm:$0xff]
    %v518 = vld [vmem:[#allocation14 + $0x978] sm:$0xff]
    %v519 = vld [vmem:[#allocation14 + $0x980] sm:$0xff]
    %v520 = vld [vmem:[#allocation14 + $0x988] sm:$0xff]
    %v521 = vld [vmem:[#allocation14 + $0x990] sm:$0xff]
    %v522 = vld [vmem:[#allocation14 + $0x998] sm:$0xff]
    %v523 = vld [vmem:[#allocation14 + $0x9a0] sm:$0xff]
    %v524 = vld [vmem:[#allocation14 + $0x9a8] sm:$0xff]
    %v525 = vld [vmem:[#allocation14 + $0x9b0] sm:$0xff]
    %v526 = vld [vmem:[#allocation14 + $0x9b8] sm:$0xff]
    %v527 = vld [vmem:[#allocation14 + $0x9c0] sm:$0xff]
    %v528 = vld [vmem:[#allocation14 + $0x9c8] sm:$0xff]
    %v529 = vld [vmem:[#allocation14 + $0x9d0] sm:$0xff]
    %v530 = vld [vmem:[#allocation14 + $0x9d8] sm:$0xff]
    %v531 = vld [vmem:[#allocation14 + $0x9e0] sm:$0xff]
    %v532 = vld [vmem:[#allocation14 + $0x9e8] sm:$0xff]
    %v533 = vld [vmem:[#allocation14 + $0x9f0] sm:$0xff]
    %v534 = vld [vmem:[#allocation14 + $0x9f8] sm:$0xff]
    %v535 = vld [vmem:[#allocation14 + $0xa00] sm:$0xff]
    %v536 = vld [vmem:[#allocation14 + $0xa08] sm:$0xff]
    %v537 = vld [vmem:[#allocation14 + $0xa10] sm:$0xff]
    %v538 = vld [vmem:[#allocation14 + $0xa18] sm:$0xff]
    %v539 = vld [vmem:[#allocation14 + $0xa20] sm:$0xff]
    %v540 = vld [vmem:[#allocation14 + $0xa28] sm:$0xff]
    %v541 = vld [vmem:[#allocation14 + $0xa30] sm:$0xff]
    %v542 = vld [vmem:[#allocation14 + $0xa38] sm:$0xff]
    %v543 = vld [vmem:[#allocation14 + $0xa40] sm:$0xff]
    %v544 = vld [vmem:[#allocation14 + $0xa48] sm:$0xff]
    %v545 = vld [vmem:[#allocation14 + $0xa50] sm:$0xff]
    %v546 = vld [vmem:[#allocation14 + $0xa58] sm:$0xff]
    %v547 = vld [vmem:[#allocation14 + $0xa60] sm:$0xff]
    %v548 = vld [vmem:[#allocation14 + $0xa68] sm:$0xff]
    %v549 = vld [vmem:[#allocation14 + $0xa70] sm:$0xff]
    %v550 = vld [vmem:[#allocation14 + $0xa78] sm:$0xff]
    %v551 = vld [vmem:[#allocation14 + $0xa80] sm:$0xff]
    %v552 = vld [vmem:[#allocation14 + $0xa88] sm:$0xff]
    %v553 = vld [vmem:[#allocation14 + $0xa90] sm:$0xff]
    %v554 = vld [vmem:[#allocation14 + $0xa98] sm:$0xff]
    %v555 = vld [vmem:[#allocation14 + $0xaa0] sm:$0xff]
    %v556 = vld [vmem:[#allocation14 + $0xaa8] sm:$0xff]
    %v557 = vld [vmem:[#allocation14 + $0xab0] sm:$0xff]
    %v558 = vld [vmem:[#allocation14 + $0xab8] sm:$0xff]
    %v559 = vld [vmem:[#allocation14 + $0xac0] sm:$0xff]
    %v560 = vld [vmem:[#allocation14 + $0xac8] sm:$0xff]
    %v561 = vld [vmem:[#allocation14 + $0xad0] sm:$0xff]
    %v562 = vld [vmem:[#allocation14 + $0xad8] sm:$0xff]
    %v563 = vld [vmem:[#allocation14 + $0xae0] sm:$0xff]
    %v564 = vld [vmem:[#allocation14 + $0xae8] sm:$0xff]
    %v565 = vld [vmem:[#allocation14 + $0xaf0] sm:$0xff]
    %v566 = vld [vmem:[#allocation14 + $0xaf8] sm:$0xff]
    %v567 = vld [vmem:[#allocation14 + $0xb00] sm:$0xff]
    %v568 = vld [vmem:[#allocation14 + $0xb08] sm:$0xff]
    %v569 = vld [vmem:[#allocation14 + $0xb10] sm:$0xff]
    %v570 = vld [vmem:[#allocation14 + $0xb18] sm:$0xff]
    %v571 = vld [vmem:[#allocation14 + $0xb20] sm:$0xff]
    %v572 = vld [vmem:[#allocation14 + $0xb28] sm:$0xff]
    %v573 = vld [vmem:[#allocation14 + $0xb30] sm:$0xff]
    %v574 = vld [vmem:[#allocation14 + $0xb38] sm:$0xff]
    %v575 = vld [vmem:[#allocation14 + $0xb40] sm:$0xff]
    %v576 = vld [vmem:[#allocation14 + $0xb48] sm:$0xff]
    %v577 = vld [vmem:[#allocation14 + $0xb50] sm:$0xff]
    %v578 = vld [vmem:[#allocation14 + $0xb58] sm:$0xff]
    %v579 = vld [vmem:[#allocation14 + $0xb60] sm:$0xff]
    %v580 = vld [vmem:[#allocation14 + $0xb68] sm:$0xff]
    %v581 = vld [vmem:[#allocation14 + $0xb70] sm:$0xff]
    %v582 = vld [vmem:[#allocation14 + $0xb78] sm:$0xff]
    %v583 = vld [vmem:[#allocation14 + $0xb80] sm:$0xff]
    %v584 = vld [vmem:[#allocation14 + $0xb88] sm:$0xff]
    %v585 = vld [vmem:[#allocation14 + $0xb90] sm:$0xff]
    %v586 = vld [vmem:[#allocation14 + $0xb98] sm:$0xff]
    %v587 = vld [vmem:[#allocation14 + $0xba0] sm:$0xff]
    %v588 = vld [vmem:[#allocation14 + $0xba8] sm:$0xff]
    %v589 = vld [vmem:[#allocation14 + $0xbb0] sm:$0xff]
    %v590 = vld [vmem:[#allocation14 + $0xbb8] sm:$0xff]
    %v591 = vld [vmem:[#allocation14 + $0xbc0] sm:$0xff]
    %v592 = vld [vmem:[#allocation14 + $0xbc8] sm:$0xff]
    %v593 = vld [vmem:[#allocation14 + $0xbd0] sm:$0xff]
    %v594 = vld [vmem:[#allocation14 + $0xbd8] sm:$0xff]
    %v595 = vld [vmem:[#allocation14 + $0xbe0] sm:$0xff]
    %v596 = vld [vmem:[#allocation14 + $0xbe8] sm:$0xff]
    %v597 = vld [vmem:[#allocation14 + $0xbf0] sm:$0xff]
    %v598 = vld [vmem:[#allocation14 + $0xbf8] sm:$0xff]
    %v599 = vld [vmem:[#allocation14 + $0xc00] sm:$0xff]
    %v600 = vld [vmem:[#allocation14 + $0xc08] sm:$0xff]
    %v601 = vld [vmem:[#allocation14 + $0xc10] sm:$0xff]
    %v602 = vld [vmem:[#allocation14 + $0xc18] sm:$0xff]
    %v603 = vld [vmem:[#allocation14 + $0xc20] sm:$0xff]
    %v604 = vld [vmem:[#allocation14 + $0xc28] sm:$0xff]
    %v605 = vld [vmem:[#allocation14 + $0xc30] sm:$0xff]
    %v606 = vld [vmem:[#allocation14 + $0xc38] sm:$0xff]
    %v607 = vld [vmem:[#allocation14 + $0xc40] sm:$0xff]
    %v608 = vld [vmem:[#allocation14 + $0xc48] sm:$0xff]
    %v609 = vld [vmem:[#allocation14 + $0xc50] sm:$0xff]
    %v610 = vld [vmem:[#allocation14 + $0xc58] sm:$0xff]
    %v611 = vld [vmem:[#allocation14 + $0xc60] sm:$0xff]
    %v612 = vld [vmem:[#allocation14 + $0xc68] sm:$0xff]
    %v613 = vld [vmem:[#allocation14 + $0xc70] sm:$0xff]
    %v614 = vld [vmem:[#allocation14 + $0xc78] sm:$0xff]
    %v615 = vld [vmem:[#allocation14 + $0xc80] sm:$0xff]
    %v616 = vld [vmem:[#allocation14 + $0xc88] sm:$0xff]
    %v617 = vld [vmem:[#allocation14 + $0xc90] sm:$0xff]
    %v618 = vld [vmem:[#allocation14 + $0xc98] sm:$0xff]
    %v619 = vld [vmem:[#allocation14 + $0xca0] sm:$0xff]
    %v620 = vld [vmem:[#allocation14 + $0xca8] sm:$0xff]
    %v621 = vld [vmem:[#allocation14 + $0xcb0] sm:$0xff]
    %v622 = vld [vmem:[#allocation14 + $0xcb8] sm:$0xff]
    %v623 = vld [vmem:[#allocation14 + $0xcc0] sm:$0xff]
    %v624 = vld [vmem:[#allocation14 + $0xcc8] sm:$0xff]
    %v625 = vld [vmem:[#allocation14 + $0xcd0] sm:$0xff]
    %v626 = vld [vmem:[#allocation14 + $0xcd8] sm:$0xff]
    %v627 = vld [vmem:[#allocation14 + $0xce0] sm:$0xff]
    %v628 = vld [vmem:[#allocation14 + $0xce8] sm:$0xff]
    %v629 = vld [vmem:[#allocation14 + $0xcf0] sm:$0xff]
    %v630 = vld [vmem:[#allocation14 + $0xcf8] sm:$0xff]
    %v631 = vld [vmem:[#allocation14 + $0xd00] sm:$0xff]
    %v632 = vld [vmem:[#allocation14 + $0xd08] sm:$0xff]
    %v633 = vld [vmem:[#allocation14 + $0xd10] sm:$0xff]
    %v634 = vld [vmem:[#allocation14 + $0xd18] sm:$0xff]
    %v635 = vld [vmem:[#allocation14 + $0xd20] sm:$0xff]
    %v636 = vld [vmem:[#allocation14 + $0xd28] sm:$0xff]
    %v637 = vld [vmem:[#allocation14 + $0xd30] sm:$0xff]
    %v638 = vld [vmem:[#allocation14 + $0xd38] sm:$0xff]
    %v639 = vld [vmem:[#allocation14 + $0xd40] sm:$0xff]
    %v640 = vld [vmem:[#allocation14 + $0xd48] sm:$0xff]
    %v641 = vld [vmem:[#allocation14 + $0xd50] sm:$0xff]
    %v642 = vld [vmem:[#allocation14 + $0xd58] sm:$0xff]
    %v643 = vld [vmem:[#allocation14 + $0xd60] sm:$0xff]
    %v644 = vld [vmem:[#allocation14 + $0xd68] sm:$0xff]
    %v645 = vld [vmem:[#allocation14 + $0xd70] sm:$0xff]
    %v646 = vld [vmem:[#allocation14 + $0xd78] sm:$0xff]
    %v647 = vld [vmem:[#allocation14 + $0xd80] sm:$0xff]
    %v648 = vld [vmem:[#allocation14 + $0xd88] sm:$0xff]
    %v649 = vld [vmem:[#allocation14 + $0xd90] sm:$0xff]
    %v650 = vld [vmem:[#allocation14 + $0xd98] sm:$0xff]
    %v651 = vld [vmem:[#allocation14 + $0xda0] sm:$0xff]
    %v652 = vld [vmem:[#allocation14 + $0xda8] sm:$0xff]
    %v653 = vld [vmem:[#allocation14 + $0xdb0] sm:$0xff]
    %v654 = vld [vmem:[#allocation14 + $0xdb8] sm:$0xff]
    %v655 = vld [vmem:[#allocation14 + $0xdc0] sm:$0xff]
    %v656 = vld [vmem:[#allocation14 + $0xdc8] sm:$0xff]
    %v657 = vld [vmem:[#allocation14 + $0xdd0] sm:$0xff]
    %v658 = vld [vmem:[#allocation14 + $0xdd8] sm:$0xff]
    %v659 = vld [vmem:[#allocation14 + $0xde0] sm:$0xff]
    %v660 = vld [vmem:[#allocation14 + $0xde8] sm:$0xff]
    %v661 = vld [vmem:[#allocation14 + $0xdf0] sm:$0xff]
    %v662 = vld [vmem:[#allocation14 + $0xdf8] sm:$0xff]
    %v663 = vld [vmem:[#allocation14 + $0xe00] sm:$0xff]
    %v664 = vld [vmem:[#allocation14 + $0xe08] sm:$0xff]
    %v665 = vld [vmem:[#allocation14 + $0xe10] sm:$0xff]
    %v666 = vld [vmem:[#allocation14 + $0xe18] sm:$0xff]
    %v667 = vld [vmem:[#allocation14 + $0xe20] sm:$0xff]
    %v668 = vld [vmem:[#allocation14 + $0xe28] sm:$0xff]
    %v669 = vld [vmem:[#allocation14 + $0xe30] sm:$0xff]
    %v670 = vld [vmem:[#allocation14 + $0xe38] sm:$0xff]
    %v671 = vld [vmem:[#allocation14 + $0xe40] sm:$0xff]
    %v672 = vld [vmem:[#allocation14 + $0xe48] sm:$0xff]
    %v673 = vld [vmem:[#allocation14 + $0xe50] sm:$0xff]
    %v674 = vld [vmem:[#allocation14 + $0xe58] sm:$0xff]
    %v675 = vld [vmem:[#allocation14 + $0xe60] sm:$0xff]
    %v676 = vld [vmem:[#allocation14 + $0xe68] sm:$0xff]
    %v677 = vld [vmem:[#allocation14 + $0xe70] sm:$0xff]
    %v678 = vld [vmem:[#allocation14 + $0xe78] sm:$0xff]
    %v679 = vld [vmem:[#allocation14 + $0xe80] sm:$0xff]
    %v680 = vld [vmem:[#allocation14 + $0xe88] sm:$0xff]
    %v681 = vld [vmem:[#allocation14 + $0xe90] sm:$0xff]
    %v682 = vld [vmem:[#allocation14 + $0xe98] sm:$0xff]
    %v683 = vld [vmem:[#allocation14 + $0xea0] sm:$0xff]
    %v684 = vld [vmem:[#allocation14 + $0xea8] sm:$0xff]
    %v685 = vld [vmem:[#allocation14 + $0xeb0] sm:$0xff]
    %v686 = vld [vmem:[#allocation14 + $0xeb8] sm:$0xff]
    %v687 = vld [vmem:[#allocation14 + $0xec0] sm:$0xff]
    %v688 = vld [vmem:[#allocation14 + $0xec8] sm:$0xff]
    %v689 = vld [vmem:[#allocation14 + $0xed0] sm:$0xff]
    %v690 = vld [vmem:[#allocation14 + $0xed8] sm:$0xff]
    %v691 = vld [vmem:[#allocation14 + $0xee0] sm:$0xff]
    %v692 = vld [vmem:[#allocation14 + $0xee8] sm:$0xff]
    %v693 = vld [vmem:[#allocation14 + $0xef0] sm:$0xff]
    %v694 = vld [vmem:[#allocation14 + $0xef8] sm:$0xff]
    %v695 = vld [vmem:[#allocation14 + $0xf00] sm:$0xff]
    %v696 = vld [vmem:[#allocation14 + $0xf08] sm:$0xff]
    %v697 = vld [vmem:[#allocation14 + $0xf10] sm:$0xff]
    %v698 = vld [vmem:[#allocation14 + $0xf18] sm:$0xff]
    %v699 = vld [vmem:[#allocation14 + $0xf20] sm:$0xff]
    %v700 = vld [vmem:[#allocation14 + $0xf28] sm:$0xff]
    %v701 = vld [vmem:[#allocation14 + $0xf30] sm:$0xff]
    %v702 = vld [vmem:[#allocation14 + $0xf38] sm:$0xff]
    %v703 = vld [vmem:[#allocation14 + $0xf40] sm:$0xff]
    %v704 = vld [vmem:[#allocation14 + $0xf48] sm:$0xff]
    %v705 = vld [vmem:[#allocation14 + $0xf50] sm:$0xff]
    %v706 = vld [vmem:[#allocation14 + $0xf58] sm:$0xff]
    %v707 = vld [vmem:[#allocation14 + $0xf60] sm:$0xff]
    %v708 = vld [vmem:[#allocation14 + $0xf68] sm:$0xff]
    %v709 = vld [vmem:[#allocation14 + $0xf70] sm:$0xff]
    %v710 = vld [vmem:[#allocation14 + $0xf78] sm:$0xff]
    %v711 = vld [vmem:[#allocation14 + $0xf80] sm:$0xff]
    %v712 = vld [vmem:[#allocation14 + $0xf88] sm:$0xff]
    %v713 = vld [vmem:[#allocation14 + $0xf90] sm:$0xff]
    %v714 = vld [vmem:[#allocation14 + $0xf98] sm:$0xff]
    %v715 = vld [vmem:[#allocation14 + $0xfa0] sm:$0xff]
    %v716 = vld [vmem:[#allocation14 + $0xfa8] sm:$0xff]
    %v717 = vld [vmem:[#allocation14 + $0xfb0] sm:$0xff]
    %v718 = vld [vmem:[#allocation14 + $0xfb8] sm:$0xff]
    %v719 = vld [vmem:[#allocation14 + $0xfc0] sm:$0xff]
    %v720 = vld [vmem:[#allocation14 + $0xfc8] sm:$0xff]
    %v721 = vld [vmem:[#allocation14 + $0xfd0] sm:$0xff]
    %v722 = vld [vmem:[#allocation14 + $0xfd8] sm:$0xff]
    %v723 = vld [vmem:[#allocation14 + $0xfe0] sm:$0xff]
    %v724 = vld [vmem:[#allocation14 + $0xfe8] sm:$0xff]
    %v725 = vld [vmem:[#allocation14 + $0xff0] sm:$0xff]
    %v726 = vld [vmem:[#allocation14 + $0xff8] sm:$0xff]
    %v727 = vld [vmem:[#allocation16] sm:$0xff]
    %v728 = vld [vmem:[#allocation16 + $0x8] sm:$0xff]
    %v731 = vlaneseq
    %v732 = vshrl.u32 %v731, 7
    %v733 = vsub.s32 0, %v732
    %v734 = vrot.slane %v727, %v733
    %v735 = vlaneseq
    %v736 = vshrl.u32 %v735, 7
    %v737 = vsub.s32 1, %v736
    %v738 = vrot.slane %v727, %v737
    %v739 = vlaneseq
    %v740 = vshrl.u32 %v739, 7
    %v741 = vsub.s32 2, %v740
    %v742 = vrot.slane %v727, %v741
    %v743 = vlaneseq
    %v744 = vshrl.u32 %v743, 7
    %v745 = vsub.s32 3, %v744
    %v746 = vrot.slane %v727, %v745
    %v747 = vlaneseq
    %v748 = vshrl.u32 %v747, 7
    %v749 = vsub.s32 4, %v748
    %v750 = vrot.slane %v727, %v749
    %v751 = vlaneseq
    %v752 = vshrl.u32 %v751, 7
    %v753 = vsub.s32 5, %v752
    %v754 = vrot.slane %v727, %v753
    %v755 = vlaneseq
    %v756 = vshrl.u32 %v755, 7
    %v757 = vsub.s32 6, %v756
    %v758 = vrot.slane %v727, %v757
    %v759 = vlaneseq
    %v760 = vshrl.u32 %v759, 7
    %v761 = vsub.s32 7, %v760
    %v762 = vrot.slane %v727, %v761
    %v763 = vlaneseq
    %v764 = vshrl.u32 %v763, 7
    %v765 = vsub.s32 0, %v764
    %v766 = vrot.slane %v728, %v765
    %v767 = vlaneseq
    %v768 = vshrl.u32 %v767, 7
    %v769 = vsub.s32 1, %v768
    %v770 = vrot.slane %v728, %v769
    %v771 = vlaneseq
    %v772 = vshrl.u32 %v771, 7
    %v773 = vsub.s32 2, %v772
    %v774 = vrot.slane %v728, %v773
    %v775 = vlaneseq
    %v776 = vshrl.u32 %v775, 7
    %v777 = vsub.s32 3, %v776
    %v778 = vrot.slane %v728, %v777
    %v779 = vlaneseq
    %v780 = vshrl.u32 %v779, 7
    %v781 = vsub.s32 4, %v780
    %v782 = vrot.slane %v728, %v781
    %v783 = vlaneseq
    %v784 = vshrl.u32 %v783, 7
    %v785 = vsub.s32 5, %v784
    %v786 = vrot.slane %v728, %v785
    %v787 = vlaneseq
    %v788 = vshrl.u32 %v787, 7
    %v789 = vsub.s32 6, %v788
    %v790 = vrot.slane %v728, %v789
    %v791 = vlaneseq
    %v792 = vshrl.u32 %v791, 7
    %v793 = vsub.s32 7, %v792
    %v794 = vrot.slane %v728, %v793
    %v1323 = vunpack.c.l.b16 %v215
    %v1324 = vunpack.c.h.b16 %v215
    %v1325 = vunpack.c.l.b16 %v216
    %v1326 = vunpack.c.h.b16 %v216
    %v1327 = vunpack.c.l.b16 %v217
    %v1328 = vunpack.c.h.b16 %v217
    %v1329 = vunpack.c.l.b16 %v218
    %v1330 = vunpack.c.h.b16 %v218
    %v1331 = vunpack.c.l.b16 %v219
    %v1332 = vunpack.c.h.b16 %v219
    %v1333 = vunpack.c.l.b16 %v220
    %v1334 = vunpack.c.h.b16 %v220
    %v1335 = vunpack.c.l.b16 %v221
    %v1336 = vunpack.c.h.b16 %v221
    %v1337 = vunpack.c.l.b16 %v222
    %v1338 = vunpack.c.h.b16 %v222
    %v1339 = vunpack.c.l.b16 %v223
    %v1340 = vunpack.c.h.b16 %v223
    %v1341 = vunpack.c.l.b16 %v224
    %v1342 = vunpack.c.h.b16 %v224
    %v1343 = vunpack.c.l.b16 %v225
    %v1344 = vunpack.c.h.b16 %v225
    %v1345 = vunpack.c.l.b16 %v226
    %v1346 = vunpack.c.h.b16 %v226
    %v1347 = vunpack.c.l.b16 %v227
    %v1348 = vunpack.c.h.b16 %v227
    %v1349 = vunpack.c.l.b16 %v228
    %v1350 = vunpack.c.h.b16 %v228
    %v1351 = vunpack.c.l.b16 %v229
    %v1352 = vunpack.c.h.b16 %v229
    %v1353 = vunpack.c.l.b16 %v230
    %v1354 = vunpack.c.h.b16 %v230
    %v1355 = vunpack.c.l.b16 %v231
    %v1356 = vunpack.c.h.b16 %v231
    %v1357 = vunpack.c.l.b16 %v232
    %v1358 = vunpack.c.h.b16 %v232
    %v1359 = vunpack.c.l.b16 %v233
    %v1360 = vunpack.c.h.b16 %v233
    %v1361 = vunpack.c.l.b16 %v234
    %v1362 = vunpack.c.h.b16 %v234
    %v1363 = vunpack.c.l.b16 %v235
    %v1364 = vunpack.c.h.b16 %v235
    %v1365 = vunpack.c.l.b16 %v236
    %v1366 = vunpack.c.h.b16 %v236
    %v1367 = vunpack.c.l.b16 %v237
    %v1368 = vunpack.c.h.b16 %v237
    %v1369 = vunpack.c.l.b16 %v238
    %v1370 = vunpack.c.h.b16 %v238
    %v1371 = vunpack.c.l.b16 %v239
    %v1372 = vunpack.c.h.b16 %v239
    %v1373 = vunpack.c.l.b16 %v240
    %v1374 = vunpack.c.h.b16 %v240
    %v1375 = vunpack.c.l.b16 %v241
    %v1376 = vunpack.c.h.b16 %v241
    %v1377 = vunpack.c.l.b16 %v242
    %v1378 = vunpack.c.h.b16 %v242
    %v1379 = vunpack.c.l.b16 %v243
    %v1380 = vunpack.c.h.b16 %v243
    %v1381 = vunpack.c.l.b16 %v244
    %v1382 = vunpack.c.h.b16 %v244
    %v1383 = vunpack.c.l.b16 %v245
    %v1384 = vunpack.c.h.b16 %v245
    %v1385 = vunpack.c.l.b16 %v246
    %v1386 = vunpack.c.h.b16 %v246
    %v1387 = vunpack.c.l.b16 %v247
    %v1388 = vunpack.c.h.b16 %v247
    %v1389 = vunpack.c.l.b16 %v248
    %v1390 = vunpack.c.h.b16 %v248
    %v1391 = vunpack.c.l.b16 %v249
    %v1392 = vunpack.c.h.b16 %v249
    %v1393 = vunpack.c.l.b16 %v250
    %v1394 = vunpack.c.h.b16 %v250
    %v1395 = vunpack.c.l.b16 %v251
    %v1396 = vunpack.c.h.b16 %v251
    %v1397 = vunpack.c.l.b16 %v252
    %v1398 = vunpack.c.h.b16 %v252
    %v1399 = vunpack.c.l.b16 %v253
    %v1400 = vunpack.c.h.b16 %v253
    %v1401 = vunpack.c.l.b16 %v254
    %v1402 = vunpack.c.h.b16 %v254
    %v1403 = vunpack.c.l.b16 %v255
    %v1404 = vunpack.c.h.b16 %v255
    %v1405 = vunpack.c.l.b16 %v256
    %v1406 = vunpack.c.h.b16 %v256
    %v1407 = vunpack.c.l.b16 %v257
    %v1408 = vunpack.c.h.b16 %v257
    %v1409 = vunpack.c.l.b16 %v258
    %v1410 = vunpack.c.h.b16 %v258
    %v1411 = vunpack.c.l.b16 %v259
    %v1412 = vunpack.c.h.b16 %v259
    %v1413 = vunpack.c.l.b16 %v260
    %v1414 = vunpack.c.h.b16 %v260
    %v1415 = vunpack.c.l.b16 %v261
    %v1416 = vunpack.c.h.b16 %v261
    %v1417 = vunpack.c.l.b16 %v262
    %v1418 = vunpack.c.h.b16 %v262
    %v1419 = vunpack.c.l.b16 %v263
    %v1420 = vunpack.c.h.b16 %v263
    %v1421 = vunpack.c.l.b16 %v264
    %v1422 = vunpack.c.h.b16 %v264
    %v1423 = vunpack.c.l.b16 %v265
    %v1424 = vunpack.c.h.b16 %v265
    %v1425 = vunpack.c.l.b16 %v266
    %v1426 = vunpack.c.h.b16 %v266
    %v1427 = vunpack.c.l.b16 %v267
    %v1428 = vunpack.c.h.b16 %v267
    %v1429 = vunpack.c.l.b16 %v268
    %v1430 = vunpack.c.h.b16 %v268
    %v1431 = vunpack.c.l.b16 %v269
    %v1432 = vunpack.c.h.b16 %v269
    %v1433 = vunpack.c.l.b16 %v270
    %v1434 = vunpack.c.h.b16 %v270
    %v1435 = vunpack.c.l.b16 %v271
    %v1436 = vunpack.c.h.b16 %v271
    %v1437 = vunpack.c.l.b16 %v272
    %v1438 = vunpack.c.h.b16 %v272
    %v1439 = vunpack.c.l.b16 %v273
    %v1440 = vunpack.c.h.b16 %v273
    %v1441 = vunpack.c.l.b16 %v274
    %v1442 = vunpack.c.h.b16 %v274
    %v1443 = vunpack.c.l.b16 %v275
    %v1444 = vunpack.c.h.b16 %v275
    %v1445 = vunpack.c.l.b16 %v276
    %v1446 = vunpack.c.h.b16 %v276
    %v1447 = vunpack.c.l.b16 %v277
    %v1448 = vunpack.c.h.b16 %v277
    %v1449 = vunpack.c.l.b16 %v278
    %v1450 = vunpack.c.h.b16 %v278
    %v1451 = vunpack.c.l.b16 %v279
    %v1452 = vunpack.c.h.b16 %v279
    %v1453 = vunpack.c.l.b16 %v280
    %v1454 = vunpack.c.h.b16 %v280
    %v1455 = vunpack.c.l.b16 %v281
    %v1456 = vunpack.c.h.b16 %v281
    %v1457 = vunpack.c.l.b16 %v282
    %v1458 = vunpack.c.h.b16 %v282
    %v1459 = vunpack.c.l.b16 %v283
    %v1460 = vunpack.c.h.b16 %v283
    %v1461 = vunpack.c.l.b16 %v284
    %v1462 = vunpack.c.h.b16 %v284
    %v1463 = vunpack.c.l.b16 %v285
    %v1464 = vunpack.c.h.b16 %v285
    %v1465 = vunpack.c.l.b16 %v286
    %v1466 = vunpack.c.h.b16 %v286
    %v1467 = vunpack.c.l.b16 %v287
    %v1468 = vunpack.c.h.b16 %v287
    %v1469 = vunpack.c.l.b16 %v288
    %v1470 = vunpack.c.h.b16 %v288
    %v1471 = vunpack.c.l.b16 %v289
    %v1472 = vunpack.c.h.b16 %v289
    %v1473 = vunpack.c.l.b16 %v290
    %v1474 = vunpack.c.h.b16 %v290
    %v1475 = vunpack.c.l.b16 %v291
    %v1476 = vunpack.c.h.b16 %v291
    %v1477 = vunpack.c.l.b16 %v292
    %v1478 = vunpack.c.h.b16 %v292
    %v1479 = vunpack.c.l.b16 %v293
    %v1480 = vunpack.c.h.b16 %v293
    %v1481 = vunpack.c.l.b16 %v294
    %v1482 = vunpack.c.h.b16 %v294
    %v1483 = vunpack.c.l.b16 %v295
    %v1484 = vunpack.c.h.b16 %v295
    %v1485 = vunpack.c.l.b16 %v296
    %v1486 = vunpack.c.h.b16 %v296
    %v1487 = vunpack.c.l.b16 %v297
    %v1488 = vunpack.c.h.b16 %v297
    %v1489 = vunpack.c.l.b16 %v298
    %v1490 = vunpack.c.h.b16 %v298
    %v1491 = vunpack.c.l.b16 %v299
    %v1492 = vunpack.c.h.b16 %v299
    %v1493 = vunpack.c.l.b16 %v300
    %v1494 = vunpack.c.h.b16 %v300
    %v1495 = vunpack.c.l.b16 %v301
    %v1496 = vunpack.c.h.b16 %v301
    %v1497 = vunpack.c.l.b16 %v302
    %v1498 = vunpack.c.h.b16 %v302
    %v1499 = vunpack.c.l.b16 %v303
    %v1500 = vunpack.c.h.b16 %v303
    %v1501 = vunpack.c.l.b16 %v304
    %v1502 = vunpack.c.h.b16 %v304
    %v1503 = vunpack.c.l.b16 %v305
    %v1504 = vunpack.c.h.b16 %v305
    %v1505 = vunpack.c.l.b16 %v306
    %v1506 = vunpack.c.h.b16 %v306
    %v1507 = vunpack.c.l.b16 %v307
    %v1508 = vunpack.c.h.b16 %v307
    %v1509 = vunpack.c.l.b16 %v308
    %v1510 = vunpack.c.h.b16 %v308
    %v1511 = vunpack.c.l.b16 %v309
    %v1512 = vunpack.c.h.b16 %v309
    %v1513 = vunpack.c.l.b16 %v310
    %v1514 = vunpack.c.h.b16 %v310
    %v1515 = vunpack.c.l.b16 %v311
    %v1516 = vunpack.c.h.b16 %v311
    %v1517 = vunpack.c.l.b16 %v312
    %v1518 = vunpack.c.h.b16 %v312
    %v1519 = vunpack.c.l.b16 %v313
    %v1520 = vunpack.c.h.b16 %v313
    %v1521 = vunpack.c.l.b16 %v314
    %v1522 = vunpack.c.h.b16 %v314
    %v1523 = vunpack.c.l.b16 %v315
    %v1524 = vunpack.c.h.b16 %v315
    %v1525 = vunpack.c.l.b16 %v316
    %v1526 = vunpack.c.h.b16 %v316
    %v1527 = vunpack.c.l.b16 %v317
    %v1528 = vunpack.c.h.b16 %v317
    %v1529 = vunpack.c.l.b16 %v318
    %v1530 = vunpack.c.h.b16 %v318
    %v1531 = vunpack.c.l.b16 %v319
    %v1532 = vunpack.c.h.b16 %v319
    %v1533 = vunpack.c.l.b16 %v320
    %v1534 = vunpack.c.h.b16 %v320
    %v1535 = vunpack.c.l.b16 %v321
    %v1536 = vunpack.c.h.b16 %v321
    %v1537 = vunpack.c.l.b16 %v322
    %v1538 = vunpack.c.h.b16 %v322
    %v1539 = vunpack.c.l.b16 %v323
    %v1540 = vunpack.c.h.b16 %v323
    %v1541 = vunpack.c.l.b16 %v324
    %v1542 = vunpack.c.h.b16 %v324
    %v1543 = vunpack.c.l.b16 %v325
    %v1544 = vunpack.c.h.b16 %v325
    %v1545 = vunpack.c.l.b16 %v326
    %v1546 = vunpack.c.h.b16 %v326
    %v1547 = vunpack.c.l.b16 %v327
    %v1548 = vunpack.c.h.b16 %v327
    %v1549 = vunpack.c.l.b16 %v328
    %v1550 = vunpack.c.h.b16 %v328
    %v1551 = vunpack.c.l.b16 %v329
    %v1552 = vunpack.c.h.b16 %v329
    %v1553 = vunpack.c.l.b16 %v330
    %v1554 = vunpack.c.h.b16 %v330
    %v1555 = vunpack.c.l.b16 %v331
    %v1556 = vunpack.c.h.b16 %v331
    %v1557 = vunpack.c.l.b16 %v332
    %v1558 = vunpack.c.h.b16 %v332
    %v1559 = vunpack.c.l.b16 %v333
    %v1560 = vunpack.c.h.b16 %v333
    %v1561 = vunpack.c.l.b16 %v334
    %v1562 = vunpack.c.h.b16 %v334
    %v1563 = vunpack.c.l.b16 %v335
    %v1564 = vunpack.c.h.b16 %v335
    %v1565 = vunpack.c.l.b16 %v336
    %v1566 = vunpack.c.h.b16 %v336
    %v1567 = vunpack.c.l.b16 %v337
    %v1568 = vunpack.c.h.b16 %v337
    %v1569 = vunpack.c.l.b16 %v338
    %v1570 = vunpack.c.h.b16 %v338
    %v1571 = vunpack.c.l.b16 %v339
    %v1572 = vunpack.c.h.b16 %v339
    %v1573 = vunpack.c.l.b16 %v340
    %v1574 = vunpack.c.h.b16 %v340
    %v1575 = vunpack.c.l.b16 %v341
    %v1576 = vunpack.c.h.b16 %v341
    %v1577 = vunpack.c.l.b16 %v342
    %v1578 = vunpack.c.h.b16 %v342
    %v1579 = vunpack.c.l.b16 %v343
    %v1580 = vunpack.c.h.b16 %v343
    %v1581 = vunpack.c.l.b16 %v344
    %v1582 = vunpack.c.h.b16 %v344
    %v1583 = vunpack.c.l.b16 %v345
    %v1584 = vunpack.c.h.b16 %v345
    %v1585 = vunpack.c.l.b16 %v346
    %v1586 = vunpack.c.h.b16 %v346
    %v1587 = vunpack.c.l.b16 %v347
    %v1588 = vunpack.c.h.b16 %v347
    %v1589 = vunpack.c.l.b16 %v348
    %v1590 = vunpack.c.h.b16 %v348
    %v1591 = vunpack.c.l.b16 %v349
    %v1592 = vunpack.c.h.b16 %v349
    %v1593 = vunpack.c.l.b16 %v350
    %v1594 = vunpack.c.h.b16 %v350
    %v1595 = vunpack.c.l.b16 %v351
    %v1596 = vunpack.c.h.b16 %v351
    %v1597 = vunpack.c.l.b16 %v352
    %v1598 = vunpack.c.h.b16 %v352
    %v1599 = vunpack.c.l.b16 %v353
    %v1600 = vunpack.c.h.b16 %v353
    %v1601 = vunpack.c.l.b16 %v354
    %v1602 = vunpack.c.h.b16 %v354
    %v1603 = vunpack.c.l.b16 %v355
    %v1604 = vunpack.c.h.b16 %v355
    %v1605 = vunpack.c.l.b16 %v356
    %v1606 = vunpack.c.h.b16 %v356
    %v1607 = vunpack.c.l.b16 %v357
    %v1608 = vunpack.c.h.b16 %v357
    %v1609 = vunpack.c.l.b16 %v358
    %v1610 = vunpack.c.h.b16 %v358
    %v1611 = vunpack.c.l.b16 %v359
    %v1612 = vunpack.c.h.b16 %v359
    %v1613 = vunpack.c.l.b16 %v360
    %v1614 = vunpack.c.h.b16 %v360
    %v1615 = vunpack.c.l.b16 %v361
    %v1616 = vunpack.c.h.b16 %v361
    %v1617 = vunpack.c.l.b16 %v362
    %v1618 = vunpack.c.h.b16 %v362
    %v1619 = vunpack.c.l.b16 %v363
    %v1620 = vunpack.c.h.b16 %v363
    %v1621 = vunpack.c.l.b16 %v364
    %v1622 = vunpack.c.h.b16 %v364
    %v1623 = vunpack.c.l.b16 %v365
    %v1624 = vunpack.c.h.b16 %v365
    %v1625 = vunpack.c.l.b16 %v366
    %v1626 = vunpack.c.h.b16 %v366
    %v1627 = vunpack.c.l.b16 %v367
    %v1628 = vunpack.c.h.b16 %v367
    %v1629 = vunpack.c.l.b16 %v368
    %v1630 = vunpack.c.h.b16 %v368
    %v1631 = vunpack.c.l.b16 %v369
    %v1632 = vunpack.c.h.b16 %v369
    %v1633 = vunpack.c.l.b16 %v370
    %v1634 = vunpack.c.h.b16 %v370
    %v1635 = vunpack.c.l.b16 %v371
    %v1636 = vunpack.c.h.b16 %v371
    %v1637 = vunpack.c.l.b16 %v372
    %v1638 = vunpack.c.h.b16 %v372
    %v1639 = vunpack.c.l.b16 %v373
    %v1640 = vunpack.c.h.b16 %v373
    %v1641 = vunpack.c.l.b16 %v374
    %v1642 = vunpack.c.h.b16 %v374
    %v1643 = vunpack.c.l.b16 %v375
    %v1644 = vunpack.c.h.b16 %v375
    %v1645 = vunpack.c.l.b16 %v376
    %v1646 = vunpack.c.h.b16 %v376
    %v1647 = vunpack.c.l.b16 %v377
    %v1648 = vunpack.c.h.b16 %v377
    %v1649 = vunpack.c.l.b16 %v378
    %v1650 = vunpack.c.h.b16 %v378
    %v1651 = vunpack.c.l.b16 %v379
    %v1652 = vunpack.c.h.b16 %v379
    %v1653 = vunpack.c.l.b16 %v380
    %v1654 = vunpack.c.h.b16 %v380
    %v1655 = vunpack.c.l.b16 %v381
    %v1656 = vunpack.c.h.b16 %v381
    %v1657 = vunpack.c.l.b16 %v382
    %v1658 = vunpack.c.h.b16 %v382
    %v1659 = vunpack.c.l.b16 %v383
    %v1660 = vunpack.c.h.b16 %v383
    %v1661 = vunpack.c.l.b16 %v384
    %v1662 = vunpack.c.h.b16 %v384
    %v1663 = vunpack.c.l.b16 %v385
    %v1664 = vunpack.c.h.b16 %v385
    %v1665 = vunpack.c.l.b16 %v386
    %v1666 = vunpack.c.h.b16 %v386
    %v1667 = vunpack.c.l.b16 %v387
    %v1668 = vunpack.c.h.b16 %v387
    %v1669 = vunpack.c.l.b16 %v388
    %v1670 = vunpack.c.h.b16 %v388
    %v1671 = vunpack.c.l.b16 %v389
    %v1672 = vunpack.c.h.b16 %v389
    %v1673 = vunpack.c.l.b16 %v390
    %v1674 = vunpack.c.h.b16 %v390
    %v1675 = vunpack.c.l.b16 %v391
    %v1676 = vunpack.c.h.b16 %v391
    %v1677 = vunpack.c.l.b16 %v392
    %v1678 = vunpack.c.h.b16 %v392
    %v1679 = vunpack.c.l.b16 %v393
    %v1680 = vunpack.c.h.b16 %v393
    %v1681 = vunpack.c.l.b16 %v394
    %v1682 = vunpack.c.h.b16 %v394
    %v1683 = vunpack.c.l.b16 %v395
    %v1684 = vunpack.c.h.b16 %v395
    %v1685 = vunpack.c.l.b16 %v396
    %v1686 = vunpack.c.h.b16 %v396
    %v1687 = vunpack.c.l.b16 %v397
    %v1688 = vunpack.c.h.b16 %v397
    %v1689 = vunpack.c.l.b16 %v398
    %v1690 = vunpack.c.h.b16 %v398
    %v1691 = vunpack.c.l.b16 %v399
    %v1692 = vunpack.c.h.b16 %v399
    %v1693 = vunpack.c.l.b16 %v400
    %v1694 = vunpack.c.h.b16 %v400
    %v1695 = vunpack.c.l.b16 %v401
    %v1696 = vunpack.c.h.b16 %v401
    %v1697 = vunpack.c.l.b16 %v402
    %v1698 = vunpack.c.h.b16 %v402
    %v1699 = vunpack.c.l.b16 %v403
    %v1700 = vunpack.c.h.b16 %v403
    %v1701 = vunpack.c.l.b16 %v404
    %v1702 = vunpack.c.h.b16 %v404
    %v1703 = vunpack.c.l.b16 %v405
    %v1704 = vunpack.c.h.b16 %v405
    %v1705 = vunpack.c.l.b16 %v406
    %v1706 = vunpack.c.h.b16 %v406
    %v1707 = vunpack.c.l.b16 %v407
    %v1708 = vunpack.c.h.b16 %v407
    %v1709 = vunpack.c.l.b16 %v408
    %v1710 = vunpack.c.h.b16 %v408
    %v1711 = vunpack.c.l.b16 %v409
    %v1712 = vunpack.c.h.b16 %v409
    %v1713 = vunpack.c.l.b16 %v410
    %v1714 = vunpack.c.h.b16 %v410
    %v1715 = vunpack.c.l.b16 %v411
    %v1716 = vunpack.c.h.b16 %v411
    %v1717 = vunpack.c.l.b16 %v412
    %v1718 = vunpack.c.h.b16 %v412
    %v1719 = vunpack.c.l.b16 %v413
    %v1720 = vunpack.c.h.b16 %v413
    %v1721 = vunpack.c.l.b16 %v414
    %v1722 = vunpack.c.h.b16 %v414
    %v1723 = vunpack.c.l.b16 %v415
    %v1724 = vunpack.c.h.b16 %v415
    %v1725 = vunpack.c.l.b16 %v416
    %v1726 = vunpack.c.h.b16 %v416
    %v1727 = vunpack.c.l.b16 %v417
    %v1728 = vunpack.c.h.b16 %v417
    %v1729 = vunpack.c.l.b16 %v418
    %v1730 = vunpack.c.h.b16 %v418
    %v1731 = vunpack.c.l.b16 %v419
    %v1732 = vunpack.c.h.b16 %v419
    %v1733 = vunpack.c.l.b16 %v420
    %v1734 = vunpack.c.h.b16 %v420
    %v1735 = vunpack.c.l.b16 %v421
    %v1736 = vunpack.c.h.b16 %v421
    %v1737 = vunpack.c.l.b16 %v422
    %v1738 = vunpack.c.h.b16 %v422
    %v1739 = vunpack.c.l.b16 %v423
    %v1740 = vunpack.c.h.b16 %v423
    %v1741 = vunpack.c.l.b16 %v424
    %v1742 = vunpack.c.h.b16 %v424
    %v1743 = vunpack.c.l.b16 %v425
    %v1744 = vunpack.c.h.b16 %v425
    %v1745 = vunpack.c.l.b16 %v426
    %v1746 = vunpack.c.h.b16 %v426
    %v1747 = vunpack.c.l.b16 %v427
    %v1748 = vunpack.c.h.b16 %v427
    %v1749 = vunpack.c.l.b16 %v428
    %v1750 = vunpack.c.h.b16 %v428
    %v1751 = vunpack.c.l.b16 %v429
    %v1752 = vunpack.c.h.b16 %v429
    %v1753 = vunpack.c.l.b16 %v430
    %v1754 = vunpack.c.h.b16 %v430
    %v1755 = vunpack.c.l.b16 %v431
    %v1756 = vunpack.c.h.b16 %v431
    %v1757 = vunpack.c.l.b16 %v432
    %v1758 = vunpack.c.h.b16 %v432
    %v1759 = vunpack.c.l.b16 %v433
    %v1760 = vunpack.c.h.b16 %v433
    %v1761 = vunpack.c.l.b16 %v434
    %v1762 = vunpack.c.h.b16 %v434
    %v1763 = vunpack.c.l.b16 %v435
    %v1764 = vunpack.c.h.b16 %v435
    %v1765 = vunpack.c.l.b16 %v436
    %v1766 = vunpack.c.h.b16 %v436
    %v1767 = vunpack.c.l.b16 %v437
    %v1768 = vunpack.c.h.b16 %v437
    %v1769 = vunpack.c.l.b16 %v438
    %v1770 = vunpack.c.h.b16 %v438
    %v1771 = vunpack.c.l.b16 %v439
    %v1772 = vunpack.c.h.b16 %v439
    %v1773 = vunpack.c.l.b16 %v440
    %v1774 = vunpack.c.h.b16 %v440
    %v1775 = vunpack.c.l.b16 %v441
    %v1776 = vunpack.c.h.b16 %v441
    %v1777 = vunpack.c.l.b16 %v442
    %v1778 = vunpack.c.h.b16 %v442
    %v1779 = vunpack.c.l.b16 %v443
    %v1780 = vunpack.c.h.b16 %v443
    %v1781 = vunpack.c.l.b16 %v444
    %v1782 = vunpack.c.h.b16 %v444
    %v1783 = vunpack.c.l.b16 %v445
    %v1784 = vunpack.c.h.b16 %v445
    %v1785 = vunpack.c.l.b16 %v446
    %v1786 = vunpack.c.h.b16 %v446
    %v1787 = vunpack.c.l.b16 %v447
    %v1788 = vunpack.c.h.b16 %v447
    %v1789 = vunpack.c.l.b16 %v448
    %v1790 = vunpack.c.h.b16 %v448
    %v1791 = vunpack.c.l.b16 %v449
    %v1792 = vunpack.c.h.b16 %v449
    %v1793 = vunpack.c.l.b16 %v450
    %v1794 = vunpack.c.h.b16 %v450
    %v1795 = vunpack.c.l.b16 %v451
    %v1796 = vunpack.c.h.b16 %v451
    %v1797 = vunpack.c.l.b16 %v452
    %v1798 = vunpack.c.h.b16 %v452
    %v1799 = vunpack.c.l.b16 %v453
    %v1800 = vunpack.c.h.b16 %v453
    %v1801 = vunpack.c.l.b16 %v454
    %v1802 = vunpack.c.h.b16 %v454
    %v1803 = vunpack.c.l.b16 %v455
    %v1804 = vunpack.c.h.b16 %v455
    %v1805 = vunpack.c.l.b16 %v456
    %v1806 = vunpack.c.h.b16 %v456
    %v1807 = vunpack.c.l.b16 %v457
    %v1808 = vunpack.c.h.b16 %v457
    %v1809 = vunpack.c.l.b16 %v458
    %v1810 = vunpack.c.h.b16 %v458
    %v1811 = vunpack.c.l.b16 %v459
    %v1812 = vunpack.c.h.b16 %v459
    %v1813 = vunpack.c.l.b16 %v460
    %v1814 = vunpack.c.h.b16 %v460
    %v1815 = vunpack.c.l.b16 %v461
    %v1816 = vunpack.c.h.b16 %v461
    %v1817 = vunpack.c.l.b16 %v462
    %v1818 = vunpack.c.h.b16 %v462
    %v1819 = vunpack.c.l.b16 %v463
    %v1820 = vunpack.c.h.b16 %v463
    %v1821 = vunpack.c.l.b16 %v464
    %v1822 = vunpack.c.h.b16 %v464
    %v1823 = vunpack.c.l.b16 %v465
    %v1824 = vunpack.c.h.b16 %v465
    %v1825 = vunpack.c.l.b16 %v466
    %v1826 = vunpack.c.h.b16 %v466
    %v1827 = vunpack.c.l.b16 %v467
    %v1828 = vunpack.c.h.b16 %v467
    %v1829 = vunpack.c.l.b16 %v468
    %v1830 = vunpack.c.h.b16 %v468
    %v1831 = vunpack.c.l.b16 %v469
    %v1832 = vunpack.c.h.b16 %v469
    %v1833 = vunpack.c.l.b16 %v470
    %v1834 = vunpack.c.h.b16 %v470
    %v1835 = vunpack.c.l.b16 %v471
    %v1836 = vunpack.c.h.b16 %v471
    %v1837 = vunpack.c.l.b16 %v472
    %v1838 = vunpack.c.h.b16 %v472
    %v1839 = vunpack.c.l.b16 %v473
    %v1840 = vunpack.c.h.b16 %v473
    %v1841 = vunpack.c.l.b16 %v474
    %v1842 = vunpack.c.h.b16 %v474
    %v1843 = vunpack.c.l.b16 %v475
    %v1844 = vunpack.c.h.b16 %v475
    %v1845 = vunpack.c.l.b16 %v476
    %v1846 = vunpack.c.h.b16 %v476
    %v1847 = vunpack.c.l.b16 %v477
    %v1848 = vunpack.c.h.b16 %v477
    %v1849 = vunpack.c.l.b16 %v478
    %v1850 = vunpack.c.h.b16 %v478
    %v1851 = vunpack.c.l.b16 %v479
    %v1852 = vunpack.c.h.b16 %v479
    %v1853 = vunpack.c.l.b16 %v480
    %v1854 = vunpack.c.h.b16 %v480
    %v1855 = vunpack.c.l.b16 %v481
    %v1856 = vunpack.c.h.b16 %v481
    %v1857 = vunpack.c.l.b16 %v482
    %v1858 = vunpack.c.h.b16 %v482
    %v1859 = vunpack.c.l.b16 %v483
    %v1860 = vunpack.c.h.b16 %v483
    %v1861 = vunpack.c.l.b16 %v484
    %v1862 = vunpack.c.h.b16 %v484
    %v1863 = vunpack.c.l.b16 %v485
    %v1864 = vunpack.c.h.b16 %v485
    %v1865 = vunpack.c.l.b16 %v486
    %v1866 = vunpack.c.h.b16 %v486
    %v1867 = vunpack.c.l.b16 %v487
    %v1868 = vunpack.c.h.b16 %v487
    %v1869 = vunpack.c.l.b16 %v488
    %v1870 = vunpack.c.h.b16 %v488
    %v1871 = vunpack.c.l.b16 %v489
    %v1872 = vunpack.c.h.b16 %v489
    %v1873 = vunpack.c.l.b16 %v490
    %v1874 = vunpack.c.h.b16 %v490
    %v1875 = vunpack.c.l.b16 %v491
    %v1876 = vunpack.c.h.b16 %v491
    %v1877 = vunpack.c.l.b16 %v492
    %v1878 = vunpack.c.h.b16 %v492
    %v1879 = vunpack.c.l.b16 %v493
    %v1880 = vunpack.c.h.b16 %v493
    %v1881 = vunpack.c.l.b16 %v494
    %v1882 = vunpack.c.h.b16 %v494
    %v1883 = vunpack.c.l.b16 %v495
    %v1884 = vunpack.c.h.b16 %v495
    %v1885 = vunpack.c.l.b16 %v496
    %v1886 = vunpack.c.h.b16 %v496
    %v1887 = vunpack.c.l.b16 %v497
    %v1888 = vunpack.c.h.b16 %v497
    %v1889 = vunpack.c.l.b16 %v498
    %v1890 = vunpack.c.h.b16 %v498
    %v1891 = vunpack.c.l.b16 %v499
    %v1892 = vunpack.c.h.b16 %v499
    %v1893 = vunpack.c.l.b16 %v500
    %v1894 = vunpack.c.h.b16 %v500
    %v1895 = vunpack.c.l.b16 %v501
    %v1896 = vunpack.c.h.b16 %v501
    %v1897 = vunpack.c.l.b16 %v502
    %v1898 = vunpack.c.h.b16 %v502
    %v1899 = vunpack.c.l.b16 %v503
    %v1900 = vunpack.c.h.b16 %v503
    %v1901 = vunpack.c.l.b16 %v504
    %v1902 = vunpack.c.h.b16 %v504
    %v1903 = vunpack.c.l.b16 %v505
    %v1904 = vunpack.c.h.b16 %v505
    %v1905 = vunpack.c.l.b16 %v506
    %v1906 = vunpack.c.h.b16 %v506
    %v1907 = vunpack.c.l.b16 %v507
    %v1908 = vunpack.c.h.b16 %v507
    %v1909 = vunpack.c.l.b16 %v508
    %v1910 = vunpack.c.h.b16 %v508
    %v1911 = vunpack.c.l.b16 %v509
    %v1912 = vunpack.c.h.b16 %v509
    %v1913 = vunpack.c.l.b16 %v510
    %v1914 = vunpack.c.h.b16 %v510
    %v1915 = vunpack.c.l.b16 %v511
    %v1916 = vunpack.c.h.b16 %v511
    %v1917 = vunpack.c.l.b16 %v512
    %v1918 = vunpack.c.h.b16 %v512
    %v1919 = vunpack.c.l.b16 %v513
    %v1920 = vunpack.c.h.b16 %v513
    %v1921 = vunpack.c.l.b16 %v514
    %v1922 = vunpack.c.h.b16 %v514
    %v1923 = vunpack.c.l.b16 %v515
    %v1924 = vunpack.c.h.b16 %v515
    %v1925 = vunpack.c.l.b16 %v516
    %v1926 = vunpack.c.h.b16 %v516
    %v1927 = vunpack.c.l.b16 %v517
    %v1928 = vunpack.c.h.b16 %v517
    %v1929 = vunpack.c.l.b16 %v518
    %v1930 = vunpack.c.h.b16 %v518
    %v1931 = vunpack.c.l.b16 %v519
    %v1932 = vunpack.c.h.b16 %v519
    %v1933 = vunpack.c.l.b16 %v520
    %v1934 = vunpack.c.h.b16 %v520
    %v1935 = vunpack.c.l.b16 %v521
    %v1936 = vunpack.c.h.b16 %v521
    %v1937 = vunpack.c.l.b16 %v522
    %v1938 = vunpack.c.h.b16 %v522
    %v1939 = vunpack.c.l.b16 %v523
    %v1940 = vunpack.c.h.b16 %v523
    %v1941 = vunpack.c.l.b16 %v524
    %v1942 = vunpack.c.h.b16 %v524
    %v1943 = vunpack.c.l.b16 %v525
    %v1944 = vunpack.c.h.b16 %v525
    %v1945 = vunpack.c.l.b16 %v526
    %v1946 = vunpack.c.h.b16 %v526
    %v1947 = vunpack.c.l.b16 %v527
    %v1948 = vunpack.c.h.b16 %v527
    %v1949 = vunpack.c.l.b16 %v528
    %v1950 = vunpack.c.h.b16 %v528
    %v1951 = vunpack.c.l.b16 %v529
    %v1952 = vunpack.c.h.b16 %v529
    %v1953 = vunpack.c.l.b16 %v530
    %v1954 = vunpack.c.h.b16 %v530
    %v1955 = vunpack.c.l.b16 %v531
    %v1956 = vunpack.c.h.b16 %v531
    %v1957 = vunpack.c.l.b16 %v532
    %v1958 = vunpack.c.h.b16 %v532
    %v1959 = vunpack.c.l.b16 %v533
    %v1960 = vunpack.c.h.b16 %v533
    %v1961 = vunpack.c.l.b16 %v534
    %v1962 = vunpack.c.h.b16 %v534
    %v1963 = vunpack.c.l.b16 %v535
    %v1964 = vunpack.c.h.b16 %v535
    %v1965 = vunpack.c.l.b16 %v536
    %v1966 = vunpack.c.h.b16 %v536
    %v1967 = vunpack.c.l.b16 %v537
    %v1968 = vunpack.c.h.b16 %v537
    %v1969 = vunpack.c.l.b16 %v538
    %v1970 = vunpack.c.h.b16 %v538
    %v1971 = vunpack.c.l.b16 %v539
    %v1972 = vunpack.c.h.b16 %v539
    %v1973 = vunpack.c.l.b16 %v540
    %v1974 = vunpack.c.h.b16 %v540
    %v1975 = vunpack.c.l.b16 %v541
    %v1976 = vunpack.c.h.b16 %v541
    %v1977 = vunpack.c.l.b16 %v542
    %v1978 = vunpack.c.h.b16 %v542
    %v1979 = vunpack.c.l.b16 %v543
    %v1980 = vunpack.c.h.b16 %v543
    %v1981 = vunpack.c.l.b16 %v544
    %v1982 = vunpack.c.h.b16 %v544
    %v1983 = vunpack.c.l.b16 %v545
    %v1984 = vunpack.c.h.b16 %v545
    %v1985 = vunpack.c.l.b16 %v546
    %v1986 = vunpack.c.h.b16 %v546
    %v1987 = vunpack.c.l.b16 %v547
    %v1988 = vunpack.c.h.b16 %v547
    %v1989 = vunpack.c.l.b16 %v548
    %v1990 = vunpack.c.h.b16 %v548
    %v1991 = vunpack.c.l.b16 %v549
    %v1992 = vunpack.c.h.b16 %v549
    %v1993 = vunpack.c.l.b16 %v550
    %v1994 = vunpack.c.h.b16 %v550
    %v1995 = vunpack.c.l.b16 %v551
    %v1996 = vunpack.c.h.b16 %v551
    %v1997 = vunpack.c.l.b16 %v552
    %v1998 = vunpack.c.h.b16 %v552
    %v1999 = vunpack.c.l.b16 %v553
    %v2000 = vunpack.c.h.b16 %v553
    %v2001 = vunpack.c.l.b16 %v554
    %v2002 = vunpack.c.h.b16 %v554
    %v2003 = vunpack.c.l.b16 %v555
    %v2004 = vunpack.c.h.b16 %v555
    %v2005 = vunpack.c.l.b16 %v556
    %v2006 = vunpack.c.h.b16 %v556
    %v2007 = vunpack.c.l.b16 %v557
    %v2008 = vunpack.c.h.b16 %v557
    %v2009 = vunpack.c.l.b16 %v558
    %v2010 = vunpack.c.h.b16 %v558
    %v2011 = vunpack.c.l.b16 %v559
    %v2012 = vunpack.c.h.b16 %v559
    %v2013 = vunpack.c.l.b16 %v560
    %v2014 = vunpack.c.h.b16 %v560
    %v2015 = vunpack.c.l.b16 %v561
    %v2016 = vunpack.c.h.b16 %v561
    %v2017 = vunpack.c.l.b16 %v562
    %v2018 = vunpack.c.h.b16 %v562
    %v2019 = vunpack.c.l.b16 %v563
    %v2020 = vunpack.c.h.b16 %v563
    %v2021 = vunpack.c.l.b16 %v564
    %v2022 = vunpack.c.h.b16 %v564
    %v2023 = vunpack.c.l.b16 %v565
    %v2024 = vunpack.c.h.b16 %v565
    %v2025 = vunpack.c.l.b16 %v566
    %v2026 = vunpack.c.h.b16 %v566
    %v2027 = vunpack.c.l.b16 %v567
    %v2028 = vunpack.c.h.b16 %v567
    %v2029 = vunpack.c.l.b16 %v568
    %v2030 = vunpack.c.h.b16 %v568
    %v2031 = vunpack.c.l.b16 %v569
    %v2032 = vunpack.c.h.b16 %v569
    %v2033 = vunpack.c.l.b16 %v570
    %v2034 = vunpack.c.h.b16 %v570
    %v2035 = vunpack.c.l.b16 %v571
    %v2036 = vunpack.c.h.b16 %v571
    %v2037 = vunpack.c.l.b16 %v572
    %v2038 = vunpack.c.h.b16 %v572
    %v2039 = vunpack.c.l.b16 %v573
    %v2040 = vunpack.c.h.b16 %v573
    %v2041 = vunpack.c.l.b16 %v574
    %v2042 = vunpack.c.h.b16 %v574
    %v2043 = vunpack.c.l.b16 %v575
    %v2044 = vunpack.c.h.b16 %v575
    %v2045 = vunpack.c.l.b16 %v576
    %v2046 = vunpack.c.h.b16 %v576
    %v2047 = vunpack.c.l.b16 %v577
    %v2048 = vunpack.c.h.b16 %v577
    %v2049 = vunpack.c.l.b16 %v578
    %v2050 = vunpack.c.h.b16 %v578
    %v2051 = vunpack.c.l.b16 %v579
    %v2052 = vunpack.c.h.b16 %v579
    %v2053 = vunpack.c.l.b16 %v580
    %v2054 = vunpack.c.h.b16 %v580
    %v2055 = vunpack.c.l.b16 %v581
    %v2056 = vunpack.c.h.b16 %v581
    %v2057 = vunpack.c.l.b16 %v582
    %v2058 = vunpack.c.h.b16 %v582
    %v2059 = vunpack.c.l.b16 %v583
    %v2060 = vunpack.c.h.b16 %v583
    %v2061 = vunpack.c.l.b16 %v584
    %v2062 = vunpack.c.h.b16 %v584
    %v2063 = vunpack.c.l.b16 %v585
    %v2064 = vunpack.c.h.b16 %v585
    %v2065 = vunpack.c.l.b16 %v586
    %v2066 = vunpack.c.h.b16 %v586
    %v2067 = vunpack.c.l.b16 %v587
    %v2068 = vunpack.c.h.b16 %v587
    %v2069 = vunpack.c.l.b16 %v588
    %v2070 = vunpack.c.h.b16 %v588
    %v2071 = vunpack.c.l.b16 %v589
    %v2072 = vunpack.c.h.b16 %v589
    %v2073 = vunpack.c.l.b16 %v590
    %v2074 = vunpack.c.h.b16 %v590
    %v2075 = vunpack.c.l.b16 %v591
    %v2076 = vunpack.c.h.b16 %v591
    %v2077 = vunpack.c.l.b16 %v592
    %v2078 = vunpack.c.h.b16 %v592
    %v2079 = vunpack.c.l.b16 %v593
    %v2080 = vunpack.c.h.b16 %v593
    %v2081 = vunpack.c.l.b16 %v594
    %v2082 = vunpack.c.h.b16 %v594
    %v2083 = vunpack.c.l.b16 %v595
    %v2084 = vunpack.c.h.b16 %v595
    %v2085 = vunpack.c.l.b16 %v596
    %v2086 = vunpack.c.h.b16 %v596
    %v2087 = vunpack.c.l.b16 %v597
    %v2088 = vunpack.c.h.b16 %v597
    %v2089 = vunpack.c.l.b16 %v598
    %v2090 = vunpack.c.h.b16 %v598
    %v2091 = vunpack.c.l.b16 %v599
    %v2092 = vunpack.c.h.b16 %v599
    %v2093 = vunpack.c.l.b16 %v600
    %v2094 = vunpack.c.h.b16 %v600
    %v2095 = vunpack.c.l.b16 %v601
    %v2096 = vunpack.c.h.b16 %v601
    %v2097 = vunpack.c.l.b16 %v602
    %v2098 = vunpack.c.h.b16 %v602
    %v2099 = vunpack.c.l.b16 %v603
    %v2100 = vunpack.c.h.b16 %v603
    %v2101 = vunpack.c.l.b16 %v604
    %v2102 = vunpack.c.h.b16 %v604
    %v2103 = vunpack.c.l.b16 %v605
    %v2104 = vunpack.c.h.b16 %v605
    %v2105 = vunpack.c.l.b16 %v606
    %v2106 = vunpack.c.h.b16 %v606
    %v2107 = vunpack.c.l.b16 %v607
    %v2108 = vunpack.c.h.b16 %v607
    %v2109 = vunpack.c.l.b16 %v608
    %v2110 = vunpack.c.h.b16 %v608
    %v2111 = vunpack.c.l.b16 %v609
    %v2112 = vunpack.c.h.b16 %v609
    %v2113 = vunpack.c.l.b16 %v610
    %v2114 = vunpack.c.h.b16 %v610
    %v2115 = vunpack.c.l.b16 %v611
    %v2116 = vunpack.c.h.b16 %v611
    %v2117 = vunpack.c.l.b16 %v612
    %v2118 = vunpack.c.h.b16 %v612
    %v2119 = vunpack.c.l.b16 %v613
    %v2120 = vunpack.c.h.b16 %v613
    %v2121 = vunpack.c.l.b16 %v614
    %v2122 = vunpack.c.h.b16 %v614
    %v2123 = vunpack.c.l.b16 %v615
    %v2124 = vunpack.c.h.b16 %v615
    %v2125 = vunpack.c.l.b16 %v616
    %v2126 = vunpack.c.h.b16 %v616
    %v2127 = vunpack.c.l.b16 %v617
    %v2128 = vunpack.c.h.b16 %v617
    %v2129 = vunpack.c.l.b16 %v618
    %v2130 = vunpack.c.h.b16 %v618
    %v2131 = vunpack.c.l.b16 %v619
    %v2132 = vunpack.c.h.b16 %v619
    %v2133 = vunpack.c.l.b16 %v620
    %v2134 = vunpack.c.h.b16 %v620
    %v2135 = vunpack.c.l.b16 %v621
    %v2136 = vunpack.c.h.b16 %v621
    %v2137 = vunpack.c.l.b16 %v622
    %v2138 = vunpack.c.h.b16 %v622
    %v2139 = vunpack.c.l.b16 %v623
    %v2140 = vunpack.c.h.b16 %v623
    %v2141 = vunpack.c.l.b16 %v624
    %v2142 = vunpack.c.h.b16 %v624
    %v2143 = vunpack.c.l.b16 %v625
    %v2144 = vunpack.c.h.b16 %v625
    %v2145 = vunpack.c.l.b16 %v626
    %v2146 = vunpack.c.h.b16 %v626
    %v2147 = vunpack.c.l.b16 %v627
    %v2148 = vunpack.c.h.b16 %v627
    %v2149 = vunpack.c.l.b16 %v628
    %v2150 = vunpack.c.h.b16 %v628
    %v2151 = vunpack.c.l.b16 %v629
    %v2152 = vunpack.c.h.b16 %v629
    %v2153 = vunpack.c.l.b16 %v630
    %v2154 = vunpack.c.h.b16 %v630
    %v2155 = vunpack.c.l.b16 %v631
    %v2156 = vunpack.c.h.b16 %v631
    %v2157 = vunpack.c.l.b16 %v632
    %v2158 = vunpack.c.h.b16 %v632
    %v2159 = vunpack.c.l.b16 %v633
    %v2160 = vunpack.c.h.b16 %v633
    %v2161 = vunpack.c.l.b16 %v634
    %v2162 = vunpack.c.h.b16 %v634
    %v2163 = vunpack.c.l.b16 %v635
    %v2164 = vunpack.c.h.b16 %v635
    %v2165 = vunpack.c.l.b16 %v636
    %v2166 = vunpack.c.h.b16 %v636
    %v2167 = vunpack.c.l.b16 %v637
    %v2168 = vunpack.c.h.b16 %v637
    %v2169 = vunpack.c.l.b16 %v638
    %v2170 = vunpack.c.h.b16 %v638
    %v2171 = vunpack.c.l.b16 %v639
    %v2172 = vunpack.c.h.b16 %v639
    %v2173 = vunpack.c.l.b16 %v640
    %v2174 = vunpack.c.h.b16 %v640
    %v2175 = vunpack.c.l.b16 %v641
    %v2176 = vunpack.c.h.b16 %v641
    %v2177 = vunpack.c.l.b16 %v642
    %v2178 = vunpack.c.h.b16 %v642
    %v2179 = vunpack.c.l.b16 %v643
    %v2180 = vunpack.c.h.b16 %v643
    %v2181 = vunpack.c.l.b16 %v644
    %v2182 = vunpack.c.h.b16 %v644
    %v2183 = vunpack.c.l.b16 %v645
    %v2184 = vunpack.c.h.b16 %v645
    %v2185 = vunpack.c.l.b16 %v646
    %v2186 = vunpack.c.h.b16 %v646
    %v2187 = vunpack.c.l.b16 %v647
    %v2188 = vunpack.c.h.b16 %v647
    %v2189 = vunpack.c.l.b16 %v648
    %v2190 = vunpack.c.h.b16 %v648
    %v2191 = vunpack.c.l.b16 %v649
    %v2192 = vunpack.c.h.b16 %v649
    %v2193 = vunpack.c.l.b16 %v650
    %v2194 = vunpack.c.h.b16 %v650
    %v2195 = vunpack.c.l.b16 %v651
    %v2196 = vunpack.c.h.b16 %v651
    %v2197 = vunpack.c.l.b16 %v652
    %v2198 = vunpack.c.h.b16 %v652
    %v2199 = vunpack.c.l.b16 %v653
    %v2200 = vunpack.c.h.b16 %v653
    %v2201 = vunpack.c.l.b16 %v654
    %v2202 = vunpack.c.h.b16 %v654
    %v2203 = vunpack.c.l.b16 %v655
    %v2204 = vunpack.c.h.b16 %v655
    %v2205 = vunpack.c.l.b16 %v656
    %v2206 = vunpack.c.h.b16 %v656
    %v2207 = vunpack.c.l.b16 %v657
    %v2208 = vunpack.c.h.b16 %v657
    %v2209 = vunpack.c.l.b16 %v658
    %v2210 = vunpack.c.h.b16 %v658
    %v2211 = vunpack.c.l.b16 %v659
    %v2212 = vunpack.c.h.b16 %v659
    %v2213 = vunpack.c.l.b16 %v660
    %v2214 = vunpack.c.h.b16 %v660
    %v2215 = vunpack.c.l.b16 %v661
    %v2216 = vunpack.c.h.b16 %v661
    %v2217 = vunpack.c.l.b16 %v662
    %v2218 = vunpack.c.h.b16 %v662
    %v2219 = vunpack.c.l.b16 %v663
    %v2220 = vunpack.c.h.b16 %v663
    %v2221 = vunpack.c.l.b16 %v664
    %v2222 = vunpack.c.h.b16 %v664
    %v2223 = vunpack.c.l.b16 %v665
    %v2224 = vunpack.c.h.b16 %v665
    %v2225 = vunpack.c.l.b16 %v666
    %v2226 = vunpack.c.h.b16 %v666
    %v2227 = vunpack.c.l.b16 %v667
    %v2228 = vunpack.c.h.b16 %v667
    %v2229 = vunpack.c.l.b16 %v668
    %v2230 = vunpack.c.h.b16 %v668
    %v2231 = vunpack.c.l.b16 %v669
    %v2232 = vunpack.c.h.b16 %v669
    %v2233 = vunpack.c.l.b16 %v670
    %v2234 = vunpack.c.h.b16 %v670
    %v2235 = vunpack.c.l.b16 %v671
    %v2236 = vunpack.c.h.b16 %v671
    %v2237 = vunpack.c.l.b16 %v672
    %v2238 = vunpack.c.h.b16 %v672
    %v2239 = vunpack.c.l.b16 %v673
    %v2240 = vunpack.c.h.b16 %v673
    %v2241 = vunpack.c.l.b16 %v674
    %v2242 = vunpack.c.h.b16 %v674
    %v2243 = vunpack.c.l.b16 %v675
    %v2244 = vunpack.c.h.b16 %v675
    %v2245 = vunpack.c.l.b16 %v676
    %v2246 = vunpack.c.h.b16 %v676
    %v2247 = vunpack.c.l.b16 %v677
    %v2248 = vunpack.c.h.b16 %v677
    %v2249 = vunpack.c.l.b16 %v678
    %v2250 = vunpack.c.h.b16 %v678
    %v2251 = vunpack.c.l.b16 %v679
    %v2252 = vunpack.c.h.b16 %v679
    %v2253 = vunpack.c.l.b16 %v680
    %v2254 = vunpack.c.h.b16 %v680
    %v2255 = vunpack.c.l.b16 %v681
    %v2256 = vunpack.c.h.b16 %v681
    %v2257 = vunpack.c.l.b16 %v682
    %v2258 = vunpack.c.h.b16 %v682
    %v2259 = vunpack.c.l.b16 %v683
    %v2260 = vunpack.c.h.b16 %v683
    %v2261 = vunpack.c.l.b16 %v684
    %v2262 = vunpack.c.h.b16 %v684
    %v2263 = vunpack.c.l.b16 %v685
    %v2264 = vunpack.c.h.b16 %v685
    %v2265 = vunpack.c.l.b16 %v686
    %v2266 = vunpack.c.h.b16 %v686
    %v2267 = vunpack.c.l.b16 %v687
    %v2268 = vunpack.c.h.b16 %v687
    %v2269 = vunpack.c.l.b16 %v688
    %v2270 = vunpack.c.h.b16 %v688
    %v2271 = vunpack.c.l.b16 %v689
    %v2272 = vunpack.c.h.b16 %v689
    %v2273 = vunpack.c.l.b16 %v690
    %v2274 = vunpack.c.h.b16 %v690
    %v2275 = vunpack.c.l.b16 %v691
    %v2276 = vunpack.c.h.b16 %v691
    %v2277 = vunpack.c.l.b16 %v692
    %v2278 = vunpack.c.h.b16 %v692
    %v2279 = vunpack.c.l.b16 %v693
    %v2280 = vunpack.c.h.b16 %v693
    %v2281 = vunpack.c.l.b16 %v694
    %v2282 = vunpack.c.h.b16 %v694
    %v2283 = vunpack.c.l.b16 %v695
    %v2284 = vunpack.c.h.b16 %v695
    %v2285 = vunpack.c.l.b16 %v696
    %v2286 = vunpack.c.h.b16 %v696
    %v2287 = vunpack.c.l.b16 %v697
    %v2288 = vunpack.c.h.b16 %v697
    %v2289 = vunpack.c.l.b16 %v698
    %v2290 = vunpack.c.h.b16 %v698
    %v2291 = vunpack.c.l.b16 %v699
    %v2292 = vunpack.c.h.b16 %v699
    %v2293 = vunpack.c.l.b16 %v700
    %v2294 = vunpack.c.h.b16 %v700
    %v2295 = vunpack.c.l.b16 %v701
    %v2296 = vunpack.c.h.b16 %v701
    %v2297 = vunpack.c.l.b16 %v702
    %v2298 = vunpack.c.h.b16 %v702
    %v2299 = vunpack.c.l.b16 %v703
    %v2300 = vunpack.c.h.b16 %v703
    %v2301 = vunpack.c.l.b16 %v704
    %v2302 = vunpack.c.h.b16 %v704
    %v2303 = vunpack.c.l.b16 %v705
    %v2304 = vunpack.c.h.b16 %v705
    %v2305 = vunpack.c.l.b16 %v706
    %v2306 = vunpack.c.h.b16 %v706
    %v2307 = vunpack.c.l.b16 %v707
    %v2308 = vunpack.c.h.b16 %v707
    %v2309 = vunpack.c.l.b16 %v708
    %v2310 = vunpack.c.h.b16 %v708
    %v2311 = vunpack.c.l.b16 %v709
    %v2312 = vunpack.c.h.b16 %v709
    %v2313 = vunpack.c.l.b16 %v710
    %v2314 = vunpack.c.h.b16 %v710
    %v2315 = vunpack.c.l.b16 %v711
    %v2316 = vunpack.c.h.b16 %v711
    %v2317 = vunpack.c.l.b16 %v712
    %v2318 = vunpack.c.h.b16 %v712
    %v2319 = vunpack.c.l.b16 %v713
    %v2320 = vunpack.c.h.b16 %v713
    %v2321 = vunpack.c.l.b16 %v714
    %v2322 = vunpack.c.h.b16 %v714
    %v2323 = vunpack.c.l.b16 %v715
    %v2324 = vunpack.c.h.b16 %v715
    %v2325 = vunpack.c.l.b16 %v716
    %v2326 = vunpack.c.h.b16 %v716
    %v2327 = vunpack.c.l.b16 %v717
    %v2328 = vunpack.c.h.b16 %v717
    %v2329 = vunpack.c.l.b16 %v718
    %v2330 = vunpack.c.h.b16 %v718
    %v2331 = vunpack.c.l.b16 %v719
    %v2332 = vunpack.c.h.b16 %v719
    %v2333 = vunpack.c.l.b16 %v720
    %v2334 = vunpack.c.h.b16 %v720
    %v2335 = vunpack.c.l.b16 %v721
    %v2336 = vunpack.c.h.b16 %v721
    %v2337 = vunpack.c.l.b16 %v722
    %v2338 = vunpack.c.h.b16 %v722
    %v2339 = vunpack.c.l.b16 %v723
    %v2340 = vunpack.c.h.b16 %v723
    %v2341 = vunpack.c.l.b16 %v724
    %v2342 = vunpack.c.h.b16 %v724
    %v2343 = vunpack.c.l.b16 %v725
    %v2344 = vunpack.c.h.b16 %v725
    %v2345 = vunpack.c.l.b16 %v726
    %v2346 = vunpack.c.h.b16 %v726
    %v2347 = vpack.c.b16 %v1339, %v1323
    %v2348 = vpack.c.b16 %v1340, %v1324
    %v2349 = vpack.c.b16 %v1341, %v1325
    %v2350 = vpack.c.b16 %v1342, %v1326
    %v2351 = vpack.c.b16 %v1343, %v1327
    %v2352 = vpack.c.b16 %v1344, %v1328
    %v2353 = vpack.c.b16 %v1345, %v1329
    %v2354 = vpack.c.b16 %v1346, %v1330
    %v2355 = vpack.c.b16 %v1347, %v1331
    %v2356 = vpack.c.b16 %v1348, %v1332
    %v2357 = vpack.c.b16 %v1349, %v1333
    %v2358 = vpack.c.b16 %v1350, %v1334
    %v2359 = vpack.c.b16 %v1351, %v1335
    %v2360 = vpack.c.b16 %v1352, %v1336
    %v2361 = vpack.c.b16 %v1353, %v1337
    %v2362 = vpack.c.b16 %v1354, %v1338
    %v2363 = vpack.c.b16 %v1371, %v1355
    %v2364 = vpack.c.b16 %v1372, %v1356
    %v2365 = vpack.c.b16 %v1373, %v1357
    %v2366 = vpack.c.b16 %v1374, %v1358
    %v2367 = vpack.c.b16 %v1375, %v1359
    %v2368 = vpack.c.b16 %v1376, %v1360
    %v2369 = vpack.c.b16 %v1377, %v1361
    %v2370 = vpack.c.b16 %v1378, %v1362
    %v2371 = vpack.c.b16 %v1379, %v1363
    %v2372 = vpack.c.b16 %v1380, %v1364
    %v2373 = vpack.c.b16 %v1381, %v1365
    %v2374 = vpack.c.b16 %v1382, %v1366
    %v2375 = vpack.c.b16 %v1383, %v1367
    %v2376 = vpack.c.b16 %v1384, %v1368
    %v2377 = vpack.c.b16 %v1385, %v1369
    %v2378 = vpack.c.b16 %v1386, %v1370
    %v2379 = vpack.c.b16 %v1403, %v1387
    %v2380 = vpack.c.b16 %v1404, %v1388
    %v2381 = vpack.c.b16 %v1405, %v1389
    %v2382 = vpack.c.b16 %v1406, %v1390
    %v2383 = vpack.c.b16 %v1407, %v1391
    %v2384 = vpack.c.b16 %v1408, %v1392
    %v2385 = vpack.c.b16 %v1409, %v1393
    %v2386 = vpack.c.b16 %v1410, %v1394
    %v2387 = vpack.c.b16 %v1411, %v1395
    %v2388 = vpack.c.b16 %v1412, %v1396
    %v2389 = vpack.c.b16 %v1413, %v1397
    %v2390 = vpack.c.b16 %v1414, %v1398
    %v2391 = vpack.c.b16 %v1415, %v1399
    %v2392 = vpack.c.b16 %v1416, %v1400
    %v2393 = vpack.c.b16 %v1417, %v1401
    %v2394 = vpack.c.b16 %v1418, %v1402
    %v2395 = vpack.c.b16 %v1435, %v1419
    %v2396 = vpack.c.b16 %v1436, %v1420
    %v2397 = vpack.c.b16 %v1437, %v1421
    %v2398 = vpack.c.b16 %v1438, %v1422
    %v2399 = vpack.c.b16 %v1439, %v1423
    %v2400 = vpack.c.b16 %v1440, %v1424
    %v2401 = vpack.c.b16 %v1441, %v1425
    %v2402 = vpack.c.b16 %v1442, %v1426
    %v2403 = vpack.c.b16 %v1443, %v1427
    %v2404 = vpack.c.b16 %v1444, %v1428
    %v2405 = vpack.c.b16 %v1445, %v1429
    %v2406 = vpack.c.b16 %v1446, %v1430
    %v2407 = vpack.c.b16 %v1447, %v1431
    %v2408 = vpack.c.b16 %v1448, %v1432
    %v2409 = vpack.c.b16 %v1449, %v1433
    %v2410 = vpack.c.b16 %v1450, %v1434
    %v2411 = vpack.c.b16 %v1467, %v1451
    %v2412 = vpack.c.b16 %v1468, %v1452
    %v2413 = vpack.c.b16 %v1469, %v1453
    %v2414 = vpack.c.b16 %v1470, %v1454
    %v2415 = vpack.c.b16 %v1471, %v1455
    %v2416 = vpack.c.b16 %v1472, %v1456
    %v2417 = vpack.c.b16 %v1473, %v1457
    %v2418 = vpack.c.b16 %v1474, %v1458
    %v2419 = vpack.c.b16 %v1475, %v1459
    %v2420 = vpack.c.b16 %v1476, %v1460
    %v2421 = vpack.c.b16 %v1477, %v1461
    %v2422 = vpack.c.b16 %v1478, %v1462
    %v2423 = vpack.c.b16 %v1479, %v1463
    %v2424 = vpack.c.b16 %v1480, %v1464
    %v2425 = vpack.c.b16 %v1481, %v1465
    %v2426 = vpack.c.b16 %v1482, %v1466
    %v2427 = vpack.c.b16 %v1499, %v1483
    %v2428 = vpack.c.b16 %v1500, %v1484
    %v2429 = vpack.c.b16 %v1501, %v1485
    %v2430 = vpack.c.b16 %v1502, %v1486
    %v2431 = vpack.c.b16 %v1503, %v1487
    %v2432 = vpack.c.b16 %v1504, %v1488
    %v2433 = vpack.c.b16 %v1505, %v1489
    %v2434 = vpack.c.b16 %v1506, %v1490
    %v2435 = vpack.c.b16 %v1507, %v1491
    %v2436 = vpack.c.b16 %v1508, %v1492
    %v2437 = vpack.c.b16 %v1509, %v1493
    %v2438 = vpack.c.b16 %v1510, %v1494
    %v2439 = vpack.c.b16 %v1511, %v1495
    %v2440 = vpack.c.b16 %v1512, %v1496
    %v2441 = vpack.c.b16 %v1513, %v1497
    %v2442 = vpack.c.b16 %v1514, %v1498
    %v2443 = vpack.c.b16 %v1531, %v1515
    %v2444 = vpack.c.b16 %v1532, %v1516
    %v2445 = vpack.c.b16 %v1533, %v1517
    %v2446 = vpack.c.b16 %v1534, %v1518
    %v2447 = vpack.c.b16 %v1535, %v1519
    %v2448 = vpack.c.b16 %v1536, %v1520
    %v2449 = vpack.c.b16 %v1537, %v1521
    %v2450 = vpack.c.b16 %v1538, %v1522
    %v2451 = vpack.c.b16 %v1539, %v1523
    %v2452 = vpack.c.b16 %v1540, %v1524
    %v2453 = vpack.c.b16 %v1541, %v1525
    %v2454 = vpack.c.b16 %v1542, %v1526
    %v2455 = vpack.c.b16 %v1543, %v1527
    %v2456 = vpack.c.b16 %v1544, %v1528
    %v2457 = vpack.c.b16 %v1545, %v1529
    %v2458 = vpack.c.b16 %v1546, %v1530
    %v2459 = vpack.c.b16 %v1563, %v1547
    %v2460 = vpack.c.b16 %v1564, %v1548
    %v2461 = vpack.c.b16 %v1565, %v1549
    %v2462 = vpack.c.b16 %v1566, %v1550
    %v2463 = vpack.c.b16 %v1567, %v1551
    %v2464 = vpack.c.b16 %v1568, %v1552
    %v2465 = vpack.c.b16 %v1569, %v1553
    %v2466 = vpack.c.b16 %v1570, %v1554
    %v2467 = vpack.c.b16 %v1571, %v1555
    %v2468 = vpack.c.b16 %v1572, %v1556
    %v2469 = vpack.c.b16 %v1573, %v1557
    %v2470 = vpack.c.b16 %v1574, %v1558
    %v2471 = vpack.c.b16 %v1575, %v1559
    %v2472 = vpack.c.b16 %v1576, %v1560
    %v2473 = vpack.c.b16 %v1577, %v1561
    %v2474 = vpack.c.b16 %v1578, %v1562
    %v2475 = vpack.c.b16 %v1595, %v1579
    %v2476 = vpack.c.b16 %v1596, %v1580
    %v2477 = vpack.c.b16 %v1597, %v1581
    %v2478 = vpack.c.b16 %v1598, %v1582
    %v2479 = vpack.c.b16 %v1599, %v1583
    %v2480 = vpack.c.b16 %v1600, %v1584
    %v2481 = vpack.c.b16 %v1601, %v1585
    %v2482 = vpack.c.b16 %v1602, %v1586
    %v2483 = vpack.c.b16 %v1603, %v1587
    %v2484 = vpack.c.b16 %v1604, %v1588
    %v2485 = vpack.c.b16 %v1605, %v1589
    %v2486 = vpack.c.b16 %v1606, %v1590
    %v2487 = vpack.c.b16 %v1607, %v1591
    %v2488 = vpack.c.b16 %v1608, %v1592
    %v2489 = vpack.c.b16 %v1609, %v1593
    %v2490 = vpack.c.b16 %v1610, %v1594
    %v2491 = vpack.c.b16 %v1627, %v1611
    %v2492 = vpack.c.b16 %v1628, %v1612
    %v2493 = vpack.c.b16 %v1629, %v1613
    %v2494 = vpack.c.b16 %v1630, %v1614
    %v2495 = vpack.c.b16 %v1631, %v1615
    %v2496 = vpack.c.b16 %v1632, %v1616
    %v2497 = vpack.c.b16 %v1633, %v1617
    %v2498 = vpack.c.b16 %v1634, %v1618
    %v2499 = vpack.c.b16 %v1635, %v1619
    %v2500 = vpack.c.b16 %v1636, %v1620
    %v2501 = vpack.c.b16 %v1637, %v1621
    %v2502 = vpack.c.b16 %v1638, %v1622
    %v2503 = vpack.c.b16 %v1639, %v1623
    %v2504 = vpack.c.b16 %v1640, %v1624
    %v2505 = vpack.c.b16 %v1641, %v1625
    %v2506 = vpack.c.b16 %v1642, %v1626
    %v2507 = vpack.c.b16 %v1659, %v1643
    %v2508 = vpack.c.b16 %v1660, %v1644
    %v2509 = vpack.c.b16 %v1661, %v1645
    %v2510 = vpack.c.b16 %v1662, %v1646
    %v2511 = vpack.c.b16 %v1663, %v1647
    %v2512 = vpack.c.b16 %v1664, %v1648
    %v2513 = vpack.c.b16 %v1665, %v1649
    %v2514 = vpack.c.b16 %v1666, %v1650
    %v2515 = vpack.c.b16 %v1667, %v1651
    %v2516 = vpack.c.b16 %v1668, %v1652
    %v2517 = vpack.c.b16 %v1669, %v1653
    %v2518 = vpack.c.b16 %v1670, %v1654
    %v2519 = vpack.c.b16 %v1671, %v1655
    %v2520 = vpack.c.b16 %v1672, %v1656
    %v2521 = vpack.c.b16 %v1673, %v1657
    %v2522 = vpack.c.b16 %v1674, %v1658
    %v2523 = vpack.c.b16 %v1691, %v1675
    %v2524 = vpack.c.b16 %v1692, %v1676
    %v2525 = vpack.c.b16 %v1693, %v1677
    %v2526 = vpack.c.b16 %v1694, %v1678
    %v2527 = vpack.c.b16 %v1695, %v1679
    %v2528 = vpack.c.b16 %v1696, %v1680
    %v2529 = vpack.c.b16 %v1697, %v1681
    %v2530 = vpack.c.b16 %v1698, %v1682
    %v2531 = vpack.c.b16 %v1699, %v1683
    %v2532 = vpack.c.b16 %v1700, %v1684
    %v2533 = vpack.c.b16 %v1701, %v1685
    %v2534 = vpack.c.b16 %v1702, %v1686
    %v2535 = vpack.c.b16 %v1703, %v1687
    %v2536 = vpack.c.b16 %v1704, %v1688
    %v2537 = vpack.c.b16 %v1705, %v1689
    %v2538 = vpack.c.b16 %v1706, %v1690
    %v2539 = vpack.c.b16 %v1723, %v1707
    %v2540 = vpack.c.b16 %v1724, %v1708
    %v2541 = vpack.c.b16 %v1725, %v1709
    %v2542 = vpack.c.b16 %v1726, %v1710
    %v2543 = vpack.c.b16 %v1727, %v1711
    %v2544 = vpack.c.b16 %v1728, %v1712
    %v2545 = vpack.c.b16 %v1729, %v1713
    %v2546 = vpack.c.b16 %v1730, %v1714
    %v2547 = vpack.c.b16 %v1731, %v1715
    %v2548 = vpack.c.b16 %v1732, %v1716
    %v2549 = vpack.c.b16 %v1733, %v1717
    %v2550 = vpack.c.b16 %v1734, %v1718
    %v2551 = vpack.c.b16 %v1735, %v1719
    %v2552 = vpack.c.b16 %v1736, %v1720
    %v2553 = vpack.c.b16 %v1737, %v1721
    %v2554 = vpack.c.b16 %v1738, %v1722
    %v2555 = vpack.c.b16 %v1755, %v1739
    %v2556 = vpack.c.b16 %v1756, %v1740
    %v2557 = vpack.c.b16 %v1757, %v1741
    %v2558 = vpack.c.b16 %v1758, %v1742
    %v2559 = vpack.c.b16 %v1759, %v1743
    %v2560 = vpack.c.b16 %v1760, %v1744
    %v2561 = vpack.c.b16 %v1761, %v1745
    %v2562 = vpack.c.b16 %v1762, %v1746
    %v2563 = vpack.c.b16 %v1763, %v1747
    %v2564 = vpack.c.b16 %v1764, %v1748
    %v2565 = vpack.c.b16 %v1765, %v1749
    %v2566 = vpack.c.b16 %v1766, %v1750
    %v2567 = vpack.c.b16 %v1767, %v1751
    %v2568 = vpack.c.b16 %v1768, %v1752
    %v2569 = vpack.c.b16 %v1769, %v1753
    %v2570 = vpack.c.b16 %v1770, %v1754
    %v2571 = vpack.c.b16 %v1787, %v1771
    %v2572 = vpack.c.b16 %v1788, %v1772
    %v2573 = vpack.c.b16 %v1789, %v1773
    %v2574 = vpack.c.b16 %v1790, %v1774
    %v2575 = vpack.c.b16 %v1791, %v1775
    %v2576 = vpack.c.b16 %v1792, %v1776
    %v2577 = vpack.c.b16 %v1793, %v1777
    %v2578 = vpack.c.b16 %v1794, %v1778
    %v2579 = vpack.c.b16 %v1795, %v1779
    %v2580 = vpack.c.b16 %v1796, %v1780
    %v2581 = vpack.c.b16 %v1797, %v1781
    %v2582 = vpack.c.b16 %v1798, %v1782
    %v2583 = vpack.c.b16 %v1799, %v1783
    %v2584 = vpack.c.b16 %v1800, %v1784
    %v2585 = vpack.c.b16 %v1801, %v1785
    %v2586 = vpack.c.b16 %v1802, %v1786
    %v2587 = vpack.c.b16 %v1819, %v1803
    %v2588 = vpack.c.b16 %v1820, %v1804
    %v2589 = vpack.c.b16 %v1821, %v1805
    %v2590 = vpack.c.b16 %v1822, %v1806
    %v2591 = vpack.c.b16 %v1823, %v1807
    %v2592 = vpack.c.b16 %v1824, %v1808
    %v2593 = vpack.c.b16 %v1825, %v1809
    %v2594 = vpack.c.b16 %v1826, %v1810
    %v2595 = vpack.c.b16 %v1827, %v1811
    %v2596 = vpack.c.b16 %v1828, %v1812
    %v2597 = vpack.c.b16 %v1829, %v1813
    %v2598 = vpack.c.b16 %v1830, %v1814
    %v2599 = vpack.c.b16 %v1831, %v1815
    %v2600 = vpack.c.b16 %v1832, %v1816
    %v2601 = vpack.c.b16 %v1833, %v1817
    %v2602 = vpack.c.b16 %v1834, %v1818
    %v2603 = vpack.c.b16 %v1851, %v1835
    %v2604 = vpack.c.b16 %v1852, %v1836
    %v2605 = vpack.c.b16 %v1853, %v1837
    %v2606 = vpack.c.b16 %v1854, %v1838
    %v2607 = vpack.c.b16 %v1855, %v1839
    %v2608 = vpack.c.b16 %v1856, %v1840
    %v2609 = vpack.c.b16 %v1857, %v1841
    %v2610 = vpack.c.b16 %v1858, %v1842
    %v2611 = vpack.c.b16 %v1859, %v1843
    %v2612 = vpack.c.b16 %v1860, %v1844
    %v2613 = vpack.c.b16 %v1861, %v1845
    %v2614 = vpack.c.b16 %v1862, %v1846
    %v2615 = vpack.c.b16 %v1863, %v1847
    %v2616 = vpack.c.b16 %v1864, %v1848
    %v2617 = vpack.c.b16 %v1865, %v1849
    %v2618 = vpack.c.b16 %v1866, %v1850
    %v2619 = vpack.c.b16 %v1883, %v1867
    %v2620 = vpack.c.b16 %v1884, %v1868
    %v2621 = vpack.c.b16 %v1885, %v1869
    %v2622 = vpack.c.b16 %v1886, %v1870
    %v2623 = vpack.c.b16 %v1887, %v1871
    %v2624 = vpack.c.b16 %v1888, %v1872
    %v2625 = vpack.c.b16 %v1889, %v1873
    %v2626 = vpack.c.b16 %v1890, %v1874
    %v2627 = vpack.c.b16 %v1891, %v1875
    %v2628 = vpack.c.b16 %v1892, %v1876
    %v2629 = vpack.c.b16 %v1893, %v1877
    %v2630 = vpack.c.b16 %v1894, %v1878
    %v2631 = vpack.c.b16 %v1895, %v1879
    %v2632 = vpack.c.b16 %v1896, %v1880
    %v2633 = vpack.c.b16 %v1897, %v1881
    %v2634 = vpack.c.b16 %v1898, %v1882
    %v2635 = vpack.c.b16 %v1915, %v1899
    %v2636 = vpack.c.b16 %v1916, %v1900
    %v2637 = vpack.c.b16 %v1917, %v1901
    %v2638 = vpack.c.b16 %v1918, %v1902
    %v2639 = vpack.c.b16 %v1919, %v1903
    %v2640 = vpack.c.b16 %v1920, %v1904
    %v2641 = vpack.c.b16 %v1921, %v1905
    %v2642 = vpack.c.b16 %v1922, %v1906
    %v2643 = vpack.c.b16 %v1923, %v1907
    %v2644 = vpack.c.b16 %v1924, %v1908
    %v2645 = vpack.c.b16 %v1925, %v1909
    %v2646 = vpack.c.b16 %v1926, %v1910
    %v2647 = vpack.c.b16 %v1927, %v1911
    %v2648 = vpack.c.b16 %v1928, %v1912
    %v2649 = vpack.c.b16 %v1929, %v1913
    %v2650 = vpack.c.b16 %v1930, %v1914
    %v2651 = vpack.c.b16 %v1947, %v1931
    %v2652 = vpack.c.b16 %v1948, %v1932
    %v2653 = vpack.c.b16 %v1949, %v1933
    %v2654 = vpack.c.b16 %v1950, %v1934
    %v2655 = vpack.c.b16 %v1951, %v1935
    %v2656 = vpack.c.b16 %v1952, %v1936
    %v2657 = vpack.c.b16 %v1953, %v1937
    %v2658 = vpack.c.b16 %v1954, %v1938
    %v2659 = vpack.c.b16 %v1955, %v1939
    %v2660 = vpack.c.b16 %v1956, %v1940
    %v2661 = vpack.c.b16 %v1957, %v1941
    %v2662 = vpack.c.b16 %v1958, %v1942
    %v2663 = vpack.c.b16 %v1959, %v1943
    %v2664 = vpack.c.b16 %v1960, %v1944
    %v2665 = vpack.c.b16 %v1961, %v1945
    %v2666 = vpack.c.b16 %v1962, %v1946
    %v2667 = vpack.c.b16 %v1979, %v1963
    %v2668 = vpack.c.b16 %v1980, %v1964
    %v2669 = vpack.c.b16 %v1981, %v1965
    %v2670 = vpack.c.b16 %v1982, %v1966
    %v2671 = vpack.c.b16 %v1983, %v1967
    %v2672 = vpack.c.b16 %v1984, %v1968
    %v2673 = vpack.c.b16 %v1985, %v1969
    %v2674 = vpack.c.b16 %v1986, %v1970
    %v2675 = vpack.c.b16 %v1987, %v1971
    %v2676 = vpack.c.b16 %v1988, %v1972
    %v2677 = vpack.c.b16 %v1989, %v1973
    %v2678 = vpack.c.b16 %v1990, %v1974
    %v2679 = vpack.c.b16 %v1991, %v1975
    %v2680 = vpack.c.b16 %v1992, %v1976
    %v2681 = vpack.c.b16 %v1993, %v1977
    %v2682 = vpack.c.b16 %v1994, %v1978
    %v2683 = vpack.c.b16 %v2011, %v1995
    %v2684 = vpack.c.b16 %v2012, %v1996
    %v2685 = vpack.c.b16 %v2013, %v1997
    %v2686 = vpack.c.b16 %v2014, %v1998
    %v2687 = vpack.c.b16 %v2015, %v1999
    %v2688 = vpack.c.b16 %v2016, %v2000
    %v2689 = vpack.c.b16 %v2017, %v2001
    %v2690 = vpack.c.b16 %v2018, %v2002
    %v2691 = vpack.c.b16 %v2019, %v2003
    %v2692 = vpack.c.b16 %v2020, %v2004
    %v2693 = vpack.c.b16 %v2021, %v2005
    %v2694 = vpack.c.b16 %v2022, %v2006
    %v2695 = vpack.c.b16 %v2023, %v2007
    %v2696 = vpack.c.b16 %v2024, %v2008
    %v2697 = vpack.c.b16 %v2025, %v2009
    %v2698 = vpack.c.b16 %v2026, %v2010
    %v2699 = vpack.c.b16 %v2043, %v2027
    %v2700 = vpack.c.b16 %v2044, %v2028
    %v2701 = vpack.c.b16 %v2045, %v2029
    %v2702 = vpack.c.b16 %v2046, %v2030
    %v2703 = vpack.c.b16 %v2047, %v2031
    %v2704 = vpack.c.b16 %v2048, %v2032
    %v2705 = vpack.c.b16 %v2049, %v2033
    %v2706 = vpack.c.b16 %v2050, %v2034
    %v2707 = vpack.c.b16 %v2051, %v2035
    %v2708 = vpack.c.b16 %v2052, %v2036
    %v2709 = vpack.c.b16 %v2053, %v2037
    %v2710 = vpack.c.b16 %v2054, %v2038
    %v2711 = vpack.c.b16 %v2055, %v2039
    %v2712 = vpack.c.b16 %v2056, %v2040
    %v2713 = vpack.c.b16 %v2057, %v2041
    %v2714 = vpack.c.b16 %v2058, %v2042
    %v2715 = vpack.c.b16 %v2075, %v2059
    %v2716 = vpack.c.b16 %v2076, %v2060
    %v2717 = vpack.c.b16 %v2077, %v2061
    %v2718 = vpack.c.b16 %v2078, %v2062
    %v2719 = vpack.c.b16 %v2079, %v2063
    %v2720 = vpack.c.b16 %v2080, %v2064
    %v2721 = vpack.c.b16 %v2081, %v2065
    %v2722 = vpack.c.b16 %v2082, %v2066
    %v2723 = vpack.c.b16 %v2083, %v2067
    %v2724 = vpack.c.b16 %v2084, %v2068
    %v2725 = vpack.c.b16 %v2085, %v2069
    %v2726 = vpack.c.b16 %v2086, %v2070
    %v2727 = vpack.c.b16 %v2087, %v2071
    %v2728 = vpack.c.b16 %v2088, %v2072
    %v2729 = vpack.c.b16 %v2089, %v2073
    %v2730 = vpack.c.b16 %v2090, %v2074
    %v2731 = vpack.c.b16 %v2107, %v2091
    %v2732 = vpack.c.b16 %v2108, %v2092
    %v2733 = vpack.c.b16 %v2109, %v2093
    %v2734 = vpack.c.b16 %v2110, %v2094
    %v2735 = vpack.c.b16 %v2111, %v2095
    %v2736 = vpack.c.b16 %v2112, %v2096
    %v2737 = vpack.c.b16 %v2113, %v2097
    %v2738 = vpack.c.b16 %v2114, %v2098
    %v2739 = vpack.c.b16 %v2115, %v2099
    %v2740 = vpack.c.b16 %v2116, %v2100
    %v2741 = vpack.c.b16 %v2117, %v2101
    %v2742 = vpack.c.b16 %v2118, %v2102
    %v2743 = vpack.c.b16 %v2119, %v2103
    %v2744 = vpack.c.b16 %v2120, %v2104
    %v2745 = vpack.c.b16 %v2121, %v2105
    %v2746 = vpack.c.b16 %v2122, %v2106
    %v2747 = vpack.c.b16 %v2139, %v2123
    %v2748 = vpack.c.b16 %v2140, %v2124
    %v2749 = vpack.c.b16 %v2141, %v2125
    %v2750 = vpack.c.b16 %v2142, %v2126
    %v2751 = vpack.c.b16 %v2143, %v2127
    %v2752 = vpack.c.b16 %v2144, %v2128
    %v2753 = vpack.c.b16 %v2145, %v2129
    %v2754 = vpack.c.b16 %v2146, %v2130
    %v2755 = vpack.c.b16 %v2147, %v2131
    %v2756 = vpack.c.b16 %v2148, %v2132
    %v2757 = vpack.c.b16 %v2149, %v2133
    %v2758 = vpack.c.b16 %v2150, %v2134
    %v2759 = vpack.c.b16 %v2151, %v2135
    %v2760 = vpack.c.b16 %v2152, %v2136
    %v2761 = vpack.c.b16 %v2153, %v2137
    %v2762 = vpack.c.b16 %v2154, %v2138
    %v2763 = vpack.c.b16 %v2171, %v2155
    %v2764 = vpack.c.b16 %v2172, %v2156
    %v2765 = vpack.c.b16 %v2173, %v2157
    %v2766 = vpack.c.b16 %v2174, %v2158
    %v2767 = vpack.c.b16 %v2175, %v2159
    %v2768 = vpack.c.b16 %v2176, %v2160
    %v2769 = vpack.c.b16 %v2177, %v2161
    %v2770 = vpack.c.b16 %v2178, %v2162
    %v2771 = vpack.c.b16 %v2179, %v2163
    %v2772 = vpack.c.b16 %v2180, %v2164
    %v2773 = vpack.c.b16 %v2181, %v2165
    %v2774 = vpack.c.b16 %v2182, %v2166
    %v2775 = vpack.c.b16 %v2183, %v2167
    %v2776 = vpack.c.b16 %v2184, %v2168
    %v2777 = vpack.c.b16 %v2185, %v2169
    %v2778 = vpack.c.b16 %v2186, %v2170
    %v2779 = vpack.c.b16 %v2203, %v2187
    %v2780 = vpack.c.b16 %v2204, %v2188
    %v2781 = vpack.c.b16 %v2205, %v2189
    %v2782 = vpack.c.b16 %v2206, %v2190
    %v2783 = vpack.c.b16 %v2207, %v2191
    %v2784 = vpack.c.b16 %v2208, %v2192
    %v2785 = vpack.c.b16 %v2209, %v2193
    %v2786 = vpack.c.b16 %v2210, %v2194
    %v2787 = vpack.c.b16 %v2211, %v2195
    %v2788 = vpack.c.b16 %v2212, %v2196
    %v2789 = vpack.c.b16 %v2213, %v2197
    %v2790 = vpack.c.b16 %v2214, %v2198
    %v2791 = vpack.c.b16 %v2215, %v2199
    %v2792 = vpack.c.b16 %v2216, %v2200
    %v2793 = vpack.c.b16 %v2217, %v2201
    %v2794 = vpack.c.b16 %v2218, %v2202
    %v2795 = vpack.c.b16 %v2235, %v2219
    %v2796 = vpack.c.b16 %v2236, %v2220
    %v2797 = vpack.c.b16 %v2237, %v2221
    %v2798 = vpack.c.b16 %v2238, %v2222
    %v2799 = vpack.c.b16 %v2239, %v2223
    %v2800 = vpack.c.b16 %v2240, %v2224
    %v2801 = vpack.c.b16 %v2241, %v2225
    %v2802 = vpack.c.b16 %v2242, %v2226
    %v2803 = vpack.c.b16 %v2243, %v2227
    %v2804 = vpack.c.b16 %v2244, %v2228
    %v2805 = vpack.c.b16 %v2245, %v2229
    %v2806 = vpack.c.b16 %v2246, %v2230
    %v2807 = vpack.c.b16 %v2247, %v2231
    %v2808 = vpack.c.b16 %v2248, %v2232
    %v2809 = vpack.c.b16 %v2249, %v2233
    %v2810 = vpack.c.b16 %v2250, %v2234
    %v2811 = vpack.c.b16 %v2267, %v2251
    %v2812 = vpack.c.b16 %v2268, %v2252
    %v2813 = vpack.c.b16 %v2269, %v2253
    %v2814 = vpack.c.b16 %v2270, %v2254
    %v2815 = vpack.c.b16 %v2271, %v2255
    %v2816 = vpack.c.b16 %v2272, %v2256
    %v2817 = vpack.c.b16 %v2273, %v2257
    %v2818 = vpack.c.b16 %v2274, %v2258
    %v2819 = vpack.c.b16 %v2275, %v2259
    %v2820 = vpack.c.b16 %v2276, %v2260
    %v2821 = vpack.c.b16 %v2277, %v2261
    %v2822 = vpack.c.b16 %v2278, %v2262
    %v2823 = vpack.c.b16 %v2279, %v2263
    %v2824 = vpack.c.b16 %v2280, %v2264
    %v2825 = vpack.c.b16 %v2281, %v2265
    %v2826 = vpack.c.b16 %v2282, %v2266
    %v2827 = vpack.c.b16 %v2299, %v2283
    %v2828 = vpack.c.b16 %v2300, %v2284
    %v2829 = vpack.c.b16 %v2301, %v2285
    %v2830 = vpack.c.b16 %v2302, %v2286
    %v2831 = vpack.c.b16 %v2303, %v2287
    %v2832 = vpack.c.b16 %v2304, %v2288
    %v2833 = vpack.c.b16 %v2305, %v2289
    %v2834 = vpack.c.b16 %v2306, %v2290
    %v2835 = vpack.c.b16 %v2307, %v2291
    %v2836 = vpack.c.b16 %v2308, %v2292
    %v2837 = vpack.c.b16 %v2309, %v2293
    %v2838 = vpack.c.b16 %v2310, %v2294
    %v2839 = vpack.c.b16 %v2311, %v2295
    %v2840 = vpack.c.b16 %v2312, %v2296
    %v2841 = vpack.c.b16 %v2313, %v2297
    %v2842 = vpack.c.b16 %v2314, %v2298
    %v2843 = vpack.c.b16 %v2331, %v2315
    %v2844 = vpack.c.b16 %v2332, %v2316
    %v2845 = vpack.c.b16 %v2333, %v2317
    %v2846 = vpack.c.b16 %v2334, %v2318
    %v2847 = vpack.c.b16 %v2335, %v2319
    %v2848 = vpack.c.b16 %v2336, %v2320
    %v2849 = vpack.c.b16 %v2337, %v2321
    %v2850 = vpack.c.b16 %v2338, %v2322
    %v2851 = vpack.c.b16 %v2339, %v2323
    %v2852 = vpack.c.b16 %v2340, %v2324
    %v2853 = vpack.c.b16 %v2341, %v2325
    %v2854 = vpack.c.b16 %v2342, %v2326
    %v2855 = vpack.c.b16 %v2343, %v2327
    %v2856 = vpack.c.b16 %v2344, %v2328
    %v2857 = vpack.c.b16 %v2345, %v2329
    %v2858 = vpack.c.b16 %v2346, %v2330
    %3371 = vmatprep.subr.bf16.mxu0 %v2348
    %3372 = vmatpush1.bf16.msra.mxu0 %v2347
    %3373 = vmatprep.subr.bf16.mxu0 %v2364
    %3374 = vmatpush1.bf16.msra.mxu0 %v2363
    %3375 = vmatprep.subr.bf16.mxu0 %v2380
    %3376 = vmatpush1.bf16.msra.mxu0 %v2379
    %3377 = vmatprep.subr.bf16.mxu0 %v2396
    %3378 = vmatpush1.bf16.msra.mxu0 %v2395
    %3379 = vmatprep.subr.bf16.mxu0 %v2412
    %3380 = vmatpush1.bf16.msra.mxu0 %v2411
    %3381 = vmatprep.subr.bf16.mxu0 %v2428
    %3382 = vmatpush1.bf16.msra.mxu0 %v2427
    %3383 = vmatprep.subr.bf16.mxu0 %v2444
    %3384 = vmatpush1.bf16.msra.mxu0 %v2443
    %3385 = vmatprep.subr.bf16.mxu0 %v2460
    %3386 = vmatpush1.bf16.msra.mxu0 %v2459
    %3387 = vmatprep.subr.bf16.mxu0 %v2476
    %3388 = vmatpush1.bf16.msra.mxu0 %v2475
    %3389 = vmatprep.subr.bf16.mxu0 %v2492
    %3390 = vmatpush1.bf16.msra.mxu0 %v2491
    %3391 = vmatprep.subr.bf16.mxu0 %v2508
    %3392 = vmatpush1.bf16.msra.mxu0 %v2507
    %3393 = vmatprep.subr.bf16.mxu0 %v2524
    %3394 = vmatpush1.bf16.msra.mxu0 %v2523
    %3395 = vmatprep.subr.bf16.mxu0 %v2540
    %3396 = vmatpush1.bf16.msra.mxu0 %v2539
    %3397 = vmatprep.subr.bf16.mxu0 %v2556
    %3398 = vmatpush1.bf16.msra.mxu0 %v2555
    %3399 = vmatprep.subr.bf16.mxu0 %v2572
    %3400 = vmatpush1.bf16.msra.mxu0 %v2571
    %3401 = vmatprep.subr.bf16.mxu0 %v2588
    %3402 = vmatpush1.bf16.msra.mxu0 %v2587
    %3403 = vmatprep.mubr.bf16.mxu0 %v212
    %3404 = vmatmul.mubr.bf16.gmra.mrb[0].mxu0 %v211
    %v3405 = vpop.f32.mrb[0].mxu0
    %v3406 = vadd.f32 %v734, %v3405
    %v3407 = vpop.f32.mrb[0].mxu0
    %v3408 = vadd.f32 %v738, %v3407
    %v3409 = vpop.f32.mrb[0].mxu0
    %v3410 = vadd.f32 %v734, %v3409
    %v3411 = vpop.f32.mrb[0].mxu0
    %v3412 = vadd.f32 %v738, %v3411
    %3413 = vdwg.mxu0
    %3414 = vmatprep.subr.bf16.mxu0 %v2604
    %3415 = vmatpush1.bf16.msra.mxu0 %v2603
    %3416 = vmatprep.subr.bf16.mxu0 %v2620
    %3417 = vmatpush1.bf16.msra.mxu0 %v2619
    %3418 = vmatprep.subr.bf16.mxu0 %v2636
    %3419 = vmatpush1.bf16.msra.mxu0 %v2635
    %3420 = vmatprep.subr.bf16.mxu0 %v2652
    %3421 = vmatpush1.bf16.msra.mxu0 %v2651
    %3422 = vmatprep.subr.bf16.mxu0 %v2668
    %3423 = vmatpush1.bf16.msra.mxu0 %v2667
    %3424 = vmatprep.subr.bf16.mxu0 %v2684
    %3425 = vmatpush1.bf16.msra.mxu0 %v2683
    %3426 = vmatprep.subr.bf16.mxu0 %v2700
    %3427 = vmatpush1.bf16.msra.mxu0 %v2699
    %3428 = vmatprep.subr.bf16.mxu0 %v2716
    %3429 = vmatpush1.bf16.msra.mxu0 %v2715
    %3430 = vmatprep.subr.bf16.mxu0 %v2732
    %3431 = vmatpush1.bf16.msra.mxu0 %v2731
    %3432 = vmatprep.subr.bf16.mxu0 %v2748
    %3433 = vmatpush1.bf16.msra.mxu0 %v2747
    %3434 = vmatprep.subr.bf16.mxu0 %v2764
    %3435 = vmatpush1.bf16.msra.mxu0 %v2763
    %3436 = vmatprep.subr.bf16.mxu0 %v2780
    %3437 = vmatpush1.bf16.msra.mxu0 %v2779
    %3438 = vmatprep.subr.bf16.mxu0 %v2796
    %3439 = vmatpush1.bf16.msra.mxu0 %v2795
    %3440 = vmatprep.subr.bf16.mxu0 %v2812
    %3441 = vmatpush1.bf16.msra.mxu0 %v2811
    %3442 = vmatprep.subr.bf16.mxu0 %v2828
    %3443 = vmatpush1.bf16.msra.mxu0 %v2827
    %3444 = vmatprep.subr.bf16.mxu0 %v2844
    %3445 = vmatpush1.bf16.msra.mxu0 %v2843
    %3446 = vmatprep.mubr.bf16.mxu0 %v214
    %3447 = vmatmul.mubr.bf16.gmra.mrb[0].mxu0 %v213
    %v3448 = vpop.f32.mrb[0].mxu0
    %v3449 = vadd.f32 %v3406, %v3448
    %v3450 = vpop.f32.mrb[0].mxu0
    %v3451 = vadd.f32 %v3408, %v3450
    %v3452 = vpop.f32.mrb[0].mxu0
    %v3453 = vadd.f32 %v3410, %v3452
    %v3454 = vpop.f32.mrb[0].mxu0
    %v3455 = vadd.f32 %v3412, %v3454
    %3456 = vdwg.mxu0
    %3457 = vmatprep.subr.bf16.mxu0 %v2350
    %3458 = vmatpush1.bf16.msra.mxu0 %v2349
    %3459 = vmatprep.subr.bf16.mxu0 %v2366
    %3460 = vmatpush1.bf16.msra.mxu0 %v2365
    %3461 = vmatprep.subr.bf16.mxu0 %v2382
    %3462 = vmatpush1.bf16.msra.mxu0 %v2381
    %3463 = vmatprep.subr.bf16.mxu0 %v2398
    %3464 = vmatpush1.bf16.msra.mxu0 %v2397
    %3465 = vmatprep.subr.bf16.mxu0 %v2414
    %3466 = vmatpush1.bf16.msra.mxu0 %v2413
    %3467 = vmatprep.subr.bf16.mxu0 %v2430
    %3468 = vmatpush1.bf16.msra.mxu0 %v2429
    %3469 = vmatprep.subr.bf16.mxu0 %v2446
    %3470 = vmatpush1.bf16.msra.mxu0 %v2445
    %3471 = vmatprep.subr.bf16.mxu0 %v2462
    %3472 = vmatpush1.bf16.msra.mxu0 %v2461
    %3473 = vmatprep.subr.bf16.mxu0 %v2478
    %3474 = vmatpush1.bf16.msra.mxu0 %v2477
    %3475 = vmatprep.subr.bf16.mxu0 %v2494
    %3476 = vmatpush1.bf16.msra.mxu0 %v2493
    %3477 = vmatprep.subr.bf16.mxu0 %v2510
    %3478 = vmatpush1.bf16.msra.mxu0 %v2509
    %3479 = vmatprep.subr.bf16.mxu0 %v2526
    %3480 = vmatpush1.bf16.msra.mxu0 %v2525
    %3481 = vmatprep.subr.bf16.mxu0 %v2542
    %3482 = vmatpush1.bf16.msra.mxu0 %v2541
    %3483 = vmatprep.subr.bf16.mxu0 %v2558
    %3484 = vmatpush1.bf16.msra.mxu0 %v2557
    %3485 = vmatprep.subr.bf16.mxu0 %v2574
    %3486 = vmatpush1.bf16.msra.mxu0 %v2573
    %3487 = vmatprep.subr.bf16.mxu0 %v2590
    %3488 = vmatpush1.bf16.msra.mxu0 %v2589
    %3489 = vmatprep.mubr.bf16.mxu0 %v212
    %3490 = vmatmul.mubr.bf16.gmra.mrb[0].mxu0 %v211
    %v3491 = vpop.f32.mrb[0].mxu0
    %v3492 = vadd.f32 %v742, %v3491
    %v3493 = vpop.f32.mrb[0].mxu0
    %v3494 = vadd.f32 %v746, %v3493
    %v3495 = vpop.f32.mrb[0].mxu0
    %v3496 = vadd.f32 %v742, %v3495
    %v3497 = vpop.f32.mrb[0].mxu0
    %v3498 = vadd.f32 %v746, %v3497
    %3499 = vdwg.mxu0
    %3500 = vmatprep.subr.bf16.mxu0 %v2606
    %3501 = vmatpush1.bf16.msra.mxu0 %v2605
    %3502 = vmatprep.subr.bf16.mxu0 %v2622
    %3503 = vmatpush1.bf16.msra.mxu0 %v2621
    %3504 = vmatprep.subr.bf16.mxu0 %v2638
    %3505 = vmatpush1.bf16.msra.mxu0 %v2637
    %3506 = vmatprep.subr.bf16.mxu0 %v2654
    %3507 = vmatpush1.bf16.msra.mxu0 %v2653
    %3508 = vmatprep.subr.bf16.mxu0 %v2670
    %3509 = vmatpush1.bf16.msra.mxu0 %v2669
    %3510 = vmatprep.subr.bf16.mxu0 %v2686
    %3511 = vmatpush1.bf16.msra.mxu0 %v2685
    %3512 = vmatprep.subr.bf16.mxu0 %v2702
    %3513 = vmatpush1.bf16.msra.mxu0 %v2701
    %3514 = vmatprep.subr.bf16.mxu0 %v2718
    %3515 = vmatpush1.bf16.msra.mxu0 %v2717
    %3516 = vmatprep.subr.bf16.mxu0 %v2734
    %3517 = vmatpush1.bf16.msra.mxu0 %v2733
    %3518 = vmatprep.subr.bf16.mxu0 %v2750
    %3519 = vmatpush1.bf16.msra.mxu0 %v2749
    %3520 = vmatprep.subr.bf16.mxu0 %v2766
    %3521 = vmatpush1.bf16.msra.mxu0 %v2765
    %3522 = vmatprep.subr.bf16.mxu0 %v2782
    %3523 = vmatpush1.bf16.msra.mxu0 %v2781
    %3524 = vmatprep.subr.bf16.mxu0 %v2798
    %3525 = vmatpush1.bf16.msra.mxu0 %v2797
    %3526 = vmatprep.subr.bf16.mxu0 %v2814
    %3527 = vmatpush1.bf16.msra.mxu0 %v2813
    %3528 = vmatprep.subr.bf16.mxu0 %v2830
    %3529 = vmatpush1.bf16.msra.mxu0 %v2829
    %3530 = vmatprep.subr.bf16.mxu0 %v2846
    %3531 = vmatpush1.bf16.msra.mxu0 %v2845
    %3532 = vmatprep.mubr.bf16.mxu0 %v214
    %3533 = vmatmul.mubr.bf16.gmra.mrb[0].mxu0 %v213
    %v3534 = vpop.f32.mrb[0].mxu0
    %v3535 = vadd.f32 %v3492, %v3534
    %v3536 = vpop.f32.mrb[0].mxu0
    %v3537 = vadd.f32 %v3494, %v3536
    %v3538 = vpop.f32.mrb[0].mxu0
    %v3539 = vadd.f32 %v3496, %v3538
    %v3540 = vpop.f32.mrb[0].mxu0
    %v3541 = vadd.f32 %v3498, %v3540
    %3542 = vdwg.mxu0
    %3543 = vmatprep.subr.bf16.mxu0 %v2352
    %3544 = vmatpush1.bf16.msra.mxu0 %v2351
    %3545 = vmatprep.subr.bf16.mxu0 %v2368
    %3546 = vmatpush1.bf16.msra.mxu0 %v2367
    %3547 = vmatprep.subr.bf16.mxu0 %v2384
    %3548 = vmatpush1.bf16.msra.mxu0 %v2383
    %3549 = vmatprep.subr.bf16.mxu0 %v2400
    %3550 = vmatpush1.bf16.msra.mxu0 %v2399
    %3551 = vmatprep.subr.bf16.mxu0 %v2416
    %3552 = vmatpush1.bf16.msra.mxu0 %v2415
    %3553 = vmatprep.subr.bf16.mxu0 %v2432
    %3554 = vmatpush1.bf16.msra.mxu0 %v2431
    %3555 = vmatprep.subr.bf16.mxu0 %v2448
    %3556 = vmatpush1.bf16.msra.mxu0 %v2447
    %3557 = vmatprep.subr.bf16.mxu0 %v2464
    %3558 = vmatpush1.bf16.msra.mxu0 %v2463
    %3559 = vmatprep.subr.bf16.mxu0 %v2480
    %3560 = vmatpush1.bf16.msra.mxu0 %v2479
    %3561 = vmatprep.subr.bf16.mxu0 %v2496
    %3562 = vmatpush1.bf16.msra.mxu0 %v2495
    %3563 = vmatprep.subr.bf16.mxu0 %v2512
    %3564 = vmatpush1.bf16.msra.mxu0 %v2511
    %3565 = vmatprep.subr.bf16.mxu0 %v2528
    %3566 = vmatpush1.bf16.msra.mxu0 %v2527
    %3567 = vmatprep.subr.bf16.mxu0 %v2544
    %3568 = vmatpush1.bf16.msra.mxu0 %v2543
    %3569 = vmatprep.subr.bf16.mxu0 %v2560
    %3570 = vmatpush1.bf16.msra.mxu0 %v2559
    %3571 = vmatprep.subr.bf16.mxu0 %v2576
    %3572 = vmatpush1.bf16.msra.mxu0 %v2575
    %3573 = vmatprep.subr.bf16.mxu0 %v2592
    %3574 = vmatpush1.bf16.msra.mxu0 %v2591
    %3575 = vmatprep.mubr.bf16.mxu0 %v212
    %3576 = vmatmul.mubr.bf16.gmra.mrb[0].mxu0 %v211
    %v3577 = vpop.f32.mrb[0].mxu0
    %v3578 = vadd.f32 %v750, %v3577
    %v3579 = vpop.f32.mrb[0].mxu0
    %v3580 = vadd.f32 %v754, %v3579
    %v3581 = vpop.f32.mrb[0].mxu0
    %v3582 = vadd.f32 %v750, %v3581
    %v3583 = vpop.f32.mrb[0].mxu0
    %v3584 = vadd.f32 %v754, %v3583
    %3585 = vdwg.mxu0
    %3586 = vmatprep.subr.bf16.mxu0 %v2608
    %3587 = vmatpush1.bf16.msra.mxu0 %v2607
    %3588 = vmatprep.subr.bf16.mxu0 %v2624
    %3589 = vmatpush1.bf16.msra.mxu0 %v2623
    %3590 = vmatprep.subr.bf16.mxu0 %v2640
    %3591 = vmatpush1.bf16.msra.mxu0 %v2639
    %3592 = vmatprep.subr.bf16.mxu0 %v2656
    %3593 = vmatpush1.bf16.msra.mxu0 %v2655
    %3594 = vmatprep.subr.bf16.mxu0 %v2672
    %3595 = vmatpush1.bf16.msra.mxu0 %v2671
    %3596 = vmatprep.subr.bf16.mxu0 %v2688
    %3597 = vmatpush1.bf16.msra.mxu0 %v2687
    %3598 = vmatprep.subr.bf16.mxu0 %v2704
    %3599 = vmatpush1.bf16.msra.mxu0 %v2703
    %3600 = vmatprep.subr.bf16.mxu0 %v2720
    %3601 = vmatpush1.bf16.msra.mxu0 %v2719
    %3602 = vmatprep.subr.bf16.mxu0 %v2736
    %3603 = vmatpush1.bf16.msra.mxu0 %v2735
    %3604 = vmatprep.subr.bf16.mxu0 %v2752
    %3605 = vmatpush1.bf16.msra.mxu0 %v2751
    %3606 = vmatprep.subr.bf16.mxu0 %v2768
    %3607 = vmatpush1.bf16.msra.mxu0 %v2767
    %3608 = vmatprep.subr.bf16.mxu0 %v2784
    %3609 = vmatpush1.bf16.msra.mxu0 %v2783
    %3610 = vmatprep.subr.bf16.mxu0 %v2800
    %3611 = vmatpush1.bf16.msra.mxu0 %v2799
    %3612 = vmatprep.subr.bf16.mxu0 %v2816
    %3613 = vmatpush1.bf16.msra.mxu0 %v2815
    %3614 = vmatprep.subr.bf16.mxu0 %v2832
    %3615 = vmatpush1.bf16.msra.mxu0 %v2831
    %3616 = vmatprep.subr.bf16.mxu0 %v2848
    %3617 = vmatpush1.bf16.msra.mxu0 %v2847
    %3618 = vmatprep.mubr.bf16.mxu0 %v214
    %3619 = vmatmul.mubr.bf16.gmra.mrb[0].mxu0 %v213
    %v3620 = vpop.f32.mrb[0].mxu0
    %v3621 = vadd.f32 %v3578, %v3620
    %v3622 = vpop.f32.mrb[0].mxu0
    %v3623 = vadd.f32 %v3580, %v3622
    %v3624 = vpop.f32.mrb[0].mxu0
    %v3625 = vadd.f32 %v3582, %v3624
    %v3626 = vpop.f32.mrb[0].mxu0
    %v3627 = vadd.f32 %v3584, %v3626
    %3628 = vdwg.mxu0
    %3629 = vmatprep.subr.bf16.mxu0 %v2354
    %3630 = vmatpush1.bf16.msra.mxu0 %v2353
    %3631 = vmatprep.subr.bf16.mxu0 %v2370
    %3632 = vmatpush1.bf16.msra.mxu0 %v2369
    %3633 = vmatprep.subr.bf16.mxu0 %v2386
    %3634 = vmatpush1.bf16.msra.mxu0 %v2385
    %3635 = vmatprep.subr.bf16.mxu0 %v2402
    %3636 = vmatpush1.bf16.msra.mxu0 %v2401
    %3637 = vmatprep.subr.bf16.mxu0 %v2418
    %3638 = vmatpush1.bf16.msra.mxu0 %v2417
    %3639 = vmatprep.subr.bf16.mxu0 %v2434
    %3640 = vmatpush1.bf16.msra.mxu0 %v2433
    %3641 = vmatprep.subr.bf16.mxu0 %v2450
    %3642 = vmatpush1.bf16.msra.mxu0 %v2449
    %3643 = vmatprep.subr.bf16.mxu0 %v2466
    %3644 = vmatpush1.bf16.msra.mxu0 %v2465
    %3645 = vmatprep.subr.bf16.mxu0 %v2482
    %3646 = vmatpush1.bf16.msra.mxu0 %v2481
    %3647 = vmatprep.subr.bf16.mxu0 %v2498
    %3648 = vmatpush1.bf16.msra.mxu0 %v2497
    %3649 = vmatprep.subr.bf16.mxu0 %v2514
    %3650 = vmatpush1.bf16.msra.mxu0 %v2513
    %3651 = vmatprep.subr.bf16.mxu0 %v2530
    %3652 = vmatpush1.bf16.msra.mxu0 %v2529
    %3653 = vmatprep.subr.bf16.mxu0 %v2546
    %3654 = vmatpush1.bf16.msra.mxu0 %v2545
    %3655 = vmatprep.subr.bf16.mxu0 %v2562
    %3656 = vmatpush1.bf16.msra.mxu0 %v2561
    %3657 = vmatprep.subr.bf16.mxu0 %v2578
    %3658 = vmatpush1.bf16.msra.mxu0 %v2577
    %3659 = vmatprep.subr.bf16.mxu0 %v2594
    %3660 = vmatpush1.bf16.msra.mxu0 %v2593
    %3661 = vmatprep.mubr.bf16.mxu0 %v212
    %3662 = vmatmul.mubr.bf16.gmra.mrb[0].mxu0 %v211
    %v3663 = vpop.f32.mrb[0].mxu0
    %v3664 = vadd.f32 %v758, %v3663
    %v3665 = vpop.f32.mrb[0].mxu0
    %v3666 = vadd.f32 %v762, %v3665
    %v3667 = vpop.f32.mrb[0].mxu0
    %v3668 = vadd.f32 %v758, %v3667
    %v3669 = vpop.f32.mrb[0].mxu0
    %v3670 = vadd.f32 %v762, %v3669
    %3671 = vdwg.mxu0
    %3672 = vmatprep.subr.bf16.mxu0 %v2610
    %3673 = vmatpush1.bf16.msra.mxu0 %v2609
    %3674 = vmatprep.subr.bf16.mxu0 %v2626
    %3675 = vmatpush1.bf16.msra.mxu0 %v2625
    %3676 = vmatprep.subr.bf16.mxu0 %v2642
    %3677 = vmatpush1.bf16.msra.mxu0 %v2641
    %3678 = vmatprep.subr.bf16.mxu0 %v2658
    %3679 = vmatpush1.bf16.msra.mxu0 %v2657
    %3680 = vmatprep.subr.bf16.mxu0 %v2674
    %3681 = vmatpush1.bf16.msra.mxu0 %v2673
    %3682 = vmatprep.subr.bf16.mxu0 %v2690
    %3683 = vmatpush1.bf16.msra.mxu0 %v2689
    %3684 = vmatprep.subr.bf16.mxu0 %v2706
    %3685 = vmatpush1.bf16.msra.mxu0 %v2705
    %3686 = vmatprep.subr.bf16.mxu0 %v2722
    %3687 = vmatpush1.bf16.msra.mxu0 %v2721
    %3688 = vmatprep.subr.bf16.mxu0 %v2738
    %3689 = vmatpush1.bf16.msra.mxu0 %v2737
    %3690 = vmatprep.subr.bf16.mxu0 %v2754
    %3691 = vmatpush1.bf16.msra.mxu0 %v2753
    %3692 = vmatprep.subr.bf16.mxu0 %v2770
    %3693 = vmatpush1.bf16.msra.mxu0 %v2769
    %3694 = vmatprep.subr.bf16.mxu0 %v2786
    %3695 = vmatpush1.bf16.msra.mxu0 %v2785
    %3696 = vmatprep.subr.bf16.mxu0 %v2802
    %3697 = vmatpush1.bf16.msra.mxu0 %v2801
    %3698 = vmatprep.subr.bf16.mxu0 %v2818
    %3699 = vmatpush1.bf16.msra.mxu0 %v2817
    %3700 = vmatprep.subr.bf16.mxu0 %v2834
    %3701 = vmatpush1.bf16.msra.mxu0 %v2833
    %3702 = vmatprep.subr.bf16.mxu0 %v2850
    %3703 = vmatpush1.bf16.msra.mxu0 %v2849
    %3704 = vmatprep.mubr.bf16.mxu0 %v214
    %3705 = vmatmul.mubr.bf16.gmra.mrb[0].mxu0 %v213
    %v3706 = vpop.f32.mrb[0].mxu0
    %v3707 = vadd.f32 %v3664, %v3706
    %v3708 = vpop.f32.mrb[0].mxu0
    %v3709 = vadd.f32 %v3666, %v3708
    %v3710 = vpop.f32.mrb[0].mxu0
    %v3711 = vadd.f32 %v3668, %v3710
    %v3712 = vpop.f32.mrb[0].mxu0
    %v3713 = vadd.f32 %v3670, %v3712
    %3714 = vdwg.mxu0
    %3715 = vmatprep.subr.bf16.mxu0 %v2356
    %3716 = vmatpush1.bf16.msra.mxu0 %v2355
    %3717 = vmatprep.subr.bf16.mxu0 %v2372
    %3718 = vmatpush1.bf16.msra.mxu0 %v2371
    %3719 = vmatprep.subr.bf16.mxu0 %v2388
    %3720 = vmatpush1.bf16.msra.mxu0 %v2387
    %3721 = vmatprep.subr.bf16.mxu0 %v2404
    %3722 = vmatpush1.bf16.msra.mxu0 %v2403
    %3723 = vmatprep.subr.bf16.mxu0 %v2420
    %3724 = vmatpush1.bf16.msra.mxu0 %v2419
    %3725 = vmatprep.subr.bf16.mxu0 %v2436
    %3726 = vmatpush1.bf16.msra.mxu0 %v2435
    %3727 = vmatprep.subr.bf16.mxu0 %v2452
    %3728 = vmatpush1.bf16.msra.mxu0 %v2451
    %3729 = vmatprep.subr.bf16.mxu0 %v2468
    %3730 = vmatpush1.bf16.msra.mxu0 %v2467
    %3731 = vmatprep.subr.bf16.mxu0 %v2484
    %3732 = vmatpush1.bf16.msra.mxu0 %v2483
    %3733 = vmatprep.subr.bf16.mxu0 %v2500
    %3734 = vmatpush1.bf16.msra.mxu0 %v2499
    %3735 = vmatprep.subr.bf16.mxu0 %v2516
    %3736 = vmatpush1.bf16.msra.mxu0 %v2515
    %3737 = vmatprep.subr.bf16.mxu0 %v2532
    %3738 = vmatpush1.bf16.msra.mxu0 %v2531
    %3739 = vmatprep.subr.bf16.mxu0 %v2548
    %3740 = vmatpush1.bf16.msra.mxu0 %v2547
    %3741 = vmatprep.subr.bf16.mxu0 %v2564
    %3742 = vmatpush1.bf16.msra.mxu0 %v2563
    %3743 = vmatprep.subr.bf16.mxu0 %v2580
    %3744 = vmatpush1.bf16.msra.mxu0 %v2579
    %3745 = vmatprep.subr.bf16.mxu0 %v2596
    %3746 = vmatpush1.bf16.msra.mxu0 %v2595
    %3747 = vmatprep.mubr.bf16.mxu0 %v212
    %3748 = vmatmul.mubr.bf16.gmra.mrb[0].mxu0 %v211
    %v3749 = vpop.f32.mrb[0].mxu0
    %v3750 = vadd.f32 %v766, %v3749
    %v3751 = vpop.f32.mrb[0].mxu0
    %v3752 = vadd.f32 %v770, %v3751
    %v3753 = vpop.f32.mrb[0].mxu0
    %v3754 = vadd.f32 %v766, %v3753
    %v3755 = vpop.f32.mrb[0].mxu0
    %v3756 = vadd.f32 %v770, %v3755
    %3757 = vdwg.mxu0
    %3758 = vmatprep.subr.bf16.mxu0 %v2612
    %3759 = vmatpush1.bf16.msra.mxu0 %v2611
    %3760 = vmatprep.subr.bf16.mxu0 %v2628
    %3761 = vmatpush1.bf16.msra.mxu0 %v2627
    %3762 = vmatprep.subr.bf16.mxu0 %v2644
    %3763 = vmatpush1.bf16.msra.mxu0 %v2643
    %3764 = vmatprep.subr.bf16.mxu0 %v2660
    %3765 = vmatpush1.bf16.msra.mxu0 %v2659
    %3766 = vmatprep.subr.bf16.mxu0 %v2676
    %3767 = vmatpush1.bf16.msra.mxu0 %v2675
    %3768 = vmatprep.subr.bf16.mxu0 %v2692
    %3769 = vmatpush1.bf16.msra.mxu0 %v2691
    %3770 = vmatprep.subr.bf16.mxu0 %v2708
    %3771 = vmatpush1.bf16.msra.mxu0 %v2707
    %3772 = vmatprep.subr.bf16.mxu0 %v2724
    %3773 = vmatpush1.bf16.msra.mxu0 %v2723
    %3774 = vmatprep.subr.bf16.mxu0 %v2740
    %3775 = vmatpush1.bf16.msra.mxu0 %v2739
    %3776 = vmatprep.subr.bf16.mxu0 %v2756
    %3777 = vmatpush1.bf16.msra.mxu0 %v2755
    %3778 = vmatprep.subr.bf16.mxu0 %v2772
    %3779 = vmatpush1.bf16.msra.mxu0 %v2771
    %3780 = vmatprep.subr.bf16.mxu0 %v2788
    %3781 = vmatpush1.bf16.msra.mxu0 %v2787
    %3782 = vmatprep.subr.bf16.mxu0 %v2804
    %3783 = vmatpush1.bf16.msra.mxu0 %v2803
    %3784 = vmatprep.subr.bf16.mxu0 %v2820
    %3785 = vmatpush1.bf16.msra.mxu0 %v2819
    %3786 = vmatprep.subr.bf16.mxu0 %v2836
    %3787 = vmatpush1.bf16.msra.mxu0 %v2835
    %3788 = vmatprep.subr.bf16.mxu0 %v2852
    %3789 = vmatpush1.bf16.msra.mxu0 %v2851
    %3790 = vmatprep.mubr.bf16.mxu0 %v214
    %3791 = vmatmul.mubr.bf16.gmra.mrb[0].mxu0 %v213
    %v3792 = vpop.f32.mrb[0].mxu0
    %v3793 = vadd.f32 %v3750, %v3792
    %v3794 = vpop.f32.mrb[0].mxu0
    %v3795 = vadd.f32 %v3752, %v3794
    %v3796 = vpop.f32.mrb[0].mxu0
    %v3797 = vadd.f32 %v3754, %v3796
    %v3798 = vpop.f32.mrb[0].mxu0
    %v3799 = vadd.f32 %v3756, %v3798
    %3800 = vdwg.mxu0
    %3801 = vmatprep.subr.bf16.mxu0 %v2358
    %3802 = vmatpush1.bf16.msra.mxu0 %v2357
    %3803 = vmatprep.subr.bf16.mxu0 %v2374
    %3804 = vmatpush1.bf16.msra.mxu0 %v2373
    %3805 = vmatprep.subr.bf16.mxu0 %v2390
    %3806 = vmatpush1.bf16.msra.mxu0 %v2389
    %3807 = vmatprep.subr.bf16.mxu0 %v2406
    %3808 = vmatpush1.bf16.msra.mxu0 %v2405
    %3809 = vmatprep.subr.bf16.mxu0 %v2422
    %3810 = vmatpush1.bf16.msra.mxu0 %v2421
    %3811 = vmatprep.subr.bf16.mxu0 %v2438
    %3812 = vmatpush1.bf16.msra.mxu0 %v2437
    %3813 = vmatprep.subr.bf16.mxu0 %v2454
    %3814 = vmatpush1.bf16.msra.mxu0 %v2453
    %3815 = vmatprep.subr.bf16.mxu0 %v2470
    %3816 = vmatpush1.bf16.msra.mxu0 %v2469
    %3817 = vmatprep.subr.bf16.mxu0 %v2486
    %3818 = vmatpush1.bf16.msra.mxu0 %v2485
    %3819 = vmatprep.subr.bf16.mxu0 %v2502
    %3820 = vmatpush1.bf16.msra.mxu0 %v2501
    %3821 = vmatprep.subr.bf16.mxu0 %v2518
    %3822 = vmatpush1.bf16.msra.mxu0 %v2517
    %3823 = vmatprep.subr.bf16.mxu0 %v2534
    %3824 = vmatpush1.bf16.msra.mxu0 %v2533
    %3825 = vmatprep.subr.bf16.mxu0 %v2550
    %3826 = vmatpush1.bf16.msra.mxu0 %v2549
    %3827 = vmatprep.subr.bf16.mxu0 %v2566
    %3828 = vmatpush1.bf16.msra.mxu0 %v2565
    %3829 = vmatprep.subr.bf16.mxu0 %v2582
    %3830 = vmatpush1.bf16.msra.mxu0 %v2581
    %3831 = vmatprep.subr.bf16.mxu0 %v2598
    %3832 = vmatpush1.bf16.msra.mxu0 %v2597
    %3833 = vmatprep.mubr.bf16.mxu0 %v212
    %3834 = vmatmul.mubr.bf16.gmra.mrb[0].mxu0 %v211
    %v3835 = vpop.f32.mrb[0].mxu0
    %v3836 = vadd.f32 %v774, %v3835
    %v3837 = vpop.f32.mrb[0].mxu0
    %v3838 = vadd.f32 %v778, %v3837
    %v3839 = vpop.f32.mrb[0].mxu0
    %v3840 = vadd.f32 %v774, %v3839
    %v3841 = vpop.f32.mrb[0].mxu0
    %v3842 = vadd.f32 %v778, %v3841
    %3843 = vdwg.mxu0
    %3844 = vmatprep.subr.bf16.mxu0 %v2614
    %3845 = vmatpush1.bf16.msra.mxu0 %v2613
    %3846 = vmatprep.subr.bf16.mxu0 %v2630
    %3847 = vmatpush1.bf16.msra.mxu0 %v2629
    %3848 = vmatprep.subr.bf16.mxu0 %v2646
    %3849 = vmatpush1.bf16.msra.mxu0 %v2645
    %3850 = vmatprep.subr.bf16.mxu0 %v2662
    %3851 = vmatpush1.bf16.msra.mxu0 %v2661
    %3852 = vmatprep.subr.bf16.mxu0 %v2678
    %3853 = vmatpush1.bf16.msra.mxu0 %v2677
    %3854 = vmatprep.subr.bf16.mxu0 %v2694
    %3855 = vmatpush1.bf16.msra.mxu0 %v2693
    %3856 = vmatprep.subr.bf16.mxu0 %v2710
    %3857 = vmatpush1.bf16.msra.mxu0 %v2709
    %3858 = vmatprep.subr.bf16.mxu0 %v2726
    %3859 = vmatpush1.bf16.msra.mxu0 %v2725
    %3860 = vmatprep.subr.bf16.mxu0 %v2742
    %3861 = vmatpush1.bf16.msra.mxu0 %v2741
    %3862 = vmatprep.subr.bf16.mxu0 %v2758
    %3863 = vmatpush1.bf16.msra.mxu0 %v2757
    %3864 = vmatprep.subr.bf16.mxu0 %v2774
    %3865 = vmatpush1.bf16.msra.mxu0 %v2773
    %3866 = vmatprep.subr.bf16.mxu0 %v2790
    %3867 = vmatpush1.bf16.msra.mxu0 %v2789
    %3868 = vmatprep.subr.bf16.mxu0 %v2806
    %3869 = vmatpush1.bf16.msra.mxu0 %v2805
    %3870 = vmatprep.subr.bf16.mxu0 %v2822
    %3871 = vmatpush1.bf16.msra.mxu0 %v2821
    %3872 = vmatprep.subr.bf16.mxu0 %v2838
    %3873 = vmatpush1.bf16.msra.mxu0 %v2837
    %3874 = vmatprep.subr.bf16.mxu0 %v2854
    %3875 = vmatpush1.bf16.msra.mxu0 %v2853
    %3876 = vmatprep.mubr.bf16.mxu0 %v214
    %3877 = vmatmul.mubr.bf16.gmra.mrb[0].mxu0 %v213
    %v3878 = vpop.f32.mrb[0].mxu0
    %v3879 = vadd.f32 %v3836, %v3878
    %v3880 = vpop.f32.mrb[0].mxu0
    %v3881 = vadd.f32 %v3838, %v3880
    %v3882 = vpop.f32.mrb[0].mxu0
    %v3883 = vadd.f32 %v3840, %v3882
    %v3884 = vpop.f32.mrb[0].mxu0
    %v3885 = vadd.f32 %v3842, %v3884
    %3886 = vdwg.mxu0
    %3887 = vmatprep.subr.bf16.mxu0 %v2360
    %3888 = vmatpush1.bf16.msra.mxu0 %v2359
    %3889 = vmatprep.subr.bf16.mxu0 %v2376
    %3890 = vmatpush1.bf16.msra.mxu0 %v2375
    %3891 = vmatprep.subr.bf16.mxu0 %v2392
    %3892 = vmatpush1.bf16.msra.mxu0 %v2391
    %3893 = vmatprep.subr.bf16.mxu0 %v2408
    %3894 = vmatpush1.bf16.msra.mxu0 %v2407
    %3895 = vmatprep.subr.bf16.mxu0 %v2424
    %3896 = vmatpush1.bf16.msra.mxu0 %v2423
    %3897 = vmatprep.subr.bf16.mxu0 %v2440
    %3898 = vmatpush1.bf16.msra.mxu0 %v2439
    %3899 = vmatprep.subr.bf16.mxu0 %v2456
    %3900 = vmatpush1.bf16.msra.mxu0 %v2455
    %3901 = vmatprep.subr.bf16.mxu0 %v2472
    %3902 = vmatpush1.bf16.msra.mxu0 %v2471
    %3903 = vmatprep.subr.bf16.mxu0 %v2488
    %3904 = vmatpush1.bf16.msra.mxu0 %v2487
    %3905 = vmatprep.subr.bf16.mxu0 %v2504
    %3906 = vmatpush1.bf16.msra.mxu0 %v2503
    %3907 = vmatprep.subr.bf16.mxu0 %v2520
    %3908 = vmatpush1.bf16.msra.mxu0 %v2519
    %3909 = vmatprep.subr.bf16.mxu0 %v2536
    %3910 = vmatpush1.bf16.msra.mxu0 %v2535
    %3911 = vmatprep.subr.bf16.mxu0 %v2552
    %3912 = vmatpush1.bf16.msra.mxu0 %v2551
    %3913 = vmatprep.subr.bf16.mxu0 %v2568
    %3914 = vmatpush1.bf16.msra.mxu0 %v2567
    %3915 = vmatprep.subr.bf16.mxu0 %v2584
    %3916 = vmatpush1.bf16.msra.mxu0 %v2583
    %3917 = vmatprep.subr.bf16.mxu0 %v2600
    %3918 = vmatpush1.bf16.msra.mxu0 %v2599
    %3919 = vmatprep.mubr.bf16.mxu0 %v212
    %3920 = vmatmul.mubr.bf16.gmra.mrb[0].mxu0 %v211
    %v3921 = vpop.f32.mrb[0].mxu0
    %v3922 = vadd.f32 %v782, %v3921
    %v3923 = vpop.f32.mrb[0].mxu0
    %v3924 = vadd.f32 %v786, %v3923
    %v3925 = vpop.f32.mrb[0].mxu0
    %v3926 = vadd.f32 %v782, %v3925
    %v3927 = vpop.f32.mrb[0].mxu0
    %v3928 = vadd.f32 %v786, %v3927
    %3929 = vdwg.mxu0
    %3930 = vmatprep.subr.bf16.mxu0 %v2616
    %3931 = vmatpush1.bf16.msra.mxu0 %v2615
    %3932 = vmatprep.subr.bf16.mxu0 %v2632
    %3933 = vmatpush1.bf16.msra.mxu0 %v2631
    %3934 = vmatprep.subr.bf16.mxu0 %v2648
    %3935 = vmatpush1.bf16.msra.mxu0 %v2647
    %3936 = vmatprep.subr.bf16.mxu0 %v2664
    %3937 = vmatpush1.bf16.msra.mxu0 %v2663
    %3938 = vmatprep.subr.bf16.mxu0 %v2680
    %3939 = vmatpush1.bf16.msra.mxu0 %v2679
    %3940 = vmatprep.subr.bf16.mxu0 %v2696
    %3941 = vmatpush1.bf16.msra.mxu0 %v2695
    %3942 = vmatprep.subr.bf16.mxu0 %v2712
    %3943 = vmatpush1.bf16.msra.mxu0 %v2711
    %3944 = vmatprep.subr.bf16.mxu0 %v2728
    %3945 = vmatpush1.bf16.msra.mxu0 %v2727
    %3946 = vmatprep.subr.bf16.mxu0 %v2744
    %3947 = vmatpush1.bf16.msra.mxu0 %v2743
    %3948 = vmatprep.subr.bf16.mxu0 %v2760
    %3949 = vmatpush1.bf16.msra.mxu0 %v2759
    %3950 = vmatprep.subr.bf16.mxu0 %v2776
    %3951 = vmatpush1.bf16.msra.mxu0 %v2775
    %3952 = vmatprep.subr.bf16.mxu0 %v2792
    %3953 = vmatpush1.bf16.msra.mxu0 %v2791
    %3954 = vmatprep.subr.bf16.mxu0 %v2808
    %3955 = vmatpush1.bf16.msra.mxu0 %v2807
    %3956 = vmatprep.subr.bf16.mxu0 %v2824
    %3957 = vmatpush1.bf16.msra.mxu0 %v2823
    %3958 = vmatprep.subr.bf16.mxu0 %v2840
    %3959 = vmatpush1.bf16.msra.mxu0 %v2839
    %3960 = vmatprep.subr.bf16.mxu0 %v2856
    %3961 = vmatpush1.bf16.msra.mxu0 %v2855
    %3962 = vmatprep.mubr.bf16.mxu0 %v214
    %3963 = vmatmul.mubr.bf16.gmra.mrb[0].mxu0 %v213
    %v3964 = vpop.f32.mrb[0].mxu0
    %v3965 = vadd.f32 %v3922, %v3964
    %v3966 = vpop.f32.mrb[0].mxu0
    %v3967 = vadd.f32 %v3924, %v3966
    %v3968 = vpop.f32.mrb[0].mxu0
    %v3969 = vadd.f32 %v3926, %v3968
    %v3970 = vpop.f32.mrb[0].mxu0
    %v3971 = vadd.f32 %v3928, %v3970
    %3972 = vdwg.mxu0
    %3973 = vmatprep.subr.bf16.mxu0 %v2362
    %3974 = vmatpush1.bf16.msra.mxu0 %v2361
    %3975 = vmatprep.subr.bf16.mxu0 %v2378
    %3976 = vmatpush1.bf16.msra.mxu0 %v2377
    %3977 = vmatprep.subr.bf16.mxu0 %v2394
    %3978 = vmatpush1.bf16.msra.mxu0 %v2393
    %3979 = vmatprep.subr.bf16.mxu0 %v2410
    %3980 = vmatpush1.bf16.msra.mxu0 %v2409
    %3981 = vmatprep.subr.bf16.mxu0 %v2426
    %3982 = vmatpush1.bf16.msra.mxu0 %v2425
    %3983 = vmatprep.subr.bf16.mxu0 %v2442
    %3984 = vmatpush1.bf16.msra.mxu0 %v2441
    %3985 = vmatprep.subr.bf16.mxu0 %v2458
    %3986 = vmatpush1.bf16.msra.mxu0 %v2457
    %3987 = vmatprep.subr.bf16.mxu0 %v2474
    %3988 = vmatpush1.bf16.msra.mxu0 %v2473
    %3989 = vmatprep.subr.bf16.mxu0 %v2490
    %3990 = vmatpush1.bf16.msra.mxu0 %v2489
    %3991 = vmatprep.subr.bf16.mxu0 %v2506
    %3992 = vmatpush1.bf16.msra.mxu0 %v2505
    %3993 = vmatprep.subr.bf16.mxu0 %v2522
    %3994 = vmatpush1.bf16.msra.mxu0 %v2521
    %3995 = vmatprep.subr.bf16.mxu0 %v2538
    %3996 = vmatpush1.bf16.msra.mxu0 %v2537
    %3997 = vmatprep.subr.bf16.mxu0 %v2554
    %3998 = vmatpush1.bf16.msra.mxu0 %v2553
    %3999 = vmatprep.subr.bf16.mxu0 %v2570
    %4000 = vmatpush1.bf16.msra.mxu0 %v2569
    %4001 = vmatprep.subr.bf16.mxu0 %v2586
    %4002 = vmatpush1.bf16.msra.mxu0 %v2585
    %4003 = vmatprep.subr.bf16.mxu0 %v2602
    %4004 = vmatpush1.bf16.msra.mxu0 %v2601
    %4005 = vmatprep.mubr.bf16.mxu0 %v212
    %4006 = vmatmul.mubr.bf16.gmra.mrb[0].mxu0 %v211
    %v4007 = vpop.f32.mrb[0].mxu0
    %v4008 = vadd.f32 %v790, %v4007
    %v4009 = vpop.f32.mrb[0].mxu0
    %v4010 = vadd.f32 %v794, %v4009
    %v4011 = vpop.f32.mrb[0].mxu0
    %v4012 = vadd.f32 %v790, %v4011
    %v4013 = vpop.f32.mrb[0].mxu0
    %v4014 = vadd.f32 %v794, %v4013
    %4015 = vdwg.mxu0
    %4016 = vmatprep.subr.bf16.mxu0 %v2618
    %4017 = vmatpush1.bf16.msra.mxu0 %v2617
    %4018 = vmatprep.subr.bf16.mxu0 %v2634
    %4019 = vmatpush1.bf16.msra.mxu0 %v2633
    %4020 = vmatprep.subr.bf16.mxu0 %v2650
    %4021 = vmatpush1.bf16.msra.mxu0 %v2649
    %4022 = vmatprep.subr.bf16.mxu0 %v2666
    %4023 = vmatpush1.bf16.msra.mxu0 %v2665
    %4024 = vmatprep.subr.bf16.mxu0 %v2682
    %4025 = vmatpush1.bf16.msra.mxu0 %v2681
    %4026 = vmatprep.subr.bf16.mxu0 %v2698
    %4027 = vmatpush1.bf16.msra.mxu0 %v2697
    %4028 = vmatprep.subr.bf16.mxu0 %v2714
    %4029 = vmatpush1.bf16.msra.mxu0 %v2713
    %4030 = vmatprep.subr.bf16.mxu0 %v2730
    %4031 = vmatpush1.bf16.msra.mxu0 %v2729
    %4032 = vmatprep.subr.bf16.mxu0 %v2746
    %4033 = vmatpush1.bf16.msra.mxu0 %v2745
    %4034 = vmatprep.subr.bf16.mxu0 %v2762
    %4035 = vmatpush1.bf16.msra.mxu0 %v2761
    %4036 = vmatprep.subr.bf16.mxu0 %v2778
    %4037 = vmatpush1.bf16.msra.mxu0 %v2777
    %4038 = vmatprep.subr.bf16.mxu0 %v2794
    %4039 = vmatpush1.bf16.msra.mxu0 %v2793
    %4040 = vmatprep.subr.bf16.mxu0 %v2810
    %4041 = vmatpush1.bf16.msra.mxu0 %v2809
    %4042 = vmatprep.subr.bf16.mxu0 %v2826
    %4043 = vmatpush1.bf16.msra.mxu0 %v2825
    %4044 = vmatprep.subr.bf16.mxu0 %v2842
    %4045 = vmatpush1.bf16.msra.mxu0 %v2841
    %4046 = vmatprep.subr.bf16.mxu0 %v2858
    %4047 = vmatpush1.bf16.msra.mxu0 %v2857
    %4048 = vmatprep.mubr.bf16.mxu0 %v214
    %4049 = vmatmul.mubr.bf16.gmra.mrb[0].mxu0 %v213
    %v4050 = vpop.f32.mrb[0].mxu0
    %v4051 = vadd.f32 %v4008, %v4050
    %v4052 = vpop.f32.mrb[0].mxu0
    %v4053 = vadd.f32 %v4010, %v4052
    %v4054 = vpop.f32.mrb[0].mxu0
    %v4055 = vadd.f32 %v4012, %v4054
    %v4056 = vpop.f32.mrb[0].mxu0
    %v4057 = vadd.f32 %v4014, %v4056
    %4058 = vdwg.mxu0
    %4059 = vst [vmem:[#allocation2] sm:$0xff] %v3449
    %4060 = vst [vmem:[#allocation2 + $0x8] sm:$0xff] %v3451
    %4061 = vst [vmem:[#allocation2 + $0x10] sm:$0xff] %v3535
    %4062 = vst [vmem:[#allocation2 + $0x18] sm:$0xff] %v3537
    %4063 = vst [vmem:[#allocation2 + $0x20] sm:$0xff] %v3621
    %4064 = vst [vmem:[#allocation2 + $0x28] sm:$0xff] %v3623
    %4065 = vst [vmem:[#allocation2 + $0x30] sm:$0xff] %v3707
    %4066 = vst [vmem:[#allocation2 + $0x38] sm:$0xff] %v3709
    %4067 = vst [vmem:[#allocation2 + $0x40] sm:$0xff] %v3793
    %4068 = vst [vmem:[#allocation2 + $0x48] sm:$0xff] %v3795
    %4069 = vst [vmem:[#allocation2 + $0x50] sm:$0xff] %v3879
    %4070 = vst [vmem:[#allocation2 + $0x58] sm:$0xff] %v3881
    %4071 = vst [vmem:[#allocation2 + $0x60] sm:$0xff] %v3965
    %4072 = vst [vmem:[#allocation2 + $0x68] sm:$0xff] %v3967
    %4073 = vst [vmem:[#allocation2 + $0x70] sm:$0xff] %v4051
    %4074 = vst [vmem:[#allocation2 + $0x78] sm:$0xff] %v4053
    %4075 = vst [vmem:[#allocation2 + $0x80] sm:$0xff] %v3453
    %4076 = vst [vmem:[#allocation2 + $0x88] sm:$0xff] %v3455
    %4077 = vst [vmem:[#allocation2 + $0x90] sm:$0xff] %v3539
    %4078 = vst [vmem:[#allocation2 + $0x98] sm:$0xff] %v3541
    %4079 = vst [vmem:[#allocation2 + $0xa0] sm:$0xff] %v3625
    %4080 = vst [vmem:[#allocation2 + $0xa8] sm:$0xff] %v3627
    %4081 = vst [vmem:[#allocation2 + $0xb0] sm:$0xff] %v3711
    %4082 = vst [vmem:[#allocation2 + $0xb8] sm:$0xff] %v3713
    %4083 = vst [vmem:[#allocation2 + $0xc0] sm:$0xff] %v3797
    %4084 = vst [vmem:[#allocation2 + $0xc8] sm:$0xff] %v3799
    %4085 = vst [vmem:[#allocation2 + $0xd0] sm:$0xff] %v3883
    %4086 = vst [vmem:[#allocation2 + $0xd8] sm:$0xff] %v3885
    %4087 = vst [vmem:[#allocation2 + $0xe0] sm:$0xff] %v3969
    %4088 = vst [vmem:[#allocation2 + $0xe8] sm:$0xff] %v3971
    %4089 = vst [vmem:[#allocation2 + $0xf0] sm:$0xff] %v4055
    %4090 = vst [vmem:[#allocation2 + $0xf8] sm:$0xff] %v4057
    %s4091 = smul.u32 4, 32
    %s4092 = smul.u32 %s4091, 8
    %s4093 = sshll.u32 %s4092, 4
    %4094 = dma.done [#allocation10], %s4093
    %s4095 = sshll.u32 %s4092, 4
    %4096 = dma.done %s124, %s4095
    %v4097 = vld [vmem:[#allocation5] sm:$0xff]
    %v4098 = vld [vmem:[#allocation5 + $0x8] sm:$0xff]
    %v4099 = vld [vmem:[#allocation5 + $0x10] sm:$0xff]
    %v4100 = vld [vmem:[#allocation5 + $0x18] sm:$0xff]
    %v4101 = vld [vmem:[#allocation5 + $0x20] sm:$0xff]
    %v4102 = vld [vmem:[#allocation5 + $0x28] sm:$0xff]
    %v4103 = vld [vmem:[#allocation5 + $0x30] sm:$0xff]
    %v4104 = vld [vmem:[#allocation5 + $0x38] sm:$0xff]
    %v4105 = vld [vmem:[#allocation5 + $0x40] sm:$0xff]
    %v4106 = vld [vmem:[#allocation5 + $0x48] sm:$0xff]
    %v4107 = vld [vmem:[#allocation5 + $0x50] sm:$0xff]
    %v4108 = vld [vmem:[#allocation5 + $0x58] sm:$0xff]
    %v4109 = vld [vmem:[#allocation5 + $0x60] sm:$0xff]
    %v4110 = vld [vmem:[#allocation5 + $0x68] sm:$0xff]
    %v4111 = vld [vmem:[#allocation5 + $0x70] sm:$0xff]
    %v4112 = vld [vmem:[#allocation5 + $0x78] sm:$0xff]
    %v4113 = vld [vmem:[#allocation5 + $0x80] sm:$0xff]
    %v4114 = vld [vmem:[#allocation5 + $0x88] sm:$0xff]
    %v4115 = vld [vmem:[#allocation5 + $0x90] sm:$0xff]
    %v4116 = vld [vmem:[#allocation5 + $0x98] sm:$0xff]
    %v4117 = vld [vmem:[#allocation5 + $0xa0] sm:$0xff]
    %v4118 = vld [vmem:[#allocation5 + $0xa8] sm:$0xff]
    %v4119 = vld [vmem:[#allocation5 + $0xb0] sm:$0xff]
    %v4120 = vld [vmem:[#allocation5 + $0xb8] sm:$0xff]
    %v4121 = vld [vmem:[#allocation5 + $0xc0] sm:$0xff]
    %v4122 = vld [vmem:[#allocation5 + $0xc8] sm:$0xff]
    %v4123 = vld [vmem:[#allocation5 + $0xd0] sm:$0xff]
    %v4124 = vld [vmem:[#allocation5 + $0xd8] sm:$0xff]
    %v4125 = vld [vmem:[#allocation5 + $0xe0] sm:$0xff]
    %v4126 = vld [vmem:[#allocation5 + $0xe8] sm:$0xff]
    %v4127 = vld [vmem:[#allocation5 + $0xf0] sm:$0xff]
    %v4128 = vld [vmem:[#allocation5 + $0xf8] sm:$0xff]
    %v4129 = vld [vmem:[#allocation5 + $0x100] sm:$0xff]
    %v4130 = vld [vmem:[#allocation5 + $0x108] sm:$0xff]
    %v4131 = vld [vmem:[#allocation5 + $0x110] sm:$0xff]
    %v4132 = vld [vmem:[#allocation5 + $0x118] sm:$0xff]
    %v4133 = vld [vmem:[#allocation5 + $0x120] sm:$0xff]
    %v4134 = vld [vmem:[#allocation5 + $0x128] sm:$0xff]
    %v4135 = vld [vmem:[#allocation5 + $0x130] sm:$0xff]
    %v4136 = vld [vmem:[#allocation5 + $0x138] sm:$0xff]
    %v4137 = vld [vmem:[#allocation5 + $0x140] sm:$0xff]
    %v4138 = vld [vmem:[#allocation5 + $0x148] sm:$0xff]
    %v4139 = vld [vmem:[#allocation5 + $0x150] sm:$0xff]
    %v4140 = vld [vmem:[#allocation5 + $0x158] sm:$0xff]
    %v4141 = vld [vmem:[#allocation5 + $0x160] sm:$0xff]
    %v4142 = vld [vmem:[#allocation5 + $0x168] sm:$0xff]
    %v4143 = vld [vmem:[#allocation5 + $0x170] sm:$0xff]
    %v4144 = vld [vmem:[#allocation5 + $0x178] sm:$0xff]
    %v4145 = vld [vmem:[#allocation5 + $0x180] sm:$0xff]
    %v4146 = vld [vmem:[#allocation5 + $0x188] sm:$0xff]
    %v4147 = vld [vmem:[#allocation5 + $0x190] sm:$0xff]
    %v4148 = vld [vmem:[#allocation5 + $0x198] sm:$0xff]
    %v4149 = vld [vmem:[#allocation5 + $0x1a0] sm:$0xff]
    %v4150 = vld [vmem:[#allocation5 + $0x1a8] sm:$0xff]
    %v4151 = vld [vmem:[#allocation5 + $0x1b0] sm:$0xff]
    %v4152 = vld [vmem:[#allocation5 + $0x1b8] sm:$0xff]
    %v4153 = vld [vmem:[#allocation5 + $0x1c0] sm:$0xff]
    %v4154 = vld [vmem:[#allocation5 + $0x1c8] sm:$0xff]
    %v4155 = vld [vmem:[#allocation5 + $0x1d0] sm:$0xff]
    %v4156 = vld [vmem:[#allocation5 + $0x1d8] sm:$0xff]
    %v4157 = vld [vmem:[#allocation5 + $0x1e0] sm:$0xff]
    %v4158 = vld [vmem:[#allocation5 + $0x1e8] sm:$0xff]
    %v4159 = vld [vmem:[#allocation5 + $0x1f0] sm:$0xff]
    %v4160 = vld [vmem:[#allocation5 + $0x1f8] sm:$0xff]
    %v4161 = vld [vmem:[#allocation5 + $0x200] sm:$0xff]
    %v4162 = vld [vmem:[#allocation5 + $0x208] sm:$0xff]
    %v4163 = vld [vmem:[#allocation5 + $0x210] sm:$0xff]
    %v4164 = vld [vmem:[#allocation5 + $0x218] sm:$0xff]
    %v4165 = vld [vmem:[#allocation5 + $0x220] sm:$0xff]
    %v4166 = vld [vmem:[#allocation5 + $0x228] sm:$0xff]
    %v4167 = vld [vmem:[#allocation5 + $0x230] sm:$0xff]
    %v4168 = vld [vmem:[#allocation5 + $0x238] sm:$0xff]
    %v4169 = vld [vmem:[#allocation5 + $0x240] sm:$0xff]
    %v4170 = vld [vmem:[#allocation5 + $0x248] sm:$0xff]
    %v4171 = vld [vmem:[#allocation5 + $0x250] sm:$0xff]
    %v4172 = vld [vmem:[#allocation5 + $0x258] sm:$0xff]
    %v4173 = vld [vmem:[#allocation5 + $0x260] sm:$0xff]
    %v4174 = vld [vmem:[#allocation5 + $0x268] sm:$0xff]
    %v4175 = vld [vmem:[#allocation5 + $0x270] sm:$0xff]
    %v4176 = vld [vmem:[#allocation5 + $0x278] sm:$0xff]
    %v4177 = vld [vmem:[#allocation5 + $0x280] sm:$0xff]
    %v4178 = vld [vmem:[#allocation5 + $0x288] sm:$0xff]
    %v4179 = vld [vmem:[#allocation5 + $0x290] sm:$0xff]
    %v4180 = vld [vmem:[#allocation5 + $0x298] sm:$0xff]
    %v4181 = vld [vmem:[#allocation5 + $0x2a0] sm:$0xff]
    %v4182 = vld [vmem:[#allocation5 + $0x2a8] sm:$0xff]
    %v4183 = vld [vmem:[#allocation5 + $0x2b0] sm:$0xff]
    %v4184 = vld [vmem:[#allocation5 + $0x2b8] sm:$0xff]
    %v4185 = vld [vmem:[#allocation5 + $0x2c0] sm:$0xff]
    %v4186 = vld [vmem:[#allocation5 + $0x2c8] sm:$0xff]
    %v4187 = vld [vmem:[#allocation5 + $0x2d0] sm:$0xff]
    %v4188 = vld [vmem:[#allocation5 + $0x2d8] sm:$0xff]
    %v4189 = vld [vmem:[#allocation5 + $0x2e0] sm:$0xff]
    %v4190 = vld [vmem:[#allocation5 + $0x2e8] sm:$0xff]
    %v4191 = vld [vmem:[#allocation5 + $0x2f0] sm:$0xff]
    %v4192 = vld [vmem:[#allocation5 + $0x2f8] sm:$0xff]
    %v4193 = vld [vmem:[#allocation5 + $0x300] sm:$0xff]
    %v4194 = vld [vmem:[#allocation5 + $0x308] sm:$0xff]
    %v4195 = vld [vmem:[#allocation5 + $0x310] sm:$0xff]
    %v4196 = vld [vmem:[#allocation5 + $0x318] sm:$0xff]
    %v4197 = vld [vmem:[#allocation5 + $0x320] sm:$0xff]
    %v4198 = vld [vmem:[#allocation5 + $0x328] sm:$0xff]
    %v4199 = vld [vmem:[#allocation5 + $0x330] sm:$0xff]
    %v4200 = vld [vmem:[#allocation5 + $0x338] sm:$0xff]
    %v4201 = vld [vmem:[#allocation5 + $0x340] sm:$0xff]
    %v4202 = vld [vmem:[#allocation5 + $0x348] sm:$0xff]
    %v4203 = vld [vmem:[#allocation5 + $0x350] sm:$0xff]
    %v4204 = vld [vmem:[#allocation5 + $0x358] sm:$0xff]
    %v4205 = vld [vmem:[#allocation5 + $0x360] sm:$0xff]
    %v4206 = vld [vmem:[#allocation5 + $0x368] sm:$0xff]
    %v4207 = vld [vmem:[#allocation5 + $0x370] sm:$0xff]
    %v4208 = vld [vmem:[#allocation5 + $0x378] sm:$0xff]
    %v4209 = vld [vmem:[#allocation5 + $0x380] sm:$0xff]
    %v4210 = vld [vmem:[#allocation5 + $0x388] sm:$0xff]
    %v4211 = vld [vmem:[#allocation5 + $0x390] sm:$0xff]
    %v4212 = vld [vmem:[#allocation5 + $0x398] sm:$0xff]
    %v4213 = vld [vmem:[#allocation5 + $0x3a0] sm:$0xff]
    %v4214 = vld [vmem:[#allocation5 + $0x3a8] sm:$0xff]
    %v4215 = vld [vmem:[#allocation5 + $0x3b0] sm:$0xff]
    %v4216 = vld [vmem:[#allocation5 + $0x3b8] sm:$0xff]
    %v4217 = vld [vmem:[#allocation5 + $0x3c0] sm:$0xff]
    %v4218 = vld [vmem:[#allocation5 + $0x3c8] sm:$0xff]
    %v4219 = vld [vmem:[#allocation5 + $0x3d0] sm:$0xff]
    %v4220 = vld [vmem:[#allocation5 + $0x3d8] sm:$0xff]
    %v4221 = vld [vmem:[#allocation5 + $0x3e0] sm:$0xff]
    %v4222 = vld [vmem:[#allocation5 + $0x3e8] sm:$0xff]
    %v4223 = vld [vmem:[#allocation5 + $0x3f0] sm:$0xff]
    %v4224 = vld [vmem:[#allocation5 + $0x3f8] sm:$0xff]
    %v4225 = vld [vmem:[#allocation6] sm:$0xff]
    %v4226 = vld [vmem:[#allocation6 + $0x8] sm:$0xff]
    %v4227 = vld [vmem:[#allocation6 + $0x10] sm:$0xff]
    %v4228 = vld [vmem:[#allocation6 + $0x18] sm:$0xff]
    %v4229 = vld [vmem:[#allocation6 + $0x20] sm:$0xff]
    %v4230 = vld [vmem:[#allocation6 + $0x28] sm:$0xff]
    %v4231 = vld [vmem:[#allocation6 + $0x30] sm:$0xff]
    %v4232 = vld [vmem:[#allocation6 + $0x38] sm:$0xff]
    %v4233 = vld [vmem:[#allocation6 + $0x40] sm:$0xff]
    %v4234 = vld [vmem:[#allocation6 + $0x48] sm:$0xff]
    %v4235 = vld [vmem:[#allocation6 + $0x50] sm:$0xff]
    %v4236 = vld [vmem:[#allocation6 + $0x58] sm:$0xff]
    %v4237 = vld [vmem:[#allocation6 + $0x60] sm:$0xff]
    %v4238 = vld [vmem:[#allocation6 + $0x68] sm:$0xff]
    %v4239 = vld [vmem:[#allocation6 + $0x70] sm:$0xff]
    %v4240 = vld [vmem:[#allocation6 + $0x78] sm:$0xff]
    %v4241 = vld [vmem:[#allocation6 + $0x80] sm:$0xff]
    %v4242 = vld [vmem:[#allocation6 + $0x88] sm:$0xff]
    %v4243 = vld [vmem:[#allocation6 + $0x90] sm:$0xff]
    %v4244 = vld [vmem:[#allocation6 + $0x98] sm:$0xff]
    %v4245 = vld [vmem:[#allocation6 + $0xa0] sm:$0xff]
    %v4246 = vld [vmem:[#allocation6 + $0xa8] sm:$0xff]
    %v4247 = vld [vmem:[#allocation6 + $0xb0] sm:$0xff]
    %v4248 = vld [vmem:[#allocation6 + $0xb8] sm:$0xff]
    %v4249 = vld [vmem:[#allocation6 + $0xc0] sm:$0xff]
    %v4250 = vld [vmem:[#allocation6 + $0xc8] sm:$0xff]
    %v4251 = vld [vmem:[#allocation6 + $0xd0] sm:$0xff]
    %v4252 = vld [vmem:[#allocation6 + $0xd8] sm:$0xff]
    %v4253 = vld [vmem:[#allocation6 + $0xe0] sm:$0xff]
    %v4254 = vld [vmem:[#allocation6 + $0xe8] sm:$0xff]
    %v4255 = vld [vmem:[#allocation6 + $0xf0] sm:$0xff]
    %v4256 = vld [vmem:[#allocation6 + $0xf8] sm:$0xff]
    %v4257 = vld [vmem:[#allocation6 + $0x100] sm:$0xff]
    %v4258 = vld [vmem:[#allocation6 + $0x108] sm:$0xff]
    %v4259 = vld [vmem:[#allocation6 + $0x110] sm:$0xff]
    %v4260 = vld [vmem:[#allocation6 + $0x118] sm:$0xff]
    %v4261 = vld [vmem:[#allocation6 + $0x120] sm:$0xff]
    %v4262 = vld [vmem:[#allocation6 + $0x128] sm:$0xff]
    %v4263 = vld [vmem:[#allocation6 + $0x130] sm:$0xff]
    %v4264 = vld [vmem:[#allocation6 + $0x138] sm:$0xff]
    %v4265 = vld [vmem:[#allocation6 + $0x140] sm:$0xff]
    %v4266 = vld [vmem:[#allocation6 + $0x148] sm:$0xff]
    %v4267 = vld [vmem:[#allocation6 + $0x150] sm:$0xff]
    %v4268 = vld [vmem:[#allocation6 + $0x158] sm:$0xff]
    %v4269 = vld [vmem:[#allocation6 + $0x160] sm:$0xff]
    %v4270 = vld [vmem:[#allocation6 + $0x168] sm:$0xff]
    %v4271 = vld [vmem:[#allocation6 + $0x170] sm:$0xff]
    %v4272 = vld [vmem:[#allocation6 + $0x178] sm:$0xff]
    %v4273 = vld [vmem:[#allocation6 + $0x180] sm:$0xff]
    %v4274 = vld [vmem:[#allocation6 + $0x188] sm:$0xff]
    %v4275 = vld [vmem:[#allocation6 + $0x190] sm:$0xff]
    %v4276 = vld [vmem:[#allocation6 + $0x198] sm:$0xff]
    %v4277 = vld [vmem:[#allocation6 + $0x1a0] sm:$0xff]
    %v4278 = vld [vmem:[#allocation6 + $0x1a8] sm:$0xff]
    %v4279 = vld [vmem:[#allocation6 + $0x1b0] sm:$0xff]
    %v4280 = vld [vmem:[#allocation6 + $0x1b8] sm:$0xff]
    %v4281 = vld [vmem:[#allocation6 + $0x1c0] sm:$0xff]
    %v4282 = vld [vmem:[#allocation6 + $0x1c8] sm:$0xff]
    %v4283 = vld [vmem:[#allocation6 + $0x1d0] sm:$0xff]
    %v4284 = vld [vmem:[#allocation6 + $0x1d8] sm:$0xff]
    %v4285 = vld [vmem:[#allocation6 + $0x1e0] sm:$0xff]
    %v4286 = vld [vmem:[#allocation6 + $0x1e8] sm:$0xff]
    %v4287 = vld [vmem:[#allocation6 + $0x1f0] sm:$0xff]
    %v4288 = vld [vmem:[#allocation6 + $0x1f8] sm:$0xff]
    %v4289 = vld [vmem:[#allocation6 + $0x200] sm:$0xff]
    %v4290 = vld [vmem:[#allocation6 + $0x208] sm:$0xff]
    %v4291 = vld [vmem:[#allocation6 + $0x210] sm:$0xff]
    %v4292 = vld [vmem:[#allocation6 + $0x218] sm:$0xff]
    %v4293 = vld [vmem:[#allocation6 + $0x220] sm:$0xff]
    %v4294 = vld [vmem:[#allocation6 + $0x228] sm:$0xff]
    %v4295 = vld [vmem:[#allocation6 + $0x230] sm:$0xff]
    %v4296 = vld [vmem:[#allocation6 + $0x238] sm:$0xff]
    %v4297 = vld [vmem:[#allocation6 + $0x240] sm:$0xff]
    %v4298 = vld [vmem:[#allocation6 + $0x248] sm:$0xff]
    %v4299 = vld [vmem:[#allocation6 + $0x250] sm:$0xff]
    %v4300 = vld [vmem:[#allocation6 + $0x258] sm:$0xff]
    %v4301 = vld [vmem:[#allocation6 + $0x260] sm:$0xff]
    %v4302 = vld [vmem:[#allocation6 + $0x268] sm:$0xff]
    %v4303 = vld [vmem:[#allocation6 + $0x270] sm:$0xff]
    %v4304 = vld [vmem:[#allocation6 + $0x278] sm:$0xff]
    %v4305 = vld [vmem:[#allocation6 + $0x280] sm:$0xff]
    %v4306 = vld [vmem:[#allocation6 + $0x288] sm:$0xff]
    %v4307 = vld [vmem:[#allocation6 + $0x290] sm:$0xff]
    %v4308 = vld [vmem:[#allocation6 + $0x298] sm:$0xff]
    %v4309 = vld [vmem:[#allocation6 + $0x2a0] sm:$0xff]
    %v4310 = vld [vmem:[#allocation6 + $0x2a8] sm:$0xff]
    %v4311 = vld [vmem:[#allocation6 + $0x2b0] sm:$0xff]
    %v4312 = vld [vmem:[#allocation6 + $0x2b8] sm:$0xff]
    %v4313 = vld [vmem:[#allocation6 + $0x2c0] sm:$0xff]
    %v4314 = vld [vmem:[#allocation6 + $0x2c8] sm:$0xff]
    %v4315 = vld [vmem:[#allocation6 + $0x2d0] sm:$0xff]
    %v4316 = vld [vmem:[#allocation6 + $0x2d8] sm:$0xff]
    %v4317 = vld [vmem:[#allocation6 + $0x2e0] sm:$0xff]
    %v4318 = vld [vmem:[#allocation6 + $0x2e8] sm:$0xff]
    %v4319 = vld [vmem:[#allocation6 + $0x2f0] sm:$0xff]
    %v4320 = vld [vmem:[#allocation6 + $0x2f8] sm:$0xff]
    %v4321 = vld [vmem:[#allocation6 + $0x300] sm:$0xff]
    %v4322 = vld [vmem:[#allocation6 + $0x308] sm:$0xff]
    %v4323 = vld [vmem:[#allocation6 + $0x310] sm:$0xff]
    %v4324 = vld [vmem:[#allocation6 + $0x318] sm:$0xff]
    %v4325 = vld [vmem:[#allocation6 + $0x320] sm:$0xff]
    %v4326 = vld [vmem:[#allocation6 + $0x328] sm:$0xff]
    %v4327 = vld [vmem:[#allocation6 + $0x330] sm:$0xff]
    %v4328 = vld [vmem:[#allocation6 + $0x338] sm:$0xff]
    %v4329 = vld [vmem:[#allocation6 + $0x340] sm:$0xff]
    %v4330 = vld [vmem:[#allocation6 + $0x348] sm:$0xff]
    %v4331 = vld [vmem:[#allocation6 + $0x350] sm:$0xff]
    %v4332 = vld [vmem:[#allocation6 + $0x358] sm:$0xff]
    %v4333 = vld [vmem:[#allocation6 + $0x360] sm:$0xff]
    %v4334 = vld [vmem:[#allocation6 + $0x368] sm:$0xff]
    %v4335 = vld [vmem:[#allocation6 + $0x370] sm:$0xff]
    %v4336 = vld [vmem:[#allocation6 + $0x378] sm:$0xff]
    %v4337 = vld [vmem:[#allocation6 + $0x380] sm:$0xff]
    %v4338 = vld [vmem:[#allocation6 + $0x388] sm:$0xff]
    %v4339 = vld [vmem:[#allocation6 + $0x390] sm:$0xff]
    %v4340 = vld [vmem:[#allocation6 + $0x398] sm:$0xff]
    %v4341 = vld [vmem:[#allocation6 + $0x3a0] sm:$0xff]
    %v4342 = vld [vmem:[#allocation6 + $0x3a8] sm:$0xff]
    %v4343 = vld [vmem:[#allocation6 + $0x3b0] sm:$0xff]
    %v4344 = vld [vmem:[#allocation6 + $0x3b8] sm:$0xff]
    %v4345 = vld [vmem:[#allocation6 + $0x3c0] sm:$0xff]
    %v4346 = vld [vmem:[#allocation6 + $0x3c8] sm:$0xff]
    %v4347 = vld [vmem:[#allocation6 + $0x3d0] sm:$0xff]
    %v4348 = vld [vmem:[#allocation6 + $0x3d8] sm:$0xff]
    %v4349 = vld [vmem:[#allocation6 + $0x3e0] sm:$0xff]
    %v4350 = vld [vmem:[#allocation6 + $0x3e8] sm:$0xff]
    %v4351 = vld [vmem:[#allocation6 + $0x3f0] sm:$0xff]
    %v4352 = vld [vmem:[#allocation6 + $0x3f8] sm:$0xff]
    %v4353 = vld [vmem:[#allocation2] sm:$0x3]
    %v4354 = vld [vmem:[#allocation2 + $0x8] sm:$0x3]
    %v4355 = vld [vmem:[#allocation2 + $0x10] sm:$0x3]
    %v4356 = vld [vmem:[#allocation2 + $0x18] sm:$0x3]
    %v4357 = vld [vmem:[#allocation2 + $0x20] sm:$0x3]
    %v4358 = vld [vmem:[#allocation2 + $0x28] sm:$0x3]
    %v4359 = vld [vmem:[#allocation2 + $0x30] sm:$0x3]
    %v4360 = vld [vmem:[#allocation2 + $0x38] sm:$0x3]
    %4361 = vmatprep.subr.bf16.mxu0 %v4098
    %4362 = vmatpush1.bf16.msra.mxu0 %v4097
    %4363 = vmatprep.subr.bf16.mxu0 %v4106
    %4364 = vmatpush1.bf16.msra.mxu0 %v4105
    %4365 = vmatprep.subr.bf16.mxu0 %v4114
    %4366 = vmatpush1.bf16.msra.mxu0 %v4113
    %4367 = vmatprep.subr.bf16.mxu0 %v4122
    %4368 = vmatpush1.bf16.msra.mxu0 %v4121
    %4369 = vmatprep.subr.bf16.mxu0 %v4130
    %4370 = vmatpush1.bf16.msra.mxu0 %v4129
    %4371 = vmatprep.subr.bf16.mxu0 %v4138
    %4372 = vmatpush1.bf16.msra.mxu0 %v4137
    %4373 = vmatprep.subr.bf16.mxu0 %v4146
    %4374 = vmatpush1.bf16.msra.mxu0 %v4145
    %4375 = vmatprep.subr.bf16.mxu0 %v4154
    %4376 = vmatpush1.bf16.msra.mxu0 %v4153
    %4377 = vmatprep.subr.bf16.mxu0 %v4162
    %4378 = vmatpush1.bf16.msra.mxu0 %v4161
    %4379 = vmatprep.subr.bf16.mxu0 %v4170
    %4380 = vmatpush1.bf16.msra.mxu0 %v4169
    %4381 = vmatprep.subr.bf16.mxu0 %v4178
    %4382 = vmatpush1.bf16.msra.mxu0 %v4177
    %4383 = vmatprep.subr.bf16.mxu0 %v4186
    %4384 = vmatpush1.bf16.msra.mxu0 %v4185
    %4385 = vmatprep.subr.bf16.mxu0 %v4194
    %4386 = vmatpush1.bf16.msra.mxu0 %v4193
    %4387 = vmatprep.subr.bf16.mxu0 %v4202
    %4388 = vmatpush1.bf16.msra.mxu0 %v4201
    %4389 = vmatprep.subr.bf16.mxu0 %v4210
    %4390 = vmatpush1.bf16.msra.mxu0 %v4209
    %4391 = vmatprep.subr.bf16.mxu0 %v4218
    %4392 = vmatpush1.bf16.msra.mxu0 %v4217
    %4393 = vmatprep.mubr.bf16.mxu0 0
    %4394 = vmatmul.mubr.bf16.gmra.mrb[0].mxu0 0
    %v4395 = vpop.f32.mrb[0].mxu0
    %v4396 = vadd.f32 0.0, %v4395
    %v4397 = vpop.f32.mrb[0].mxu0
    %v4398 = vadd.f32 0.0, %v4397
    %v4399 = vpop.f32.mrb[0].mxu0
    %v4400 = vpop.f32.mrb[0].mxu0
    %4401 = vdwg.mxu0
    %4402 = vmatprep.subr.bf16.mxu0 %v4100
    %4403 = vmatpush1.bf16.msra.mxu0 %v4099
    %4404 = vmatprep.subr.bf16.mxu0 %v4108
    %4405 = vmatpush1.bf16.msra.mxu0 %v4107
    %4406 = vmatprep.subr.bf16.mxu0 %v4116
    %4407 = vmatpush1.bf16.msra.mxu0 %v4115
    %4408 = vmatprep.subr.bf16.mxu0 %v4124
    %4409 = vmatpush1.bf16.msra.mxu0 %v4123
    %4410 = vmatprep.subr.bf16.mxu0 %v4132
    %4411 = vmatpush1.bf16.msra.mxu0 %v4131
    %4412 = vmatprep.subr.bf16.mxu0 %v4140
    %4413 = vmatpush1.bf16.msra.mxu0 %v4139
    %4414 = vmatprep.subr.bf16.mxu0 %v4148
    %4415 = vmatpush1.bf16.msra.mxu0 %v4147
    %4416 = vmatprep.subr.bf16.mxu0 %v4156
    %4417 = vmatpush1.bf16.msra.mxu0 %v4155
    %4418 = vmatprep.subr.bf16.mxu0 %v4164
    %4419 = vmatpush1.bf16.msra.mxu0 %v4163
    %4420 = vmatprep.subr.bf16.mxu0 %v4172
    %4421 = vmatpush1.bf16.msra.mxu0 %v4171
    %4422 = vmatprep.subr.bf16.mxu0 %v4180
    %4423 = vmatpush1.bf16.msra.mxu0 %v4179
    %4424 = vmatprep.subr.bf16.mxu0 %v4188
    %4425 = vmatpush1.bf16.msra.mxu0 %v4187
    %4426 = vmatprep.subr.bf16.mxu0 %v4196
    %4427 = vmatpush1.bf16.msra.mxu0 %v4195
    %4428 = vmatprep.subr.bf16.mxu0 %v4204
    %4429 = vmatpush1.bf16.msra.mxu0 %v4203
    %4430 = vmatprep.subr.bf16.mxu0 %v4212
    %4431 = vmatpush1.bf16.msra.mxu0 %v4211
    %4432 = vmatprep.subr.bf16.mxu0 %v4220
    %4433 = vmatpush1.bf16.msra.mxu0 %v4219
    %4434 = vmatprep.mubr.bf16.mxu0 0
    %4435 = vmatmul.mubr.bf16.gmra.mrb[0].mxu0 0
    %v4436 = vpop.f32.mrb[0].mxu0
    %v4437 = vadd.f32 0.0, %v4436
    %v4438 = vpop.f32.mrb[0].mxu0
    %v4439 = vadd.f32 0.0, %v4438
    %v4440 = vpop.f32.mrb[0].mxu0
    %v4441 = vpop.f32.mrb[0].mxu0
    %4442 = vdwg.mxu0
    %4443 = vmatprep.subr.bf16.mxu0 %v4102
    %4444 = vmatpush1.bf16.msra.mxu0 %v4101
    %4445 = vmatprep.subr.bf16.mxu0 %v4110
    %4446 = vmatpush1.bf16.msra.mxu0 %v4109
    %4447 = vmatprep.subr.bf16.mxu0 %v4118
    %4448 = vmatpush1.bf16.msra.mxu0 %v4117
    %4449 = vmatprep.subr.bf16.mxu0 %v4126
    %4450 = vmatpush1.bf16.msra.mxu0 %v4125
    %4451 = vmatprep.subr.bf16.mxu0 %v4134
    %4452 = vmatpush1.bf16.msra.mxu0 %v4133
    %4453 = vmatprep.subr.bf16.mxu0 %v4142
    %4454 = vmatpush1.bf16.msra.mxu0 %v4141
    %4455 = vmatprep.subr.bf16.mxu0 %v4150
    %4456 = vmatpush1.bf16.msra.mxu0 %v4149
    %4457 = vmatprep.subr.bf16.mxu0 %v4158
    %4458 = vmatpush1.bf16.msra.mxu0 %v4157
    %4459 = vmatprep.subr.bf16.mxu0 %v4166
    %4460 = vmatpush1.bf16.msra.mxu0 %v4165
    %4461 = vmatprep.subr.bf16.mxu0 %v4174
    %4462 = vmatpush1.bf16.msra.mxu0 %v4173
    %4463 = vmatprep.subr.bf16.mxu0 %v4182
    %4464 = vmatpush1.bf16.msra.mxu0 %v4181
    %4465 = vmatprep.subr.bf16.mxu0 %v4190
    %4466 = vmatpush1.bf16.msra.mxu0 %v4189
    %4467 = vmatprep.subr.bf16.mxu0 %v4198
    %4468 = vmatpush1.bf16.msra.mxu0 %v4197
    %4469 = vmatprep.subr.bf16.mxu0 %v4206
    %4470 = vmatpush1.bf16.msra.mxu0 %v4205
    %4471 = vmatprep.subr.bf16.mxu0 %v4214
    %4472 = vmatpush1.bf16.msra.mxu0 %v4213
    %4473 = vmatprep.subr.bf16.mxu0 %v4222
    %4474 = vmatpush1.bf16.msra.mxu0 %v4221
    %4475 = vmatprep.mubr.bf16.mxu0 0
    %4476 = vmatmul.mubr.bf16.gmra.mrb[0].mxu0 0
    %v4477 = vpop.f32.mrb[0].mxu0
    %v4478 = vadd.f32 0.0, %v4477
    %v4479 = vpop.f32.mrb[0].mxu0
    %v4480 = vadd.f32 0.0, %v4479
    %v4481 = vpop.f32.mrb[0].mxu0
    %v4482 = vpop.f32.mrb[0].mxu0
    %4483 = vdwg.mxu0
    %4484 = vmatprep.subr.bf16.mxu0 %v4104
    %4485 = vmatpush1.bf16.msra.mxu0 %v4103
    %4486 = vmatprep.subr.bf16.mxu0 %v4112
    %4487 = vmatpush1.bf16.msra.mxu0 %v4111
    %4488 = vmatprep.subr.bf16.mxu0 %v4120
    %4489 = vmatpush1.bf16.msra.mxu0 %v4119
    %4490 = vmatprep.subr.bf16.mxu0 %v4128
    %4491 = vmatpush1.bf16.msra.mxu0 %v4127
    %4492 = vmatprep.subr.bf16.mxu0 %v4136
    %4493 = vmatpush1.bf16.msra.mxu0 %v4135
    %4494 = vmatprep.subr.bf16.mxu0 %v4144
    %4495 = vmatpush1.bf16.msra.mxu0 %v4143
    %4496 = vmatprep.subr.bf16.mxu0 %v4152
    %4497 = vmatpush1.bf16.msra.mxu0 %v4151
    %4498 = vmatprep.subr.bf16.mxu0 %v4160
    %4499 = vmatpush1.bf16.msra.mxu0 %v4159
    %4500 = vmatprep.subr.bf16.mxu0 %v4168
    %4501 = vmatpush1.bf16.msra.mxu0 %v4167
    %4502 = vmatprep.subr.bf16.mxu0 %v4176
    %4503 = vmatpush1.bf16.msra.mxu0 %v4175
    %4504 = vmatprep.subr.bf16.mxu0 %v4184
    %4505 = vmatpush1.bf16.msra.mxu0 %v4183
    %4506 = vmatprep.subr.bf16.mxu0 %v4192
    %4507 = vmatpush1.bf16.msra.mxu0 %v4191
    %4508 = vmatprep.subr.bf16.mxu0 %v4200
    %4509 = vmatpush1.bf16.msra.mxu0 %v4199
    %4510 = vmatprep.subr.bf16.mxu0 %v4208
    %4511 = vmatpush1.bf16.msra.mxu0 %v4207
    %4512 = vmatprep.subr.bf16.mxu0 %v4216
    %4513 = vmatpush1.bf16.msra.mxu0 %v4215
    %4514 = vmatprep.subr.bf16.mxu0 %v4224
    %4515 = vmatpush1.bf16.msra.mxu0 %v4223
    %4516 = vmatprep.mubr.bf16.mxu0 0
    %4517 = vmatmul.mubr.bf16.gmra.mrb[0].mxu0 0
    %v4518 = vpop.f32.mrb[0].mxu0
    %v4519 = vadd.f32 0.0, %v4518
    %v4520 = vpop.f32.mrb[0].mxu0
    %v4521 = vadd.f32 0.0, %v4520
    %v4522 = vpop.f32.mrb[0].mxu0
    %v4523 = vpop.f32.mrb[0].mxu0
    %4524 = vdwg.mxu0
    %v4525 = vadd.f32 %v4353, %v4396
    %v4526 = vadd.f32 %v4354, %v4398
    %v4527 = vadd.f32 %v4355, %v4437
    %v4528 = vadd.f32 %v4356, %v4439
    %v4529 = vadd.f32 %v4357, %v4478
    %v4530 = vadd.f32 %v4358, %v4480
    %v4531 = vadd.f32 %v4359, %v4519
    %v4532 = vadd.f32 %v4360, %v4521
    %v4533 = vld [vmem:[#allocation2 + $0xc0] sm:$0xc0]
    %v4534 = vld [vmem:[#allocation2 + $0xc8] sm:$0xc0]
    %v4535 = vld [vmem:[#allocation2 + $0xd0] sm:$0xc0]
    %v4536 = vld [vmem:[#allocation2 + $0xd8] sm:$0xc0]
    %v4537 = vld [vmem:[#allocation2 + $0xe0] sm:$0xc0]
    %v4538 = vld [vmem:[#allocation2 + $0xe8] sm:$0xc0]
    %v4539 = vld [vmem:[#allocation2 + $0xf0] sm:$0xc0]
    %v4540 = vld [vmem:[#allocation2 + $0xf8] sm:$0xc0]
    %4541 = vmatprep.subr.bf16.mxu0 %v4226
    %4542 = vmatpush1.bf16.msra.mxu0 %v4225
    %4543 = vmatprep.subr.bf16.mxu0 %v4234
    %4544 = vmatpush1.bf16.msra.mxu0 %v4233
    %4545 = vmatprep.subr.bf16.mxu0 %v4242
    %4546 = vmatpush1.bf16.msra.mxu0 %v4241
    %4547 = vmatprep.subr.bf16.mxu0 %v4250
    %4548 = vmatpush1.bf16.msra.mxu0 %v4249
    %4549 = vmatprep.subr.bf16.mxu0 %v4258
    %4550 = vmatpush1.bf16.msra.mxu0 %v4257
    %4551 = vmatprep.subr.bf16.mxu0 %v4266
    %4552 = vmatpush1.bf16.msra.mxu0 %v4265
    %4553 = vmatprep.subr.bf16.mxu0 %v4274
    %4554 = vmatpush1.bf16.msra.mxu0 %v4273
    %4555 = vmatprep.subr.bf16.mxu0 %v4282
    %4556 = vmatpush1.bf16.msra.mxu0 %v4281
    %4557 = vmatprep.subr.bf16.mxu0 %v4290
    %4558 = vmatpush1.bf16.msra.mxu0 %v4289
    %4559 = vmatprep.subr.bf16.mxu0 %v4298
    %4560 = vmatpush1.bf16.msra.mxu0 %v4297
    %4561 = vmatprep.subr.bf16.mxu0 %v4306
    %4562 = vmatpush1.bf16.msra.mxu0 %v4305
    %4563 = vmatprep.subr.bf16.mxu0 %v4314
    %4564 = vmatpush1.bf16.msra.mxu0 %v4313
    %4565 = vmatprep.subr.bf16.mxu0 %v4322
    %4566 = vmatpush1.bf16.msra.mxu0 %v4321
    %4567 = vmatprep.subr.bf16.mxu0 %v4330
    %4568 = vmatpush1.bf16.msra.mxu0 %v4329
    %4569 = vmatprep.subr.bf16.mxu0 %v4338
    %4570 = vmatpush1.bf16.msra.mxu0 %v4337
    %4571 = vmatprep.subr.bf16.mxu0 %v4346
    %4572 = vmatpush1.bf16.msra.mxu0 %v4345
    %4573 = vmatprep.mubr.bf16.mxu0 0
    %4574 = vmatmul.mubr.bf16.gmra.mrb[0].mxu0 0
    %v4575 = vpop.f32.mrb[0].mxu0
    %v4576 = vadd.f32 0.0, %v4575
    %v4577 = vpop.f32.mrb[0].mxu0
    %v4578 = vadd.f32 0.0, %v4577
    %v4579 = vpop.f32.mrb[0].mxu0
    %v4580 = vpop.f32.mrb[0].mxu0
    %4581 = vdwg.mxu0
    %4582 = vmatprep.subr.bf16.mxu0 %v4228
    %4583 = vmatpush1.bf16.msra.mxu0 %v4227
    %4584 = vmatprep.subr.bf16.mxu0 %v4236
    %4585 = vmatpush1.bf16.msra.mxu0 %v4235
    %4586 = vmatprep.subr.bf16.mxu0 %v4244
    %4587 = vmatpush1.bf16.msra.mxu0 %v4243
    %4588 = vmatprep.subr.bf16.mxu0 %v4252
    %4589 = vmatpush1.bf16.msra.mxu0 %v4251
    %4590 = vmatprep.subr.bf16.mxu0 %v4260
    %4591 = vmatpush1.bf16.msra.mxu0 %v4259
    %4592 = vmatprep.subr.bf16.mxu0 %v4268
    %4593 = vmatpush1.bf16.msra.mxu0 %v4267
    %4594 = vmatprep.subr.bf16.mxu0 %v4276
    %4595 = vmatpush1.bf16.msra.mxu0 %v4275
    %4596 = vmatprep.subr.bf16.mxu0 %v4284
    %4597 = vmatpush1.bf16.msra.mxu0 %v4283
    %4598 = vmatprep.subr.bf16.mxu0 %v4292
    %4599 = vmatpush1.bf16.msra.mxu0 %v4291
    %4600 = vmatprep.subr.bf16.mxu0 %v4300
    %4601 = vmatpush1.bf16.msra.mxu0 %v4299
    %4602 = vmatprep.subr.bf16.mxu0 %v4308
    %4603 = vmatpush1.bf16.msra.mxu0 %v4307
    %4604 = vmatprep.subr.bf16.mxu0 %v4316
    %4605 = vmatpush1.bf16.msra.mxu0 %v4315
    %4606 = vmatprep.subr.bf16.mxu0 %v4324
    %4607 = vmatpush1.bf16.msra.mxu0 %v4323
    %4608 = vmatprep.subr.bf16.mxu0 %v4332
    %4609 = vmatpush1.bf16.msra.mxu0 %v4331
    %4610 = vmatprep.subr.bf16.mxu0 %v4340
    %4611 = vmatpush1.bf16.msra.mxu0 %v4339
    %4612 = vmatprep.subr.bf16.mxu0 %v4348
    %4613 = vmatpush1.bf16.msra.mxu0 %v4347
    %4614 = vmatprep.mubr.bf16.mxu0 0
    %4615 = vmatmul.mubr.bf16.gmra.mrb[0].mxu0 0
    %v4616 = vpop.f32.mrb[0].mxu0
    %v4617 = vadd.f32 0.0, %v4616
    %v4618 = vpop.f32.mrb[0].mxu0
    %v4619 = vadd.f32 0.0, %v4618
    %v4620 = vpop.f32.mrb[0].mxu0
    %v4621 = vpop.f32.mrb[0].mxu0
    %4622 = vdwg.mxu0
    %4623 = vmatprep.subr.bf16.mxu0 %v4230
    %4624 = vmatpush1.bf16.msra.mxu0 %v4229
    %4625 = vmatprep.subr.bf16.mxu0 %v4238
    %4626 = vmatpush1.bf16.msra.mxu0 %v4237
    %4627 = vmatprep.subr.bf16.mxu0 %v4246
    %4628 = vmatpush1.bf16.msra.mxu0 %v4245
    %4629 = vmatprep.subr.bf16.mxu0 %v4254
    %4630 = vmatpush1.bf16.msra.mxu0 %v4253
    %4631 = vmatprep.subr.bf16.mxu0 %v4262
    %4632 = vmatpush1.bf16.msra.mxu0 %v4261
    %4633 = vmatprep.subr.bf16.mxu0 %v4270
    %4634 = vmatpush1.bf16.msra.mxu0 %v4269
    %4635 = vmatprep.subr.bf16.mxu0 %v4278
    %4636 = vmatpush1.bf16.msra.mxu0 %v4277
    %4637 = vmatprep.subr.bf16.mxu0 %v4286
    %4638 = vmatpush1.bf16.msra.mxu0 %v4285
    %4639 = vmatprep.subr.bf16.mxu0 %v4294
    %4640 = vmatpush1.bf16.msra.mxu0 %v4293
    %4641 = vmatprep.subr.bf16.mxu0 %v4302
    %4642 = vmatpush1.bf16.msra.mxu0 %v4301
    %4643 = vmatprep.subr.bf16.mxu0 %v4310
    %4644 = vmatpush1.bf16.msra.mxu0 %v4309
    %4645 = vmatprep.subr.bf16.mxu0 %v4318
    %4646 = vmatpush1.bf16.msra.mxu0 %v4317
    %4647 = vmatprep.subr.bf16.mxu0 %v4326
    %4648 = vmatpush1.bf16.msra.mxu0 %v4325
    %4649 = vmatprep.subr.bf16.mxu0 %v4334
    %4650 = vmatpush1.bf16.msra.mxu0 %v4333
    %4651 = vmatprep.subr.bf16.mxu0 %v4342
    %4652 = vmatpush1.bf16.msra.mxu0 %v4341
    %4653 = vmatprep.subr.bf16.mxu0 %v4350
    %4654 = vmatpush1.bf16.msra.mxu0 %v4349
    %4655 = vmatprep.mubr.bf16.mxu0 0
    %4656 = vmatmul.mubr.bf16.gmra.mrb[0].mxu0 0
    %v4657 = vpop.f32.mrb[0].mxu0
    %v4658 = vadd.f32 0.0, %v4657
    %v4659 = vpop.f32.mrb[0].mxu0
    %v4660 = vadd.f32 0.0, %v4659
    %v4661 = vpop.f32.mrb[0].mxu0
    %v4662 = vpop.f32.mrb[0].mxu0
    %4663 = vdwg.mxu0
    %4664 = vmatprep.subr.bf16.mxu0 %v4232
    %4665 = vmatpush1.bf16.msra.mxu0 %v4231
    %4666 = vmatprep.subr.bf16.mxu0 %v4240
    %4667 = vmatpush1.bf16.msra.mxu0 %v4239
    %4668 = vmatprep.subr.bf16.mxu0 %v4248
    %4669 = vmatpush1.bf16.msra.mxu0 %v4247
    %4670 = vmatprep.subr.bf16.mxu0 %v4256
    %4671 = vmatpush1.bf16.msra.mxu0 %v4255
    %4672 = vmatprep.subr.bf16.mxu0 %v4264
    %4673 = vmatpush1.bf16.msra.mxu0 %v4263
    %4674 = vmatprep.subr.bf16.mxu0 %v4272
    %4675 = vmatpush1.bf16.msra.mxu0 %v4271
    %4676 = vmatprep.subr.bf16.mxu0 %v4280
    %4677 = vmatpush1.bf16.msra.mxu0 %v4279
    %4678 = vmatprep.subr.bf16.mxu0 %v4288
    %4679 = vmatpush1.bf16.msra.mxu0 %v4287
    %4680 = vmatprep.subr.bf16.mxu0 %v4296
    %4681 = vmatpush1.bf16.msra.mxu0 %v4295
    %4682 = vmatprep.subr.bf16.mxu0 %v4304
    %4683 = vmatpush1.bf16.msra.mxu0 %v4303
    %4684 = vmatprep.subr.bf16.mxu0 %v4312
    %4685 = vmatpush1.bf16.msra.mxu0 %v4311
    %4686 = vmatprep.subr.bf16.mxu0 %v4320
    %4687 = vmatpush1.bf16.msra.mxu0 %v4319
    %4688 = vmatprep.subr.bf16.mxu0 %v4328
    %4689 = vmatpush1.bf16.msra.mxu0 %v4327
    %4690 = vmatprep.subr.bf16.mxu0 %v4336
    %4691 = vmatpush1.bf16.msra.mxu0 %v4335
    %4692 = vmatprep.subr.bf16.mxu0 %v4344
    %4693 = vmatpush1.bf16.msra.mxu0 %v4343
    %4694 = vmatprep.subr.bf16.mxu0 %v4352
    %4695 = vmatpush1.bf16.msra.mxu0 %v4351
    %4696 = vmatprep.mubr.bf16.mxu0 0
    %4697 = vmatmul.mubr.bf16.gmra.mrb[0].mxu0 0
    %v4698 = vpop.f32.mrb[0].mxu0
    %v4699 = vadd.f32 0.0, %v4698
    %v4700 = vpop.f32.mrb[0].mxu0
    %v4701 = vadd.f32 0.0, %v4700
    %v4702 = vpop.f32.mrb[0].mxu0
    %v4703 = vpop.f32.mrb[0].mxu0
    %4704 = vdwg.mxu0
    %v4713 = vrot.slane %v4576, 2
    %v4714 = vrot.slane %v4578, 2
    %v4715 = vrot.slane %v4617, 2
    %v4716 = vrot.slane %v4619, 2
    %v4717 = vrot.slane %v4658, 2
    %v4718 = vrot.slane %v4660, 2
    %v4719 = vrot.slane %v4699, 2
    %v4720 = vrot.slane %v4701, 2
    %v4729 = vadd.f32 %v4533, %v4713
    %v4730 = vadd.f32 %v4534, %v4714
    %v4731 = vadd.f32 %v4535, %v4715
    %v4732 = vadd.f32 %v4536, %v4716
    %v4733 = vadd.f32 %v4537, %v4717
    %v4734 = vadd.f32 %v4538, %v4718
    %v4735 = vadd.f32 %v4539, %v4719
    %v4736 = vadd.f32 %v4540, %v4720
    %v4745 = vrot.slane %v4729, 4
    %v4746 = vrot.slane %v4730, 4
    %v4747 = vrot.slane %v4731, 4
    %v4748 = vrot.slane %v4732, 4
    %v4749 = vrot.slane %v4733, 4
    %v4750 = vrot.slane %v4734, 4
    %v4751 = vrot.slane %v4735, 4
    %v4752 = vrot.slane %v4736, 4
    %vm4761 = vcmask 1041408
    %v4762 = vsel %vm4761, %v4525, %v4745
    %v4763 = vsel %vm4761, %v4526, %v4746
    %v4764 = vsel %vm4761, %v4527, %v4747
    %v4765 = vsel %vm4761, %v4528, %v4748
    %v4766 = vsel %vm4761, %v4529, %v4749
    %v4767 = vsel %vm4761, %v4530, %v4750
    %v4768 = vsel %vm4761, %v4531, %v4751
    %v4769 = vsel %vm4761, %v4532, %v4752
    %v4770 = vxor.u32 %v4762, 2147483648
    %v4771 = vxor.u32 %v4763, 2147483648
    %v4772 = vmul.f32 %v4770, 1.442695
    %v4773 = vpow.pop %v4772
    %v4774 = vmul.f32 %v4771, 1.442695
    %v4775 = vpow.pop %v4774
    %v4776 = vadd.f32 %v4773, 1.0
    %v4777 = vadd.f32 %v4775, 1.0
    %v4778 = vrcp.pop %v4776
    %v4779 = vmul.f32 1.0, %v4778
    %v4780 = vrcp.pop %v4777
    %v4781 = vmul.f32 1.0, %v4780
    %v4782 = vxor.u32 %v4764, 2147483648
    %v4783 = vxor.u32 %v4765, 2147483648
    %v4784 = vmul.f32 %v4782, 1.442695
    %v4785 = vpow.pop %v4784
    %v4786 = vmul.f32 %v4783, 1.442695
    %v4787 = vpow.pop %v4786
    %v4788 = vadd.f32 %v4785, 1.0
    %v4789 = vadd.f32 %v4787, 1.0
    %v4790 = vrcp.pop %v4788
    %v4791 = vmul.f32 1.0, %v4790
    %v4792 = vrcp.pop %v4789
    %v4793 = vmul.f32 1.0, %v4792
    %v4794 = vtanh.pop %v4766
    %v4795 = vtanh.pop %v4767
    %v4796 = vxor.u32 %v4768, 2147483648
    %v4797 = vxor.u32 %v4769, 2147483648
    %v4798 = vmul.f32 %v4796, 1.442695
    %v4799 = vpow.pop %v4798
    %v4800 = vmul.f32 %v4797, 1.442695
    %v4801 = vpow.pop %v4800
    %v4802 = vadd.f32 %v4799, 1.0
    %v4803 = vadd.f32 %v4801, 1.0
    %v4804 = vrcp.pop %v4802
    %v4805 = vmul.f32 1.0, %v4804
    %v4806 = vrcp.pop %v4803
    %v4807 = vmul.f32 1.0, %v4806
    %v4808 = vmul.f32 %v4791, 0.0
    %v4809 = vmul.f32 %v4793, 0.0
    %v4810 = vmul.f32 %v4779, %v4794
    %v4811 = vmul.f32 %v4781, %v4795
    %v4812 = vadd.f32 %v4808, %v4810
    %v4813 = vadd.f32 %v4809, %v4811
    %v4814 = vtanh.pop %v4812
    %v4815 = vtanh.pop %v4813
    %v4816 = vmul.f32 %v4805, %v4814
    %v4817 = vmul.f32 %v4807, %v4815
    %v4818 = vpack.c.bf16 %v4816, %v4816
    %v4819 = vpack.c.bf16 %v4817, %v4817
    %4820 = vst [vmem:[#allocation3] sm:$0x1] %v4818
    %4821 = vst [vmem:[#allocation3 + $0x8] sm:$0x1] %v4819
    %v4824 = vrot.slane %v4818, 2
    %v4825 = vrot.slane %v4819, 2
    %4828 = vst [vmem:[#allocation4] sm:$0x80] %v4824
    %4829 = vst [vmem:[#allocation4 + $0x8] sm:$0x80] %v4825
    %v4830 = vld [vmem:[#allocation2] sm:$0xc]
    %v4831 = vld [vmem:[#allocation2 + $0x8] sm:$0xc]
    %v4832 = vld [vmem:[#allocation2 + $0x10] sm:$0xc]
    %v4833 = vld [vmem:[#allocation2 + $0x18] sm:$0xc]
    %v4834 = vld [vmem:[#allocation2 + $0x20] sm:$0xc]
    %v4835 = vld [vmem:[#allocation2 + $0x28] sm:$0xc]
    %v4836 = vld [vmem:[#allocation2 + $0x30] sm:$0xc]
    %v4837 = vld [vmem:[#allocation2 + $0x38] sm:$0xc]
    %4838 = vmatprep.subr.bf16.mxu0 %v4098
    %4839 = vmatpush1.bf16.msra.mxu0 %v4097
    %4840 = vmatprep.subr.bf16.mxu0 %v4106
    %4841 = vmatpush1.bf16.msra.mxu0 %v4105
    %4842 = vmatprep.subr.bf16.mxu0 %v4114
    %4843 = vmatpush1.bf16.msra.mxu0 %v4113
    %4844 = vmatprep.subr.bf16.mxu0 %v4122
    %4845 = vmatpush1.bf16.msra.mxu0 %v4121
    %4846 = vmatprep.subr.bf16.mxu0 %v4130
    %4847 = vmatpush1.bf16.msra.mxu0 %v4129
    %4848 = vmatprep.subr.bf16.mxu0 %v4138
    %4849 = vmatpush1.bf16.msra.mxu0 %v4137
    %4850 = vmatprep.subr.bf16.mxu0 %v4146
    %4851 = vmatpush1.bf16.msra.mxu0 %v4145
    %4852 = vmatprep.subr.bf16.mxu0 %v4154
    %4853 = vmatpush1.bf16.msra.mxu0 %v4153
    %4854 = vmatprep.subr.bf16.mxu0 %v4162
    %4855 = vmatpush1.bf16.msra.mxu0 %v4161
    %4856 = vmatprep.subr.bf16.mxu0 %v4170
    %4857 = vmatpush1.bf16.msra.mxu0 %v4169
    %4858 = vmatprep.subr.bf16.mxu0 %v4178
    %4859 = vmatpush1.bf16.msra.mxu0 %v4177
    %4860 = vmatprep.subr.bf16.mxu0 %v4186
    %4861 = vmatpush1.bf16.msra.mxu0 %v4185
    %4862 = vmatprep.subr.bf16.mxu0 %v4194
    %4863 = vmatpush1.bf16.msra.mxu0 %v4193
    %4864 = vmatprep.subr.bf16.mxu0 %v4202
    %4865 = vmatpush1.bf16.msra.mxu0 %v4201
    %4866 = vmatprep.subr.bf16.mxu0 %v4210
    %4867 = vmatpush1.bf16.msra.mxu0 %v4209
    %4868 = vmatprep.subr.bf16.mxu0 %v4218
    %4869 = vmatpush1.bf16.msra.mxu0 %v4217
    %4870 = vmatprep.mubr.bf16.mxu0 %v4819
    %4871 = vmatmul.mubr.bf16.gmra.mrb[0].mxu0 %v4818
    %v4872 = vpop.f32.mrb[0].mxu0
    %v4873 = vadd.f32 0.0, %v4872
    %v4874 = vpop.f32.mrb[0].mxu0
    %v4875 = vadd.f32 0.0, %v4874
    %v4876 = vpop.f32.mrb[0].mxu0
    %v4877 = vpop.f32.mrb[0].mxu0
    %4878 = vdwg.mxu0
    %4879 = vmatprep.subr.bf16.mxu0 %v4100
    %4880 = vmatpush1.bf16.msra.mxu0 %v4099
    %4881 = vmatprep.subr.bf16.mxu0 %v4108
    %4882 = vmatpush1.bf16.msra.mxu0 %v4107
    %4883 = vmatprep.subr.bf16.mxu0 %v4116
    %4884 = vmatpush1.bf16.msra.mxu0 %v4115
    %4885 = vmatprep.subr.bf16.mxu0 %v4124
    %4886 = vmatpush1.bf16.msra.mxu0 %v4123
    %4887 = vmatprep.subr.bf16.mxu0 %v4132
    %4888 = vmatpush1.bf16.msra.mxu0 %v4131
    %4889 = vmatprep.subr.bf16.mxu0 %v4140
    %4890 = vmatpush1.bf16.msra.mxu0 %v4139
    %4891 = vmatprep.subr.bf16.mxu0 %v4148
    %4892 = vmatpush1.bf16.msra.mxu0 %v4147
    %4893 = vmatprep.subr.bf16.mxu0 %v4156
    %4894 = vmatpush1.bf16.msra.mxu0 %v4155
    %4895 = vmatprep.subr.bf16.mxu0 %v4164
    %4896 = vmatpush1.bf16.msra.mxu0 %v4163
    %4897 = vmatprep.subr.bf16.mxu0 %v4172
    %4898 = vmatpush1.bf16.msra.mxu0 %v4171
    %4899 = vmatprep.subr.bf16.mxu0 %v4180
    %4900 = vmatpush1.bf16.msra.mxu0 %v4179
    %4901 = vmatprep.subr.bf16.mxu0 %v4188
    %4902 = vmatpush1.bf16.msra.mxu0 %v4187
    %4903 = vmatprep.subr.bf16.mxu0 %v4196
    %4904 = vmatpush1.bf16.msra.mxu0 %v4195
    %4905 = vmatprep.subr.bf16.mxu0 %v4204
    %4906 = vmatpush1.bf16.msra.mxu0 %v4203
    %4907 = vmatprep.subr.bf16.mxu0 %v4212
    %4908 = vmatpush1.bf16.msra.mxu0 %v4211
    %4909 = vmatprep.subr.bf16.mxu0 %v4220
    %4910 = vmatpush1.bf16.msra.mxu0 %v4219
    %4911 = vmatprep.mubr.bf16.mxu0 %v4819
    %4912 = vmatmul.mubr.bf16.gmra.mrb[0].mxu0 %v4818
    %v4913 = vpop.f32.mrb[0].mxu0
    %v4914 = vadd.f32 0.0, %v4913
    %v4915 = vpop.f32.mrb[0].mxu0
    %v4916 = vadd.f32 0.0, %v4915
    %v4917 = vpop.f32.mrb[0].mxu0
    %v4918 = vpop.f32.mrb[0].mxu0
    %4919 = vdwg.mxu0
    %4920 = vmatprep.subr.bf16.mxu0 %v4102
    %4921 = vmatpush1.bf16.msra.mxu0 %v4101
    %4922 = vmatprep.subr.bf16.mxu0 %v4110
    %4923 = vmatpush1.bf16.msra.mxu0 %v4109
    %4924 = vmatprep.subr.bf16.mxu0 %v4118
    %4925 = vmatpush1.bf16.msra.mxu0 %v4117
    %4926 = vmatprep.subr.bf16.mxu0 %v4126
    %4927 = vmatpush1.bf16.msra.mxu0 %v4125
    %4928 = vmatprep.subr.bf16.mxu0 %v4134
    %4929 = vmatpush1.bf16.msra.mxu0 %v4133
    %4930 = vmatprep.subr.bf16.mxu0 %v4142
    %4931 = vmatpush1.bf16.msra.mxu0 %v4141
    %4932 = vmatprep.subr.bf16.mxu0 %v4150
    %4933 = vmatpush1.bf16.msra.mxu0 %v4149
    %4934 = vmatprep.subr.bf16.mxu0 %v4158
    %4935 = vmatpush1.bf16.msra.mxu0 %v4157
    %4936 = vmatprep.subr.bf16.mxu0 %v4166
    %4937 = vmatpush1.bf16.msra.mxu0 %v4165
    %4938 = vmatprep.subr.bf16.mxu0 %v4174
    %4939 = vmatpush1.bf16.msra.mxu0 %v4173
    %4940 = vmatprep.subr.bf16.mxu0 %v4182
    %4941 = vmatpush1.bf16.msra.mxu0 %v4181
    %4942 = vmatprep.subr.bf16.mxu0 %v4190
    %4943 = vmatpush1.bf16.msra.mxu0 %v4189
    %4944 = vmatprep.subr.bf16.mxu0 %v4198
    %4945 = vmatpush1.bf16.msra.mxu0 %v4197
    %4946 = vmatprep.subr.bf16.mxu0 %v4206
    %4947 = vmatpush1.bf16.msra.mxu0 %v4205
    %4948 = vmatprep.subr.bf16.mxu0 %v4214
    %4949 = vmatpush1.bf16.msra.mxu0 %v4213
    %4950 = vmatprep.subr.bf16.mxu0 %v4222
    %4951 = vmatpush1.bf16.msra.mxu0 %v4221
    %4952 = vmatprep.mubr.bf16.mxu0 %v4819
    %4953 = vmatmul.mubr.bf16.gmra.mrb[0].mxu0 %v4818
    %v4954 = vpop.f32.mrb[0].mxu0
    %v4955 = vadd.f32 0.0, %v4954
    %v4956 = vpop.f32.mrb[0].mxu0
    %v4957 = vadd.f32 0.0, %v4956
    %v4958 = vpop.f32.mrb[0].mxu0
    %v4959 = vpop.f32.mrb[0].mxu0
    %4960 = vdwg.mxu0
    %4961 = vmatprep.subr.bf16.mxu0 %v4104
    %4962 = vmatpush1.bf16.msra.mxu0 %v4103
    %4963 = vmatprep.subr.bf16.mxu0 %v4112
    %4964 = vmatpush1.bf16.msra.mxu0 %v4111
    %4965 = vmatprep.subr.bf16.mxu0 %v4120
    %4966 = vmatpush1.bf16.msra.mxu0 %v4119
    %4967 = vmatprep.subr.bf16.mxu0 %v4128
    %4968 = vmatpush1.bf16.msra.mxu0 %v4127
    %4969 = vmatprep.subr.bf16.mxu0 %v4136
    %4970 = vmatpush1.bf16.msra.mxu0 %v4135
    %4971 = vmatprep.subr.bf16.mxu0 %v4144
    %4972 = vmatpush1.bf16.msra.mxu0 %v4143
    %4973 = vmatprep.subr.bf16.mxu0 %v4152
    %4974 = vmatpush1.bf16.msra.mxu0 %v4151
    %4975 = vmatprep.subr.bf16.mxu0 %v4160
    %4976 = vmatpush1.bf16.msra.mxu0 %v4159
    %4977 = vmatprep.subr.bf16.mxu0 %v4168
    %4978 = vmatpush1.bf16.msra.mxu0 %v4167
    %4979 = vmatprep.subr.bf16.mxu0 %v4176
    %4980 = vmatpush1.bf16.msra.mxu0 %v4175
    %4981 = vmatprep.subr.bf16.mxu0 %v4184
    %4982 = vmatpush1.bf16.msra.mxu0 %v4183
    %4983 = vmatprep.subr.bf16.mxu0 %v4192
    %4984 = vmatpush1.bf16.msra.mxu0 %v4191
    %4985 = vmatprep.subr.bf16.mxu0 %v4200
    %4986 = vmatpush1.bf16.msra.mxu0 %v4199
    %4987 = vmatprep.subr.bf16.mxu0 %v4208
    %4988 = vmatpush1.bf16.msra.mxu0 %v4207
    %4989 = vmatprep.subr.bf16.mxu0 %v4216
    %4990 = vmatpush1.bf16.msra.mxu0 %v4215
    %4991 = vmatprep.subr.bf16.mxu0 %v4224
    %4992 = vmatpush1.bf16.msra.mxu0 %v4223
    %4993 = vmatprep.mubr.bf16.mxu0 %v4819
    %4994 = vmatmul.mubr.bf16.gmra.mrb[0].mxu0 %v4818
    %v4995 = vpop.f32.mrb[0].mxu0
    %v4996 = vadd.f32 0.0, %v4995
    %v4997 = vpop.f32.mrb[0].mxu0
    %v4998 = vadd.f32 0.0, %v4997
    %v4999 = vpop.f32.mrb[0].mxu0
    %v5000 = vpop.f32.mrb[0].mxu0
    %5001 = vdwg.mxu0
    %v5010 = vrot.slane %v4873, 6
    %v5011 = vrot.slane %v4875, 6
    %v5012 = vrot.slane %v4914, 6
    %v5013 = vrot.slane %v4916, 6
    %v5014 = vrot.slane %v4955, 6
    %v5015 = vrot.slane %v4957, 6
    %v5016 = vrot.slane %v4996, 6
    %v5017 = vrot.slane %v4998, 6
    %v5026 = vadd.f32 %v4830, %v5010
    %v5027 = vadd.f32 %v4831, %v5011
    %v5028 = vadd.f32 %v4832, %v5012
    %v5029 = vadd.f32 %v4833, %v5013
    %v5030 = vadd.f32 %v4834, %v5014
    %v5031 = vadd.f32 %v4835, %v5015
    %v5032 = vadd.f32 %v4836, %v5016
    %v5033 = vadd.f32 %v4837, %v5017
    %v5034 = vld [vmem:[#allocation2 + $0xc0] sm:$0x30]
    %v5035 = vld [vmem:[#allocation2 + $0xc8] sm:$0x30]
    %v5036 = vld [vmem:[#allocation2 + $0xd0] sm:$0x30]
    %v5037 = vld [vmem:[#allocation2 + $0xd8] sm:$0x30]
    %v5038 = vld [vmem:[#allocation2 + $0xe0] sm:$0x30]
    %v5039 = vld [vmem:[#allocation2 + $0xe8] sm:$0x30]
    %v5040 = vld [vmem:[#allocation2 + $0xf0] sm:$0x30]
    %v5041 = vld [vmem:[#allocation2 + $0xf8] sm:$0x30]
    %v5042 = vrot.slane %v4818, 1
    %v5043 = vrot.slane %v4819, 1
    %5046 = vmatprep.subr.bf16.mxu0 %v4226
    %5047 = vmatpush1.bf16.msra.mxu0 %v4225
    %5048 = vmatprep.subr.bf16.mxu0 %v4234
    %5049 = vmatpush1.bf16.msra.mxu0 %v4233
    %5050 = vmatprep.subr.bf16.mxu0 %v4242
    %5051 = vmatpush1.bf16.msra.mxu0 %v4241
    %5052 = vmatprep.subr.bf16.mxu0 %v4250
    %5053 = vmatpush1.bf16.msra.mxu0 %v4249
    %5054 = vmatprep.subr.bf16.mxu0 %v4258
    %5055 = vmatpush1.bf16.msra.mxu0 %v4257
    %5056 = vmatprep.subr.bf16.mxu0 %v4266
    %5057 = vmatpush1.bf16.msra.mxu0 %v4265
    %5058 = vmatprep.subr.bf16.mxu0 %v4274
    %5059 = vmatpush1.bf16.msra.mxu0 %v4273
    %5060 = vmatprep.subr.bf16.mxu0 %v4282
    %5061 = vmatpush1.bf16.msra.mxu0 %v4281
    %5062 = vmatprep.subr.bf16.mxu0 %v4290
    %5063 = vmatpush1.bf16.msra.mxu0 %v4289
    %5064 = vmatprep.subr.bf16.mxu0 %v4298
    %5065 = vmatpush1.bf16.msra.mxu0 %v4297
    %5066 = vmatprep.subr.bf16.mxu0 %v4306
    %5067 = vmatpush1.bf16.msra.mxu0 %v4305
    %5068 = vmatprep.subr.bf16.mxu0 %v4314
    %5069 = vmatpush1.bf16.msra.mxu0 %v4313
    %5070 = vmatprep.subr.bf16.mxu0 %v4322
    %5071 = vmatpush1.bf16.msra.mxu0 %v4321
    %5072 = vmatprep.subr.bf16.mxu0 %v4330
    %5073 = vmatpush1.bf16.msra.mxu0 %v4329
    %5074 = vmatprep.subr.bf16.mxu0 %v4338
    %5075 = vmatpush1.bf16.msra.mxu0 %v4337
    %5076 = vmatprep.subr.bf16.mxu0 %v4346
    %5077 = vmatpush1.bf16.msra.mxu0 %v4345
    %5078 = vmatprep.mubr.bf16.mxu0 %v5043
    %5079 = vmatmul.mubr.bf16.gmra.mrb[0].mxu0 %v5042
    %v5080 = vpop.f32.mrb[0].mxu0
    %v5081 = vadd.f32 0.0, %v5080
    %v5082 = vpop.f32.mrb[0].mxu0
    %v5083 = vadd.f32 0.0, %v5082
    %v5084 = vpop.f32.mrb[0].mxu0
    %v5085 = vpop.f32.mrb[0].mxu0
    %5086 = vdwg.mxu0
    %5087 = vmatprep.subr.bf16.mxu0 %v4228
    %5088 = vmatpush1.bf16.msra.mxu0 %v4227
    %5089 = vmatprep.subr.bf16.mxu0 %v4236
    %5090 = vmatpush1.bf16.msra.mxu0 %v4235
    %5091 = vmatprep.subr.bf16.mxu0 %v4244
    %5092 = vmatpush1.bf16.msra.mxu0 %v4243
    %5093 = vmatprep.subr.bf16.mxu0 %v4252
    %5094 = vmatpush1.bf16.msra.mxu0 %v4251
    %5095 = vmatprep.subr.bf16.mxu0 %v4260
    %5096 = vmatpush1.bf16.msra.mxu0 %v4259
    %5097 = vmatprep.subr.bf16.mxu0 %v4268
    %5098 = vmatpush1.bf16.msra.mxu0 %v4267
    %5099 = vmatprep.subr.bf16.mxu0 %v4276
    %5100 = vmatpush1.bf16.msra.mxu0 %v4275
    %5101 = vmatprep.subr.bf16.mxu0 %v4284
    %5102 = vmatpush1.bf16.msra.mxu0 %v4283
    %5103 = vmatprep.subr.bf16.mxu0 %v4292
    %5104 = vmatpush1.bf16.msra.mxu0 %v4291
    %5105 = vmatprep.subr.bf16.mxu0 %v4300
    %5106 = vmatpush1.bf16.msra.mxu0 %v4299
    %5107 = vmatprep.subr.bf16.mxu0 %v4308
    %5108 = vmatpush1.bf16.msra.mxu0 %v4307
    %5109 = vmatprep.subr.bf16.mxu0 %v4316
    %5110 = vmatpush1.bf16.msra.mxu0 %v4315
    %5111 = vmatprep.subr.bf16.mxu0 %v4324
    %5112 = vmatpush1.bf16.msra.mxu0 %v4323
    %5113 = vmatprep.subr.bf16.mxu0 %v4332
    %5114 = vmatpush1.bf16.msra.mxu0 %v4331
    %5115 = vmatprep.subr.bf16.mxu0 %v4340
    %5116 = vmatpush1.bf16.msra.mxu0 %v4339
    %5117 = vmatprep.subr.bf16.mxu0 %v4348
    %5118 = vmatpush1.bf16.msra.mxu0 %v4347
    %5119 = vmatprep.mubr.bf16.mxu0 %v5043
    %5120 = vmatmul.mubr.bf16.gmra.mrb[0].mxu0 %v5042
    %v5121 = vpop.f32.mrb[0].mxu0
    %v5122 = vadd.f32 0.0, %v5121
    %v5123 = vpop.f32.mrb[0].mxu0
    %v5124 = vadd.f32 0.0, %v5123
    %v5125 = vpop.f32.mrb[0].mxu0
    %v5126 = vpop.f32.mrb[0].mxu0
    %5127 = vdwg.mxu0
    %5128 = vmatprep.subr.bf16.mxu0 %v4230
    %5129 = vmatpush1.bf16.msra.mxu0 %v4229
    %5130 = vmatprep.subr.bf16.mxu0 %v4238
    %5131 = vmatpush1.bf16.msra.mxu0 %v4237
    %5132 = vmatprep.subr.bf16.mxu0 %v4246
    %5133 = vmatpush1.bf16.msra.mxu0 %v4245
    %5134 = vmatprep.subr.bf16.mxu0 %v4254
    %5135 = vmatpush1.bf16.msra.mxu0 %v4253
    %5136 = vmatprep.subr.bf16.mxu0 %v4262
    %5137 = vmatpush1.bf16.msra.mxu0 %v4261
    %5138 = vmatprep.subr.bf16.mxu0 %v4270
    %5139 = vmatpush1.bf16.msra.mxu0 %v4269
    %5140 = vmatprep.subr.bf16.mxu0 %v4278
    %5141 = vmatpush1.bf16.msra.mxu0 %v4277
    %5142 = vmatprep.subr.bf16.mxu0 %v4286
    %5143 = vmatpush1.bf16.msra.mxu0 %v4285
    %5144 = vmatprep.subr.bf16.mxu0 %v4294
    %5145 = vmatpush1.bf16.msra.mxu0 %v4293
    %5146 = vmatprep.subr.bf16.mxu0 %v4302
    %5147 = vmatpush1.bf16.msra.mxu0 %v4301
    %5148 = vmatprep.subr.bf16.mxu0 %v4310
    %5149 = vmatpush1.bf16.msra.mxu0 %v4309
    %5150 = vmatprep.subr.bf16.mxu0 %v4318
    %5151 = vmatpush1.bf16.msra.mxu0 %v4317
    %5152 = vmatprep.subr.bf16.mxu0 %v4326
    %5153 = vmatpush1.bf16.msra.mxu0 %v4325
    %5154 = vmatprep.subr.bf16.mxu0 %v4334
    %5155 = vmatpush1.bf16.msra.mxu0 %v4333
    %5156 = vmatprep.subr.bf16.mxu0 %v4342
    %5157 = vmatpush1.bf16.msra.mxu0 %v4341
    %5158 = vmatprep.subr.bf16.mxu0 %v4350
    %5159 = vmatpush1.bf16.msra.mxu0 %v4349
    %5160 = vmatprep.mubr.bf16.mxu0 %v5043
    %5161 = vmatmul.mubr.bf16.gmra.mrb[0].mxu0 %v5042
    %v5162 = vpop.f32.mrb[0].mxu0
    %v5163 = vadd.f32 0.0, %v5162
    %v5164 = vpop.f32.mrb[0].mxu0
    %v5165 = vadd.f32 0.0, %v5164
    %v5166 = vpop.f32.mrb[0].mxu0
    %v5167 = vpop.f32.mrb[0].mxu0
    %5168 = vdwg.mxu0
    %5169 = vmatprep.subr.bf16.mxu0 %v4232
    %5170 = vmatpush1.bf16.msra.mxu0 %v4231
    %5171 = vmatprep.subr.bf16.mxu0 %v4240
    %5172 = vmatpush1.bf16.msra.mxu0 %v4239
    %5173 = vmatprep.subr.bf16.mxu0 %v4248
    %5174 = vmatpush1.bf16.msra.mxu0 %v4247
    %5175 = vmatprep.subr.bf16.mxu0 %v4256
    %5176 = vmatpush1.bf16.msra.mxu0 %v4255
    %5177 = vmatprep.subr.bf16.mxu0 %v4264
    %5178 = vmatpush1.bf16.msra.mxu0 %v4263
    %5179 = vmatprep.subr.bf16.mxu0 %v4272
    %5180 = vmatpush1.bf16.msra.mxu0 %v4271
    %5181 = vmatprep.subr.bf16.mxu0 %v4280
    %5182 = vmatpush1.bf16.msra.mxu0 %v4279
    %5183 = vmatprep.subr.bf16.mxu0 %v4288
    %5184 = vmatpush1.bf16.msra.mxu0 %v4287
    %5185 = vmatprep.subr.bf16.mxu0 %v4296
    %5186 = vmatpush1.bf16.msra.mxu0 %v4295
    %5187 = vmatprep.subr.bf16.mxu0 %v4304
    %5188 = vmatpush1.bf16.msra.mxu0 %v4303
    %5189 = vmatprep.subr.bf16.mxu0 %v4312
    %5190 = vmatpush1.bf16.msra.mxu0 %v4311
    %5191 = vmatprep.subr.bf16.mxu0 %v4320
    %5192 = vmatpush1.bf16.msra.mxu0 %v4319
    %5193 = vmatprep.subr.bf16.mxu0 %v4328
    %5194 = vmatpush1.bf16.msra.mxu0 %v4327
    %5195 = vmatprep.subr.bf16.mxu0 %v4336
    %5196 = vmatpush1.bf16.msra.mxu0 %v4335
    %5197 = vmatprep.subr.bf16.mxu0 %v4344
    %5198 = vmatpush1.bf16.msra.mxu0 %v4343
    %5199 = vmatprep.subr.bf16.mxu0 %v4352
    %5200 = vmatpush1.bf16.msra.mxu0 %v4351
    %5201 = vmatprep.mubr.bf16.mxu0 %v5043
    %5202 = vmatmul.mubr.bf16.gmra.mrb[0].mxu0 %v5042
    %v5203 = vpop.f32.mrb[0].mxu0
    %v5204 = vadd.f32 0.0, %v5203
    %v5205 = vpop.f32.mrb[0].mxu0
    %v5206 = vadd.f32 0.0, %v5205
    %v5207 = vpop.f32.mrb[0].mxu0
    %v5208 = vpop.f32.mrb[0].mxu0
    %5209 = vdwg.mxu0
    %v5218 = vrot.slane %v5081, 4
    %v5219 = vrot.slane %v5083, 4
    %v5220 = vrot.slane %v5122, 4
    %v5221 = vrot.slane %v5124, 4
    %v5222 = vrot.slane %v5163, 4
    %v5223 = vrot.slane %v5165, 4
    %v5224 = vrot.slane %v5204, 4
    %v5225 = vrot.slane %v5206, 4
    %v5234 = vadd.f32 %v5034, %v5218
    %v5235 = vadd.f32 %v5035, %v5219
    %v5236 = vadd.f32 %v5036, %v5220
    %v5237 = vadd.f32 %v5037, %v5221
    %v5238 = vadd.f32 %v5038, %v5222
    %v5239 = vadd.f32 %v5039, %v5223
    %v5240 = vadd.f32 %v5040, %v5224
    %v5241 = vadd.f32 %v5041, %v5225
    %v5250 = vrot.slane %v5026, 2
    %v5251 = vrot.slane %v5027, 2
    %v5252 = vrot.slane %v5028, 2
    %v5253 = vrot.slane %v5029, 2
    %v5254 = vrot.slane %v5030, 2
    %v5255 = vrot.slane %v5031, 2
    %v5256 = vrot.slane %v5032, 2
    %v5257 = vrot.slane %v5033, 2
    %v5274 = vrot.slane %v5234, 2
    %v5275 = vrot.slane %v5235, 2
    %v5276 = vrot.slane %v5236, 2
    %v5277 = vrot.slane %v5237, 2
    %v5278 = vrot.slane %v5238, 2
    %v5279 = vrot.slane %v5239, 2
    %v5280 = vrot.slane %v5240, 2
    %v5281 = vrot.slane %v5241, 2
    %v5290 = vsel %vm4761, %v5250, %v5274
    %v5291 = vsel %vm4761, %v5251, %v5275
    %v5292 = vsel %vm4761, %v5252, %v5276
    %v5293 = vsel %vm4761, %v5253, %v5277
    %v5294 = vsel %vm4761, %v5254, %v5278
    %v5295 = vsel %vm4761, %v5255, %v5279
    %v5296 = vsel %vm4761, %v5256, %v5280
    %v5297 = vsel %vm4761, %v5257, %v5281
    %v5298 = vxor.u32 %v5290, 2147483648
    %v5299 = vxor.u32 %v5291, 2147483648
    %v5300 = vmul.f32 %v5298, 1.442695
    %v5301 = vpow.pop %v5300
    %v5302 = vmul.f32 %v5299, 1.442695
    %v5303 = vpow.pop %v5302
    %v5304 = vadd.f32 %v5301, 1.0
    %v5305 = vadd.f32 %v5303, 1.0
    %v5306 = vrcp.pop %v5304
    %v5307 = vmul.f32 1.0, %v5306
    %v5308 = vrcp.pop %v5305
    %v5309 = vmul.f32 1.0, %v5308
    %v5310 = vxor.u32 %v5292, 2147483648
    %v5311 = vxor.u32 %v5293, 2147483648
    %v5312 = vmul.f32 %v5310, 1.442695
    %v5313 = vpow.pop %v5312
    %v5314 = vmul.f32 %v5311, 1.442695
    %v5315 = vpow.pop %v5314
    %v5316 = vadd.f32 %v5313, 1.0
    %v5317 = vadd.f32 %v5315, 1.0
    %v5318 = vrcp.pop %v5316
    %v5319 = vmul.f32 1.0, %v5318
    %v5320 = vrcp.pop %v5317
    %v5321 = vmul.f32 1.0, %v5320
    %v5322 = vtanh.pop %v5294
    %v5323 = vtanh.pop %v5295
    %v5324 = vxor.u32 %v5296, 2147483648
    %v5325 = vxor.u32 %v5297, 2147483648
    %v5326 = vmul.f32 %v5324, 1.442695
    %v5327 = vpow.pop %v5326
    %v5328 = vmul.f32 %v5325, 1.442695
    %v5329 = vpow.pop %v5328
    %v5330 = vadd.f32 %v5327, 1.0
    %v5331 = vadd.f32 %v5329, 1.0
    %v5332 = vrcp.pop %v5330
    %v5333 = vmul.f32 1.0, %v5332
    %v5334 = vrcp.pop %v5331
    %v5335 = vmul.f32 1.0, %v5334
    %v5336 = vmul.f32 %v5319, %v4812
    %v5337 = vmul.f32 %v5321, %v4813
    %v5338 = vmul.f32 %v5307, %v5322
    %v5339 = vmul.f32 %v5309, %v5323
    %v5340 = vadd.f32 %v5336, %v5338
    %v5341 = vadd.f32 %v5337, %v5339
    %v5342 = vtanh.pop %v5340
    %v5343 = vtanh.pop %v5341
    %v5344 = vmul.f32 %v5333, %v5342
    %v5345 = vmul.f32 %v5335, %v5343
    %v5346 = vpack.c.bf16 %v5344, %v5344
    %v5347 = vpack.c.bf16 %v5345, %v5345
    %v5350 = vrot.slane %v5346, 7
    %v5351 = vrot.slane %v5347, 7
    %5354 = vst [vmem:[#allocation3] sm:$0x2] %v5350
    %5355 = vst [vmem:[#allocation3 + $0x8] sm:$0x2] %v5351
    %v5356 = vrot.slane %v5346, 3
    %v5357 = vrot.slane %v5347, 3
    %5360 = vst [vmem:[#allocation4] sm:$0x40] %v5356
    %5361 = vst [vmem:[#allocation4 + $0x8] sm:$0x40] %v5357
    %v5362 = vld [vmem:[#allocation2] sm:$0x30]
    %v5363 = vld [vmem:[#allocation2 + $0x8] sm:$0x30]
    %v5364 = vld [vmem:[#allocation2 + $0x10] sm:$0x30]
    %v5365 = vld [vmem:[#allocation2 + $0x18] sm:$0x30]
    %v5366 = vld [vmem:[#allocation2 + $0x20] sm:$0x30]
    %v5367 = vld [vmem:[#allocation2 + $0x28] sm:$0x30]
    %v5368 = vld [vmem:[#allocation2 + $0x30] sm:$0x30]
    %v5369 = vld [vmem:[#allocation2 + $0x38] sm:$0x30]
    %5370 = vmatprep.subr.bf16.mxu0 %v4098
    %5371 = vmatpush1.bf16.msra.mxu0 %v4097
    %5372 = vmatprep.subr.bf16.mxu0 %v4106
    %5373 = vmatpush1.bf16.msra.mxu0 %v4105
    %5374 = vmatprep.subr.bf16.mxu0 %v4114
    %5375 = vmatpush1.bf16.msra.mxu0 %v4113
    %5376 = vmatprep.subr.bf16.mxu0 %v4122
    %5377 = vmatpush1.bf16.msra.mxu0 %v4121
    %5378 = vmatprep.subr.bf16.mxu0 %v4130
    %5379 = vmatpush1.bf16.msra.mxu0 %v4129
    %5380 = vmatprep.subr.bf16.mxu0 %v4138
    %5381 = vmatpush1.bf16.msra.mxu0 %v4137
    %5382 = vmatprep.subr.bf16.mxu0 %v4146
    %5383 = vmatpush1.bf16.msra.mxu0 %v4145
    %5384 = vmatprep.subr.bf16.mxu0 %v4154
    %5385 = vmatpush1.bf16.msra.mxu0 %v4153
    %5386 = vmatprep.subr.bf16.mxu0 %v4162
    %5387 = vmatpush1.bf16.msra.mxu0 %v4161
    %5388 = vmatprep.subr.bf16.mxu0 %v4170
    %5389 = vmatpush1.bf16.msra.mxu0 %v4169
    %5390 = vmatprep.subr.bf16.mxu0 %v4178
    %5391 = vmatpush1.bf16.msra.mxu0 %v4177
    %5392 = vmatprep.subr.bf16.mxu0 %v4186
    %5393 = vmatpush1.bf16.msra.mxu0 %v4185
    %5394 = vmatprep.subr.bf16.mxu0 %v4194
    %5395 = vmatpush1.bf16.msra.mxu0 %v4193
    %5396 = vmatprep.subr.bf16.mxu0 %v4202
    %5397 = vmatpush1.bf16.msra.mxu0 %v4201
    %5398 = vmatprep.subr.bf16.mxu0 %v4210
    %5399 = vmatpush1.bf16.msra.mxu0 %v4209
    %5400 = vmatprep.subr.bf16.mxu0 %v4218
    %5401 = vmatpush1.bf16.msra.mxu0 %v4217
    %5402 = vmatprep.mubr.bf16.mxu0 %v5347
    %5403 = vmatmul.mubr.bf16.gmra.mrb[0].mxu0 %v5346
    %v5404 = vpop.f32.mrb[0].mxu0
    %v5405 = vadd.f32 0.0, %v5404
    %v5406 = vpop.f32.mrb[0].mxu0
    %v5407 = vadd.f32 0.0, %v5406
    %v5408 = vpop.f32.mrb[0].mxu0
    %v5409 = vpop.f32.mrb[0].mxu0
    %5410 = vdwg.mxu0
    %5411 = vmatprep.subr.bf16.mxu0 %v4100
    %5412 = vmatpush1.bf16.msra.mxu0 %v4099
    %5413 = vmatprep.subr.bf16.mxu0 %v4108
    %5414 = vmatpush1.bf16.msra.mxu0 %v4107
    %5415 = vmatprep.subr.bf16.mxu0 %v4116
    %5416 = vmatpush1.bf16.msra.mxu0 %v4115
    %5417 = vmatprep.subr.bf16.mxu0 %v4124
    %5418 = vmatpush1.bf16.msra.mxu0 %v4123
    %5419 = vmatprep.subr.bf16.mxu0 %v4132
    %5420 = vmatpush1.bf16.msra.mxu0 %v4131
    %5421 = vmatprep.subr.bf16.mxu0 %v4140
    %5422 = vmatpush1.bf16.msra.mxu0 %v4139
    %5423 = vmatprep.subr.bf16.mxu0 %v4148
    %5424 = vmatpush1.bf16.msra.mxu0 %v4147
    %5425 = vmatprep.subr.bf16.mxu0 %v4156
    %5426 = vmatpush1.bf16.msra.mxu0 %v4155
    %5427 = vmatprep.subr.bf16.mxu0 %v4164
    %5428 = vmatpush1.bf16.msra.mxu0 %v4163
    %5429 = vmatprep.subr.bf16.mxu0 %v4172
    %5430 = vmatpush1.bf16.msra.mxu0 %v4171
    %5431 = vmatprep.subr.bf16.mxu0 %v4180
    %5432 = vmatpush1.bf16.msra.mxu0 %v4179
    %5433 = vmatprep.subr.bf16.mxu0 %v4188
    %5434 = vmatpush1.bf16.msra.mxu0 %v4187
    %5435 = vmatprep.subr.bf16.mxu0 %v4196
    %5436 = vmatpush1.bf16.msra.mxu0 %v4195
    %5437 = vmatprep.subr.bf16.mxu0 %v4204
    %5438 = vmatpush1.bf16.msra.mxu0 %v4203
    %5439 = vmatprep.subr.bf16.mxu0 %v4212
    %5440 = vmatpush1.bf16.msra.mxu0 %v4211
    %5441 = vmatprep.subr.bf16.mxu0 %v4220
    %5442 = vmatpush1.bf16.msra.mxu0 %v4219
    %5443 = vmatprep.mubr.bf16.mxu0 %v5347
    %5444 = vmatmul.mubr.bf16.gmra.mrb[0].mxu0 %v5346
    %v5445 = vpop.f32.mrb[0].mxu0
    %v5446 = vadd.f32 0.0, %v5445
    %v5447 = vpop.f32.mrb[0].mxu0
    %v5448 = vadd.f32 0.0, %v5447
    %v5449 = vpop.f32.mrb[0].mxu0
    %v5450 = vpop.f32.mrb[0].mxu0
    %5451 = vdwg.mxu0
    %5452 = vmatprep.subr.bf16.mxu0 %v4102
    %5453 = vmatpush1.bf16.msra.mxu0 %v4101
    %5454 = vmatprep.subr.bf16.mxu0 %v4110
    %5455 = vmatpush1.bf16.msra.mxu0 %v4109
    %5456 = vmatprep.subr.bf16.mxu0 %v4118
    %5457 = vmatpush1.bf16.msra.mxu0 %v4117
    %5458 = vmatprep.subr.bf16.mxu0 %v4126
    %5459 = vmatpush1.bf16.msra.mxu0 %v4125
    %5460 = vmatprep.subr.bf16.mxu0 %v4134
    %5461 = vmatpush1.bf16.msra.mxu0 %v4133
    %5462 = vmatprep.subr.bf16.mxu0 %v4142
    %5463 = vmatpush1.bf16.msra.mxu0 %v4141
    %5464 = vmatprep.subr.bf16.mxu0 %v4150
    %5465 = vmatpush1.bf16.msra.mxu0 %v4149
    %5466 = vmatprep.subr.bf16.mxu0 %v4158
    %5467 = vmatpush1.bf16.msra.mxu0 %v4157
    %5468 = vmatprep.subr.bf16.mxu0 %v4166
    %5469 = vmatpush1.bf16.msra.mxu0 %v4165
    %5470 = vmatprep.subr.bf16.mxu0 %v4174
    %5471 = vmatpush1.bf16.msra.mxu0 %v4173
    %5472 = vmatprep.subr.bf16.mxu0 %v4182
    %5473 = vmatpush1.bf16.msra.mxu0 %v4181
    %5474 = vmatprep.subr.bf16.mxu0 %v4190
    %5475 = vmatpush1.bf16.msra.mxu0 %v4189
    %5476 = vmatprep.subr.bf16.mxu0 %v4198
    %5477 = vmatpush1.bf16.msra.mxu0 %v4197
    %5478 = vmatprep.subr.bf16.mxu0 %v4206
    %5479 = vmatpush1.bf16.msra.mxu0 %v4205
    %5480 = vmatprep.subr.bf16.mxu0 %v4214
    %5481 = vmatpush1.bf16.msra.mxu0 %v4213
    %5482 = vmatprep.subr.bf16.mxu0 %v4222
    %5483 = vmatpush1.bf16.msra.mxu0 %v4221
    %5484 = vmatprep.mubr.bf16.mxu0 %v5347
    %5485 = vmatmul.mubr.bf16.gmra.mrb[0].mxu0 %v5346
    %v5486 = vpop.f32.mrb[0].mxu0
    %v5487 = vadd.f32 0.0, %v5486
    %v5488 = vpop.f32.mrb[0].mxu0
    %v5489 = vadd.f32 0.0, %v5488
    %v5490 = vpop.f32.mrb[0].mxu0
    %v5491 = vpop.f32.mrb[0].mxu0
    %5492 = vdwg.mxu0
    %5493 = vmatprep.subr.bf16.mxu0 %v4104
    %5494 = vmatpush1.bf16.msra.mxu0 %v4103
    %5495 = vmatprep.subr.bf16.mxu0 %v4112
    %5496 = vmatpush1.bf16.msra.mxu0 %v4111
    %5497 = vmatprep.subr.bf16.mxu0 %v4120
    %5498 = vmatpush1.bf16.msra.mxu0 %v4119
    %5499 = vmatprep.subr.bf16.mxu0 %v4128
    %5500 = vmatpush1.bf16.msra.mxu0 %v4127
    %5501 = vmatprep.subr.bf16.mxu0 %v4136
    %5502 = vmatpush1.bf16.msra.mxu0 %v4135
    %5503 = vmatprep.subr.bf16.mxu0 %v4144
    %5504 = vmatpush1.bf16.msra.mxu0 %v4143
    %5505 = vmatprep.subr.bf16.mxu0 %v4152
    %5506 = vmatpush1.bf16.msra.mxu0 %v4151
    %5507 = vmatprep.subr.bf16.mxu0 %v4160
    %5508 = vmatpush1.bf16.msra.mxu0 %v4159
    %5509 = vmatprep.subr.bf16.mxu0 %v4168
    %5510 = vmatpush1.bf16.msra.mxu0 %v4167
    %5511 = vmatprep.subr.bf16.mxu0 %v4176
    %5512 = vmatpush1.bf16.msra.mxu0 %v4175
    %5513 = vmatprep.subr.bf16.mxu0 %v4184
    %5514 = vmatpush1.bf16.msra.mxu0 %v4183
    %5515 = vmatprep.subr.bf16.mxu0 %v4192
    %5516 = vmatpush1.bf16.msra.mxu0 %v4191
    %5517 = vmatprep.subr.bf16.mxu0 %v4200
    %5518 = vmatpush1.bf16.msra.mxu0 %v4199
    %5519 = vmatprep.subr.bf16.mxu0 %v4208
    %5520 = vmatpush1.bf16.msra.mxu0 %v4207
    %5521 = vmatprep.subr.bf16.mxu0 %v4216
    %5522 = vmatpush1.bf16.msra.mxu0 %v4215
    %5523 = vmatprep.subr.bf16.mxu0 %v4224
    %5524 = vmatpush1.bf16.msra.mxu0 %v4223
    %5525 = vmatprep.mubr.bf16.mxu0 %v5347
    %5526 = vmatmul.mubr.bf16.gmra.mrb[0].mxu0 %v5346
    %v5527 = vpop.f32.mrb[0].mxu0
    %v5528 = vadd.f32 0.0, %v5527
    %v5529 = vpop.f32.mrb[0].mxu0
    %v5530 = vadd.f32 0.0, %v5529
    %v5531 = vpop.f32.mrb[0].mxu0
    %v5532 = vpop.f32.mrb[0].mxu0
    %5533 = vdwg.mxu0
    %v5542 = vrot.slane %v5405, 4
    %v5543 = vrot.slane %v5407, 4
    %v5544 = vrot.slane %v5446, 4
    %v5545 = vrot.slane %v5448, 4
    %v5546 = vrot.slane %v5487, 4
    %v5547 = vrot.slane %v5489, 4
    %v5548 = vrot.slane %v5528, 4
    %v5549 = vrot.slane %v5530, 4
    %v5558 = vadd.f32 %v5362, %v5542
    %v5559 = vadd.f32 %v5363, %v5543
    %v5560 = vadd.f32 %v5364, %v5544
    %v5561 = vadd.f32 %v5365, %v5545
    %v5562 = vadd.f32 %v5366, %v5546
    %v5563 = vadd.f32 %v5367, %v5547
    %v5564 = vadd.f32 %v5368, %v5548
    %v5565 = vadd.f32 %v5369, %v5549
    %v5566 = vld [vmem:[#allocation2 + $0xc0] sm:$0xc]
    %v5567 = vld [vmem:[#allocation2 + $0xc8] sm:$0xc]
    %v5568 = vld [vmem:[#allocation2 + $0xd0] sm:$0xc]
    %v5569 = vld [vmem:[#allocation2 + $0xd8] sm:$0xc]
    %v5570 = vld [vmem:[#allocation2 + $0xe0] sm:$0xc]
    %v5571 = vld [vmem:[#allocation2 + $0xe8] sm:$0xc]
    %v5572 = vld [vmem:[#allocation2 + $0xf0] sm:$0xc]
    %v5573 = vld [vmem:[#allocation2 + $0xf8] sm:$0xc]
    %v5574 = vrot.slane %v5346, 1
    %v5575 = vrot.slane %v5347, 1
    %5578 = vmatprep.subr.bf16.mxu0 %v4226
    %5579 = vmatpush1.bf16.msra.mxu0 %v4225
    %5580 = vmatprep.subr.bf16.mxu0 %v4234
    %5581 = vmatpush1.bf16.msra.mxu0 %v4233
    %5582 = vmatprep.subr.bf16.mxu0 %v4242
    %5583 = vmatpush1.bf16.msra.mxu0 %v4241
    %5584 = vmatprep.subr.bf16.mxu0 %v4250
    %5585 = vmatpush1.bf16.msra.mxu0 %v4249
    %5586 = vmatprep.subr.bf16.mxu0 %v4258
    %5587 = vmatpush1.bf16.msra.mxu0 %v4257
    %5588 = vmatprep.subr.bf16.mxu0 %v4266
    %5589 = vmatpush1.bf16.msra.mxu0 %v4265
    %5590 = vmatprep.subr.bf16.mxu0 %v4274
    %5591 = vmatpush1.bf16.msra.mxu0 %v4273
    %5592 = vmatprep.subr.bf16.mxu0 %v4282
    %5593 = vmatpush1.bf16.msra.mxu0 %v4281
    %5594 = vmatprep.subr.bf16.mxu0 %v4290
    %5595 = vmatpush1.bf16.msra.mxu0 %v4289
    %5596 = vmatprep.subr.bf16.mxu0 %v4298
    %5597 = vmatpush1.bf16.msra.mxu0 %v4297
    %5598 = vmatprep.subr.bf16.mxu0 %v4306
    %5599 = vmatpush1.bf16.msra.mxu0 %v4305
    %5600 = vmatprep.subr.bf16.mxu0 %v4314
    %5601 = vmatpush1.bf16.msra.mxu0 %v4313
    %5602 = vmatprep.subr.bf16.mxu0 %v4322
    %5603 = vmatpush1.bf16.msra.mxu0 %v4321
    %5604 = vmatprep.subr.bf16.mxu0 %v4330
    %5605 = vmatpush1.bf16.msra.mxu0 %v4329
    %5606 = vmatprep.subr.bf16.mxu0 %v4338
    %5607 = vmatpush1.bf16.msra.mxu0 %v4337
    %5608 = vmatprep.subr.bf16.mxu0 %v4346
    %5609 = vmatpush1.bf16.msra.mxu0 %v4345
    %5610 = vmatprep.mubr.bf16.mxu0 %v5575
    %5611 = vmatmul.mubr.bf16.gmra.mrb[0].mxu0 %v5574
    %v5612 = vpop.f32.mrb[0].mxu0
    %v5613 = vadd.f32 0.0, %v5612
    %v5614 = vpop.f32.mrb[0].mxu0
    %v5615 = vadd.f32 0.0, %v5614
    %v5616 = vpop.f32.mrb[0].mxu0
    %v5617 = vpop.f32.mrb[0].mxu0
    %5618 = vdwg.mxu0
    %5619 = vmatprep.subr.bf16.mxu0 %v4228
    %5620 = vmatpush1.bf16.msra.mxu0 %v4227
    %5621 = vmatprep.subr.bf16.mxu0 %v4236
    %5622 = vmatpush1.bf16.msra.mxu0 %v4235
    %5623 = vmatprep.subr.bf16.mxu0 %v4244
    %5624 = vmatpush1.bf16.msra.mxu0 %v4243
    %5625 = vmatprep.subr.bf16.mxu0 %v4252
    %5626 = vmatpush1.bf16.msra.mxu0 %v4251
    %5627 = vmatprep.subr.bf16.mxu0 %v4260
    %5628 = vmatpush1.bf16.msra.mxu0 %v4259
    %5629 = vmatprep.subr.bf16.mxu0 %v4268
    %5630 = vmatpush1.bf16.msra.mxu0 %v4267
    %5631 = vmatprep.subr.bf16.mxu0 %v4276
    %5632 = vmatpush1.bf16.msra.mxu0 %v4275
    %5633 = vmatprep.subr.bf16.mxu0 %v4284
    %5634 = vmatpush1.bf16.msra.mxu0 %v4283
    %5635 = vmatprep.subr.bf16.mxu0 %v4292
    %5636 = vmatpush1.bf16.msra.mxu0 %v4291
    %5637 = vmatprep.subr.bf16.mxu0 %v4300
    %5638 = vmatpush1.bf16.msra.mxu0 %v4299
    %5639 = vmatprep.subr.bf16.mxu0 %v4308
    %5640 = vmatpush1.bf16.msra.mxu0 %v4307
    %5641 = vmatprep.subr.bf16.mxu0 %v4316
    %5642 = vmatpush1.bf16.msra.mxu0 %v4315
    %5643 = vmatprep.subr.bf16.mxu0 %v4324
    %5644 = vmatpush1.bf16.msra.mxu0 %v4323
    %5645 = vmatprep.subr.bf16.mxu0 %v4332
    %5646 = vmatpush1.bf16.msra.mxu0 %v4331
    %5647 = vmatprep.subr.bf16.mxu0 %v4340
    %5648 = vmatpush1.bf16.msra.mxu0 %v4339
    %5649 = vmatprep.subr.bf16.mxu0 %v4348
    %5650 = vmatpush1.bf16.msra.mxu0 %v4347
    %5651 = vmatprep.mubr.bf16.mxu0 %v5575
    %5652 = vmatmul.mubr.bf16.gmra.mrb[0].mxu0 %v5574
    %v5653 = vpop.f32.mrb[0].mxu0
    %v5654 = vadd.f32 0.0, %v5653
    %v5655 = vpop.f32.mrb[0].mxu0
    %v5656 = vadd.f32 0.0, %v5655
    %v5657 = vpop.f32.mrb[0].mxu0
    %v5658 = vpop.f32.mrb[0].mxu0
    %5659 = vdwg.mxu0
    %5660 = vmatprep.subr.bf16.mxu0 %v4230
    %5661 = vmatpush1.bf16.msra.mxu0 %v4229
    %5662 = vmatprep.subr.bf16.mxu0 %v4238
    %5663 = vmatpush1.bf16.msra.mxu0 %v4237
    %5664 = vmatprep.subr.bf16.mxu0 %v4246
    %5665 = vmatpush1.bf16.msra.mxu0 %v4245
    %5666 = vmatprep.subr.bf16.mxu0 %v4254
    %5667 = vmatpush1.bf16.msra.mxu0 %v4253
    %5668 = vmatprep.subr.bf16.mxu0 %v4262
    %5669 = vmatpush1.bf16.msra.mxu0 %v4261
    %5670 = vmatprep.subr.bf16.mxu0 %v4270
    %5671 = vmatpush1.bf16.msra.mxu0 %v4269
    %5672 = vmatprep.subr.bf16.mxu0 %v4278
    %5673 = vmatpush1.bf16.msra.mxu0 %v4277
    %5674 = vmatprep.subr.bf16.mxu0 %v4286
    %5675 = vmatpush1.bf16.msra.mxu0 %v4285
    %5676 = vmatprep.subr.bf16.mxu0 %v4294
    %5677 = vmatpush1.bf16.msra.mxu0 %v4293
    %5678 = vmatprep.subr.bf16.mxu0 %v4302
    %5679 = vmatpush1.bf16.msra.mxu0 %v4301
    %5680 = vmatprep.subr.bf16.mxu0 %v4310
    %5681 = vmatpush1.bf16.msra.mxu0 %v4309
    %5682 = vmatprep.subr.bf16.mxu0 %v4318
    %5683 = vmatpush1.bf16.msra.mxu0 %v4317
    %5684 = vmatprep.subr.bf16.mxu0 %v4326
    %5685 = vmatpush1.bf16.msra.mxu0 %v4325
    %5686 = vmatprep.subr.bf16.mxu0 %v4334
    %5687 = vmatpush1.bf16.msra.mxu0 %v4333
    %5688 = vmatprep.subr.bf16.mxu0 %v4342
    %5689 = vmatpush1.bf16.msra.mxu0 %v4341
    %5690 = vmatprep.subr.bf16.mxu0 %v4350
    %5691 = vmatpush1.bf16.msra.mxu0 %v4349
    %5692 = vmatprep.mubr.bf16.mxu0 %v5575
    %5693 = vmatmul.mubr.bf16.gmra.mrb[0].mxu0 %v5574
    %v5694 = vpop.f32.mrb[0].mxu0
    %v5695 = vadd.f32 0.0, %v5694
    %v5696 = vpop.f32.mrb[0].mxu0
    %v5697 = vadd.f32 0.0, %v5696
    %v5698 = vpop.f32.mrb[0].mxu0
    %v5699 = vpop.f32.mrb[0].mxu0
    %5700 = vdwg.mxu0
    %5701 = vmatprep.subr.bf16.mxu0 %v4232
    %5702 = vmatpush1.bf16.msra.mxu0 %v4231
    %5703 = vmatprep.subr.bf16.mxu0 %v4240
    %5704 = vmatpush1.bf16.msra.mxu0 %v4239
    %5705 = vmatprep.subr.bf16.mxu0 %v4248
    %5706 = vmatpush1.bf16.msra.mxu0 %v4247
    %5707 = vmatprep.subr.bf16.mxu0 %v4256
    %5708 = vmatpush1.bf16.msra.mxu0 %v4255
    %5709 = vmatprep.subr.bf16.mxu0 %v4264
    %5710 = vmatpush1.bf16.msra.mxu0 %v4263
    %5711 = vmatprep.subr.bf16.mxu0 %v4272
    %5712 = vmatpush1.bf16.msra.mxu0 %v4271
    %5713 = vmatprep.subr.bf16.mxu0 %v4280
    %5714 = vmatpush1.bf16.msra.mxu0 %v4279
    %5715 = vmatprep.subr.bf16.mxu0 %v4288
    %5716 = vmatpush1.bf16.msra.mxu0 %v4287
    %5717 = vmatprep.subr.bf16.mxu0 %v4296
    %5718 = vmatpush1.bf16.msra.mxu0 %v4295
    %5719 = vmatprep.subr.bf16.mxu0 %v4304
    %5720 = vmatpush1.bf16.msra.mxu0 %v4303
    %5721 = vmatprep.subr.bf16.mxu0 %v4312
    %5722 = vmatpush1.bf16.msra.mxu0 %v4311
    %5723 = vmatprep.subr.bf16.mxu0 %v4320
    %5724 = vmatpush1.bf16.msra.mxu0 %v4319
    %5725 = vmatprep.subr.bf16.mxu0 %v4328
    %5726 = vmatpush1.bf16.msra.mxu0 %v4327
    %5727 = vmatprep.subr.bf16.mxu0 %v4336
    %5728 = vmatpush1.bf16.msra.mxu0 %v4335
    %5729 = vmatprep.subr.bf16.mxu0 %v4344
    %5730 = vmatpush1.bf16.msra.mxu0 %v4343
    %5731 = vmatprep.subr.bf16.mxu0 %v4352
    %5732 = vmatpush1.bf16.msra.mxu0 %v4351
    %5733 = vmatprep.mubr.bf16.mxu0 %v5575
    %5734 = vmatmul.mubr.bf16.gmra.mrb[0].mxu0 %v5574
    %v5735 = vpop.f32.mrb[0].mxu0
    %v5736 = vadd.f32 0.0, %v5735
    %v5737 = vpop.f32.mrb[0].mxu0
    %v5738 = vadd.f32 0.0, %v5737
    %v5739 = vpop.f32.mrb[0].mxu0
    %v5740 = vpop.f32.mrb[0].mxu0
    %5741 = vdwg.mxu0
    %v5750 = vrot.slane %v5613, 6
    %v5751 = vrot.slane %v5615, 6
    %v5752 = vrot.slane %v5654, 6
    %v5753 = vrot.slane %v5656, 6
    %v5754 = vrot.slane %v5695, 6
    %v5755 = vrot.slane %v5697, 6
    %v5756 = vrot.slane %v5736, 6
    %v5757 = vrot.slane %v5738, 6
    %v5766 = vadd.f32 %v5566, %v5750
    %v5767 = vadd.f32 %v5567, %v5751
    %v5768 = vadd.f32 %v5568, %v5752
    %v5769 = vadd.f32 %v5569, %v5753
    %v5770 = vadd.f32 %v5570, %v5754
    %v5771 = vadd.f32 %v5571, %v5755
    %v5772 = vadd.f32 %v5572, %v5756
    %v5773 = vadd.f32 %v5573, %v5757
    %v5782 = vrot.slane %v5558, 4
    %v5783 = vrot.slane %v5559, 4
    %v5784 = vrot.slane %v5560, 4
    %v5785 = vrot.slane %v5561, 4
    %v5786 = vrot.slane %v5562, 4
    %v5787 = vrot.slane %v5563, 4
    %v5788 = vrot.slane %v5564, 4
    %v5789 = vrot.slane %v5565, 4
    %v5798 = vsel %vm4761, %v5782, %v5766
    %v5799 = vsel %vm4761, %v5783, %v5767
    %v5800 = vsel %vm4761, %v5784, %v5768
    %v5801 = vsel %vm4761, %v5785, %v5769
    %v5802 = vsel %vm4761, %v5786, %v5770
    %v5803 = vsel %vm4761, %v5787, %v5771
    %v5804 = vsel %vm4761, %v5788, %v5772
    %v5805 = vsel %vm4761, %v5789, %v5773
    %v5806 = vxor.u32 %v5798, 2147483648
    %v5807 = vxor.u32 %v5799, 2147483648
    %v5808 = vmul.f32 %v5806, 1.442695
    %v5809 = vpow.pop %v5808
    %v5810 = vmul.f32 %v5807, 1.442695
    %v5811 = vpow.pop %v5810
    %v5812 = vadd.f32 %v5809, 1.0
    %v5813 = vadd.f32 %v5811, 1.0
    %v5814 = vrcp.pop %v5812
    %v5815 = vmul.f32 1.0, %v5814
    %v5816 = vrcp.pop %v5813
    %v5817 = vmul.f32 1.0, %v5816
    %v5818 = vxor.u32 %v5800, 2147483648
    %v5819 = vxor.u32 %v5801, 2147483648
    %v5820 = vmul.f32 %v5818, 1.442695
    %v5821 = vpow.pop %v5820
    %v5822 = vmul.f32 %v5819, 1.442695
    %v5823 = vpow.pop %v5822
    %v5824 = vadd.f32 %v5821, 1.0
    %v5825 = vadd.f32 %v5823, 1.0
    %v5826 = vrcp.pop %v5824
    %v5827 = vmul.f32 1.0, %v5826
    %v5828 = vrcp.pop %v5825
    %v5829 = vmul.f32 1.0, %v5828
    %v5830 = vtanh.pop %v5802
    %v5831 = vtanh.pop %v5803
    %v5832 = vxor.u32 %v5804, 2147483648
    %v5833 = vxor.u32 %v5805, 2147483648
    %v5834 = vmul.f32 %v5832, 1.442695
    %v5835 = vpow.pop %v5834
    %v5836 = vmul.f32 %v5833, 1.442695
    %v5837 = vpow.pop %v5836
    %v5838 = vadd.f32 %v5835, 1.0
    %v5839 = vadd.f32 %v5837, 1.0
    %v5840 = vrcp.pop %v5838
    %v5841 = vmul.f32 1.0, %v5840
    %v5842 = vrcp.pop %v5839
    %v5843 = vmul.f32 1.0, %v5842
    %v5844 = vmul.f32 %v5827, %v5340
    %v5845 = vmul.f32 %v5829, %v5341
    %v5846 = vmul.f32 %v5815, %v5830
    %v5847 = vmul.f32 %v5817, %v5831
    %v5848 = vadd.f32 %v5844, %v5846
    %v5849 = vadd.f32 %v5845, %v5847
    %v5850 = vtanh.pop %v5848
    %v5851 = vtanh.pop %v5849
    %v5852 = vmul.f32 %v5841, %v5850
    %v5853 = vmul.f32 %v5843, %v5851
    %v5854 = vpack.c.bf16 %v5852, %v5852
    %v5855 = vpack.c.bf16 %v5853, %v5853
    %v5858 = vrot.slane %v5854, 6
    %v5859 = vrot.slane %v5855, 6
    %5862 = vst [vmem:[#allocation3] sm:$0x4] %v5858
    %5863 = vst [vmem:[#allocation3 + $0x8] sm:$0x4] %v5859
    %v5864 = vrot.slane %v5854, 4
    %v5865 = vrot.slane %v5855, 4
    %5868 = vst [vmem:[#allocation4] sm:$0x20] %v5864
    %5869 = vst [vmem:[#allocation4 + $0x8] sm:$0x20] %v5865
    %v5870 = vld [vmem:[#allocation2] sm:$0xc0]
    %v5871 = vld [vmem:[#allocation2 + $0x8] sm:$0xc0]
    %v5872 = vld [vmem:[#allocation2 + $0x10] sm:$0xc0]
    %v5873 = vld [vmem:[#allocation2 + $0x18] sm:$0xc0]
    %v5874 = vld [vmem:[#allocation2 + $0x20] sm:$0xc0]
    %v5875 = vld [vmem:[#allocation2 + $0x28] sm:$0xc0]
    %v5876 = vld [vmem:[#allocation2 + $0x30] sm:$0xc0]
    %v5877 = vld [vmem:[#allocation2 + $0x38] sm:$0xc0]
    %5878 = vmatprep.subr.bf16.mxu0 %v4098
    %5879 = vmatpush1.bf16.msra.mxu0 %v4097
    %5880 = vmatprep.subr.bf16.mxu0 %v4106
    %5881 = vmatpush1.bf16.msra.mxu0 %v4105
    %5882 = vmatprep.subr.bf16.mxu0 %v4114
    %5883 = vmatpush1.bf16.msra.mxu0 %v4113
    %5884 = vmatprep.subr.bf16.mxu0 %v4122
    %5885 = vmatpush1.bf16.msra.mxu0 %v4121
    %5886 = vmatprep.subr.bf16.mxu0 %v4130
    %5887 = vmatpush1.bf16.msra.mxu0 %v4129
    %5888 = vmatprep.subr.bf16.mxu0 %v4138
    %5889 = vmatpush1.bf16.msra.mxu0 %v4137
    %5890 = vmatprep.subr.bf16.mxu0 %v4146
    %5891 = vmatpush1.bf16.msra.mxu0 %v4145
    %5892 = vmatprep.subr.bf16.mxu0 %v4154
    %5893 = vmatpush1.bf16.msra.mxu0 %v4153
    %5894 = vmatprep.subr.bf16.mxu0 %v4162
    %5895 = vmatpush1.bf16.msra.mxu0 %v4161
    %5896 = vmatprep.subr.bf16.mxu0 %v4170
    %5897 = vmatpush1.bf16.msra.mxu0 %v4169
    %5898 = vmatprep.subr.bf16.mxu0 %v4178
    %5899 = vmatpush1.bf16.msra.mxu0 %v4177
    %5900 = vmatprep.subr.bf16.mxu0 %v4186
    %5901 = vmatpush1.bf16.msra.mxu0 %v4185
    %5902 = vmatprep.subr.bf16.mxu0 %v4194
    %5903 = vmatpush1.bf16.msra.mxu0 %v4193
    %5904 = vmatprep.subr.bf16.mxu0 %v4202
    %5905 = vmatpush1.bf16.msra.mxu0 %v4201
    %5906 = vmatprep.subr.bf16.mxu0 %v4210
    %5907 = vmatpush1.bf16.msra.mxu0 %v4209
    %5908 = vmatprep.subr.bf16.mxu0 %v4218
    %5909 = vmatpush1.bf16.msra.mxu0 %v4217
    %5910 = vmatprep.mubr.bf16.mxu0 %v5855
    %5911 = vmatmul.mubr.bf16.gmra.mrb[0].mxu0 %v5854
    %v5912 = vpop.f32.mrb[0].mxu0
    %v5913 = vadd.f32 0.0, %v5912
    %v5914 = vpop.f32.mrb[0].mxu0
    %v5915 = vadd.f32 0.0, %v5914
    %v5916 = vpop.f32.mrb[0].mxu0
    %v5917 = vpop.f32.mrb[0].mxu0
    %5918 = vdwg.mxu0
    %5919 = vmatprep.subr.bf16.mxu0 %v4100
    %5920 = vmatpush1.bf16.msra.mxu0 %v4099
    %5921 = vmatprep.subr.bf16.mxu0 %v4108
    %5922 = vmatpush1.bf16.msra.mxu0 %v4107
    %5923 = vmatprep.subr.bf16.mxu0 %v4116
    %5924 = vmatpush1.bf16.msra.mxu0 %v4115
    %5925 = vmatprep.subr.bf16.mxu0 %v4124
    %5926 = vmatpush1.bf16.msra.mxu0 %v4123
    %5927 = vmatprep.subr.bf16.mxu0 %v4132
    %5928 = vmatpush1.bf16.msra.mxu0 %v4131
    %5929 = vmatprep.subr.bf16.mxu0 %v4140
    %5930 = vmatpush1.bf16.msra.mxu0 %v4139
    %5931 = vmatprep.subr.bf16.mxu0 %v4148
    %5932 = vmatpush1.bf16.msra.mxu0 %v4147
    %5933 = vmatprep.subr.bf16.mxu0 %v4156
    %5934 = vmatpush1.bf16.msra.mxu0 %v4155
    %5935 = vmatprep.subr.bf16.mxu0 %v4164
    %5936 = vmatpush1.bf16.msra.mxu0 %v4163
    %5937 = vmatprep.subr.bf16.mxu0 %v4172
    %5938 = vmatpush1.bf16.msra.mxu0 %v4171
    %5939 = vmatprep.subr.bf16.mxu0 %v4180
    %5940 = vmatpush1.bf16.msra.mxu0 %v4179
    %5941 = vmatprep.subr.bf16.mxu0 %v4188
    %5942 = vmatpush1.bf16.msra.mxu0 %v4187
    %5943 = vmatprep.subr.bf16.mxu0 %v4196
    %5944 = vmatpush1.bf16.msra.mxu0 %v4195
    %5945 = vmatprep.subr.bf16.mxu0 %v4204
    %5946 = vmatpush1.bf16.msra.mxu0 %v4203
    %5947 = vmatprep.subr.bf16.mxu0 %v4212
    %5948 = vmatpush1.bf16.msra.mxu0 %v4211
    %5949 = vmatprep.subr.bf16.mxu0 %v4220
    %5950 = vmatpush1.bf16.msra.mxu0 %v4219
    %5951 = vmatprep.mubr.bf16.mxu0 %v5855
    %5952 = vmatmul.mubr.bf16.gmra.mrb[0].mxu0 %v5854
    %v5953 = vpop.f32.mrb[0].mxu0
    %v5954 = vadd.f32 0.0, %v5953
    %v5955 = vpop.f32.mrb[0].mxu0
    %v5956 = vadd.f32 0.0, %v5955
    %v5957 = vpop.f32.mrb[0].mxu0
    %v5958 = vpop.f32.mrb[0].mxu0
    %5959 = vdwg.mxu0
    %5960 = vmatprep.subr.bf16.mxu0 %v4102
    %5961 = vmatpush1.bf16.msra.mxu0 %v4101
    %5962 = vmatprep.subr.bf16.mxu0 %v4110
    %5963 = vmatpush1.bf16.msra.mxu0 %v4109
    %5964 = vmatprep.subr.bf16.mxu0 %v4118
    %5965 = vmatpush1.bf16.msra.mxu0 %v4117
    %5966 = vmatprep.subr.bf16.mxu0 %v4126
    %5967 = vmatpush1.bf16.msra.mxu0 %v4125
    %5968 = vmatprep.subr.bf16.mxu0 %v4134
    %5969 = vmatpush1.bf16.msra.mxu0 %v4133
    %5970 = vmatprep.subr.bf16.mxu0 %v4142
    %5971 = vmatpush1.bf16.msra.mxu0 %v4141
    %5972 = vmatprep.subr.bf16.mxu0 %v4150
    %5973 = vmatpush1.bf16.msra.mxu0 %v4149
    %5974 = vmatprep.subr.bf16.mxu0 %v4158
    %5975 = vmatpush1.bf16.msra.mxu0 %v4157
    %5976 = vmatprep.subr.bf16.mxu0 %v4166
    %5977 = vmatpush1.bf16.msra.mxu0 %v4165
    %5978 = vmatprep.subr.bf16.mxu0 %v4174
    %5979 = vmatpush1.bf16.msra.mxu0 %v4173
    %5980 = vmatprep.subr.bf16.mxu0 %v4182
    %5981 = vmatpush1.bf16.msra.mxu0 %v4181
    %5982 = vmatprep.subr.bf16.mxu0 %v4190
    %5983 = vmatpush1.bf16.msra.mxu0 %v4189
    %5984 = vmatprep.subr.bf16.mxu0 %v4198
    %5985 = vmatpush1.bf16.msra.mxu0 %v4197
    %5986 = vmatprep.subr.bf16.mxu0 %v4206
    %5987 = vmatpush1.bf16.msra.mxu0 %v4205
    %5988 = vmatprep.subr.bf16.mxu0 %v4214
    %5989 = vmatpush1.bf16.msra.mxu0 %v4213
    %5990 = vmatprep.subr.bf16.mxu0 %v4222
    %5991 = vmatpush1.bf16.msra.mxu0 %v4221
    %5992 = vmatprep.mubr.bf16.mxu0 %v5855
    %5993 = vmatmul.mubr.bf16.gmra.mrb[0].mxu0 %v5854
    %v5994 = vpop.f32.mrb[0].mxu0
    %v5995 = vadd.f32 0.0, %v5994
    %v5996 = vpop.f32.mrb[0].mxu0
    %v5997 = vadd.f32 0.0, %v5996
    %v5998 = vpop.f32.mrb[0].mxu0
    %v5999 = vpop.f32.mrb[0].mxu0
    %6000 = vdwg.mxu0
    %6001 = vmatprep.subr.bf16.mxu0 %v4104
    %6002 = vmatpush1.bf16.msra.mxu0 %v4103
    %6003 = vmatprep.subr.bf16.mxu0 %v4112
    %6004 = vmatpush1.bf16.msra.mxu0 %v4111
    %6005 = vmatprep.subr.bf16.mxu0 %v4120
    %6006 = vmatpush1.bf16.msra.mxu0 %v4119
    %6007 = vmatprep.subr.bf16.mxu0 %v4128
    %6008 = vmatpush1.bf16.msra.mxu0 %v4127
    %6009 = vmatprep.subr.bf16.mxu0 %v4136
    %6010 = vmatpush1.bf16.msra.mxu0 %v4135
    %6011 = vmatprep.subr.bf16.mxu0 %v4144
    %6012 = vmatpush1.bf16.msra.mxu0 %v4143
    %6013 = vmatprep.subr.bf16.mxu0 %v4152
    %6014 = vmatpush1.bf16.msra.mxu0 %v4151
    %6015 = vmatprep.subr.bf16.mxu0 %v4160
    %6016 = vmatpush1.bf16.msra.mxu0 %v4159
    %6017 = vmatprep.subr.bf16.mxu0 %v4168
    %6018 = vmatpush1.bf16.msra.mxu0 %v4167
    %6019 = vmatprep.subr.bf16.mxu0 %v4176
    %6020 = vmatpush1.bf16.msra.mxu0 %v4175
    %6021 = vmatprep.subr.bf16.mxu0 %v4184
    %6022 = vmatpush1.bf16.msra.mxu0 %v4183
    %6023 = vmatprep.subr.bf16.mxu0 %v4192
    %6024 = vmatpush1.bf16.msra.mxu0 %v4191
    %6025 = vmatprep.subr.bf16.mxu0 %v4200
    %6026 = vmatpush1.bf16.msra.mxu0 %v4199
    %6027 = vmatprep.subr.bf16.mxu0 %v4208
    %6028 = vmatpush1.bf16.msra.mxu0 %v4207
    %6029 = vmatprep.subr.bf16.mxu0 %v4216
    %6030 = vmatpush1.bf16.msra.mxu0 %v4215
    %6031 = vmatprep.subr.bf16.mxu0 %v4224
    %6032 = vmatpush1.bf16.msra.mxu0 %v4223
    %6033 = vmatprep.mubr.bf16.mxu0 %v5855
    %6034 = vmatmul.mubr.bf16.gmra.mrb[0].mxu0 %v5854
    %v6035 = vpop.f32.mrb[0].mxu0
    %v6036 = vadd.f32 0.0, %v6035
    %v6037 = vpop.f32.mrb[0].mxu0
    %v6038 = vadd.f32 0.0, %v6037
    %v6039 = vpop.f32.mrb[0].mxu0
    %v6040 = vpop.f32.mrb[0].mxu0
    %6041 = vdwg.mxu0
    %v6050 = vrot.slane %v5913, 2
    %v6051 = vrot.slane %v5915, 2
    %v6052 = vrot.slane %v5954, 2
    %v6053 = vrot.slane %v5956, 2
    %v6054 = vrot.slane %v5995, 2
    %v6055 = vrot.slane %v5997, 2
    %v6056 = vrot.slane %v6036, 2
    %v6057 = vrot.slane %v6038, 2
    %v6066 = vadd.f32 %v5870, %v6050
    %v6067 = vadd.f32 %v5871, %v6051
    %v6068 = vadd.f32 %v5872, %v6052
    %v6069 = vadd.f32 %v5873, %v6053
    %v6070 = vadd.f32 %v5874, %v6054
    %v6071 = vadd.f32 %v5875, %v6055
    %v6072 = vadd.f32 %v5876, %v6056
    %v6073 = vadd.f32 %v5877, %v6057
    %v6074 = vld [vmem:[#allocation2 + $0xc0] sm:$0x3]
    %v6075 = vld [vmem:[#allocation2 + $0xc8] sm:$0x3]
    %v6076 = vld [vmem:[#allocation2 + $0xd0] sm:$0x3]
    %v6077 = vld [vmem:[#allocation2 + $0xd8] sm:$0x3]
    %v6078 = vld [vmem:[#allocation2 + $0xe0] sm:$0x3]
    %v6079 = vld [vmem:[#allocation2 + $0xe8] sm:$0x3]
    %v6080 = vld [vmem:[#allocation2 + $0xf0] sm:$0x3]
    %v6081 = vld [vmem:[#allocation2 + $0xf8] sm:$0x3]
    %v6082 = vrot.slane %v5854, 1
    %v6083 = vrot.slane %v5855, 1
    %6086 = vmatprep.subr.bf16.mxu0 %v4226
    %6087 = vmatpush1.bf16.msra.mxu0 %v4225
    %6088 = vmatprep.subr.bf16.mxu0 %v4234
    %6089 = vmatpush1.bf16.msra.mxu0 %v4233
    %6090 = vmatprep.subr.bf16.mxu0 %v4242
    %6091 = vmatpush1.bf16.msra.mxu0 %v4241
    %6092 = vmatprep.subr.bf16.mxu0 %v4250
    %6093 = vmatpush1.bf16.msra.mxu0 %v4249
    %6094 = vmatprep.subr.bf16.mxu0 %v4258
    %6095 = vmatpush1.bf16.msra.mxu0 %v4257
    %6096 = vmatprep.subr.bf16.mxu0 %v4266
    %6097 = vmatpush1.bf16.msra.mxu0 %v4265
    %6098 = vmatprep.subr.bf16.mxu0 %v4274
    %6099 = vmatpush1.bf16.msra.mxu0 %v4273
    %6100 = vmatprep.subr.bf16.mxu0 %v4282
    %6101 = vmatpush1.bf16.msra.mxu0 %v4281
    %6102 = vmatprep.subr.bf16.mxu0 %v4290
    %6103 = vmatpush1.bf16.msra.mxu0 %v4289
    %6104 = vmatprep.subr.bf16.mxu0 %v4298
    %6105 = vmatpush1.bf16.msra.mxu0 %v4297
    %6106 = vmatprep.subr.bf16.mxu0 %v4306
    %6107 = vmatpush1.bf16.msra.mxu0 %v4305
    %6108 = vmatprep.subr.bf16.mxu0 %v4314
    %6109 = vmatpush1.bf16.msra.mxu0 %v4313
    %6110 = vmatprep.subr.bf16.mxu0 %v4322
    %6111 = vmatpush1.bf16.msra.mxu0 %v4321
    %6112 = vmatprep.subr.bf16.mxu0 %v4330
    %6113 = vmatpush1.bf16.msra.mxu0 %v4329
    %6114 = vmatprep.subr.bf16.mxu0 %v4338
    %6115 = vmatpush1.bf16.msra.mxu0 %v4337
    %6116 = vmatprep.subr.bf16.mxu0 %v4346
    %6117 = vmatpush1.bf16.msra.mxu0 %v4345
    %6118 = vmatprep.mubr.bf16.mxu0 %v6083
    %6119 = vmatmul.mubr.bf16.gmra.mrb[0].mxu0 %v6082
    %v6120 = vpop.f32.mrb[0].mxu0
    %v6121 = vadd.f32 0.0, %v6120
    %v6122 = vpop.f32.mrb[0].mxu0
    %v6123 = vadd.f32 0.0, %v6122
    %v6124 = vpop.f32.mrb[0].mxu0
    %v6125 = vpop.f32.mrb[0].mxu0
    %6126 = vdwg.mxu0
    %6127 = vmatprep.subr.bf16.mxu0 %v4228
    %6128 = vmatpush1.bf16.msra.mxu0 %v4227
    %6129 = vmatprep.subr.bf16.mxu0 %v4236
    %6130 = vmatpush1.bf16.msra.mxu0 %v4235
    %6131 = vmatprep.subr.bf16.mxu0 %v4244
    %6132 = vmatpush1.bf16.msra.mxu0 %v4243
    %6133 = vmatprep.subr.bf16.mxu0 %v4252
    %6134 = vmatpush1.bf16.msra.mxu0 %v4251
    %6135 = vmatprep.subr.bf16.mxu0 %v4260
    %6136 = vmatpush1.bf16.msra.mxu0 %v4259
    %6137 = vmatprep.subr.bf16.mxu0 %v4268
    %6138 = vmatpush1.bf16.msra.mxu0 %v4267
    %6139 = vmatprep.subr.bf16.mxu0 %v4276
    %6140 = vmatpush1.bf16.msra.mxu0 %v4275
    %6141 = vmatprep.subr.bf16.mxu0 %v4284
    %6142 = vmatpush1.bf16.msra.mxu0 %v4283
    %6143 = vmatprep.subr.bf16.mxu0 %v4292
    %6144 = vmatpush1.bf16.msra.mxu0 %v4291
    %6145 = vmatprep.subr.bf16.mxu0 %v4300
    %6146 = vmatpush1.bf16.msra.mxu0 %v4299
    %6147 = vmatprep.subr.bf16.mxu0 %v4308
    %6148 = vmatpush1.bf16.msra.mxu0 %v4307
    %6149 = vmatprep.subr.bf16.mxu0 %v4316
    %6150 = vmatpush1.bf16.msra.mxu0 %v4315
    %6151 = vmatprep.subr.bf16.mxu0 %v4324
    %6152 = vmatpush1.bf16.msra.mxu0 %v4323
    %6153 = vmatprep.subr.bf16.mxu0 %v4332
    %6154 = vmatpush1.bf16.msra.mxu0 %v4331
    %6155 = vmatprep.subr.bf16.mxu0 %v4340
    %6156 = vmatpush1.bf16.msra.mxu0 %v4339
    %6157 = vmatprep.subr.bf16.mxu0 %v4348
    %6158 = vmatpush1.bf16.msra.mxu0 %v4347
    %6159 = vmatprep.mubr.bf16.mxu0 %v6083
    %6160 = vmatmul.mubr.bf16.gmra.mrb[0].mxu0 %v6082
    %v6161 = vpop.f32.mrb[0].mxu0
    %v6162 = vadd.f32 0.0, %v6161
    %v6163 = vpop.f32.mrb[0].mxu0
    %v6164 = vadd.f32 0.0, %v6163
    %v6165 = vpop.f32.mrb[0].mxu0
    %v6166 = vpop.f32.mrb[0].mxu0
    %6167 = vdwg.mxu0
    %6168 = vmatprep.subr.bf16.mxu0 %v4230
    %6169 = vmatpush1.bf16.msra.mxu0 %v4229
    %6170 = vmatprep.subr.bf16.mxu0 %v4238
    %6171 = vmatpush1.bf16.msra.mxu0 %v4237
    %6172 = vmatprep.subr.bf16.mxu0 %v4246
    %6173 = vmatpush1.bf16.msra.mxu0 %v4245
    %6174 = vmatprep.subr.bf16.mxu0 %v4254
    %6175 = vmatpush1.bf16.msra.mxu0 %v4253
    %6176 = vmatprep.subr.bf16.mxu0 %v4262
    %6177 = vmatpush1.bf16.msra.mxu0 %v4261
    %6178 = vmatprep.subr.bf16.mxu0 %v4270
    %6179 = vmatpush1.bf16.msra.mxu0 %v4269
    %6180 = vmatprep.subr.bf16.mxu0 %v4278
    %6181 = vmatpush1.bf16.msra.mxu0 %v4277
    %6182 = vmatprep.subr.bf16.mxu0 %v4286
    %6183 = vmatpush1.bf16.msra.mxu0 %v4285
    %6184 = vmatprep.subr.bf16.mxu0 %v4294
    %6185 = vmatpush1.bf16.msra.mxu0 %v4293
    %6186 = vmatprep.subr.bf16.mxu0 %v4302
    %6187 = vmatpush1.bf16.msra.mxu0 %v4301
    %6188 = vmatprep.subr.bf16.mxu0 %v4310
    %6189 = vmatpush1.bf16.msra.mxu0 %v4309
    %6190 = vmatprep.subr.bf16.mxu0 %v4318
    %6191 = vmatpush1.bf16.msra.mxu0 %v4317
    %6192 = vmatprep.subr.bf16.mxu0 %v4326
    %6193 = vmatpush1.bf16.msra.mxu0 %v4325
    %6194 = vmatprep.subr.bf16.mxu0 %v4334
    %6195 = vmatpush1.bf16.msra.mxu0 %v4333
    %6196 = vmatprep.subr.bf16.mxu0 %v4342
    %6197 = vmatpush1.bf16.msra.mxu0 %v4341
    %6198 = vmatprep.subr.bf16.mxu0 %v4350
    %6199 = vmatpush1.bf16.msra.mxu0 %v4349
    %6200 = vmatprep.mubr.bf16.mxu0 %v6083
    %6201 = vmatmul.mubr.bf16.gmra.mrb[0].mxu0 %v6082
    %v6202 = vpop.f32.mrb[0].mxu0
    %v6203 = vadd.f32 0.0, %v6202
    %v6204 = vpop.f32.mrb[0].mxu0
    %v6205 = vadd.f32 0.0, %v6204
    %v6206 = vpop.f32.mrb[0].mxu0
    %v6207 = vpop.f32.mrb[0].mxu0
    %6208 = vdwg.mxu0
    %6209 = vmatprep.subr.bf16.mxu0 %v4232
    %6210 = vmatpush1.bf16.msra.mxu0 %v4231
    %6211 = vmatprep.subr.bf16.mxu0 %v4240
    %6212 = vmatpush1.bf16.msra.mxu0 %v4239
    %6213 = vmatprep.subr.bf16.mxu0 %v4248
    %6214 = vmatpush1.bf16.msra.mxu0 %v4247
    %6215 = vmatprep.subr.bf16.mxu0 %v4256
    %6216 = vmatpush1.bf16.msra.mxu0 %v4255
    %6217 = vmatprep.subr.bf16.mxu0 %v4264
    %6218 = vmatpush1.bf16.msra.mxu0 %v4263
    %6219 = vmatprep.subr.bf16.mxu0 %v4272
    %6220 = vmatpush1.bf16.msra.mxu0 %v4271
    %6221 = vmatprep.subr.bf16.mxu0 %v4280
    %6222 = vmatpush1.bf16.msra.mxu0 %v4279
    %6223 = vmatprep.subr.bf16.mxu0 %v4288
    %6224 = vmatpush1.bf16.msra.mxu0 %v4287
    %6225 = vmatprep.subr.bf16.mxu0 %v4296
    %6226 = vmatpush1.bf16.msra.mxu0 %v4295
    %6227 = vmatprep.subr.bf16.mxu0 %v4304
    %6228 = vmatpush1.bf16.msra.mxu0 %v4303
    %6229 = vmatprep.subr.bf16.mxu0 %v4312
    %6230 = vmatpush1.bf16.msra.mxu0 %v4311
    %6231 = vmatprep.subr.bf16.mxu0 %v4320
    %6232 = vmatpush1.bf16.msra.mxu0 %v4319
    %6233 = vmatprep.subr.bf16.mxu0 %v4328
    %6234 = vmatpush1.bf16.msra.mxu0 %v4327
    %6235 = vmatprep.subr.bf16.mxu0 %v4336
    %6236 = vmatpush1.bf16.msra.mxu0 %v4335
    %6237 = vmatprep.subr.bf16.mxu0 %v4344
    %6238 = vmatpush1.bf16.msra.mxu0 %v4343
    %6239 = vmatprep.subr.bf16.mxu0 %v4352
    %6240 = vmatpush1.bf16.msra.mxu0 %v4351
    %6241 = vmatprep.mubr.bf16.mxu0 %v6083
    %6242 = vmatmul.mubr.bf16.gmra.mrb[0].mxu0 %v6082
    %v6243 = vpop.f32.mrb[0].mxu0
    %v6244 = vadd.f32 0.0, %v6243
    %v6245 = vpop.f32.mrb[0].mxu0
    %v6246 = vadd.f32 0.0, %v6245
    %v6247 = vpop.f32.mrb[0].mxu0
    %v6248 = vpop.f32.mrb[0].mxu0
    %6249 = vdwg.mxu0
    %v6250 = vadd.f32 %v6074, %v6121
    %v6251 = vadd.f32 %v6075, %v6123
    %v6252 = vadd.f32 %v6076, %v6162
    %v6253 = vadd.f32 %v6077, %v6164
    %v6254 = vadd.f32 %v6078, %v6203
    %v6255 = vadd.f32 %v6079, %v6205
    %v6256 = vadd.f32 %v6080, %v6244
    %v6257 = vadd.f32 %v6081, %v6246
    %v6266 = vrot.slane %v6066, 6
    %v6267 = vrot.slane %v6067, 6
    %v6268 = vrot.slane %v6068, 6
    %v6269 = vrot.slane %v6069, 6
    %v6270 = vrot.slane %v6070, 6
    %v6271 = vrot.slane %v6071, 6
    %v6272 = vrot.slane %v6072, 6
    %v6273 = vrot.slane %v6073, 6
    %v6290 = vrot.slane %v6250, 6
    %v6291 = vrot.slane %v6251, 6
    %v6292 = vrot.slane %v6252, 6
    %v6293 = vrot.slane %v6253, 6
    %v6294 = vrot.slane %v6254, 6
    %v6295 = vrot.slane %v6255, 6
    %v6296 = vrot.slane %v6256, 6
    %v6297 = vrot.slane %v6257, 6
    %v6306 = vsel %vm4761, %v6266, %v6290
    %v6307 = vsel %vm4761, %v6267, %v6291
    %v6308 = vsel %vm4761, %v6268, %v6292
    %v6309 = vsel %vm4761, %v6269, %v6293
    %v6310 = vsel %vm4761, %v6270, %v6294
    %v6311 = vsel %vm4761, %v6271, %v6295
    %v6312 = vsel %vm4761, %v6272, %v6296
    %v6313 = vsel %vm4761, %v6273, %v6297
    %v6314 = vxor.u32 %v6306, 2147483648
    %v6315 = vxor.u32 %v6307, 2147483648
    %v6316 = vmul.f32 %v6314, 1.442695
    %v6317 = vpow.pop %v6316
    %v6318 = vmul.f32 %v6315, 1.442695
    %v6319 = vpow.pop %v6318
    %v6320 = vadd.f32 %v6317, 1.0
    %v6321 = vadd.f32 %v6319, 1.0
    %v6322 = vrcp.pop %v6320
    %v6323 = vmul.f32 1.0, %v6322
    %v6324 = vrcp.pop %v6321
    %v6325 = vmul.f32 1.0, %v6324
    %v6326 = vxor.u32 %v6308, 2147483648
    %v6327 = vxor.u32 %v6309, 2147483648
    %v6328 = vmul.f32 %v6326, 1.442695
    %v6329 = vpow.pop %v6328
    %v6330 = vmul.f32 %v6327, 1.442695
    %v6331 = vpow.pop %v6330
    %v6332 = vadd.f32 %v6329, 1.0
    %v6333 = vadd.f32 %v6331, 1.0
    %v6334 = vrcp.pop %v6332
    %v6335 = vmul.f32 1.0, %v6334
    %v6336 = vrcp.pop %v6333
    %v6337 = vmul.f32 1.0, %v6336
    %v6338 = vtanh.pop %v6310
    %v6339 = vtanh.pop %v6311
    %v6340 = vxor.u32 %v6312, 2147483648
    %v6341 = vxor.u32 %v6313, 2147483648
    %v6342 = vmul.f32 %v6340, 1.442695
    %v6343 = vpow.pop %v6342
    %v6344 = vmul.f32 %v6341, 1.442695
    %v6345 = vpow.pop %v6344
    %v6346 = vadd.f32 %v6343, 1.0
    %v6347 = vadd.f32 %v6345, 1.0
    %v6348 = vrcp.pop %v6346
    %v6349 = vmul.f32 1.0, %v6348
    %v6350 = vrcp.pop %v6347
    %v6351 = vmul.f32 1.0, %v6350
    %v6352 = vmul.f32 %v6335, %v5848
    %v6353 = vmul.f32 %v6337, %v5849
    %v6354 = vmul.f32 %v6323, %v6338
    %v6355 = vmul.f32 %v6325, %v6339
    %v6356 = vadd.f32 %v6352, %v6354
    %v6357 = vadd.f32 %v6353, %v6355
    %v6358 = vtanh.pop %v6356
    %v6359 = vtanh.pop %v6357
    %v6360 = vmul.f32 %v6349, %v6358
    %v6361 = vmul.f32 %v6351, %v6359
    %v6362 = vpack.c.bf16 %v6360, %v6360
    %v6363 = vpack.c.bf16 %v6361, %v6361
    %v6366 = vrot.slane %v6362, 5
    %v6367 = vrot.slane %v6363, 5
    %6370 = vst [vmem:[#allocation3] sm:$0x8] %v6366
    %6371 = vst [vmem:[#allocation3 + $0x8] sm:$0x8] %v6367
    %6372 = vst [vmem:[#allocation4] sm:$0x10] %v6366
    %6373 = vst [vmem:[#allocation4 + $0x8] sm:$0x10] %v6367
    %v6374 = vld [vmem:[#allocation2 + $0x80] sm:$0x3]
    %v6375 = vld [vmem:[#allocation2 + $0x88] sm:$0x3]
    %v6376 = vld [vmem:[#allocation2 + $0x90] sm:$0x3]
    %v6377 = vld [vmem:[#allocation2 + $0x98] sm:$0x3]
    %v6378 = vld [vmem:[#allocation2 + $0xa0] sm:$0x3]
    %v6379 = vld [vmem:[#allocation2 + $0xa8] sm:$0x3]
    %v6380 = vld [vmem:[#allocation2 + $0xb0] sm:$0x3]
    %v6381 = vld [vmem:[#allocation2 + $0xb8] sm:$0x3]
    %6382 = vmatprep.subr.bf16.mxu0 %v4098
    %6383 = vmatpush1.bf16.msra.mxu0 %v4097
    %6384 = vmatprep.subr.bf16.mxu0 %v4106
    %6385 = vmatpush1.bf16.msra.mxu0 %v4105
    %6386 = vmatprep.subr.bf16.mxu0 %v4114
    %6387 = vmatpush1.bf16.msra.mxu0 %v4113
    %6388 = vmatprep.subr.bf16.mxu0 %v4122
    %6389 = vmatpush1.bf16.msra.mxu0 %v4121
    %6390 = vmatprep.subr.bf16.mxu0 %v4130
    %6391 = vmatpush1.bf16.msra.mxu0 %v4129
    %6392 = vmatprep.subr.bf16.mxu0 %v4138
    %6393 = vmatpush1.bf16.msra.mxu0 %v4137
    %6394 = vmatprep.subr.bf16.mxu0 %v4146
    %6395 = vmatpush1.bf16.msra.mxu0 %v4145
    %6396 = vmatprep.subr.bf16.mxu0 %v4154
    %6397 = vmatpush1.bf16.msra.mxu0 %v4153
    %6398 = vmatprep.subr.bf16.mxu0 %v4162
    %6399 = vmatpush1.bf16.msra.mxu0 %v4161
    %6400 = vmatprep.subr.bf16.mxu0 %v4170
    %6401 = vmatpush1.bf16.msra.mxu0 %v4169
    %6402 = vmatprep.subr.bf16.mxu0 %v4178
    %6403 = vmatpush1.bf16.msra.mxu0 %v4177
    %6404 = vmatprep.subr.bf16.mxu0 %v4186
    %6405 = vmatpush1.bf16.msra.mxu0 %v4185
    %6406 = vmatprep.subr.bf16.mxu0 %v4194
    %6407 = vmatpush1.bf16.msra.mxu0 %v4193
    %6408 = vmatprep.subr.bf16.mxu0 %v4202
    %6409 = vmatpush1.bf16.msra.mxu0 %v4201
    %6410 = vmatprep.subr.bf16.mxu0 %v4210
    %6411 = vmatpush1.bf16.msra.mxu0 %v4209
    %6412 = vmatprep.subr.bf16.mxu0 %v4218
    %6413 = vmatpush1.bf16.msra.mxu0 %v4217
    %6414 = vmatprep.mubr.bf16.mxu0 %v6363
    %6415 = vmatmul.mubr.bf16.gmra.mrb[0].mxu0 %v6362
    %v6416 = vpop.f32.mrb[0].mxu0
    %v6417 = vadd.f32 0.0, %v6416
    %v6418 = vpop.f32.mrb[0].mxu0
    %v6419 = vadd.f32 0.0, %v6418
    %v6420 = vpop.f32.mrb[0].mxu0
    %v6421 = vpop.f32.mrb[0].mxu0
    %6422 = vdwg.mxu0
    %6423 = vmatprep.subr.bf16.mxu0 %v4100
    %6424 = vmatpush1.bf16.msra.mxu0 %v4099
    %6425 = vmatprep.subr.bf16.mxu0 %v4108
    %6426 = vmatpush1.bf16.msra.mxu0 %v4107
    %6427 = vmatprep.subr.bf16.mxu0 %v4116
    %6428 = vmatpush1.bf16.msra.mxu0 %v4115
    %6429 = vmatprep.subr.bf16.mxu0 %v4124
    %6430 = vmatpush1.bf16.msra.mxu0 %v4123
    %6431 = vmatprep.subr.bf16.mxu0 %v4132
    %6432 = vmatpush1.bf16.msra.mxu0 %v4131
    %6433 = vmatprep.subr.bf16.mxu0 %v4140
    %6434 = vmatpush1.bf16.msra.mxu0 %v4139
    %6435 = vmatprep.subr.bf16.mxu0 %v4148
    %6436 = vmatpush1.bf16.msra.mxu0 %v4147
    %6437 = vmatprep.subr.bf16.mxu0 %v4156
    %6438 = vmatpush1.bf16.msra.mxu0 %v4155
    %6439 = vmatprep.subr.bf16.mxu0 %v4164
    %6440 = vmatpush1.bf16.msra.mxu0 %v4163
    %6441 = vmatprep.subr.bf16.mxu0 %v4172
    %6442 = vmatpush1.bf16.msra.mxu0 %v4171
    %6443 = vmatprep.subr.bf16.mxu0 %v4180
    %6444 = vmatpush1.bf16.msra.mxu0 %v4179
    %6445 = vmatprep.subr.bf16.mxu0 %v4188
    %6446 = vmatpush1.bf16.msra.mxu0 %v4187
    %6447 = vmatprep.subr.bf16.mxu0 %v4196
    %6448 = vmatpush1.bf16.msra.mxu0 %v4195
    %6449 = vmatprep.subr.bf16.mxu0 %v4204
    %6450 = vmatpush1.bf16.msra.mxu0 %v4203
    %6451 = vmatprep.subr.bf16.mxu0 %v4212
    %6452 = vmatpush1.bf16.msra.mxu0 %v4211
    %6453 = vmatprep.subr.bf16.mxu0 %v4220
    %6454 = vmatpush1.bf16.msra.mxu0 %v4219
    %6455 = vmatprep.mubr.bf16.mxu0 %v6363
    %6456 = vmatmul.mubr.bf16.gmra.mrb[0].mxu0 %v6362
    %v6457 = vpop.f32.mrb[0].mxu0
    %v6458 = vadd.f32 0.0, %v6457
    %v6459 = vpop.f32.mrb[0].mxu0
    %v6460 = vadd.f32 0.0, %v6459
    %v6461 = vpop.f32.mrb[0].mxu0
    %v6462 = vpop.f32.mrb[0].mxu0
    %6463 = vdwg.mxu0
    %6464 = vmatprep.subr.bf16.mxu0 %v4102
    %6465 = vmatpush1.bf16.msra.mxu0 %v4101
    %6466 = vmatprep.subr.bf16.mxu0 %v4110
    %6467 = vmatpush1.bf16.msra.mxu0 %v4109
    %6468 = vmatprep.subr.bf16.mxu0 %v4118
    %6469 = vmatpush1.bf16.msra.mxu0 %v4117
    %6470 = vmatprep.subr.bf16.mxu0 %v4126
    %6471 = vmatpush1.bf16.msra.mxu0 %v4125
    %6472 = vmatprep.subr.bf16.mxu0 %v4134
    %6473 = vmatpush1.bf16.msra.mxu0 %v4133
    %6474 = vmatprep.subr.bf16.mxu0 %v4142
    %6475 = vmatpush1.bf16.msra.mxu0 %v4141
    %6476 = vmatprep.subr.bf16.mxu0 %v4150
    %6477 = vmatpush1.bf16.msra.mxu0 %v4149
    %6478 = vmatprep.subr.bf16.mxu0 %v4158
    %6479 = vmatpush1.bf16.msra.mxu0 %v4157
    %6480 = vmatprep.subr.bf16.mxu0 %v4166
    %6481 = vmatpush1.bf16.msra.mxu0 %v4165
    %6482 = vmatprep.subr.bf16.mxu0 %v4174
    %6483 = vmatpush1.bf16.msra.mxu0 %v4173
    %6484 = vmatprep.subr.bf16.mxu0 %v4182
    %6485 = vmatpush1.bf16.msra.mxu0 %v4181
    %6486 = vmatprep.subr.bf16.mxu0 %v4190
    %6487 = vmatpush1.bf16.msra.mxu0 %v4189
    %6488 = vmatprep.subr.bf16.mxu0 %v4198
    %6489 = vmatpush1.bf16.msra.mxu0 %v4197
    %6490 = vmatprep.subr.bf16.mxu0 %v4206
    %6491 = vmatpush1.bf16.msra.mxu0 %v4205
    %6492 = vmatprep.subr.bf16.mxu0 %v4214
    %6493 = vmatpush1.bf16.msra.mxu0 %v4213
    %6494 = vmatprep.subr.bf16.mxu0 %v4222
    %6495 = vmatpush1.bf16.msra.mxu0 %v4221
    %6496 = vmatprep.mubr.bf16.mxu0 %v6363
    %6497 = vmatmul.mubr.bf16.gmra.mrb[0].mxu0 %v6362
    %v6498 = vpop.f32.mrb[0].mxu0
    %v6499 = vadd.f32 0.0, %v6498
    %v6500 = vpop.f32.mrb[0].mxu0
    %v6501 = vadd.f32 0.0, %v6500
    %v6502 = vpop.f32.mrb[0].mxu0
    %v6503 = vpop.f32.mrb[0].mxu0
    %6504 = vdwg.mxu0
    %6505 = vmatprep.subr.bf16.mxu0 %v4104
    %6506 = vmatpush1.bf16.msra.mxu0 %v4103
    %6507 = vmatprep.subr.bf16.mxu0 %v4112
    %6508 = vmatpush1.bf16.msra.mxu0 %v4111
    %6509 = vmatprep.subr.bf16.mxu0 %v4120
    %6510 = vmatpush1.bf16.msra.mxu0 %v4119
    %6511 = vmatprep.subr.bf16.mxu0 %v4128
    %6512 = vmatpush1.bf16.msra.mxu0 %v4127
    %6513 = vmatprep.subr.bf16.mxu0 %v4136
    %6514 = vmatpush1.bf16.msra.mxu0 %v4135
    %6515 = vmatprep.subr.bf16.mxu0 %v4144
    %6516 = vmatpush1.bf16.msra.mxu0 %v4143
    %6517 = vmatprep.subr.bf16.mxu0 %v4152
    %6518 = vmatpush1.bf16.msra.mxu0 %v4151
    %6519 = vmatprep.subr.bf16.mxu0 %v4160
    %6520 = vmatpush1.bf16.msra.mxu0 %v4159
    %6521 = vmatprep.subr.bf16.mxu0 %v4168
    %6522 = vmatpush1.bf16.msra.mxu0 %v4167
    %6523 = vmatprep.subr.bf16.mxu0 %v4176
    %6524 = vmatpush1.bf16.msra.mxu0 %v4175
    %6525 = vmatprep.subr.bf16.mxu0 %v4184
    %6526 = vmatpush1.bf16.msra.mxu0 %v4183
    %6527 = vmatprep.subr.bf16.mxu0 %v4192
    %6528 = vmatpush1.bf16.msra.mxu0 %v4191
    %6529 = vmatprep.subr.bf16.mxu0 %v4200
    %6530 = vmatpush1.bf16.msra.mxu0 %v4199
    %6531 = vmatprep.subr.bf16.mxu0 %v4208
    %6532 = vmatpush1.bf16.msra.mxu0 %v4207
    %6533 = vmatprep.subr.bf16.mxu0 %v4216
    %6534 = vmatpush1.bf16.msra.mxu0 %v4215
    %6535 = vmatprep.subr.bf16.mxu0 %v4224
    %6536 = vmatpush1.bf16.msra.mxu0 %v4223
    %6537 = vmatprep.mubr.bf16.mxu0 %v6363
    %6538 = vmatmul.mubr.bf16.gmra.mrb[0].mxu0 %v6362
    %v6539 = vpop.f32.mrb[0].mxu0
    %v6540 = vadd.f32 0.0, %v6539
    %v6541 = vpop.f32.mrb[0].mxu0
    %v6542 = vadd.f32 0.0, %v6541
    %v6543 = vpop.f32.mrb[0].mxu0
    %v6544 = vpop.f32.mrb[0].mxu0
    %6545 = vdwg.mxu0
    %v6546 = vadd.f32 %v6374, %v6417
    %v6547 = vadd.f32 %v6375, %v6419
    %v6548 = vadd.f32 %v6376, %v6458
    %v6549 = vadd.f32 %v6377, %v6460
    %v6550 = vadd.f32 %v6378, %v6499
    %v6551 = vadd.f32 %v6379, %v6501
    %v6552 = vadd.f32 %v6380, %v6540
    %v6553 = vadd.f32 %v6381, %v6542
    %v6554 = vld [vmem:[#allocation2 + $0x40] sm:$0xc0]
    %v6555 = vld [vmem:[#allocation2 + $0x48] sm:$0xc0]
    %v6556 = vld [vmem:[#allocation2 + $0x50] sm:$0xc0]
    %v6557 = vld [vmem:[#allocation2 + $0x58] sm:$0xc0]
    %v6558 = vld [vmem:[#allocation2 + $0x60] sm:$0xc0]
    %v6559 = vld [vmem:[#allocation2 + $0x68] sm:$0xc0]
    %v6560 = vld [vmem:[#allocation2 + $0x70] sm:$0xc0]
    %v6561 = vld [vmem:[#allocation2 + $0x78] sm:$0xc0]
    %v6562 = vrot.slane %v6362, 1
    %v6563 = vrot.slane %v6363, 1
    %6566 = vmatprep.subr.bf16.mxu0 %v4226
    %6567 = vmatpush1.bf16.msra.mxu0 %v4225
    %6568 = vmatprep.subr.bf16.mxu0 %v4234
    %6569 = vmatpush1.bf16.msra.mxu0 %v4233
    %6570 = vmatprep.subr.bf16.mxu0 %v4242
    %6571 = vmatpush1.bf16.msra.mxu0 %v4241
    %6572 = vmatprep.subr.bf16.mxu0 %v4250
    %6573 = vmatpush1.bf16.msra.mxu0 %v4249
    %6574 = vmatprep.subr.bf16.mxu0 %v4258
    %6575 = vmatpush1.bf16.msra.mxu0 %v4257
    %6576 = vmatprep.subr.bf16.mxu0 %v4266
    %6577 = vmatpush1.bf16.msra.mxu0 %v4265
    %6578 = vmatprep.subr.bf16.mxu0 %v4274
    %6579 = vmatpush1.bf16.msra.mxu0 %v4273
    %6580 = vmatprep.subr.bf16.mxu0 %v4282
    %6581 = vmatpush1.bf16.msra.mxu0 %v4281
    %6582 = vmatprep.subr.bf16.mxu0 %v4290
    %6583 = vmatpush1.bf16.msra.mxu0 %v4289
    %6584 = vmatprep.subr.bf16.mxu0 %v4298
    %6585 = vmatpush1.bf16.msra.mxu0 %v4297
    %6586 = vmatprep.subr.bf16.mxu0 %v4306
    %6587 = vmatpush1.bf16.msra.mxu0 %v4305
    %6588 = vmatprep.subr.bf16.mxu0 %v4314
    %6589 = vmatpush1.bf16.msra.mxu0 %v4313
    %6590 = vmatprep.subr.bf16.mxu0 %v4322
    %6591 = vmatpush1.bf16.msra.mxu0 %v4321
    %6592 = vmatprep.subr.bf16.mxu0 %v4330
    %6593 = vmatpush1.bf16.msra.mxu0 %v4329
    %6594 = vmatprep.subr.bf16.mxu0 %v4338
    %6595 = vmatpush1.bf16.msra.mxu0 %v4337
    %6596 = vmatprep.subr.bf16.mxu0 %v4346
    %6597 = vmatpush1.bf16.msra.mxu0 %v4345
    %6598 = vmatprep.mubr.bf16.mxu0 %v6563
    %6599 = vmatmul.mubr.bf16.gmra.mrb[0].mxu0 %v6562
    %v6600 = vpop.f32.mrb[0].mxu0
    %v6601 = vadd.f32 0.0, %v6600
    %v6602 = vpop.f32.mrb[0].mxu0
    %v6603 = vadd.f32 0.0, %v6602
    %v6604 = vpop.f32.mrb[0].mxu0
    %v6605 = vpop.f32.mrb[0].mxu0
    %6606 = vdwg.mxu0
    %6607 = vmatprep.subr.bf16.mxu0 %v4228
    %6608 = vmatpush1.bf16.msra.mxu0 %v4227
    %6609 = vmatprep.subr.bf16.mxu0 %v4236
    %6610 = vmatpush1.bf16.msra.mxu0 %v4235
    %6611 = vmatprep.subr.bf16.mxu0 %v4244
    %6612 = vmatpush1.bf16.msra.mxu0 %v4243
    %6613 = vmatprep.subr.bf16.mxu0 %v4252
    %6614 = vmatpush1.bf16.msra.mxu0 %v4251
    %6615 = vmatprep.subr.bf16.mxu0 %v4260
    %6616 = vmatpush1.bf16.msra.mxu0 %v4259
    %6617 = vmatprep.subr.bf16.mxu0 %v4268
    %6618 = vmatpush1.bf16.msra.mxu0 %v4267
    %6619 = vmatprep.subr.bf16.mxu0 %v4276
    %6620 = vmatpush1.bf16.msra.mxu0 %v4275
    %6621 = vmatprep.subr.bf16.mxu0 %v4284
    %6622 = vmatpush1.bf16.msra.mxu0 %v4283
    %6623 = vmatprep.subr.bf16.mxu0 %v4292
    %6624 = vmatpush1.bf16.msra.mxu0 %v4291
    %6625 = vmatprep.subr.bf16.mxu0 %v4300
    %6626 = vmatpush1.bf16.msra.mxu0 %v4299
    %6627 = vmatprep.subr.bf16.mxu0 %v4308
    %6628 = vmatpush1.bf16.msra.mxu0 %v4307
    %6629 = vmatprep.subr.bf16.mxu0 %v4316
    %6630 = vmatpush1.bf16.msra.mxu0 %v4315
    %6631 = vmatprep.subr.bf16.mxu0 %v4324
    %6632 = vmatpush1.bf16.msra.mxu0 %v4323
    %6633 = vmatprep.subr.bf16.mxu0 %v4332
    %6634 = vmatpush1.bf16.msra.mxu0 %v4331
    %6635 = vmatprep.subr.bf16.mxu0 %v4340
    %6636 = vmatpush1.bf16.msra.mxu0 %v4339
    %6637 = vmatprep.subr.bf16.mxu0 %v4348
    %6638 = vmatpush1.bf16.msra.mxu0 %v4347
    %6639 = vmatprep.mubr.bf16.mxu0 %v6563
    %6640 = vmatmul.mubr.bf16.gmra.mrb[0].mxu0 %v6562
    %v6641 = vpop.f32.mrb[0].mxu0
    %v6642 = vadd.f32 0.0, %v6641
    %v6643 = vpop.f32.mrb[0].mxu0
    %v6644 = vadd.f32 0.0, %v6643
    %v6645 = vpop.f32.mrb[0].mxu0
    %v6646 = vpop.f32.mrb[0].mxu0
    %6647 = vdwg.mxu0
    %6648 = vmatprep.subr.bf16.mxu0 %v4230
    %6649 = vmatpush1.bf16.msra.mxu0 %v4229
    %6650 = vmatprep.subr.bf16.mxu0 %v4238
    %6651 = vmatpush1.bf16.msra.mxu0 %v4237
    %6652 = vmatprep.subr.bf16.mxu0 %v4246
    %6653 = vmatpush1.bf16.msra.mxu0 %v4245
    %6654 = vmatprep.subr.bf16.mxu0 %v4254
    %6655 = vmatpush1.bf16.msra.mxu0 %v4253
    %6656 = vmatprep.subr.bf16.mxu0 %v4262
    %6657 = vmatpush1.bf16.msra.mxu0 %v4261
    %6658 = vmatprep.subr.bf16.mxu0 %v4270
    %6659 = vmatpush1.bf16.msra.mxu0 %v4269
    %6660 = vmatprep.subr.bf16.mxu0 %v4278
    %6661 = vmatpush1.bf16.msra.mxu0 %v4277
    %6662 = vmatprep.subr.bf16.mxu0 %v4286
    %6663 = vmatpush1.bf16.msra.mxu0 %v4285
    %6664 = vmatprep.subr.bf16.mxu0 %v4294
    %6665 = vmatpush1.bf16.msra.mxu0 %v4293
    %6666 = vmatprep.subr.bf16.mxu0 %v4302
    %6667 = vmatpush1.bf16.msra.mxu0 %v4301
    %6668 = vmatprep.subr.bf16.mxu0 %v4310
    %6669 = vmatpush1.bf16.msra.mxu0 %v4309
    %6670 = vmatprep.subr.bf16.mxu0 %v4318
    %6671 = vmatpush1.bf16.msra.mxu0 %v4317
    %6672 = vmatprep.subr.bf16.mxu0 %v4326
    %6673 = vmatpush1.bf16.msra.mxu0 %v4325
    %6674 = vmatprep.subr.bf16.mxu0 %v4334
    %6675 = vmatpush1.bf16.msra.mxu0 %v4333
    %6676 = vmatprep.subr.bf16.mxu0 %v4342
    %6677 = vmatpush1.bf16.msra.mxu0 %v4341
    %6678 = vmatprep.subr.bf16.mxu0 %v4350
    %6679 = vmatpush1.bf16.msra.mxu0 %v4349
    %6680 = vmatprep.mubr.bf16.mxu0 %v6563
    %6681 = vmatmul.mubr.bf16.gmra.mrb[0].mxu0 %v6562
    %v6682 = vpop.f32.mrb[0].mxu0
    %v6683 = vadd.f32 0.0, %v6682
    %v6684 = vpop.f32.mrb[0].mxu0
    %v6685 = vadd.f32 0.0, %v6684
    %v6686 = vpop.f32.mrb[0].mxu0
    %v6687 = vpop.f32.mrb[0].mxu0
    %6688 = vdwg.mxu0
    %6689 = vmatprep.subr.bf16.mxu0 %v4232
    %6690 = vmatpush1.bf16.msra.mxu0 %v4231
    %6691 = vmatprep.subr.bf16.mxu0 %v4240
    %6692 = vmatpush1.bf16.msra.mxu0 %v4239
    %6693 = vmatprep.subr.bf16.mxu0 %v4248
    %6694 = vmatpush1.bf16.msra.mxu0 %v4247
    %6695 = vmatprep.subr.bf16.mxu0 %v4256
    %6696 = vmatpush1.bf16.msra.mxu0 %v4255
    %6697 = vmatprep.subr.bf16.mxu0 %v4264
    %6698 = vmatpush1.bf16.msra.mxu0 %v4263
    %6699 = vmatprep.subr.bf16.mxu0 %v4272
    %6700 = vmatpush1.bf16.msra.mxu0 %v4271
    %6701 = vmatprep.subr.bf16.mxu0 %v4280
    %6702 = vmatpush1.bf16.msra.mxu0 %v4279
    %6703 = vmatprep.subr.bf16.mxu0 %v4288
    %6704 = vmatpush1.bf16.msra.mxu0 %v4287
    %6705 = vmatprep.subr.bf16.mxu0 %v4296
    %6706 = vmatpush1.bf16.msra.mxu0 %v4295
    %6707 = vmatprep.subr.bf16.mxu0 %v4304
    %6708 = vmatpush1.bf16.msra.mxu0 %v4303
    %6709 = vmatprep.subr.bf16.mxu0 %v4312
    %6710 = vmatpush1.bf16.msra.mxu0 %v4311
    %6711 = vmatprep.subr.bf16.mxu0 %v4320
    %6712 = vmatpush1.bf16.msra.mxu0 %v4319
    %6713 = vmatprep.subr.bf16.mxu0 %v4328
    %6714 = vmatpush1.bf16.msra.mxu0 %v4327
    %6715 = vmatprep.subr.bf16.mxu0 %v4336
    %6716 = vmatpush1.bf16.msra.mxu0 %v4335
    %6717 = vmatprep.subr.bf16.mxu0 %v4344
    %6718 = vmatpush1.bf16.msra.mxu0 %v4343
    %6719 = vmatprep.subr.bf16.mxu0 %v4352
    %6720 = vmatpush1.bf16.msra.mxu0 %v4351
    %6721 = vmatprep.mubr.bf16.mxu0 %v6563
    %6722 = vmatmul.mubr.bf16.gmra.mrb[0].mxu0 %v6562
    %v6723 = vpop.f32.mrb[0].mxu0
    %v6724 = vadd.f32 0.0, %v6723
    %v6725 = vpop.f32.mrb[0].mxu0
    %v6726 = vadd.f32 0.0, %v6725
    %v6727 = vpop.f32.mrb[0].mxu0
    %v6728 = vpop.f32.mrb[0].mxu0
    %6729 = vdwg.mxu0
    %v6738 = vrot.slane %v6601, 2
    %v6739 = vrot.slane %v6603, 2
    %v6740 = vrot.slane %v6642, 2
    %v6741 = vrot.slane %v6644, 2
    %v6742 = vrot.slane %v6683, 2
    %v6743 = vrot.slane %v6685, 2
    %v6744 = vrot.slane %v6724, 2
    %v6745 = vrot.slane %v6726, 2
    %v6754 = vadd.f32 %v6554, %v6738
    %v6755 = vadd.f32 %v6555, %v6739
    %v6756 = vadd.f32 %v6556, %v6740
    %v6757 = vadd.f32 %v6557, %v6741
    %v6758 = vadd.f32 %v6558, %v6742
    %v6759 = vadd.f32 %v6559, %v6743
    %v6760 = vadd.f32 %v6560, %v6744
    %v6761 = vadd.f32 %v6561, %v6745
    %v6770 = vrot.slane %v6754, 4
    %v6771 = vrot.slane %v6755, 4
    %v6772 = vrot.slane %v6756, 4
    %v6773 = vrot.slane %v6757, 4
    %v6774 = vrot.slane %v6758, 4
    %v6775 = vrot.slane %v6759, 4
    %v6776 = vrot.slane %v6760, 4
    %v6777 = vrot.slane %v6761, 4
    %v6786 = vsel %vm4761, %v6546, %v6770
    %v6787 = vsel %vm4761, %v6547, %v6771
    %v6788 = vsel %vm4761, %v6548, %v6772
    %v6789 = vsel %vm4761, %v6549, %v6773
    %v6790 = vsel %vm4761, %v6550, %v6774
    %v6791 = vsel %vm4761, %v6551, %v6775
    %v6792 = vsel %vm4761, %v6552, %v6776
    %v6793 = vsel %vm4761, %v6553, %v6777
    %v6794 = vxor.u32 %v6786, 2147483648
    %v6795 = vxor.u32 %v6787, 2147483648
    %v6796 = vmul.f32 %v6794, 1.442695
    %v6797 = vpow.pop %v6796
    %v6798 = vmul.f32 %v6795, 1.442695
    %v6799 = vpow.pop %v6798
    %v6800 = vadd.f32 %v6797, 1.0
    %v6801 = vadd.f32 %v6799, 1.0
    %v6802 = vrcp.pop %v6800
    %v6803 = vmul.f32 1.0, %v6802
    %v6804 = vrcp.pop %v6801
    %v6805 = vmul.f32 1.0, %v6804
    %v6806 = vxor.u32 %v6788, 2147483648
    %v6807 = vxor.u32 %v6789, 2147483648
    %v6808 = vmul.f32 %v6806, 1.442695
    %v6809 = vpow.pop %v6808
    %v6810 = vmul.f32 %v6807, 1.442695
    %v6811 = vpow.pop %v6810
    %v6812 = vadd.f32 %v6809, 1.0
    %v6813 = vadd.f32 %v6811, 1.0
    %v6814 = vrcp.pop %v6812
    %v6815 = vmul.f32 1.0, %v6814
    %v6816 = vrcp.pop %v6813
    %v6817 = vmul.f32 1.0, %v6816
    %v6818 = vtanh.pop %v6790
    %v6819 = vtanh.pop %v6791
    %v6820 = vxor.u32 %v6792, 2147483648
    %v6821 = vxor.u32 %v6793, 2147483648
    %v6822 = vmul.f32 %v6820, 1.442695
    %v6823 = vpow.pop %v6822
    %v6824 = vmul.f32 %v6821, 1.442695
    %v6825 = vpow.pop %v6824
    %v6826 = vadd.f32 %v6823, 1.0
    %v6827 = vadd.f32 %v6825, 1.0
    %v6828 = vrcp.pop %v6826
    %v6829 = vmul.f32 1.0, %v6828
    %v6830 = vrcp.pop %v6827
    %v6831 = vmul.f32 1.0, %v6830
    %v6832 = vmul.f32 %v6815, %v6356
    %v6833 = vmul.f32 %v6817, %v6357
    %v6834 = vmul.f32 %v6803, %v6818
    %v6835 = vmul.f32 %v6805, %v6819
    %v6836 = vadd.f32 %v6832, %v6834
    %v6837 = vadd.f32 %v6833, %v6835
    %v6838 = vtanh.pop %v6836
    %v6839 = vtanh.pop %v6837
    %v6840 = vmul.f32 %v6829, %v6838
    %v6841 = vmul.f32 %v6831, %v6839
    %v6842 = vpack.c.bf16 %v6840, %v6840
    %v6843 = vpack.c.bf16 %v6841, %v6841
    %v6846 = vrot.slane %v6842, 4
    %v6847 = vrot.slane %v6843, 4
    %6850 = vst [vmem:[#allocation3] sm:$0x10] %v6846
    %6851 = vst [vmem:[#allocation3 + $0x8] sm:$0x10] %v6847
    %v6852 = vrot.slane %v6842, 6
    %v6853 = vrot.slane %v6843, 6
    %6856 = vst [vmem:[#allocation4] sm:$0x8] %v6852
    %6857 = vst [vmem:[#allocation4 + $0x8] sm:$0x8] %v6853
    %v6858 = vld [vmem:[#allocation2 + $0x80] sm:$0xc]
    %v6859 = vld [vmem:[#allocation2 + $0x88] sm:$0xc]
    %v6860 = vld [vmem:[#allocation2 + $0x90] sm:$0xc]
    %v6861 = vld [vmem:[#allocation2 + $0x98] sm:$0xc]
    %v6862 = vld [vmem:[#allocation2 + $0xa0] sm:$0xc]
    %v6863 = vld [vmem:[#allocation2 + $0xa8] sm:$0xc]
    %v6864 = vld [vmem:[#allocation2 + $0xb0] sm:$0xc]
    %v6865 = vld [vmem:[#allocation2 + $0xb8] sm:$0xc]
    %6866 = vmatprep.subr.bf16.mxu0 %v4098
    %6867 = vmatpush1.bf16.msra.mxu0 %v4097
    %6868 = vmatprep.subr.bf16.mxu0 %v4106
    %6869 = vmatpush1.bf16.msra.mxu0 %v4105
    %6870 = vmatprep.subr.bf16.mxu0 %v4114
    %6871 = vmatpush1.bf16.msra.mxu0 %v4113
    %6872 = vmatprep.subr.bf16.mxu0 %v4122
    %6873 = vmatpush1.bf16.msra.mxu0 %v4121
    %6874 = vmatprep.subr.bf16.mxu0 %v4130
    %6875 = vmatpush1.bf16.msra.mxu0 %v4129
    %6876 = vmatprep.subr.bf16.mxu0 %v4138
    %6877 = vmatpush1.bf16.msra.mxu0 %v4137
    %6878 = vmatprep.subr.bf16.mxu0 %v4146
    %6879 = vmatpush1.bf16.msra.mxu0 %v4145
    %6880 = vmatprep.subr.bf16.mxu0 %v4154
    %6881 = vmatpush1.bf16.msra.mxu0 %v4153
    %6882 = vmatprep.subr.bf16.mxu0 %v4162
    %6883 = vmatpush1.bf16.msra.mxu0 %v4161
    %6884 = vmatprep.subr.bf16.mxu0 %v4170
    %6885 = vmatpush1.bf16.msra.mxu0 %v4169
    %6886 = vmatprep.subr.bf16.mxu0 %v4178
    %6887 = vmatpush1.bf16.msra.mxu0 %v4177
    %6888 = vmatprep.subr.bf16.mxu0 %v4186
    %6889 = vmatpush1.bf16.msra.mxu0 %v4185
    %6890 = vmatprep.subr.bf16.mxu0 %v4194
    %6891 = vmatpush1.bf16.msra.mxu0 %v4193
    %6892 = vmatprep.subr.bf16.mxu0 %v4202
    %6893 = vmatpush1.bf16.msra.mxu0 %v4201
    %6894 = vmatprep.subr.bf16.mxu0 %v4210
    %6895 = vmatpush1.bf16.msra.mxu0 %v4209
    %6896 = vmatprep.subr.bf16.mxu0 %v4218
    %6897 = vmatpush1.bf16.msra.mxu0 %v4217
    %6898 = vmatprep.mubr.bf16.mxu0 %v6843
    %6899 = vmatmul.mubr.bf16.gmra.mrb[0].mxu0 %v6842
    %v6900 = vpop.f32.mrb[0].mxu0
    %v6901 = vadd.f32 0.0, %v6900
    %v6902 = vpop.f32.mrb[0].mxu0
    %v6903 = vadd.f32 0.0, %v6902
    %v6904 = vpop.f32.mrb[0].mxu0
    %v6905 = vpop.f32.mrb[0].mxu0
    %6906 = vdwg.mxu0
    %6907 = vmatprep.subr.bf16.mxu0 %v4100
    %6908 = vmatpush1.bf16.msra.mxu0 %v4099
    %6909 = vmatprep.subr.bf16.mxu0 %v4108
    %6910 = vmatpush1.bf16.msra.mxu0 %v4107
    %6911 = vmatprep.subr.bf16.mxu0 %v4116
    %6912 = vmatpush1.bf16.msra.mxu0 %v4115
    %6913 = vmatprep.subr.bf16.mxu0 %v4124
    %6914 = vmatpush1.bf16.msra.mxu0 %v4123
    %6915 = vmatprep.subr.bf16.mxu0 %v4132
    %6916 = vmatpush1.bf16.msra.mxu0 %v4131
    %6917 = vmatprep.subr.bf16.mxu0 %v4140
    %6918 = vmatpush1.bf16.msra.mxu0 %v4139
    %6919 = vmatprep.subr.bf16.mxu0 %v4148
    %6920 = vmatpush1.bf16.msra.mxu0 %v4147
    %6921 = vmatprep.subr.bf16.mxu0 %v4156
    %6922 = vmatpush1.bf16.msra.mxu0 %v4155
    %6923 = vmatprep.subr.bf16.mxu0 %v4164
    %6924 = vmatpush1.bf16.msra.mxu0 %v4163
    %6925 = vmatprep.subr.bf16.mxu0 %v4172
    %6926 = vmatpush1.bf16.msra.mxu0 %v4171
    %6927 = vmatprep.subr.bf16.mxu0 %v4180
    %6928 = vmatpush1.bf16.msra.mxu0 %v4179
    %6929 = vmatprep.subr.bf16.mxu0 %v4188
    %6930 = vmatpush1.bf16.msra.mxu0 %v4187
    %6931 = vmatprep.subr.bf16.mxu0 %v4196
    %6932 = vmatpush1.bf16.msra.mxu0 %v4195
    %6933 = vmatprep.subr.bf16.mxu0 %v4204
    %6934 = vmatpush1.bf16.msra.mxu0 %v4203
    %6935 = vmatprep.subr.bf16.mxu0 %v4212
    %6936 = vmatpush1.bf16.msra.mxu0 %v4211
    %6937 = vmatprep.subr.bf16.mxu0 %v4220
    %6938 = vmatpush1.bf16.msra.mxu0 %v4219
    %6939 = vmatprep.mubr.bf16.mxu0 %v6843
    %6940 = vmatmul.mubr.bf16.gmra.mrb[0].mxu0 %v6842
    %v6941 = vpop.f32.mrb[0].mxu0
    %v6942 = vadd.f32 0.0, %v6941
    %v6943 = vpop.f32.mrb[0].mxu0
    %v6944 = vadd.f32 0.0, %v6943
    %v6945 = vpop.f32.mrb[0].mxu0
    %v6946 = vpop.f32.mrb[0].mxu0
    %6947 = vdwg.mxu0
    %6948 = vmatprep.subr.bf16.mxu0 %v4102
    %6949 = vmatpush1.bf16.msra.mxu0 %v4101
    %6950 = vmatprep.subr.bf16.mxu0 %v4110
    %6951 = vmatpush1.bf16.msra.mxu0 %v4109
    %6952 = vmatprep.subr.bf16.mxu0 %v4118
    %6953 = vmatpush1.bf16.msra.mxu0 %v4117
    %6954 = vmatprep.subr.bf16.mxu0 %v4126
    %6955 = vmatpush1.bf16.msra.mxu0 %v4125
    %6956 = vmatprep.subr.bf16.mxu0 %v4134
    %6957 = vmatpush1.bf16.msra.mxu0 %v4133
    %6958 = vmatprep.subr.bf16.mxu0 %v4142
    %6959 = vmatpush1.bf16.msra.mxu0 %v4141
    %6960 = vmatprep.subr.bf16.mxu0 %v4150
    %6961 = vmatpush1.bf16.msra.mxu0 %v4149
    %6962 = vmatprep.subr.bf16.mxu0 %v4158
    %6963 = vmatpush1.bf16.msra.mxu0 %v4157
    %6964 = vmatprep.subr.bf16.mxu0 %v4166
    %6965 = vmatpush1.bf16.msra.mxu0 %v4165
    %6966 = vmatprep.subr.bf16.mxu0 %v4174
    %6967 = vmatpush1.bf16.msra.mxu0 %v4173
    %6968 = vmatprep.subr.bf16.mxu0 %v4182
    %6969 = vmatpush1.bf16.msra.mxu0 %v4181
    %6970 = vmatprep.subr.bf16.mxu0 %v4190
    %6971 = vmatpush1.bf16.msra.mxu0 %v4189
    %6972 = vmatprep.subr.bf16.mxu0 %v4198
    %6973 = vmatpush1.bf16.msra.mxu0 %v4197
    %6974 = vmatprep.subr.bf16.mxu0 %v4206
    %6975 = vmatpush1.bf16.msra.mxu0 %v4205
    %6976 = vmatprep.subr.bf16.mxu0 %v4214
    %6977 = vmatpush1.bf16.msra.mxu0 %v4213
    %6978 = vmatprep.subr.bf16.mxu0 %v4222
    %6979 = vmatpush1.bf16.msra.mxu0 %v4221
    %6980 = vmatprep.mubr.bf16.mxu0 %v6843
    %6981 = vmatmul.mubr.bf16.gmra.mrb[0].mxu0 %v6842
    %v6982 = vpop.f32.mrb[0].mxu0
    %v6983 = vadd.f32 0.0, %v6982
    %v6984 = vpop.f32.mrb[0].mxu0
    %v6985 = vadd.f32 0.0, %v6984
    %v6986 = vpop.f32.mrb[0].mxu0
    %v6987 = vpop.f32.mrb[0].mxu0
    %6988 = vdwg.mxu0
    %6989 = vmatprep.subr.bf16.mxu0 %v4104
    %6990 = vmatpush1.bf16.msra.mxu0 %v4103
    %6991 = vmatprep.subr.bf16.mxu0 %v4112
    %6992 = vmatpush1.bf16.msra.mxu0 %v4111
    %6993 = vmatprep.subr.bf16.mxu0 %v4120
    %6994 = vmatpush1.bf16.msra.mxu0 %v4119
    %6995 = vmatprep.subr.bf16.mxu0 %v4128
    %6996 = vmatpush1.bf16.msra.mxu0 %v4127
    %6997 = vmatprep.subr.bf16.mxu0 %v4136
    %6998 = vmatpush1.bf16.msra.mxu0 %v4135
    %6999 = vmatprep.subr.bf16.mxu0 %v4144
    %7000 = vmatpush1.bf16.msra.mxu0 %v4143
    %7001 = vmatprep.subr.bf16.mxu0 %v4152
    %7002 = vmatpush1.bf16.msra.mxu0 %v4151
    %7003 = vmatprep.subr.bf16.mxu0 %v4160
    %7004 = vmatpush1.bf16.msra.mxu0 %v4159
    %7005 = vmatprep.subr.bf16.mxu0 %v4168
    %7006 = vmatpush1.bf16.msra.mxu0 %v4167
    %7007 = vmatprep.subr.bf16.mxu0 %v4176
    %7008 = vmatpush1.bf16.msra.mxu0 %v4175
    %7009 = vmatprep.subr.bf16.mxu0 %v4184
    %7010 = vmatpush1.bf16.msra.mxu0 %v4183
    %7011 = vmatprep.subr.bf16.mxu0 %v4192
    %7012 = vmatpush1.bf16.msra.mxu0 %v4191
    %7013 = vmatprep.subr.bf16.mxu0 %v4200
    %7014 = vmatpush1.bf16.msra.mxu0 %v4199
    %7015 = vmatprep.subr.bf16.mxu0 %v4208
    %7016 = vmatpush1.bf16.msra.mxu0 %v4207
    %7017 = vmatprep.subr.bf16.mxu0 %v4216
    %7018 = vmatpush1.bf16.msra.mxu0 %v4215
    %7019 = vmatprep.subr.bf16.mxu0 %v4224
    %7020 = vmatpush1.bf16.msra.mxu0 %v4223
    %7021 = vmatprep.mubr.bf16.mxu0 %v6843
    %7022 = vmatmul.mubr.bf16.gmra.mrb[0].mxu0 %v6842
    %v7023 = vpop.f32.mrb[0].mxu0
    %v7024 = vadd.f32 0.0, %v7023
    %v7025 = vpop.f32.mrb[0].mxu0
    %v7026 = vadd.f32 0.0, %v7025
    %v7027 = vpop.f32.mrb[0].mxu0
    %v7028 = vpop.f32.mrb[0].mxu0
    %7029 = vdwg.mxu0
    %v7038 = vrot.slane %v6901, 6
    %v7039 = vrot.slane %v6903, 6
    %v7040 = vrot.slane %v6942, 6
    %v7041 = vrot.slane %v6944, 6
    %v7042 = vrot.slane %v6983, 6
    %v7043 = vrot.slane %v6985, 6
    %v7044 = vrot.slane %v7024, 6
    %v7045 = vrot.slane %v7026, 6
    %v7054 = vadd.f32 %v6858, %v7038
    %v7055 = vadd.f32 %v6859, %v7039
    %v7056 = vadd.f32 %v6860, %v7040
    %v7057 = vadd.f32 %v6861, %v7041
    %v7058 = vadd.f32 %v6862, %v7042
    %v7059 = vadd.f32 %v6863, %v7043
    %v7060 = vadd.f32 %v6864, %v7044
    %v7061 = vadd.f32 %v6865, %v7045
    %v7062 = vld [vmem:[#allocation2 + $0x40] sm:$0x30]
    %v7063 = vld [vmem:[#allocation2 + $0x48] sm:$0x30]
    %v7064 = vld [vmem:[#allocation2 + $0x50] sm:$0x30]
    %v7065 = vld [vmem:[#allocation2 + $0x58] sm:$0x30]
    %v7066 = vld [vmem:[#allocation2 + $0x60] sm:$0x30]
    %v7067 = vld [vmem:[#allocation2 + $0x68] sm:$0x30]
    %v7068 = vld [vmem:[#allocation2 + $0x70] sm:$0x30]
    %v7069 = vld [vmem:[#allocation2 + $0x78] sm:$0x30]
    %v7070 = vrot.slane %v6842, 1
    %v7071 = vrot.slane %v6843, 1
    %7074 = vmatprep.subr.bf16.mxu0 %v4226
    %7075 = vmatpush1.bf16.msra.mxu0 %v4225
    %7076 = vmatprep.subr.bf16.mxu0 %v4234
    %7077 = vmatpush1.bf16.msra.mxu0 %v4233
    %7078 = vmatprep.subr.bf16.mxu0 %v4242
    %7079 = vmatpush1.bf16.msra.mxu0 %v4241
    %7080 = vmatprep.subr.bf16.mxu0 %v4250
    %7081 = vmatpush1.bf16.msra.mxu0 %v4249
    %7082 = vmatprep.subr.bf16.mxu0 %v4258
    %7083 = vmatpush1.bf16.msra.mxu0 %v4257
    %7084 = vmatprep.subr.bf16.mxu0 %v4266
    %7085 = vmatpush1.bf16.msra.mxu0 %v4265
    %7086 = vmatprep.subr.bf16.mxu0 %v4274
    %7087 = vmatpush1.bf16.msra.mxu0 %v4273
    %7088 = vmatprep.subr.bf16.mxu0 %v4282
    %7089 = vmatpush1.bf16.msra.mxu0 %v4281
    %7090 = vmatprep.subr.bf16.mxu0 %v4290
    %7091 = vmatpush1.bf16.msra.mxu0 %v4289
    %7092 = vmatprep.subr.bf16.mxu0 %v4298
    %7093 = vmatpush1.bf16.msra.mxu0 %v4297
    %7094 = vmatprep.subr.bf16.mxu0 %v4306
    %7095 = vmatpush1.bf16.msra.mxu0 %v4305
    %7096 = vmatprep.subr.bf16.mxu0 %v4314
    %7097 = vmatpush1.bf16.msra.mxu0 %v4313
    %7098 = vmatprep.subr.bf16.mxu0 %v4322
    %7099 = vmatpush1.bf16.msra.mxu0 %v4321
    %7100 = vmatprep.subr.bf16.mxu0 %v4330
    %7101 = vmatpush1.bf16.msra.mxu0 %v4329
    %7102 = vmatprep.subr.bf16.mxu0 %v4338
    %7103 = vmatpush1.bf16.msra.mxu0 %v4337
    %7104 = vmatprep.subr.bf16.mxu0 %v4346
    %7105 = vmatpush1.bf16.msra.mxu0 %v4345
    %7106 = vmatprep.mubr.bf16.mxu0 %v7071
    %7107 = vmatmul.mubr.bf16.gmra.mrb[0].mxu0 %v7070
    %v7108 = vpop.f32.mrb[0].mxu0
    %v7109 = vadd.f32 0.0, %v7108
    %v7110 = vpop.f32.mrb[0].mxu0
    %v7111 = vadd.f32 0.0, %v7110
    %v7112 = vpop.f32.mrb[0].mxu0
    %v7113 = vpop.f32.mrb[0].mxu0
    %7114 = vdwg.mxu0
    %7115 = vmatprep.subr.bf16.mxu0 %v4228
    %7116 = vmatpush1.bf16.msra.mxu0 %v4227
    %7117 = vmatprep.subr.bf16.mxu0 %v4236
    %7118 = vmatpush1.bf16.msra.mxu0 %v4235
    %7119 = vmatprep.subr.bf16.mxu0 %v4244
    %7120 = vmatpush1.bf16.msra.mxu0 %v4243
    %7121 = vmatprep.subr.bf16.mxu0 %v4252
    %7122 = vmatpush1.bf16.msra.mxu0 %v4251
    %7123 = vmatprep.subr.bf16.mxu0 %v4260
    %7124 = vmatpush1.bf16.msra.mxu0 %v4259
    %7125 = vmatprep.subr.bf16.mxu0 %v4268
    %7126 = vmatpush1.bf16.msra.mxu0 %v4267
    %7127 = vmatprep.subr.bf16.mxu0 %v4276
    %7128 = vmatpush1.bf16.msra.mxu0 %v4275
    %7129 = vmatprep.subr.bf16.mxu0 %v4284
    %7130 = vmatpush1.bf16.msra.mxu0 %v4283
    %7131 = vmatprep.subr.bf16.mxu0 %v4292
    %7132 = vmatpush1.bf16.msra.mxu0 %v4291
    %7133 = vmatprep.subr.bf16.mxu0 %v4300
    %7134 = vmatpush1.bf16.msra.mxu0 %v4299
    %7135 = vmatprep.subr.bf16.mxu0 %v4308
    %7136 = vmatpush1.bf16.msra.mxu0 %v4307
    %7137 = vmatprep.subr.bf16.mxu0 %v4316
    %7138 = vmatpush1.bf16.msra.mxu0 %v4315
    %7139 = vmatprep.subr.bf16.mxu0 %v4324
    %7140 = vmatpush1.bf16.msra.mxu0 %v4323
    %7141 = vmatprep.subr.bf16.mxu0 %v4332
    %7142 = vmatpush1.bf16.msra.mxu0 %v4331
    %7143 = vmatprep.subr.bf16.mxu0 %v4340
    %7144 = vmatpush1.bf16.msra.mxu0 %v4339
    %7145 = vmatprep.subr.bf16.mxu0 %v4348
    %7146 = vmatpush1.bf16.msra.mxu0 %v4347
    %7147 = vmatprep.mubr.bf16.mxu0 %v7071
    %7148 = vmatmul.mubr.bf16.gmra.mrb[0].mxu0 %v7070
    %v7149 = vpop.f32.mrb[0].mxu0
    %v7150 = vadd.f32 0.0, %v7149
    %v7151 = vpop.f32.mrb[0].mxu0
    %v7152 = vadd.f32 0.0, %v7151
    %v7153 = vpop.f32.mrb[0].mxu0
    %v7154 = vpop.f32.mrb[0].mxu0
    %7155 = vdwg.mxu0
    %7156 = vmatprep.subr.bf16.mxu0 %v4230
    %7157 = vmatpush1.bf16.msra.mxu0 %v4229
    %7158 = vmatprep.subr.bf16.mxu0 %v4238
    %7159 = vmatpush1.bf16.msra.mxu0 %v4237
    %7160 = vmatprep.subr.bf16.mxu0 %v4246
    %7161 = vmatpush1.bf16.msra.mxu0 %v4245
    %7162 = vmatprep.subr.bf16.mxu0 %v4254
    %7163 = vmatpush1.bf16.msra.mxu0 %v4253
    %7164 = vmatprep.subr.bf16.mxu0 %v4262
    %7165 = vmatpush1.bf16.msra.mxu0 %v4261
    %7166 = vmatprep.subr.bf16.mxu0 %v4270
    %7167 = vmatpush1.bf16.msra.mxu0 %v4269
    %7168 = vmatprep.subr.bf16.mxu0 %v4278
    %7169 = vmatpush1.bf16.msra.mxu0 %v4277
    %7170 = vmatprep.subr.bf16.mxu0 %v4286
    %7171 = vmatpush1.bf16.msra.mxu0 %v4285
    %7172 = vmatprep.subr.bf16.mxu0 %v4294
    %7173 = vmatpush1.bf16.msra.mxu0 %v4293
    %7174 = vmatprep.subr.bf16.mxu0 %v4302
    %7175 = vmatpush1.bf16.msra.mxu0 %v4301
    %7176 = vmatprep.subr.bf16.mxu0 %v4310
    %7177 = vmatpush1.bf16.msra.mxu0 %v4309
    %7178 = vmatprep.subr.bf16.mxu0 %v4318
    %7179 = vmatpush1.bf16.msra.mxu0 %v4317
    %7180 = vmatprep.subr.bf16.mxu0 %v4326
    %7181 = vmatpush1.bf16.msra.mxu0 %v4325
    %7182 = vmatprep.subr.bf16.mxu0 %v4334
    %7183 = vmatpush1.bf16.msra.mxu0 %v4333
    %7184 = vmatprep.subr.bf16.mxu0 %v4342
    %7185 = vmatpush1.bf16.msra.mxu0 %v4341
    %7186 = vmatprep.subr.bf16.mxu0 %v4350
    %7187 = vmatpush1.bf16.msra.mxu0 %v4349
    %7188 = vmatprep.mubr.bf16.mxu0 %v7071
    %7189 = vmatmul.mubr.bf16.gmra.mrb[0].mxu0 %v7070
    %v7190 = vpop.f32.mrb[0].mxu0
    %v7191 = vadd.f32 0.0, %v7190
    %v7192 = vpop.f32.mrb[0].mxu0
    %v7193 = vadd.f32 0.0, %v7192
    %v7194 = vpop.f32.mrb[0].mxu0
    %v7195 = vpop.f32.mrb[0].mxu0
    %7196 = vdwg.mxu0
    %7197 = vmatprep.subr.bf16.mxu0 %v4232
    %7198 = vmatpush1.bf16.msra.mxu0 %v4231
    %7199 = vmatprep.subr.bf16.mxu0 %v4240
    %7200 = vmatpush1.bf16.msra.mxu0 %v4239
    %7201 = vmatprep.subr.bf16.mxu0 %v4248
    %7202 = vmatpush1.bf16.msra.mxu0 %v4247
    %7203 = vmatprep.subr.bf16.mxu0 %v4256
    %7204 = vmatpush1.bf16.msra.mxu0 %v4255
    %7205 = vmatprep.subr.bf16.mxu0 %v4264
    %7206 = vmatpush1.bf16.msra.mxu0 %v4263
    %7207 = vmatprep.subr.bf16.mxu0 %v4272
    %7208 = vmatpush1.bf16.msra.mxu0 %v4271
    %7209 = vmatprep.subr.bf16.mxu0 %v4280
    %7210 = vmatpush1.bf16.msra.mxu0 %v4279
    %7211 = vmatprep.subr.bf16.mxu0 %v4288
    %7212 = vmatpush1.bf16.msra.mxu0 %v4287
    %7213 = vmatprep.subr.bf16.mxu0 %v4296
    %7214 = vmatpush1.bf16.msra.mxu0 %v4295
    %7215 = vmatprep.subr.bf16.mxu0 %v4304
    %7216 = vmatpush1.bf16.msra.mxu0 %v4303
    %7217 = vmatprep.subr.bf16.mxu0 %v4312
    %7218 = vmatpush1.bf16.msra.mxu0 %v4311
    %7219 = vmatprep.subr.bf16.mxu0 %v4320
    %7220 = vmatpush1.bf16.msra.mxu0 %v4319
    %7221 = vmatprep.subr.bf16.mxu0 %v4328
    %7222 = vmatpush1.bf16.msra.mxu0 %v4327
    %7223 = vmatprep.subr.bf16.mxu0 %v4336
    %7224 = vmatpush1.bf16.msra.mxu0 %v4335
    %7225 = vmatprep.subr.bf16.mxu0 %v4344
    %7226 = vmatpush1.bf16.msra.mxu0 %v4343
    %7227 = vmatprep.subr.bf16.mxu0 %v4352
    %7228 = vmatpush1.bf16.msra.mxu0 %v4351
    %7229 = vmatprep.mubr.bf16.mxu0 %v7071
    %7230 = vmatmul.mubr.bf16.gmra.mrb[0].mxu0 %v7070
    %v7231 = vpop.f32.mrb[0].mxu0
    %v7232 = vadd.f32 0.0, %v7231
    %v7233 = vpop.f32.mrb[0].mxu0
    %v7234 = vadd.f32 0.0, %v7233
    %v7235 = vpop.f32.mrb[0].mxu0
    %v7236 = vpop.f32.mrb[0].mxu0
    %7237 = vdwg.mxu0
    %v7246 = vrot.slane %v7109, 4
    %v7247 = vrot.slane %v7111, 4
    %v7248 = vrot.slane %v7150, 4
    %v7249 = vrot.slane %v7152, 4
    %v7250 = vrot.slane %v7191, 4
    %v7251 = vrot.slane %v7193, 4
    %v7252 = vrot.slane %v7232, 4
    %v7253 = vrot.slane %v7234, 4
    %v7262 = vadd.f32 %v7062, %v7246
    %v7263 = vadd.f32 %v7063, %v7247
    %v7264 = vadd.f32 %v7064, %v7248
    %v7265 = vadd.f32 %v7065, %v7249
    %v7266 = vadd.f32 %v7066, %v7250
    %v7267 = vadd.f32 %v7067, %v7251
    %v7268 = vadd.f32 %v7068, %v7252
    %v7269 = vadd.f32 %v7069, %v7253
    %v7278 = vrot.slane %v7054, 2
    %v7279 = vrot.slane %v7055, 2
    %v7280 = vrot.slane %v7056, 2
    %v7281 = vrot.slane %v7057, 2
    %v7282 = vrot.slane %v7058, 2
    %v7283 = vrot.slane %v7059, 2
    %v7284 = vrot.slane %v7060, 2
    %v7285 = vrot.slane %v7061, 2
    %v7302 = vrot.slane %v7262, 2
    %v7303 = vrot.slane %v7263, 2
    %v7304 = vrot.slane %v7264, 2
    %v7305 = vrot.slane %v7265, 2
    %v7306 = vrot.slane %v7266, 2
    %v7307 = vrot.slane %v7267, 2
    %v7308 = vrot.slane %v7268, 2
    %v7309 = vrot.slane %v7269, 2
    %v7318 = vsel %vm4761, %v7278, %v7302
    %v7319 = vsel %vm4761, %v7279, %v7303
    %v7320 = vsel %vm4761, %v7280, %v7304
    %v7321 = vsel %vm4761, %v7281, %v7305
    %v7322 = vsel %vm4761, %v7282, %v7306
    %v7323 = vsel %vm4761, %v7283, %v7307
    %v7324 = vsel %vm4761, %v7284, %v7308
    %v7325 = vsel %vm4761, %v7285, %v7309
    %v7326 = vxor.u32 %v7318, 2147483648
    %v7327 = vxor.u32 %v7319, 2147483648
    %v7328 = vmul.f32 %v7326, 1.442695
    %v7329 = vpow.pop %v7328
    %v7330 = vmul.f32 %v7327, 1.442695
    %v7331 = vpow.pop %v7330
    %v7332 = vadd.f32 %v7329, 1.0
    %v7333 = vadd.f32 %v7331, 1.0
    %v7334 = vrcp.pop %v7332
    %v7335 = vmul.f32 1.0, %v7334
    %v7336 = vrcp.pop %v7333
    %v7337 = vmul.f32 1.0, %v7336
    %v7338 = vxor.u32 %v7320, 2147483648
    %v7339 = vxor.u32 %v7321, 2147483648
    %v7340 = vmul.f32 %v7338, 1.442695
    %v7341 = vpow.pop %v7340
    %v7342 = vmul.f32 %v7339, 1.442695
    %v7343 = vpow.pop %v7342
    %v7344 = vadd.f32 %v7341, 1.0
    %v7345 = vadd.f32 %v7343, 1.0
    %v7346 = vrcp.pop %v7344
    %v7347 = vmul.f32 1.0, %v7346
    %v7348 = vrcp.pop %v7345
    %v7349 = vmul.f32 1.0, %v7348
    %v7350 = vtanh.pop %v7322
    %v7351 = vtanh.pop %v7323
    %v7352 = vxor.u32 %v7324, 2147483648
    %v7353 = vxor.u32 %v7325, 2147483648
    %v7354 = vmul.f32 %v7352, 1.442695
    %v7355 = vpow.pop %v7354
    %v7356 = vmul.f32 %v7353, 1.442695
    %v7357 = vpow.pop %v7356
    %v7358 = vadd.f32 %v7355, 1.0
    %v7359 = vadd.f32 %v7357, 1.0
    %v7360 = vrcp.pop %v7358
    %v7361 = vmul.f32 1.0, %v7360
    %v7362 = vrcp.pop %v7359
    %v7363 = vmul.f32 1.0, %v7362
    %v7364 = vmul.f32 %v7347, %v6836
    %v7365 = vmul.f32 %v7349, %v6837
    %v7366 = vmul.f32 %v7335, %v7350
    %v7367 = vmul.f32 %v7337, %v7351
    %v7368 = vadd.f32 %v7364, %v7366
    %v7369 = vadd.f32 %v7365, %v7367
    %v7370 = vtanh.pop %v7368
    %v7371 = vtanh.pop %v7369
    %v7372 = vmul.f32 %v7361, %v7370
    %v7373 = vmul.f32 %v7363, %v7371
    %v7374 = vpack.c.bf16 %v7372, %v7372
    %v7375 = vpack.c.bf16 %v7373, %v7373
    %v7378 = vrot.slane %v7374, 3
    %v7379 = vrot.slane %v7375, 3
    %7382 = vst [vmem:[#allocation3] sm:$0x20] %v7378
    %7383 = vst [vmem:[#allocation3 + $0x8] sm:$0x20] %v7379
    %v7384 = vrot.slane %v7374, 7
    %v7385 = vrot.slane %v7375, 7
    %7388 = vst [vmem:[#allocation4] sm:$0x4] %v7384
    %7389 = vst [vmem:[#allocation4 + $0x8] sm:$0x4] %v7385
    %v7390 = vld [vmem:[#allocation2 + $0x80] sm:$0x30]
    %v7391 = vld [vmem:[#allocation2 + $0x88] sm:$0x30]
    %v7392 = vld [vmem:[#allocation2 + $0x90] sm:$0x30]
    %v7393 = vld [vmem:[#allocation2 + $0x98] sm:$0x30]
    %v7394 = vld [vmem:[#allocation2 + $0xa0] sm:$0x30]
    %v7395 = vld [vmem:[#allocation2 + $0xa8] sm:$0x30]
    %v7396 = vld [vmem:[#allocation2 + $0xb0] sm:$0x30]
    %v7397 = vld [vmem:[#allocation2 + $0xb8] sm:$0x30]
    %7398 = vmatprep.subr.bf16.mxu0 %v4098
    %7399 = vmatpush1.bf16.msra.mxu0 %v4097
    %7400 = vmatprep.subr.bf16.mxu0 %v4106
    %7401 = vmatpush1.bf16.msra.mxu0 %v4105
    %7402 = vmatprep.subr.bf16.mxu0 %v4114
    %7403 = vmatpush1.bf16.msra.mxu0 %v4113
    %7404 = vmatprep.subr.bf16.mxu0 %v4122
    %7405 = vmatpush1.bf16.msra.mxu0 %v4121
    %7406 = vmatprep.subr.bf16.mxu0 %v4130
    %7407 = vmatpush1.bf16.msra.mxu0 %v4129
    %7408 = vmatprep.subr.bf16.mxu0 %v4138
    %7409 = vmatpush1.bf16.msra.mxu0 %v4137
    %7410 = vmatprep.subr.bf16.mxu0 %v4146
    %7411 = vmatpush1.bf16.msra.mxu0 %v4145
    %7412 = vmatprep.subr.bf16.mxu0 %v4154
    %7413 = vmatpush1.bf16.msra.mxu0 %v4153
    %7414 = vmatprep.subr.bf16.mxu0 %v4162
    %7415 = vmatpush1.bf16.msra.mxu0 %v4161
    %7416 = vmatprep.subr.bf16.mxu0 %v4170
    %7417 = vmatpush1.bf16.msra.mxu0 %v4169
    %7418 = vmatprep.subr.bf16.mxu0 %v4178
    %7419 = vmatpush1.bf16.msra.mxu0 %v4177
    %7420 = vmatprep.subr.bf16.mxu0 %v4186
    %7421 = vmatpush1.bf16.msra.mxu0 %v4185
    %7422 = vmatprep.subr.bf16.mxu0 %v4194
    %7423 = vmatpush1.bf16.msra.mxu0 %v4193
    %7424 = vmatprep.subr.bf16.mxu0 %v4202
    %7425 = vmatpush1.bf16.msra.mxu0 %v4201
    %7426 = vmatprep.subr.bf16.mxu0 %v4210
    %7427 = vmatpush1.bf16.msra.mxu0 %v4209
    %7428 = vmatprep.subr.bf16.mxu0 %v4218
    %7429 = vmatpush1.bf16.msra.mxu0 %v4217
    %7430 = vmatprep.mubr.bf16.mxu0 %v7375
    %7431 = vmatmul.mubr.bf16.gmra.mrb[0].mxu0 %v7374
    %v7432 = vpop.f32.mrb[0].mxu0
    %v7433 = vadd.f32 0.0, %v7432
    %v7434 = vpop.f32.mrb[0].mxu0
    %v7435 = vadd.f32 0.0, %v7434
    %v7436 = vpop.f32.mrb[0].mxu0
    %v7437 = vpop.f32.mrb[0].mxu0
    %7438 = vdwg.mxu0
    %7439 = vmatprep.subr.bf16.mxu0 %v4100
    %7440 = vmatpush1.bf16.msra.mxu0 %v4099
    %7441 = vmatprep.subr.bf16.mxu0 %v4108
    %7442 = vmatpush1.bf16.msra.mxu0 %v4107
    %7443 = vmatprep.subr.bf16.mxu0 %v4116
    %7444 = vmatpush1.bf16.msra.mxu0 %v4115
    %7445 = vmatprep.subr.bf16.mxu0 %v4124
    %7446 = vmatpush1.bf16.msra.mxu0 %v4123
    %7447 = vmatprep.subr.bf16.mxu0 %v4132
    %7448 = vmatpush1.bf16.msra.mxu0 %v4131
    %7449 = vmatprep.subr.bf16.mxu0 %v4140
    %7450 = vmatpush1.bf16.msra.mxu0 %v4139
    %7451 = vmatprep.subr.bf16.mxu0 %v4148
    %7452 = vmatpush1.bf16.msra.mxu0 %v4147
    %7453 = vmatprep.subr.bf16.mxu0 %v4156
    %7454 = vmatpush1.bf16.msra.mxu0 %v4155
    %7455 = vmatprep.subr.bf16.mxu0 %v4164
    %7456 = vmatpush1.bf16.msra.mxu0 %v4163
    %7457 = vmatprep.subr.bf16.mxu0 %v4172
    %7458 = vmatpush1.bf16.msra.mxu0 %v4171
    %7459 = vmatprep.subr.bf16.mxu0 %v4180
    %7460 = vmatpush1.bf16.msra.mxu0 %v4179
    %7461 = vmatprep.subr.bf16.mxu0 %v4188
    %7462 = vmatpush1.bf16.msra.mxu0 %v4187
    %7463 = vmatprep.subr.bf16.mxu0 %v4196
    %7464 = vmatpush1.bf16.msra.mxu0 %v4195
    %7465 = vmatprep.subr.bf16.mxu0 %v4204
    %7466 = vmatpush1.bf16.msra.mxu0 %v4203
    %7467 = vmatprep.subr.bf16.mxu0 %v4212
    %7468 = vmatpush1.bf16.msra.mxu0 %v4211
    %7469 = vmatprep.subr.bf16.mxu0 %v4220
    %7470 = vmatpush1.bf16.msra.mxu0 %v4219
    %7471 = vmatprep.mubr.bf16.mxu0 %v7375
    %7472 = vmatmul.mubr.bf16.gmra.mrb[0].mxu0 %v7374
    %v7473 = vpop.f32.mrb[0].mxu0
    %v7474 = vadd.f32 0.0, %v7473
    %v7475 = vpop.f32.mrb[0].mxu0
    %v7476 = vadd.f32 0.0, %v7475
    %v7477 = vpop.f32.mrb[0].mxu0
    %v7478 = vpop.f32.mrb[0].mxu0
    %7479 = vdwg.mxu0
    %7480 = vmatprep.subr.bf16.mxu0 %v4102
    %7481 = vmatpush1.bf16.msra.mxu0 %v4101
    %7482 = vmatprep.subr.bf16.mxu0 %v4110
    %7483 = vmatpush1.bf16.msra.mxu0 %v4109
    %7484 = vmatprep.subr.bf16.mxu0 %v4118
    %7485 = vmatpush1.bf16.msra.mxu0 %v4117
    %7486 = vmatprep.subr.bf16.mxu0 %v4126
    %7487 = vmatpush1.bf16.msra.mxu0 %v4125
    %7488 = vmatprep.subr.bf16.mxu0 %v4134
    %7489 = vmatpush1.bf16.msra.mxu0 %v4133
    %7490 = vmatprep.subr.bf16.mxu0 %v4142
    %7491 = vmatpush1.bf16.msra.mxu0 %v4141
    %7492 = vmatprep.subr.bf16.mxu0 %v4150
    %7493 = vmatpush1.bf16.msra.mxu0 %v4149
    %7494 = vmatprep.subr.bf16.mxu0 %v4158
    %7495 = vmatpush1.bf16.msra.mxu0 %v4157
    %7496 = vmatprep.subr.bf16.mxu0 %v4166
    %7497 = vmatpush1.bf16.msra.mxu0 %v4165
    %7498 = vmatprep.subr.bf16.mxu0 %v4174
    %7499 = vmatpush1.bf16.msra.mxu0 %v4173
    %7500 = vmatprep.subr.bf16.mxu0 %v4182
    %7501 = vmatpush1.bf16.msra.mxu0 %v4181
    %7502 = vmatprep.subr.bf16.mxu0 %v4190
    %7503 = vmatpush1.bf16.msra.mxu0 %v4189
    %7504 = vmatprep.subr.bf16.mxu0 %v4198
    %7505 = vmatpush1.bf16.msra.mxu0 %v4197
    %7506 = vmatprep.subr.bf16.mxu0 %v4206
    %7507 = vmatpush1.bf16.msra.mxu0 %v4205
    %7508 = vmatprep.subr.bf16.mxu0 %v4214
    %7509 = vmatpush1.bf16.msra.mxu0 %v4213
    %7510 = vmatprep.subr.bf16.mxu0 %v4222
    %7511 = vmatpush1.bf16.msra.mxu0 %v4221
    %7512 = vmatprep.mubr.bf16.mxu0 %v7375
    %7513 = vmatmul.mubr.bf16.gmra.mrb[0].mxu0 %v7374
    %v7514 = vpop.f32.mrb[0].mxu0
    %v7515 = vadd.f32 0.0, %v7514
    %v7516 = vpop.f32.mrb[0].mxu0
    %v7517 = vadd.f32 0.0, %v7516
    %v7518 = vpop.f32.mrb[0].mxu0
    %v7519 = vpop.f32.mrb[0].mxu0
    %7520 = vdwg.mxu0
    %7521 = vmatprep.subr.bf16.mxu0 %v4104
    %7522 = vmatpush1.bf16.msra.mxu0 %v4103
    %7523 = vmatprep.subr.bf16.mxu0 %v4112
    %7524 = vmatpush1.bf16.msra.mxu0 %v4111
    %7525 = vmatprep.subr.bf16.mxu0 %v4120
    %7526 = vmatpush1.bf16.msra.mxu0 %v4119
    %7527 = vmatprep.subr.bf16.mxu0 %v4128
    %7528 = vmatpush1.bf16.msra.mxu0 %v4127
    %7529 = vmatprep.subr.bf16.mxu0 %v4136
    %7530 = vmatpush1.bf16.msra.mxu0 %v4135
    %7531 = vmatprep.subr.bf16.mxu0 %v4144
    %7532 = vmatpush1.bf16.msra.mxu0 %v4143
    %7533 = vmatprep.subr.bf16.mxu0 %v4152
    %7534 = vmatpush1.bf16.msra.mxu0 %v4151
    %7535 = vmatprep.subr.bf16.mxu0 %v4160
    %7536 = vmatpush1.bf16.msra.mxu0 %v4159
    %7537 = vmatprep.subr.bf16.mxu0 %v4168
    %7538 = vmatpush1.bf16.msra.mxu0 %v4167
    %7539 = vmatprep.subr.bf16.mxu0 %v4176
    %7540 = vmatpush1.bf16.msra.mxu0 %v4175
    %7541 = vmatprep.subr.bf16.mxu0 %v4184
    %7542 = vmatpush1.bf16.msra.mxu0 %v4183
    %7543 = vmatprep.subr.bf16.mxu0 %v4192
    %7544 = vmatpush1.bf16.msra.mxu0 %v4191
    %7545 = vmatprep.subr.bf16.mxu0 %v4200
    %7546 = vmatpush1.bf16.msra.mxu0 %v4199
    %7547 = vmatprep.subr.bf16.mxu0 %v4208
    %7548 = vmatpush1.bf16.msra.mxu0 %v4207
    %7549 = vmatprep.subr.bf16.mxu0 %v4216
    %7550 = vmatpush1.bf16.msra.mxu0 %v4215
    %7551 = vmatprep.subr.bf16.mxu0 %v4224
    %7552 = vmatpush1.bf16.msra.mxu0 %v4223
    %7553 = vmatprep.mubr.bf16.mxu0 %v7375
    %7554 = vmatmul.mubr.bf16.gmra.mrb[0].mxu0 %v7374
    %v7555 = vpop.f32.mrb[0].mxu0
    %v7556 = vadd.f32 0.0, %v7555
    %v7557 = vpop.f32.mrb[0].mxu0
    %v7558 = vadd.f32 0.0, %v7557
    %v7559 = vpop.f32.mrb[0].mxu0
    %v7560 = vpop.f32.mrb[0].mxu0
    %7561 = vdwg.mxu0
    %v7570 = vrot.slane %v7433, 4
    %v7571 = vrot.slane %v7435, 4
    %v7572 = vrot.slane %v7474, 4
    %v7573 = vrot.slane %v7476, 4
    %v7574 = vrot.slane %v7515, 4
    %v7575 = vrot.slane %v7517, 4
    %v7576 = vrot.slane %v7556, 4
    %v7577 = vrot.slane %v7558, 4
    %v7586 = vadd.f32 %v7390, %v7570
    %v7587 = vadd.f32 %v7391, %v7571
    %v7588 = vadd.f32 %v7392, %v7572
    %v7589 = vadd.f32 %v7393, %v7573
    %v7590 = vadd.f32 %v7394, %v7574
    %v7591 = vadd.f32 %v7395, %v7575
    %v7592 = vadd.f32 %v7396, %v7576
    %v7593 = vadd.f32 %v7397, %v7577
    %v7594 = vld [vmem:[#allocation2 + $0x40] sm:$0xc]
    %v7595 = vld [vmem:[#allocation2 + $0x48] sm:$0xc]
    %v7596 = vld [vmem:[#allocation2 + $0x50] sm:$0xc]
    %v7597 = vld [vmem:[#allocation2 + $0x58] sm:$0xc]
    %v7598 = vld [vmem:[#allocation2 + $0x60] sm:$0xc]
    %v7599 = vld [vmem:[#allocation2 + $0x68] sm:$0xc]
    %v7600 = vld [vmem:[#allocation2 + $0x70] sm:$0xc]
    %v7601 = vld [vmem:[#allocation2 + $0x78] sm:$0xc]
    %v7602 = vrot.slane %v7374, 1
    %v7603 = vrot.slane %v7375, 1
    %7606 = vmatprep.subr.bf16.mxu0 %v4226
    %7607 = vmatpush1.bf16.msra.mxu0 %v4225
    %7608 = vmatprep.subr.bf16.mxu0 %v4234
    %7609 = vmatpush1.bf16.msra.mxu0 %v4233
    %7610 = vmatprep.subr.bf16.mxu0 %v4242
    %7611 = vmatpush1.bf16.msra.mxu0 %v4241
    %7612 = vmatprep.subr.bf16.mxu0 %v4250
    %7613 = vmatpush1.bf16.msra.mxu0 %v4249
    %7614 = vmatprep.subr.bf16.mxu0 %v4258
    %7615 = vmatpush1.bf16.msra.mxu0 %v4257
    %7616 = vmatprep.subr.bf16.mxu0 %v4266
    %7617 = vmatpush1.bf16.msra.mxu0 %v4265
    %7618 = vmatprep.subr.bf16.mxu0 %v4274
    %7619 = vmatpush1.bf16.msra.mxu0 %v4273
    %7620 = vmatprep.subr.bf16.mxu0 %v4282
    %7621 = vmatpush1.bf16.msra.mxu0 %v4281
    %7622 = vmatprep.subr.bf16.mxu0 %v4290
    %7623 = vmatpush1.bf16.msra.mxu0 %v4289
    %7624 = vmatprep.subr.bf16.mxu0 %v4298
    %7625 = vmatpush1.bf16.msra.mxu0 %v4297
    %7626 = vmatprep.subr.bf16.mxu0 %v4306
    %7627 = vmatpush1.bf16.msra.mxu0 %v4305
    %7628 = vmatprep.subr.bf16.mxu0 %v4314
    %7629 = vmatpush1.bf16.msra.mxu0 %v4313
    %7630 = vmatprep.subr.bf16.mxu0 %v4322
    %7631 = vmatpush1.bf16.msra.mxu0 %v4321
    %7632 = vmatprep.subr.bf16.mxu0 %v4330
    %7633 = vmatpush1.bf16.msra.mxu0 %v4329
    %7634 = vmatprep.subr.bf16.mxu0 %v4338
    %7635 = vmatpush1.bf16.msra.mxu0 %v4337
    %7636 = vmatprep.subr.bf16.mxu0 %v4346
    %7637 = vmatpush1.bf16.msra.mxu0 %v4345
    %7638 = vmatprep.mubr.bf16.mxu0 %v7603
    %7639 = vmatmul.mubr.bf16.gmra.mrb[0].mxu0 %v7602
    %v7640 = vpop.f32.mrb[0].mxu0
    %v7641 = vadd.f32 0.0, %v7640
    %v7642 = vpop.f32.mrb[0].mxu0
    %v7643 = vadd.f32 0.0, %v7642
    %v7644 = vpop.f32.mrb[0].mxu0
    %v7645 = vpop.f32.mrb[0].mxu0
    %7646 = vdwg.mxu0
    %7647 = vmatprep.subr.bf16.mxu0 %v4228
    %7648 = vmatpush1.bf16.msra.mxu0 %v4227
    %7649 = vmatprep.subr.bf16.mxu0 %v4236
    %7650 = vmatpush1.bf16.msra.mxu0 %v4235
    %7651 = vmatprep.subr.bf16.mxu0 %v4244
    %7652 = vmatpush1.bf16.msra.mxu0 %v4243
    %7653 = vmatprep.subr.bf16.mxu0 %v4252
    %7654 = vmatpush1.bf16.msra.mxu0 %v4251
    %7655 = vmatprep.subr.bf16.mxu0 %v4260
    %7656 = vmatpush1.bf16.msra.mxu0 %v4259
    %7657 = vmatprep.subr.bf16.mxu0 %v4268
    %7658 = vmatpush1.bf16.msra.mxu0 %v4267
    %7659 = vmatprep.subr.bf16.mxu0 %v4276
    %7660 = vmatpush1.bf16.msra.mxu0 %v4275
    %7661 = vmatprep.subr.bf16.mxu0 %v4284
    %7662 = vmatpush1.bf16.msra.mxu0 %v4283
    %7663 = vmatprep.subr.bf16.mxu0 %v4292
    %7664 = vmatpush1.bf16.msra.mxu0 %v4291
    %7665 = vmatprep.subr.bf16.mxu0 %v4300
    %7666 = vmatpush1.bf16.msra.mxu0 %v4299
    %7667 = vmatprep.subr.bf16.mxu0 %v4308
    %7668 = vmatpush1.bf16.msra.mxu0 %v4307
    %7669 = vmatprep.subr.bf16.mxu0 %v4316
    %7670 = vmatpush1.bf16.msra.mxu0 %v4315
    %7671 = vmatprep.subr.bf16.mxu0 %v4324
    %7672 = vmatpush1.bf16.msra.mxu0 %v4323
    %7673 = vmatprep.subr.bf16.mxu0 %v4332
    %7674 = vmatpush1.bf16.msra.mxu0 %v4331
    %7675 = vmatprep.subr.bf16.mxu0 %v4340
    %7676 = vmatpush1.bf16.msra.mxu0 %v4339
    %7677 = vmatprep.subr.bf16.mxu0 %v4348
    %7678 = vmatpush1.bf16.msra.mxu0 %v4347
    %7679 = vmatprep.mubr.bf16.mxu0 %v7603
    %7680 = vmatmul.mubr.bf16.gmra.mrb[0].mxu0 %v7602
    %v7681 = vpop.f32.mrb[0].mxu0
    %v7682 = vadd.f32 0.0, %v7681
    %v7683 = vpop.f32.mrb[0].mxu0
    %v7684 = vadd.f32 0.0, %v7683
    %v7685 = vpop.f32.mrb[0].mxu0
    %v7686 = vpop.f32.mrb[0].mxu0
    %7687 = vdwg.mxu0
    %7688 = vmatprep.subr.bf16.mxu0 %v4230
    %7689 = vmatpush1.bf16.msra.mxu0 %v4229
    %7690 = vmatprep.subr.bf16.mxu0 %v4238
    %7691 = vmatpush1.bf16.msra.mxu0 %v4237
    %7692 = vmatprep.subr.bf16.mxu0 %v4246
    %7693 = vmatpush1.bf16.msra.mxu0 %v4245
    %7694 = vmatprep.subr.bf16.mxu0 %v4254
    %7695 = vmatpush1.bf16.msra.mxu0 %v4253
    %7696 = vmatprep.subr.bf16.mxu0 %v4262
    %7697 = vmatpush1.bf16.msra.mxu0 %v4261
    %7698 = vmatprep.subr.bf16.mxu0 %v4270
    %7699 = vmatpush1.bf16.msra.mxu0 %v4269
    %7700 = vmatprep.subr.bf16.mxu0 %v4278
    %7701 = vmatpush1.bf16.msra.mxu0 %v4277
    %7702 = vmatprep.subr.bf16.mxu0 %v4286
    %7703 = vmatpush1.bf16.msra.mxu0 %v4285
    %7704 = vmatprep.subr.bf16.mxu0 %v4294
    %7705 = vmatpush1.bf16.msra.mxu0 %v4293
    %7706 = vmatprep.subr.bf16.mxu0 %v4302
    %7707 = vmatpush1.bf16.msra.mxu0 %v4301
    %7708 = vmatprep.subr.bf16.mxu0 %v4310
    %7709 = vmatpush1.bf16.msra.mxu0 %v4309
    %7710 = vmatprep.subr.bf16.mxu0 %v4318
    %7711 = vmatpush1.bf16.msra.mxu0 %v4317
    %7712 = vmatprep.subr.bf16.mxu0 %v4326
    %7713 = vmatpush1.bf16.msra.mxu0 %v4325
    %7714 = vmatprep.subr.bf16.mxu0 %v4334
    %7715 = vmatpush1.bf16.msra.mxu0 %v4333
    %7716 = vmatprep.subr.bf16.mxu0 %v4342
    %7717 = vmatpush1.bf16.msra.mxu0 %v4341
    %7718 = vmatprep.subr.bf16.mxu0 %v4350
    %7719 = vmatpush1.bf16.msra.mxu0 %v4349
    %7720 = vmatprep.mubr.bf16.mxu0 %v7603
    %7721 = vmatmul.mubr.bf16.gmra.mrb[0].mxu0 %v7602
    %v7722 = vpop.f32.mrb[0].mxu0
    %v7723 = vadd.f32 0.0, %v7722
    %v7724 = vpop.f32.mrb[0].mxu0
    %v7725 = vadd.f32 0.0, %v7724
    %v7726 = vpop.f32.mrb[0].mxu0
    %v7727 = vpop.f32.mrb[0].mxu0
    %7728 = vdwg.mxu0
    %7729 = vmatprep.subr.bf16.mxu0 %v4232
    %7730 = vmatpush1.bf16.msra.mxu0 %v4231
    %7731 = vmatprep.subr.bf16.mxu0 %v4240
    %7732 = vmatpush1.bf16.msra.mxu0 %v4239
    %7733 = vmatprep.subr.bf16.mxu0 %v4248
    %7734 = vmatpush1.bf16.msra.mxu0 %v4247
    %7735 = vmatprep.subr.bf16.mxu0 %v4256
    %7736 = vmatpush1.bf16.msra.mxu0 %v4255
    %7737 = vmatprep.subr.bf16.mxu0 %v4264
    %7738 = vmatpush1.bf16.msra.mxu0 %v4263
    %7739 = vmatprep.subr.bf16.mxu0 %v4272
    %7740 = vmatpush1.bf16.msra.mxu0 %v4271
    %7741 = vmatprep.subr.bf16.mxu0 %v4280
    %7742 = vmatpush1.bf16.msra.mxu0 %v4279
    %7743 = vmatprep.subr.bf16.mxu0 %v4288
    %7744 = vmatpush1.bf16.msra.mxu0 %v4287
    %7745 = vmatprep.subr.bf16.mxu0 %v4296
    %7746 = vmatpush1.bf16.msra.mxu0 %v4295
    %7747 = vmatprep.subr.bf16.mxu0 %v4304
    %7748 = vmatpush1.bf16.msra.mxu0 %v4303
    %7749 = vmatprep.subr.bf16.mxu0 %v4312
    %7750 = vmatpush1.bf16.msra.mxu0 %v4311
    %7751 = vmatprep.subr.bf16.mxu0 %v4320
    %7752 = vmatpush1.bf16.msra.mxu0 %v4319
    %7753 = vmatprep.subr.bf16.mxu0 %v4328
    %7754 = vmatpush1.bf16.msra.mxu0 %v4327
    %7755 = vmatprep.subr.bf16.mxu0 %v4336
    %7756 = vmatpush1.bf16.msra.mxu0 %v4335
    %7757 = vmatprep.subr.bf16.mxu0 %v4344
    %7758 = vmatpush1.bf16.msra.mxu0 %v4343
    %7759 = vmatprep.subr.bf16.mxu0 %v4352
    %7760 = vmatpush1.bf16.msra.mxu0 %v4351
    %7761 = vmatprep.mubr.bf16.mxu0 %v7603
    %7762 = vmatmul.mubr.bf16.gmra.mrb[0].mxu0 %v7602
    %v7763 = vpop.f32.mrb[0].mxu0
    %v7764 = vadd.f32 0.0, %v7763
    %v7765 = vpop.f32.mrb[0].mxu0
    %v7766 = vadd.f32 0.0, %v7765
    %v7767 = vpop.f32.mrb[0].mxu0
    %v7768 = vpop.f32.mrb[0].mxu0
    %7769 = vdwg.mxu0
    %v7778 = vrot.slane %v7641, 6
    %v7779 = vrot.slane %v7643, 6
    %v7780 = vrot.slane %v7682, 6
    %v7781 = vrot.slane %v7684, 6
    %v7782 = vrot.slane %v7723, 6
    %v7783 = vrot.slane %v7725, 6
    %v7784 = vrot.slane %v7764, 6
    %v7785 = vrot.slane %v7766, 6
    %v7794 = vadd.f32 %v7594, %v7778
    %v7795 = vadd.f32 %v7595, %v7779
    %v7796 = vadd.f32 %v7596, %v7780
    %v7797 = vadd.f32 %v7597, %v7781
    %v7798 = vadd.f32 %v7598, %v7782
    %v7799 = vadd.f32 %v7599, %v7783
    %v7800 = vadd.f32 %v7600, %v7784
    %v7801 = vadd.f32 %v7601, %v7785
    %v7810 = vrot.slane %v7586, 4
    %v7811 = vrot.slane %v7587, 4
    %v7812 = vrot.slane %v7588, 4
    %v7813 = vrot.slane %v7589, 4
    %v7814 = vrot.slane %v7590, 4
    %v7815 = vrot.slane %v7591, 4
    %v7816 = vrot.slane %v7592, 4
    %v7817 = vrot.slane %v7593, 4
    %v7826 = vsel %vm4761, %v7810, %v7794
    %v7827 = vsel %vm4761, %v7811, %v7795
    %v7828 = vsel %vm4761, %v7812, %v7796
    %v7829 = vsel %vm4761, %v7813, %v7797
    %v7830 = vsel %vm4761, %v7814, %v7798
    %v7831 = vsel %vm4761, %v7815, %v7799
    %v7832 = vsel %vm4761, %v7816, %v7800
    %v7833 = vsel %vm4761, %v7817, %v7801
    %v7834 = vxor.u32 %v7826, 2147483648
    %v7835 = vxor.u32 %v7827, 2147483648
    %v7836 = vmul.f32 %v7834, 1.442695
    %v7837 = vpow.pop %v7836
    %v7838 = vmul.f32 %v7835, 1.442695
    %v7839 = vpow.pop %v7838
    %v7840 = vadd.f32 %v7837, 1.0
    %v7841 = vadd.f32 %v7839, 1.0
    %v7842 = vrcp.pop %v7840
    %v7843 = vmul.f32 1.0, %v7842
    %v7844 = vrcp.pop %v7841
    %v7845 = vmul.f32 1.0, %v7844
    %v7846 = vxor.u32 %v7828, 2147483648
    %v7847 = vxor.u32 %v7829, 2147483648
    %v7848 = vmul.f32 %v7846, 1.442695
    %v7849 = vpow.pop %v7848
    %v7850 = vmul.f32 %v7847, 1.442695
    %v7851 = vpow.pop %v7850
    %v7852 = vadd.f32 %v7849, 1.0
    %v7853 = vadd.f32 %v7851, 1.0
    %v7854 = vrcp.pop %v7852
    %v7855 = vmul.f32 1.0, %v7854
    %v7856 = vrcp.pop %v7853
    %v7857 = vmul.f32 1.0, %v7856
    %v7858 = vtanh.pop %v7830
    %v7859 = vtanh.pop %v7831
    %v7860 = vxor.u32 %v7832, 2147483648
    %v7861 = vxor.u32 %v7833, 2147483648
    %v7862 = vmul.f32 %v7860, 1.442695
    %v7863 = vpow.pop %v7862
    %v7864 = vmul.f32 %v7861, 1.442695
    %v7865 = vpow.pop %v7864
    %v7866 = vadd.f32 %v7863, 1.0
    %v7867 = vadd.f32 %v7865, 1.0
    %v7868 = vrcp.pop %v7866
    %v7869 = vmul.f32 1.0, %v7868
    %v7870 = vrcp.pop %v7867
    %v7871 = vmul.f32 1.0, %v7870
    %v7872 = vmul.f32 %v7855, %v7368
    %v7873 = vmul.f32 %v7857, %v7369
    %v7874 = vmul.f32 %v7843, %v7858
    %v7875 = vmul.f32 %v7845, %v7859
    %v7876 = vadd.f32 %v7872, %v7874
    %v7877 = vadd.f32 %v7873, %v7875
    %v7878 = vtanh.pop %v7876
    %v7879 = vtanh.pop %v7877
    %v7880 = vmul.f32 %v7869, %v7878
    %v7881 = vmul.f32 %v7871, %v7879
    %v7882 = vpack.c.bf16 %v7880, %v7880
    %v7883 = vpack.c.bf16 %v7881, %v7881
    %v7886 = vrot.slane %v7882, 2
    %v7887 = vrot.slane %v7883, 2
    %7890 = vst [vmem:[#allocation3] sm:$0x40] %v7886
    %7891 = vst [vmem:[#allocation3 + $0x8] sm:$0x40] %v7887
    %7892 = vst [vmem:[#allocation4] sm:$0x2] %v7882
    %7893 = vst [vmem:[#allocation4 + $0x8] sm:$0x2] %v7883
    %v7894 = vld [vmem:[#allocation2 + $0x80] sm:$0xc0]
    %v7895 = vld [vmem:[#allocation2 + $0x88] sm:$0xc0]
    %v7896 = vld [vmem:[#allocation2 + $0x90] sm:$0xc0]
    %v7897 = vld [vmem:[#allocation2 + $0x98] sm:$0xc0]
    %v7898 = vld [vmem:[#allocation2 + $0xa0] sm:$0xc0]
    %v7899 = vld [vmem:[#allocation2 + $0xa8] sm:$0xc0]
    %v7900 = vld [vmem:[#allocation2 + $0xb0] sm:$0xc0]
    %v7901 = vld [vmem:[#allocation2 + $0xb8] sm:$0xc0]
    %7902 = vmatprep.subr.bf16.mxu0 %v4098
    %7903 = vmatpush1.bf16.msra.mxu0 %v4097
    %7904 = vmatprep.subr.bf16.mxu0 %v4106
    %7905 = vmatpush1.bf16.msra.mxu0 %v4105
    %7906 = vmatprep.subr.bf16.mxu0 %v4114
    %7907 = vmatpush1.bf16.msra.mxu0 %v4113
    %7908 = vmatprep.subr.bf16.mxu0 %v4122
    %7909 = vmatpush1.bf16.msra.mxu0 %v4121
    %7910 = vmatprep.subr.bf16.mxu0 %v4130
    %7911 = vmatpush1.bf16.msra.mxu0 %v4129
    %7912 = vmatprep.subr.bf16.mxu0 %v4138
    %7913 = vmatpush1.bf16.msra.mxu0 %v4137
    %7914 = vmatprep.subr.bf16.mxu0 %v4146
    %7915 = vmatpush1.bf16.msra.mxu0 %v4145
    %7916 = vmatprep.subr.bf16.mxu0 %v4154
    %7917 = vmatpush1.bf16.msra.mxu0 %v4153
    %7918 = vmatprep.subr.bf16.mxu0 %v4162
    %7919 = vmatpush1.bf16.msra.mxu0 %v4161
    %7920 = vmatprep.subr.bf16.mxu0 %v4170
    %7921 = vmatpush1.bf16.msra.mxu0 %v4169
    %7922 = vmatprep.subr.bf16.mxu0 %v4178
    %7923 = vmatpush1.bf16.msra.mxu0 %v4177
    %7924 = vmatprep.subr.bf16.mxu0 %v4186
    %7925 = vmatpush1.bf16.msra.mxu0 %v4185
    %7926 = vmatprep.subr.bf16.mxu0 %v4194
    %7927 = vmatpush1.bf16.msra.mxu0 %v4193
    %7928 = vmatprep.subr.bf16.mxu0 %v4202
    %7929 = vmatpush1.bf16.msra.mxu0 %v4201
    %7930 = vmatprep.subr.bf16.mxu0 %v4210
    %7931 = vmatpush1.bf16.msra.mxu0 %v4209
    %7932 = vmatprep.subr.bf16.mxu0 %v4218
    %7933 = vmatpush1.bf16.msra.mxu0 %v4217
    %7934 = vmatprep.mubr.bf16.mxu0 %v7883
    %7935 = vmatmul.mubr.bf16.gmra.mrb[0].mxu0 %v7882
    %v7936 = vpop.f32.mrb[0].mxu0
    %v7937 = vadd.f32 0.0, %v7936
    %v7938 = vpop.f32.mrb[0].mxu0
    %v7939 = vadd.f32 0.0, %v7938
    %v7940 = vpop.f32.mrb[0].mxu0
    %v7941 = vpop.f32.mrb[0].mxu0
    %7942 = vdwg.mxu0
    %7943 = vmatprep.subr.bf16.mxu0 %v4100
    %7944 = vmatpush1.bf16.msra.mxu0 %v4099
    %7945 = vmatprep.subr.bf16.mxu0 %v4108
    %7946 = vmatpush1.bf16.msra.mxu0 %v4107
    %7947 = vmatprep.subr.bf16.mxu0 %v4116
    %7948 = vmatpush1.bf16.msra.mxu0 %v4115
    %7949 = vmatprep.subr.bf16.mxu0 %v4124
    %7950 = vmatpush1.bf16.msra.mxu0 %v4123
    %7951 = vmatprep.subr.bf16.mxu0 %v4132
    %7952 = vmatpush1.bf16.msra.mxu0 %v4131
    %7953 = vmatprep.subr.bf16.mxu0 %v4140
    %7954 = vmatpush1.bf16.msra.mxu0 %v4139
    %7955 = vmatprep.subr.bf16.mxu0 %v4148
    %7956 = vmatpush1.bf16.msra.mxu0 %v4147
    %7957 = vmatprep.subr.bf16.mxu0 %v4156
    %7958 = vmatpush1.bf16.msra.mxu0 %v4155
    %7959 = vmatprep.subr.bf16.mxu0 %v4164
    %7960 = vmatpush1.bf16.msra.mxu0 %v4163
    %7961 = vmatprep.subr.bf16.mxu0 %v4172
    %7962 = vmatpush1.bf16.msra.mxu0 %v4171
    %7963 = vmatprep.subr.bf16.mxu0 %v4180
    %7964 = vmatpush1.bf16.msra.mxu0 %v4179
    %7965 = vmatprep.subr.bf16.mxu0 %v4188
    %7966 = vmatpush1.bf16.msra.mxu0 %v4187
    %7967 = vmatprep.subr.bf16.mxu0 %v4196
    %7968 = vmatpush1.bf16.msra.mxu0 %v4195
    %7969 = vmatprep.subr.bf16.mxu0 %v4204
    %7970 = vmatpush1.bf16.msra.mxu0 %v4203
    %7971 = vmatprep.subr.bf16.mxu0 %v4212
    %7972 = vmatpush1.bf16.msra.mxu0 %v4211
    %7973 = vmatprep.subr.bf16.mxu0 %v4220
    %7974 = vmatpush1.bf16.msra.mxu0 %v4219
    %7975 = vmatprep.mubr.bf16.mxu0 %v7883
    %7976 = vmatmul.mubr.bf16.gmra.mrb[0].mxu0 %v7882
    %v7977 = vpop.f32.mrb[0].mxu0
    %v7978 = vadd.f32 0.0, %v7977
    %v7979 = vpop.f32.mrb[0].mxu0
    %v7980 = vadd.f32 0.0, %v7979
    %v7981 = vpop.f32.mrb[0].mxu0
    %v7982 = vpop.f32.mrb[0].mxu0
    %7983 = vdwg.mxu0
    %7984 = vmatprep.subr.bf16.mxu0 %v4102
    %7985 = vmatpush1.bf16.msra.mxu0 %v4101
    %7986 = vmatprep.subr.bf16.mxu0 %v4110
    %7987 = vmatpush1.bf16.msra.mxu0 %v4109
    %7988 = vmatprep.subr.bf16.mxu0 %v4118
    %7989 = vmatpush1.bf16.msra.mxu0 %v4117
    %7990 = vmatprep.subr.bf16.mxu0 %v4126
    %7991 = vmatpush1.bf16.msra.mxu0 %v4125
    %7992 = vmatprep.subr.bf16.mxu0 %v4134
    %7993 = vmatpush1.bf16.msra.mxu0 %v4133
    %7994 = vmatprep.subr.bf16.mxu0 %v4142
    %7995 = vmatpush1.bf16.msra.mxu0 %v4141
    %7996 = vmatprep.subr.bf16.mxu0 %v4150
    %7997 = vmatpush1.bf16.msra.mxu0 %v4149
    %7998 = vmatprep.subr.bf16.mxu0 %v4158
    %7999 = vmatpush1.bf16.msra.mxu0 %v4157
    %8000 = vmatprep.subr.bf16.mxu0 %v4166
    %8001 = vmatpush1.bf16.msra.mxu0 %v4165
    %8002 = vmatprep.subr.bf16.mxu0 %v4174
    %8003 = vmatpush1.bf16.msra.mxu0 %v4173
    %8004 = vmatprep.subr.bf16.mxu0 %v4182
    %8005 = vmatpush1.bf16.msra.mxu0 %v4181
    %8006 = vmatprep.subr.bf16.mxu0 %v4190
    %8007 = vmatpush1.bf16.msra.mxu0 %v4189
    %8008 = vmatprep.subr.bf16.mxu0 %v4198
    %8009 = vmatpush1.bf16.msra.mxu0 %v4197
    %8010 = vmatprep.subr.bf16.mxu0 %v4206
    %8011 = vmatpush1.bf16.msra.mxu0 %v4205
    %8012 = vmatprep.subr.bf16.mxu0 %v4214
    %8013 = vmatpush1.bf16.msra.mxu0 %v4213
    %8014 = vmatprep.subr.bf16.mxu0 %v4222
    %8015 = vmatpush1.bf16.msra.mxu0 %v4221
    %8016 = vmatprep.mubr.bf16.mxu0 %v7883
    %8017 = vmatmul.mubr.bf16.gmra.mrb[0].mxu0 %v7882
    %v8018 = vpop.f32.mrb[0].mxu0
    %v8019 = vadd.f32 0.0, %v8018
    %v8020 = vpop.f32.mrb[0].mxu0
    %v8021 = vadd.f32 0.0, %v8020
    %v8022 = vpop.f32.mrb[0].mxu0
    %v8023 = vpop.f32.mrb[0].mxu0
    %8024 = vdwg.mxu0
    %8025 = vmatprep.subr.bf16.mxu0 %v4104
    %8026 = vmatpush1.bf16.msra.mxu0 %v4103
    %8027 = vmatprep.subr.bf16.mxu0 %v4112
    %8028 = vmatpush1.bf16.msra.mxu0 %v4111
    %8029 = vmatprep.subr.bf16.mxu0 %v4120
    %8030 = vmatpush1.bf16.msra.mxu0 %v4119
    %8031 = vmatprep.subr.bf16.mxu0 %v4128
    %8032 = vmatpush1.bf16.msra.mxu0 %v4127
    %8033 = vmatprep.subr.bf16.mxu0 %v4136
    %8034 = vmatpush1.bf16.msra.mxu0 %v4135
    %8035 = vmatprep.subr.bf16.mxu0 %v4144
    %8036 = vmatpush1.bf16.msra.mxu0 %v4143
    %8037 = vmatprep.subr.bf16.mxu0 %v4152
    %8038 = vmatpush1.bf16.msra.mxu0 %v4151
    %8039 = vmatprep.subr.bf16.mxu0 %v4160
    %8040 = vmatpush1.bf16.msra.mxu0 %v4159
    %8041 = vmatprep.subr.bf16.mxu0 %v4168
    %8042 = vmatpush1.bf16.msra.mxu0 %v4167
    %8043 = vmatprep.subr.bf16.mxu0 %v4176
    %8044 = vmatpush1.bf16.msra.mxu0 %v4175
    %8045 = vmatprep.subr.bf16.mxu0 %v4184
    %8046 = vmatpush1.bf16.msra.mxu0 %v4183
    %8047 = vmatprep.subr.bf16.mxu0 %v4192
    %8048 = vmatpush1.bf16.msra.mxu0 %v4191
    %8049 = vmatprep.subr.bf16.mxu0 %v4200
    %8050 = vmatpush1.bf16.msra.mxu0 %v4199
    %8051 = vmatprep.subr.bf16.mxu0 %v4208
    %8052 = vmatpush1.bf16.msra.mxu0 %v4207
    %8053 = vmatprep.subr.bf16.mxu0 %v4216
    %8054 = vmatpush1.bf16.msra.mxu0 %v4215
    %8055 = vmatprep.subr.bf16.mxu0 %v4224
    %8056 = vmatpush1.bf16.msra.mxu0 %v4223
    %8057 = vmatprep.mubr.bf16.mxu0 %v7883
    %8058 = vmatmul.mubr.bf16.gmra.mrb[0].mxu0 %v7882
    %v8059 = vpop.f32.mrb[0].mxu0
    %v8060 = vadd.f32 0.0, %v8059
    %v8061 = vpop.f32.mrb[0].mxu0
    %v8062 = vadd.f32 0.0, %v8061
    %v8063 = vpop.f32.mrb[0].mxu0
    %v8064 = vpop.f32.mrb[0].mxu0
    %8065 = vdwg.mxu0
    %v8074 = vrot.slane %v7937, 2
    %v8075 = vrot.slane %v7939, 2
    %v8076 = vrot.slane %v7978, 2
    %v8077 = vrot.slane %v7980, 2
    %v8078 = vrot.slane %v8019, 2
    %v8079 = vrot.slane %v8021, 2
    %v8080 = vrot.slane %v8060, 2
    %v8081 = vrot.slane %v8062, 2
    %v8090 = vadd.f32 %v7894, %v8074
    %v8091 = vadd.f32 %v7895, %v8075
    %v8092 = vadd.f32 %v7896, %v8076
    %v8093 = vadd.f32 %v7897, %v8077
    %v8094 = vadd.f32 %v7898, %v8078
    %v8095 = vadd.f32 %v7899, %v8079
    %v8096 = vadd.f32 %v7900, %v8080
    %v8097 = vadd.f32 %v7901, %v8081
    %v8098 = vld [vmem:[#allocation2 + $0x40] sm:$0x3]
    %v8099 = vld [vmem:[#allocation2 + $0x48] sm:$0x3]
    %v8100 = vld [vmem:[#allocation2 + $0x50] sm:$0x3]
    %v8101 = vld [vmem:[#allocation2 + $0x58] sm:$0x3]
    %v8102 = vld [vmem:[#allocation2 + $0x60] sm:$0x3]
    %v8103 = vld [vmem:[#allocation2 + $0x68] sm:$0x3]
    %v8104 = vld [vmem:[#allocation2 + $0x70] sm:$0x3]
    %v8105 = vld [vmem:[#allocation2 + $0x78] sm:$0x3]
    %v8106 = vrot.slane %v7882, 1
    %v8107 = vrot.slane %v7883, 1
    %8110 = vmatprep.subr.bf16.mxu0 %v4226
    %8111 = vmatpush1.bf16.msra.mxu0 %v4225
    %8112 = vmatprep.subr.bf16.mxu0 %v4234
    %8113 = vmatpush1.bf16.msra.mxu0 %v4233
    %8114 = vmatprep.subr.bf16.mxu0 %v4242
    %8115 = vmatpush1.bf16.msra.mxu0 %v4241
    %8116 = vmatprep.subr.bf16.mxu0 %v4250
    %8117 = vmatpush1.bf16.msra.mxu0 %v4249
    %8118 = vmatprep.subr.bf16.mxu0 %v4258
    %8119 = vmatpush1.bf16.msra.mxu0 %v4257
    %8120 = vmatprep.subr.bf16.mxu0 %v4266
    %8121 = vmatpush1.bf16.msra.mxu0 %v4265
    %8122 = vmatprep.subr.bf16.mxu0 %v4274
    %8123 = vmatpush1.bf16.msra.mxu0 %v4273
    %8124 = vmatprep.subr.bf16.mxu0 %v4282
    %8125 = vmatpush1.bf16.msra.mxu0 %v4281
    %8126 = vmatprep.subr.bf16.mxu0 %v4290
    %8127 = vmatpush1.bf16.msra.mxu0 %v4289
    %8128 = vmatprep.subr.bf16.mxu0 %v4298
    %8129 = vmatpush1.bf16.msra.mxu0 %v4297
    %8130 = vmatprep.subr.bf16.mxu0 %v4306
    %8131 = vmatpush1.bf16.msra.mxu0 %v4305
    %8132 = vmatprep.subr.bf16.mxu0 %v4314
    %8133 = vmatpush1.bf16.msra.mxu0 %v4313
    %8134 = vmatprep.subr.bf16.mxu0 %v4322
    %8135 = vmatpush1.bf16.msra.mxu0 %v4321
    %8136 = vmatprep.subr.bf16.mxu0 %v4330
    %8137 = vmatpush1.bf16.msra.mxu0 %v4329
    %8138 = vmatprep.subr.bf16.mxu0 %v4338
    %8139 = vmatpush1.bf16.msra.mxu0 %v4337
    %8140 = vmatprep.subr.bf16.mxu0 %v4346
    %8141 = vmatpush1.bf16.msra.mxu0 %v4345
    %8142 = vmatprep.mubr.bf16.mxu0 %v8107
    %8143 = vmatmul.mubr.bf16.gmra.mrb[0].mxu0 %v8106
    %v8144 = vpop.f32.mrb[0].mxu0
    %v8145 = vadd.f32 0.0, %v8144
    %v8146 = vpop.f32.mrb[0].mxu0
    %v8147 = vadd.f32 0.0, %v8146
    %v8148 = vpop.f32.mrb[0].mxu0
    %v8149 = vpop.f32.mrb[0].mxu0
    %8150 = vdwg.mxu0
    %8151 = vmatprep.subr.bf16.mxu0 %v4228
    %8152 = vmatpush1.bf16.msra.mxu0 %v4227
    %8153 = vmatprep.subr.bf16.mxu0 %v4236
    %8154 = vmatpush1.bf16.msra.mxu0 %v4235
    %8155 = vmatprep.subr.bf16.mxu0 %v4244
    %8156 = vmatpush1.bf16.msra.mxu0 %v4243
    %8157 = vmatprep.subr.bf16.mxu0 %v4252
    %8158 = vmatpush1.bf16.msra.mxu0 %v4251
    %8159 = vmatprep.subr.bf16.mxu0 %v4260
    %8160 = vmatpush1.bf16.msra.mxu0 %v4259
    %8161 = vmatprep.subr.bf16.mxu0 %v4268
    %8162 = vmatpush1.bf16.msra.mxu0 %v4267
    %8163 = vmatprep.subr.bf16.mxu0 %v4276
    %8164 = vmatpush1.bf16.msra.mxu0 %v4275
    %8165 = vmatprep.subr.bf16.mxu0 %v4284
    %8166 = vmatpush1.bf16.msra.mxu0 %v4283
    %8167 = vmatprep.subr.bf16.mxu0 %v4292
    %8168 = vmatpush1.bf16.msra.mxu0 %v4291
    %8169 = vmatprep.subr.bf16.mxu0 %v4300
    %8170 = vmatpush1.bf16.msra.mxu0 %v4299
    %8171 = vmatprep.subr.bf16.mxu0 %v4308
    %8172 = vmatpush1.bf16.msra.mxu0 %v4307
    %8173 = vmatprep.subr.bf16.mxu0 %v4316
    %8174 = vmatpush1.bf16.msra.mxu0 %v4315
    %8175 = vmatprep.subr.bf16.mxu0 %v4324
    %8176 = vmatpush1.bf16.msra.mxu0 %v4323
    %8177 = vmatprep.subr.bf16.mxu0 %v4332
    %8178 = vmatpush1.bf16.msra.mxu0 %v4331
    %8179 = vmatprep.subr.bf16.mxu0 %v4340
    %8180 = vmatpush1.bf16.msra.mxu0 %v4339
    %8181 = vmatprep.subr.bf16.mxu0 %v4348
    %8182 = vmatpush1.bf16.msra.mxu0 %v4347
    %8183 = vmatprep.mubr.bf16.mxu0 %v8107
    %8184 = vmatmul.mubr.bf16.gmra.mrb[0].mxu0 %v8106
    %v8185 = vpop.f32.mrb[0].mxu0
    %v8186 = vadd.f32 0.0, %v8185
    %v8187 = vpop.f32.mrb[0].mxu0
    %v8188 = vadd.f32 0.0, %v8187
    %v8189 = vpop.f32.mrb[0].mxu0
    %v8190 = vpop.f32.mrb[0].mxu0
    %8191 = vdwg.mxu0
    %8192 = vmatprep.subr.bf16.mxu0 %v4230
    %8193 = vmatpush1.bf16.msra.mxu0 %v4229
    %8194 = vmatprep.subr.bf16.mxu0 %v4238
    %8195 = vmatpush1.bf16.msra.mxu0 %v4237
    %8196 = vmatprep.subr.bf16.mxu0 %v4246
    %8197 = vmatpush1.bf16.msra.mxu0 %v4245
    %8198 = vmatprep.subr.bf16.mxu0 %v4254
    %8199 = vmatpush1.bf16.msra.mxu0 %v4253
    %8200 = vmatprep.subr.bf16.mxu0 %v4262
    %8201 = vmatpush1.bf16.msra.mxu0 %v4261
    %8202 = vmatprep.subr.bf16.mxu0 %v4270
    %8203 = vmatpush1.bf16.msra.mxu0 %v4269
    %8204 = vmatprep.subr.bf16.mxu0 %v4278
    %8205 = vmatpush1.bf16.msra.mxu0 %v4277
    %8206 = vmatprep.subr.bf16.mxu0 %v4286
    %8207 = vmatpush1.bf16.msra.mxu0 %v4285
    %8208 = vmatprep.subr.bf16.mxu0 %v4294
    %8209 = vmatpush1.bf16.msra.mxu0 %v4293
    %8210 = vmatprep.subr.bf16.mxu0 %v4302
    %8211 = vmatpush1.bf16.msra.mxu0 %v4301
    %8212 = vmatprep.subr.bf16.mxu0 %v4310
    %8213 = vmatpush1.bf16.msra.mxu0 %v4309
    %8214 = vmatprep.subr.bf16.mxu0 %v4318
    %8215 = vmatpush1.bf16.msra.mxu0 %v4317
    %8216 = vmatprep.subr.bf16.mxu0 %v4326
    %8217 = vmatpush1.bf16.msra.mxu0 %v4325
    %8218 = vmatprep.subr.bf16.mxu0 %v4334
    %8219 = vmatpush1.bf16.msra.mxu0 %v4333
    %8220 = vmatprep.subr.bf16.mxu0 %v4342
    %8221 = vmatpush1.bf16.msra.mxu0 %v4341
    %8222 = vmatprep.subr.bf16.mxu0 %v4350
    %8223 = vmatpush1.bf16.msra.mxu0 %v4349
    %8224 = vmatprep.mubr.bf16.mxu0 %v8107
    %8225 = vmatmul.mubr.bf16.gmra.mrb[0].mxu0 %v8106
    %v8226 = vpop.f32.mrb[0].mxu0
    %v8227 = vadd.f32 0.0, %v8226
    %v8228 = vpop.f32.mrb[0].mxu0
    %v8229 = vadd.f32 0.0, %v8228
    %v8230 = vpop.f32.mrb[0].mxu0
    %v8231 = vpop.f32.mrb[0].mxu0
    %8232 = vdwg.mxu0
    %8233 = vmatprep.subr.bf16.mxu0 %v4232
    %8234 = vmatpush1.bf16.msra.mxu0 %v4231
    %8235 = vmatprep.subr.bf16.mxu0 %v4240
    %8236 = vmatpush1.bf16.msra.mxu0 %v4239
    %8237 = vmatprep.subr.bf16.mxu0 %v4248
    %8238 = vmatpush1.bf16.msra.mxu0 %v4247
    %8239 = vmatprep.subr.bf16.mxu0 %v4256
    %8240 = vmatpush1.bf16.msra.mxu0 %v4255
    %8241 = vmatprep.subr.bf16.mxu0 %v4264
    %8242 = vmatpush1.bf16.msra.mxu0 %v4263
    %8243 = vmatprep.subr.bf16.mxu0 %v4272
    %8244 = vmatpush1.bf16.msra.mxu0 %v4271
    %8245 = vmatprep.subr.bf16.mxu0 %v4280
    %8246 = vmatpush1.bf16.msra.mxu0 %v4279
    %8247 = vmatprep.subr.bf16.mxu0 %v4288
    %8248 = vmatpush1.bf16.msra.mxu0 %v4287
    %8249 = vmatprep.subr.bf16.mxu0 %v4296
    %8250 = vmatpush1.bf16.msra.mxu0 %v4295
    %8251 = vmatprep.subr.bf16.mxu0 %v4304
    %8252 = vmatpush1.bf16.msra.mxu0 %v4303
    %8253 = vmatprep.subr.bf16.mxu0 %v4312
    %8254 = vmatpush1.bf16.msra.mxu0 %v4311
    %8255 = vmatprep.subr.bf16.mxu0 %v4320
    %8256 = vmatpush1.bf16.msra.mxu0 %v4319
    %8257 = vmatprep.subr.bf16.mxu0 %v4328
    %8258 = vmatpush1.bf16.msra.mxu0 %v4327
    %8259 = vmatprep.subr.bf16.mxu0 %v4336
    %8260 = vmatpush1.bf16.msra.mxu0 %v4335
    %8261 = vmatprep.subr.bf16.mxu0 %v4344
    %8262 = vmatpush1.bf16.msra.mxu0 %v4343
    %8263 = vmatprep.subr.bf16.mxu0 %v4352
    %8264 = vmatpush1.bf16.msra.mxu0 %v4351
    %8265 = vmatprep.mubr.bf16.mxu0 %v8107
    %8266 = vmatmul.mubr.bf16.gmra.mrb[0].mxu0 %v8106
    %v8267 = vpop.f32.mrb[0].mxu0
    %v8268 = vadd.f32 0.0, %v8267
    %v8269 = vpop.f32.mrb[0].mxu0
    %v8270 = vadd.f32 0.0, %v8269
    %v8271 = vpop.f32.mrb[0].mxu0
    %v8272 = vpop.f32.mrb[0].mxu0
    %8273 = vdwg.mxu0
    %v8274 = vadd.f32 %v8098, %v8145
    %v8275 = vadd.f32 %v8099, %v8147
    %v8276 = vadd.f32 %v8100, %v8186
    %v8277 = vadd.f32 %v8101, %v8188
    %v8278 = vadd.f32 %v8102, %v8227
    %v8279 = vadd.f32 %v8103, %v8229
    %v8280 = vadd.f32 %v8104, %v8268
    %v8281 = vadd.f32 %v8105, %v8270
    %v8290 = vrot.slane %v8090, 6
    %v8291 = vrot.slane %v8091, 6
    %v8292 = vrot.slane %v8092, 6
    %v8293 = vrot.slane %v8093, 6
    %v8294 = vrot.slane %v8094, 6
    %v8295 = vrot.slane %v8095, 6
    %v8296 = vrot.slane %v8096, 6
    %v8297 = vrot.slane %v8097, 6
    %v8314 = vrot.slane %v8274, 6
    %v8315 = vrot.slane %v8275, 6
    %v8316 = vrot.slane %v8276, 6
    %v8317 = vrot.slane %v8277, 6
    %v8318 = vrot.slane %v8278, 6
    %v8319 = vrot.slane %v8279, 6
    %v8320 = vrot.slane %v8280, 6
    %v8321 = vrot.slane %v8281, 6
    %v8330 = vsel %vm4761, %v8290, %v8314
    %v8331 = vsel %vm4761, %v8291, %v8315
    %v8332 = vsel %vm4761, %v8292, %v8316
    %v8333 = vsel %vm4761, %v8293, %v8317
    %v8334 = vsel %vm4761, %v8294, %v8318
    %v8335 = vsel %vm4761, %v8295, %v8319
    %v8336 = vsel %vm4761, %v8296, %v8320
    %v8337 = vsel %vm4761, %v8297, %v8321
    %v8338 = vxor.u32 %v8330, 2147483648
    %v8339 = vxor.u32 %v8331, 2147483648
    %v8340 = vmul.f32 %v8338, 1.442695
    %v8341 = vpow.pop %v8340
    %v8342 = vmul.f32 %v8339, 1.442695
    %v8343 = vpow.pop %v8342
    %v8344 = vadd.f32 %v8341, 1.0
    %v8345 = vadd.f32 %v8343, 1.0
    %v8346 = vrcp.pop %v8344
    %v8347 = vmul.f32 1.0, %v8346
    %v8348 = vrcp.pop %v8345
    %v8349 = vmul.f32 1.0, %v8348
    %v8350 = vxor.u32 %v8332, 2147483648
    %v8351 = vxor.u32 %v8333, 2147483648
    %v8352 = vmul.f32 %v8350, 1.442695
    %v8353 = vpow.pop %v8352
    %v8354 = vmul.f32 %v8351, 1.442695
    %v8355 = vpow.pop %v8354
    %v8356 = vadd.f32 %v8353, 1.0
    %v8357 = vadd.f32 %v8355, 1.0
    %v8358 = vrcp.pop %v8356
    %v8359 = vmul.f32 1.0, %v8358
    %v8360 = vrcp.pop %v8357
    %v8361 = vmul.f32 1.0, %v8360
    %v8362 = vtanh.pop %v8334
    %v8363 = vtanh.pop %v8335
    %v8364 = vxor.u32 %v8336, 2147483648
    %v8365 = vxor.u32 %v8337, 2147483648
    %v8366 = vmul.f32 %v8364, 1.442695
    %v8367 = vpow.pop %v8366
    %v8368 = vmul.f32 %v8365, 1.442695
    %v8369 = vpow.pop %v8368
    %v8370 = vadd.f32 %v8367, 1.0
    %v8371 = vadd.f32 %v8369, 1.0
    %v8372 = vrcp.pop %v8370
    %v8373 = vmul.f32 1.0, %v8372
    %v8374 = vrcp.pop %v8371
    %v8375 = vmul.f32 1.0, %v8374
    %v8376 = vmul.f32 %v8359, %v7876
    %v8377 = vmul.f32 %v8361, %v7877
    %v8378 = vmul.f32 %v8347, %v8362
    %v8379 = vmul.f32 %v8349, %v8363
    %v8380 = vadd.f32 %v8376, %v8378
    %v8381 = vadd.f32 %v8377, %v8379
    %v8382 = vtanh.pop %v8380
    %v8383 = vtanh.pop %v8381
    %v8384 = vmul.f32 %v8373, %v8382
    %v8385 = vmul.f32 %v8375, %v8383
    %v8386 = vpack.c.bf16 %v8384, %v8384
    %v8387 = vpack.c.bf16 %v8385, %v8385
    %v8390 = vrot.slane %v8386, 1
    %v8391 = vrot.slane %v8387, 1
    %8394 = vst [vmem:[#allocation3] sm:$0x80] %v8390
    %8395 = vst [vmem:[#allocation3 + $0x8] sm:$0x80] %v8391
    %8396 = vst [vmem:[#allocation4] sm:$0x1] %v8390
    %8397 = vst [vmem:[#allocation4 + $0x8] sm:$0x1] %v8391
    %s8398 = smul.u32 %s4091, 1
    %s8399 = sshll.u32 %s8398, 4
    %8400 = dma.done %s159, %s8399
    %s8401 = sshll.u32 %s8398, 4
    %8402 = dma.done %s171, %s8401
    %s8403 = smul.u32 4, 16
    %s8404 = smul.u32 %s8403, 1
    %s8405 = sshll.u32 %s8404, 4
    %8406 = dma.done %s183, %s8405
    %v8407 = vld [vmem:[#allocation3] sm:$0xff]
    %v8408 = vld [vmem:[#allocation3 + $0x8] sm:$0xff]
    %v8409 = vld [vmem:[#allocation7] sm:$0xff]
    %v8410 = vld [vmem:[#allocation7 + $0x8] sm:$0xff]
    %v8411 = vld [vmem:[#allocation7 + $0x10] sm:$0xff]
    %v8412 = vld [vmem:[#allocation7 + $0x18] sm:$0xff]
    %v8413 = vld [vmem:[#allocation7 + $0x20] sm:$0xff]
    %v8414 = vld [vmem:[#allocation7 + $0x28] sm:$0xff]
    %v8415 = vld [vmem:[#allocation7 + $0x30] sm:$0xff]
    %v8416 = vld [vmem:[#allocation7 + $0x38] sm:$0xff]
    %v8417 = vld [vmem:[#allocation7 + $0x40] sm:$0xff]
    %v8418 = vld [vmem:[#allocation7 + $0x48] sm:$0xff]
    %v8419 = vld [vmem:[#allocation7 + $0x50] sm:$0xff]
    %v8420 = vld [vmem:[#allocation7 + $0x58] sm:$0xff]
    %v8421 = vld [vmem:[#allocation7 + $0x60] sm:$0xff]
    %v8422 = vld [vmem:[#allocation7 + $0x68] sm:$0xff]
    %v8423 = vld [vmem:[#allocation7 + $0x70] sm:$0xff]
    %v8424 = vld [vmem:[#allocation7 + $0x78] sm:$0xff]
    %v8425 = vld [vmem:[#allocation4] sm:$0xff]
    %v8426 = vld [vmem:[#allocation4 + $0x8] sm:$0xff]
    %v8427 = vld [vmem:[#allocation8] sm:$0xff]
    %v8428 = vld [vmem:[#allocation8 + $0x8] sm:$0xff]
    %v8429 = vld [vmem:[#allocation8 + $0x10] sm:$0xff]
    %v8430 = vld [vmem:[#allocation8 + $0x18] sm:$0xff]
    %v8431 = vld [vmem:[#allocation8 + $0x20] sm:$0xff]
    %v8432 = vld [vmem:[#allocation8 + $0x28] sm:$0xff]
    %v8433 = vld [vmem:[#allocation8 + $0x30] sm:$0xff]
    %v8434 = vld [vmem:[#allocation8 + $0x38] sm:$0xff]
    %v8435 = vld [vmem:[#allocation8 + $0x40] sm:$0xff]
    %v8436 = vld [vmem:[#allocation8 + $0x48] sm:$0xff]
    %v8437 = vld [vmem:[#allocation8 + $0x50] sm:$0xff]
    %v8438 = vld [vmem:[#allocation8 + $0x58] sm:$0xff]
    %v8439 = vld [vmem:[#allocation8 + $0x60] sm:$0xff]
    %v8440 = vld [vmem:[#allocation8 + $0x68] sm:$0xff]
    %v8441 = vld [vmem:[#allocation8 + $0x70] sm:$0xff]
    %v8442 = vld [vmem:[#allocation8 + $0x78] sm:$0xff]
    %8443 = vmatprep.subr.bf16.mxu0 0
    %8444 = vmatpush1.bf16.msra.mxu0 %v8427
    %8445 = vmatprep.subr.bf16.mxu0 0
    %8446 = vmatpush1.bf16.msra.mxu0 %v8428
    %8447 = vmatprep.subr.bf16.mxu0 0
    %8448 = vmatpush1.bf16.msra.mxu0 %v8429
    %8449 = vmatprep.subr.bf16.mxu0 0
    %8450 = vmatpush1.bf16.msra.mxu0 %v8430
    %8451 = vmatprep.subr.bf16.mxu0 0
    %8452 = vmatpush1.bf16.msra.mxu0 %v8431
    %8453 = vmatprep.subr.bf16.mxu0 0
    %8454 = vmatpush1.bf16.msra.mxu0 %v8432
    %8455 = vmatprep.subr.bf16.mxu0 0
    %8456 = vmatpush1.bf16.msra.mxu0 %v8433
    %8457 = vmatprep.subr.bf16.mxu0 0
    %8458 = vmatpush1.bf16.msra.mxu0 %v8434
    %8459 = vmatprep.subr.bf16.mxu0 0
    %8460 = vmatpush1.bf16.msra.mxu0 %v8435
    %8461 = vmatprep.subr.bf16.mxu0 0
    %8462 = vmatpush1.bf16.msra.mxu0 %v8436
    %8463 = vmatprep.subr.bf16.mxu0 0
    %8464 = vmatpush1.bf16.msra.mxu0 %v8437
    %8465 = vmatprep.subr.bf16.mxu0 0
    %8466 = vmatpush1.bf16.msra.mxu0 %v8438
    %8467 = vmatprep.subr.bf16.mxu0 0
    %8468 = vmatpush1.bf16.msra.mxu0 %v8439
    %8469 = vmatprep.subr.bf16.mxu0 0
    %8470 = vmatpush1.bf16.msra.mxu0 %v8440
    %8471 = vmatprep.subr.bf16.mxu0 0
    %8472 = vmatpush1.bf16.msra.mxu0 %v8441
    %8473 = vmatprep.subr.bf16.mxu0 0
    %8474 = vmatpush1.bf16.msra.mxu0 %v8442
    %8475 = vmatprep.mubr.bf16.mxu0 %v8426
    %8476 = vmatmul.mubr.bf16.gmra.mrb[0].mxu0 %v8425
    %v8477 = vpop.f32.mrb[0].mxu0
    %v8478 = vadd.f32 0.0, %v8477
    %v8479 = vpop.f32.mrb[0].mxu0
    %v8480 = vpop.f32.mrb[0].mxu0
    %v8481 = vadd.f32 0.0, %v8480
    %v8482 = vpop.f32.mrb[0].mxu0
    %8483 = vdwg.mxu0
    %8484 = vmatprep.subr.bf16.mxu0 0
    %8485 = vmatpush1.bf16.msra.mxu0 %v8409
    %8486 = vmatprep.subr.bf16.mxu0 0
    %8487 = vmatpush1.bf16.msra.mxu0 %v8410
    %8488 = vmatprep.subr.bf16.mxu0 0
    %8489 = vmatpush1.bf16.msra.mxu0 %v8411
    %8490 = vmatprep.subr.bf16.mxu0 0
    %8491 = vmatpush1.bf16.msra.mxu0 %v8412
    %8492 = vmatprep.subr.bf16.mxu0 0
    %8493 = vmatpush1.bf16.msra.mxu0 %v8413
    %8494 = vmatprep.subr.bf16.mxu0 0
    %8495 = vmatpush1.bf16.msra.mxu0 %v8414
    %8496 = vmatprep.subr.bf16.mxu0 0
    %8497 = vmatpush1.bf16.msra.mxu0 %v8415
    %8498 = vmatprep.subr.bf16.mxu0 0
    %8499 = vmatpush1.bf16.msra.mxu0 %v8416
    %8500 = vmatprep.subr.bf16.mxu0 0
    %8501 = vmatpush1.bf16.msra.mxu0 %v8417
    %8502 = vmatprep.subr.bf16.mxu0 0
    %8503 = vmatpush1.bf16.msra.mxu0 %v8418
    %8504 = vmatprep.subr.bf16.mxu0 0
    %8505 = vmatpush1.bf16.msra.mxu0 %v8419
    %8506 = vmatprep.subr.bf16.mxu0 0
    %8507 = vmatpush1.bf16.msra.mxu0 %v8420
    %8508 = vmatprep.subr.bf16.mxu0 0
    %8509 = vmatpush1.bf16.msra.mxu0 %v8421
    %8510 = vmatprep.subr.bf16.mxu0 0
    %8511 = vmatpush1.bf16.msra.mxu0 %v8422
    %8512 = vmatprep.subr.bf16.mxu0 0
    %8513 = vmatpush1.bf16.msra.mxu0 %v8423
    %8514 = vmatprep.subr.bf16.mxu0 0
    %8515 = vmatpush1.bf16.msra.mxu0 %v8424
    %8516 = vmatprep.mubr.bf16.mxu0 %v8408
    %8517 = vmatmul.mubr.bf16.gmra.mrb[0].mxu0 %v8407
    %v8518 = vpop.f32.mrb[0].mxu0
    %v8519 = vadd.f32 %v8478, %v8518
    %v8520 = vpop.f32.mrb[0].mxu0
    %v8521 = vpop.f32.mrb[0].mxu0
    %v8522 = vadd.f32 %v8481, %v8521
    %v8523 = vpop.f32.mrb[0].mxu0
    %8524 = vdwg.mxu0
    %v8525 = vld [vmem:[#allocation17] sm:$0x1]
    %v8527 = vlaneseq
    %v8528 = vshrl.u32 %v8527, 7
    %v8529 = vsub.s32 0, %v8528
    %v8530 = vrot.slane %v8525, %v8529
    %v8532 = vadd.f32 %v8519, %v8530
    %v8533 = vadd.f32 %v8522, %v8530
    %v8534 = vmax.f32 %v8532, 0.0
    %v8535 = vmax.f32 %v8533, 0.0
    %v8536 = vpack.c.bf16 %v8535, %v8534
    %v8537 = vld [vmem:[#allocation9] sm:$0xff]
    %v8538 = vld [vmem:[#allocation9 + $0x8] sm:$0xff]
    %v8539 = vld [vmem:[#allocation9 + $0x10] sm:$0xff]
    %v8540 = vld [vmem:[#allocation9 + $0x18] sm:$0xff]
    %v8541 = vld [vmem:[#allocation9 + $0x20] sm:$0xff]
    %v8542 = vld [vmem:[#allocation9 + $0x28] sm:$0xff]
    %v8543 = vld [vmem:[#allocation9 + $0x30] sm:$0xff]
    %v8544 = vld [vmem:[#allocation9 + $0x38] sm:$0xff]
    %v8545 = vld [vmem:[#allocation19] sm:$0x1]
    %v8547 = vlaneseq
    %v8548 = vshrl.u32 %v8547, 7
    %v8549 = vsub.s32 0, %v8548
    %v8550 = vrot.slane %v8545, %v8549
    %8552 = vmatprep.subr.bf16.mxu0 0
    %8553 = vmatpush1.bf16.msra.mxu0 %v8537
    %8554 = vmatprep.subr.bf16.mxu0 0
    %8555 = vmatpush1.bf16.msra.mxu0 %v8538
    %8556 = vmatprep.subr.bf16.mxu0 0
    %8557 = vmatpush1.bf16.msra.mxu0 %v8539
    %8558 = vmatprep.subr.bf16.mxu0 0
    %8559 = vmatpush1.bf16.msra.mxu0 %v8540
    %8560 = vmatprep.subr.bf16.mxu0 0
    %8561 = vmatpush1.bf16.msra.mxu0 %v8541
    %8562 = vmatprep.subr.bf16.mxu0 0
    %8563 = vmatpush1.bf16.msra.mxu0 %v8542
    %8564 = vmatprep.subr.bf16.mxu0 0
    %8565 = vmatpush1.bf16.msra.mxu0 %v8543
    %8566 = vmatprep.subr.bf16.mxu0 0
    %8567 = vmatpush1.bf16.msra.mxu0 %v8544
    %8568 = vmatprep.subr.bf16.mxu0 0
    %8569 = vmatpush1.bf16.msra.mxu0 0
    %8570 = vmatprep.subr.bf16.mxu0 0
    %8571 = vmatpush1.bf16.msra.mxu0 0
    %8572 = vmatprep.subr.bf16.mxu0 0
    %8573 = vmatpush1.bf16.msra.mxu0 0
    %8574 = vmatprep.subr.bf16.mxu0 0
    %8575 = vmatpush1.bf16.msra.mxu0 0
    %8576 = vmatprep.subr.bf16.mxu0 0
    %8577 = vmatpush1.bf16.msra.mxu0 0
    %8578 = vmatprep.subr.bf16.mxu0 0
    %8579 = vmatpush1.bf16.msra.mxu0 0
    %8580 = vmatprep.subr.bf16.mxu0 0
    %8581 = vmatpush1.bf16.msra.mxu0 0
    %8582 = vmatprep.subr.bf16.mxu0 0
    %8583 = vmatpush1.bf16.msra.mxu0 0
    %8584 = vmatprep.mubr.bf16.mxu0 0
    %8585 = vmatmul.mubr.bf16.gmra.mrb[0].mxu0 %v8536
    %v8586 = vpop.f32.mrb[0].mxu0
    %v8587 = vadd.f32 %v8550, %v8586
    %v8588 = vpop.f32.mrb[0].mxu0
    %v8589 = vpop.f32.mrb[0].mxu0
    %v8590 = vadd.f32 %v8550, %v8589
    %v8591 = vpop.f32.mrb[0].mxu0
    %8592 = vdwg.mxu0
    %8593 = vst [vmem:[#allocation20] sm:$0xff] %v8587
    %8594 = vst [vmem:[#allocation20 + $0x8] sm:$0xff] %v8590
    // Predicated region
    $region54: #{tpu_custom_call.1} parent=1 // pred_check
      _
    $region55: #{tpu_custom_call.1} parent=1 // pred_check_branch
      %8596 = sbr.rel (0) target = $region57
    $region56: #{tpu_custom_call.1} parent=1 // pred_region
      %s8598 = ssub.s32 256, 256
      %8599 = vsyncadd [#allocation13], %s8598
      %s8600 = sshll.u32 [#allocation20], 4
      %s8601 = int_to_ptr.vmem [resolvable:$true] %s8600
      %8606 = dma.vmem_to_hbm [thread:$0]  %s8601, 256, %s10, [#allocation13], 128, 128, 8
    $region57: #{tpu_custom_call.1} parent=1 // pred_fallthru
      _
    // Predicated region
    $region58: #{tpu_custom_call.1} parent=1 // pred_check
      _
    $region59: #{tpu_custom_call.1} parent=1 // pred_check_branch
      %8608 = sbr.rel (0) target = $region61
    $region60: #{tpu_custom_call.1} parent=1 // pred_region
      %8609 = dma.done [#allocation13], 256
    $region61: #{tpu_custom_call.1} parent=1 // pred_fallthru
      _
    %8610 = vsyncpa [#allocation12], 1
    %8611 = vsyncpa [#allocation15], 1
    %8612 = vsyncpa [#allocation18], 1
    %8613 = vsyncpa [#allocation13], 1
  %8614 = vsyncmov [#allocation10]
  %s8615 = vpop.sfrf %8614
  %p8616 = scmp.eq.s32.totalorder %s8615, 0
  %p8617 = pneg %p8616
  %8619 = shalt.err (%p8617)
  %s8620 = scalar_lea.sflag [#allocation10], 1
  %8621 = vsyncmov %s8620
  %s8622 = vpop.sfrf %8621
  %p8623 = scmp.eq.s32.totalorder %s8622, 0
  %p8624 = pneg %p8623
  %8626 = shalt.err (%p8624)
  %s8627 = scalar_lea.sflag [#allocation10], 2
  %8628 = vsyncmov %s8627
  %s8629 = vpop.sfrf %8628
  %p8630 = scmp.eq.s32.totalorder %s8629, 0
  %p8631 = pneg %p8630
  %8633 = shalt.err (%p8631)
  %s8634 = scalar_lea.sflag [#allocation10], 3
  %8635 = vsyncmov %s8634
  %s8636 = vpop.sfrf %8635
  %p8637 = scmp.eq.s32.totalorder %s8636, 0
  %p8638 = pneg %p8637
  %8640 = shalt.err (%p8638)
  %s8641 = scalar_lea.sflag [#allocation10], 4
  %8642 = vsyncmov %s8641
  %s8643 = vpop.sfrf %8642
  %p8644 = scmp.eq.s32.totalorder %s8643, 0
  %p8645 = pneg %p8644
  %8647 = shalt.err (%p8645)

</llo_original>
